<compile_context>
chip_gen: v7x
topology: tpu7x:2x2x1
jax: 0.10.0
libtpu: 0.0.40
codegen_flags: <defaults>
</compile_context>

<pallas_src>
import functools

import jax
import jax.numpy as jnp
import numpy as np
from jax.experimental import pallas as pl
from jax.experimental.pallas import tpu as pltpu


def _round_up(v, m):
    return (v + m - 1) // m * m


# ----------------------------- fused Pallas kernel -----------------------------

def _detnet_kernel(x_ref, w1_ref, b1_ref, w3_ref, b2_ref, w2_ref, b3_ref,
                   wf1_ref, bf1_ref, wf2_ref, bf2_ref,
                   o_ref, hp_ref, acc_ref, *, H, W, Ci, Cm, Co):
    """One batch element per grid step:
    conv1x1+BN+ReLU -> dilated(2) conv3x3+BN+ReLU -> conv1x1+BN -> SE gate
    -> identity residual -> ReLU."""
    DIL = 2                       # dilation (== 'same' padding) of the 3x3 conv
    W_pad = hp_ref.shape[1]       # W+4 rounded up to a multiple of 8

    # --- stage 1: 1x1 conv (BN1 scale pre-folded into w1) + shift + ReLU ---
    # Short-lived bf16 view of x; the fp32 residual is re-read at the end instead of
    # being held live across all three stages (reduces spill pressure).
    xb = x_ref[0].reshape(H * W, Ci).astype(jnp.bfloat16)
    h1 = jnp.dot(xb, w1_ref[...], preferred_element_type=jnp.float32)
    h1 = jnp.maximum(h1 + b1_ref[...], 0.0)                             # (H*W, Cm) fp32

    # --- stage 2: dilated 3x3 'same' conv: padded VMEM scratch + 9 accumulating matmuls
    # Zero ONLY the halo border (interior is fully overwritten every step; do not gate
    # on program_id -- scratch is per TensorCore under a parallel batch axis).
    hp_ref[0:DIL, :, :] = jnp.zeros((DIL, W_pad, Cm), jnp.bfloat16)
    hp_ref[DIL + H:DIL + H + DIL, :, :] = jnp.zeros((DIL, W_pad, Cm), jnp.bfloat16)
    hp_ref[DIL:DIL + H, 0:DIL, :] = jnp.zeros((H, DIL, Cm), jnp.bfloat16)
    hp_ref[DIL:DIL + H, W + DIL:W_pad, :] = (
        jnp.zeros((H, W_pad - W - DIL, Cm), jnp.bfloat16))
    hp_ref[DIL:DIL + H, DIL:DIL + W, :] = h1.reshape(H, W, Cm).astype(jnp.bfloat16)

    def tap(kh, kw):  # dilation-shifted (H, W, Cm) window, flattened for the MXU
        return hp_ref[kh * DIL:kh * DIL + H, kw * DIL:kw * DIL + W, :].reshape(H * W, Cm)

    # 9 accumulating matmuls into the fp32 VMEM accumulator (no materialized im2col).
    acc_ref[...] = jnp.dot(tap(0, 0), w3_ref[0], preferred_element_type=jnp.float32)
    for k in range(1, 9):                                               # static unroll
        kh, kw = divmod(k, 3)
        acc_ref[...] += jnp.dot(tap(kh, kw), w3_ref[k],
                                preferred_element_type=jnp.float32)
    h2 = jnp.maximum(acc_ref[...] + b2_ref[...], 0.0).astype(jnp.bfloat16)

    # --- stage 3: 1x1 conv (BN3 scale pre-folded) + shift, no activation ---
    h3 = jnp.dot(h2, w2_ref[...], preferred_element_type=jnp.float32) + b3_ref[...]

    # --- SE block on the VPU/XLU (no tiny M=1 MXU matmuls):
    #     global average pool -> fc1 -> ReLU -> fc2 -> sigmoid -> gate ---
    m = jnp.mean(h3, axis=0, keepdims=True)                             # (1, Co)
    z = jnp.sum(wf1_ref[...] * m, axis=-1, keepdims=True) + bf1_ref[...]   # (Cr, 1)
    z = jnp.maximum(z, 0.0)
    s = jnp.sum(wf2_ref[...] * z, axis=0, keepdims=True) + bf2_ref[...]    # (1, Co)
    gate = 1.0 / (1.0 + jnp.exp(-s))                                    # sigmoid

    # --- identity residual (late re-read of x) + final ReLU ---
    res = x_ref[0].reshape(H * W, Ci)
    out = jnp.maximum(h3 * gate + res, 0.0)
    o_ref[0] = out.reshape(H, W, Co).astype(o_ref.dtype)


# ------------------------------------ wrapper -----------------------------------

def detnet_bottleneck_forward(x_nhwc, params, out_dtype=jnp.bfloat16):
    """detnet_bottleneck forward (stride=1, block_type='A', in_planes == planes)."""
    N, H, W, Ci = x_nhwc.shape
    Cm = params["w1"].shape[1]
    Co = params["w2"].shape[1]
    Cr = params["wf1"].shape[0]
    assert Ci == Co, "identity residual requires in_planes == expansion * planes"

    W_pad = _round_up(W + 4, 8)          # sublane-tile-aligned row pitch for the scratch
    kernel = functools.partial(_detnet_kernel, H=H, W=W, Ci=Ci, Cm=Cm, Co=Co)
    full2 = lambda b: (0, 0)
    full3 = lambda b: (0, 0, 0)

    in_specs = [
        pl.BlockSpec((1, H, W, Ci), lambda b: (b, 0, 0, 0)),   # x (stage-1 input + residual)
        pl.BlockSpec((Ci, Cm), full2),       # w1  (bf16, BN1 scale folded)
        pl.BlockSpec((1, Cm), full2),        # b1  (BN1 shift)
        pl.BlockSpec((9, Cm, Cm), full3),    # w3  (bf16, per-tap layout, BN2 folded)
        pl.BlockSpec((1, Cm), full2),        # b2
        pl.BlockSpec((Cm, Co), full2),       # w2  (bf16, BN3 folded)
        pl.BlockSpec((1, Co), full2),        # b3
        pl.BlockSpec((Cr, Co), full2),       # SE fc1 weight (Cr, Co), fp32
        pl.BlockSpec((Cr, 1), full2),        # SE fc1 bias   (Cr, 1)
        pl.BlockSpec((Cr, Co), full2),       # SE fc2 weight transposed (Cr, Co), fp32
        pl.BlockSpec((1, Co), full2),        # SE fc2 bias   (1, Co)
    ]
    out_spec = pl.BlockSpec((1, H, W, Co), lambda b: (b, 0, 0, 0))
    scratch = [
        pltpu.VMEM((H + 4, W_pad, Cm), jnp.bfloat16),    # zero-padded h1 (pad=2, aligned pitch)
        pltpu.VMEM((H * W, Cm), jnp.float32),            # conv2 fp32 accumulator
    ]

    # VMEM budget sized to actual need (double-buffered blocks + scratch + headroom),
    # not a blanket 32 MiB (half of v7x's physical VMEM).
    def nbytes(shape, dt):
        return int(np.prod(shape)) * jnp.dtype(dt).itemsize
    block_bytes = (
        nbytes((1, H, W, Ci), x_nhwc.dtype)
        + sum(nbytes(p.shape, p.dtype) for p in (
            params["w1"], params["b1"], params["w3"], params["b2"],
            params["w2"], params["b3"], params["wf1"], params["bf1"],
            params["wf2"], params["bf2"]))
        + nbytes((1, H, W, Co), out_dtype))
    scratch_bytes = (nbytes((H + 4, W_pad, Cm), jnp.bfloat16)
                     + nbytes((H * W, Cm), jnp.float32))
    vmem_limit = int(min(64 * 2**20, 2 * block_bytes + scratch_bytes + 12 * 2**20))

    return pl.pallas_call(
        kernel,
        out_shape=jax.ShapeDtypeStruct((N, H, W, Co), out_dtype),
        grid=(N,),
        in_specs=in_specs,
        out_specs=out_spec,
        scratch_shapes=scratch,
        compiler_params=pltpu.CompilerParams(
            dimension_semantics=("parallel",),      # batch axis across TensorCores
            vmem_limit_bytes=vmem_limit,
        ),
    )(x_nhwc, params["w1"], params["b1"], params["w3"], params["b2"],
      params["w2"], params["b3"], params["wf1"], params["bf1"],
      params["wf2"], params["bf2"])


# ------------------------------ params / reference ------------------------------

def make_params(key, in_planes, planes, reduces=16, eps=1e-5):
    expansion = 1
    Co = planes * expansion
    Cr = max(Co // reduces, 1)
    ks = jax.random.split(key, 10)

    def bn(k, c):
        kg, kb, km, kv = jax.random.split(k, 4)
        gamma = jax.random.uniform(kg, (c,), jnp.float32, 0.8, 1.2)
        beta = 0.1 * jax.random.normal(kb, (c,), jnp.float32)
        mean = 0.1 * jax.random.normal(km, (c,), jnp.float32)
        var = jax.random.uniform(kv, (c,), jnp.float32, 0.8, 1.2)
        return gamma, beta, mean, var

    w1 = jax.random.normal(ks[0], (in_planes, planes), jnp.float32) * (2.0 / in_planes) ** 0.5
    w3 = jax.random.normal(ks[1], (3, 3, planes, planes), jnp.float32) * (2.0 / (9 * planes)) ** 0.5
    w2 = jax.random.normal(ks[2], (planes, Co), jnp.float32) * (2.0 / planes) ** 0.5
    bn1, bn2, bn3 = bn(ks[3], planes), bn(ks[4], planes), bn(ks[5], Co)
    fc1_w = jax.random.normal(ks[6], (Cr, Co), jnp.float32) * (1.0 / Co) ** 0.5
    fc1_b = 0.1 * jax.random.normal(ks[7], (Cr,), jnp.float32)
    fc2_w = jax.random.normal(ks[8], (Co, Cr), jnp.float32) * (1.0 / Cr) ** 0.5
    fc2_b = 0.1 * jax.random.normal(ks[9], (Co,), jnp.float32)

    def fold(g, b, m, v):
        s = g / jnp.sqrt(v + eps)
        return s, b - m * s

    s1, sh1 = fold(*bn1)
    s2, sh2 = fold(*bn2)
    s3, sh3 = fold(*bn3)

    params = dict(
        w1=(w1 * s1[None, :]).astype(jnp.bfloat16),
        b1=sh1[None, :],
        # per-tap layout: w3[k] = W3_hwio[kh, kw, :, :] with k = kh*3 + kw, BN2 folded
        w3=(w3 * s2[None, None, None, :]).reshape(9, planes, planes).astype(jnp.bfloat16),
        b2=sh2[None, :],
        w2=(w2 * s3[None, :]).astype(jnp.bfloat16),
        b3=sh3[None, :],
        wf1=fc1_w,              # (Cr, Co) fp32 (VPU path)
        bf1=fc1_b[:, None],     # (Cr, 1)
        wf2=fc2_w.T,            # (Cr, Co) fp32 (VPU path)
        bf2=fc2_b[None, :],     # (1, Co)
    )
    raw = dict(w1=w1, w3=w3, w2=w2, bn1=bn1, bn2=bn2, bn3=bn3,
               fc1_w=fc1_w, fc1_b=fc1_b, fc2_w=fc2_w, fc2_b=fc2_b)
    return params, raw


def reference_forward(x, raw, eps=1e-5):
    """Pure-JAX NHWC reference matching PyTorch detnet_bottleneck (eval BN, stride=1,
    block_type='A', identity downsample)."""
    def conv(h, w, pad, dil):
        return jax.lax.conv_general_dilated(
            h, w, window_strides=(1, 1), padding=[(pad, pad), (pad, pad)],
            rhs_dilation=(dil, dil),
            dimension_numbers=("NHWC", "HWIO", "NHWC"))

    def bnorm(y, p):
        g, b, m, v = p
        return (y - m) / jnp.sqrt(v + eps) * g + b

    h = jax.nn.relu(bnorm(conv(x, raw["w1"][None, None], 0, 1), raw["bn1"]))
    h = jax.nn.relu(bnorm(conv(h, raw["w3"], 2, 2), raw["bn2"]))
    h = bnorm(conv(h, raw["w2"][None, None], 0, 1), raw["bn3"])
    # SE block
    m = jnp.mean(h, axis=(1, 2))                                   # (N, Co)
    z = jax.nn.relu(m @ raw["fc1_w"].T + raw["fc1_b"])
    gate = jax.nn.sigmoid(z @ raw["fc2_w"].T + raw["fc2_b"])
    h = h * gate[:, None, None, :]
    return jax.nn.relu(h + x)                                      # identity downsample


# --------------------------------------- main -----------------------------------

if __name__ == "__main__":
    key = jax.random.PRNGKey(0)
    kx, kp = jax.random.split(key)

    N, H, W = 2, 16, 16
    planes = 128                 # >=128 keeps all loads/stores lane-dense (128-lane vregs)
    in_planes = planes * 1       # expansion = 1; identity residual requires equality

    # PyTorch-style NCHW input, permuted to NHWC for the TPU kernel.
    x_nchw = jax.random.normal(kx, (N, in_planes, H, W), jnp.float32)
    x_nhwc = jnp.transpose(x_nchw, (0, 2, 3, 1))

    params, raw = make_params(kp, in_planes, planes)

    out = detnet_bottleneck_forward(x_nhwc, params, out_dtype=jnp.bfloat16)
    out = jax.block_until_ready(out)

    ref = reference_forward(x_nhwc, raw)
    # bf16 matmul operands / bf16 output (fp32 accumulate) -> bf16-appropriate tolerance.
    np.testing.assert_allclose(np.asarray(out).astype(np.float32), np.asarray(ref),
                               rtol=5e-2, atol=5e-2)

    print("KERNEL_OK")
</pallas_src>

<mosaic_0001>
module attributes {stable_mosaic.version = 11 : i64} {
  func.func @_detnet_kernel(%arg0: i32, %arg1: memref<1x16x16x128xf32, #tpu.memory_space<vmem>>, %arg2: memref<128x128xbf16, #tpu.memory_space<vmem>>, %arg3: memref<1x128xf32, #tpu.memory_space<vmem>>, %arg4: memref<9x128x128xbf16, #tpu.memory_space<vmem>>, %arg5: memref<1x128xf32, #tpu.memory_space<vmem>>, %arg6: memref<128x128xbf16, #tpu.memory_space<vmem>>, %arg7: memref<1x128xf32, #tpu.memory_space<vmem>>, %arg8: memref<8x128xf32, #tpu.memory_space<vmem>>, %arg9: memref<8x1xf32, #tpu.memory_space<vmem>>, %arg10: memref<8x128xf32, #tpu.memory_space<vmem>>, %arg11: memref<1x128xf32, #tpu.memory_space<vmem>>, %arg12: memref<1x16x16x128xbf16, #tpu.memory_space<vmem>>, %arg13: memref<20x24x128xbf16, #tpu.memory_space<vmem>>, %arg14: memref<256x128xf32, #tpu.memory_space<vmem>>) attributes {dimension_semantics = [#tpu.dimension_semantics<parallel>], iteration_bounds = array<i64: 2>, scalar_prefetch = 0 : i64, scratch_operands = 2 : i64, tpu.core_type = #tpu.core_type<tc>, window_params = [{transform_indices = @transform_0, window_bounds = array<i64: 1, 16, 16, 128>}, {pipeline_mode = #tpu.pipeline_mode<synchronous>, transform_indices = @transform_1, window_bounds = array<i64: 128, 128>}, {pipeline_mode = #tpu.pipeline_mode<synchronous>, transform_indices = @transform_2, window_bounds = array<i64: 1, 128>}, {pipeline_mode = #tpu.pipeline_mode<synchronous>, transform_indices = @transform_3, window_bounds = array<i64: 9, 128, 128>}, {pipeline_mode = #tpu.pipeline_mode<synchronous>, transform_indices = @transform_4, window_bounds = array<i64: 1, 128>}, {pipeline_mode = #tpu.pipeline_mode<synchronous>, transform_indices = @transform_5, window_bounds = array<i64: 128, 128>}, {pipeline_mode = #tpu.pipeline_mode<synchronous>, transform_indices = @transform_6, window_bounds = array<i64: 1, 128>}, {pipeline_mode = #tpu.pipeline_mode<synchronous>, transform_indices = @transform_7, window_bounds = array<i64: 8, 128>}, {pipeline_mode = #tpu.pipeline_mode<synchronous>, transform_indices = @transform_8, window_bounds = array<i64: 8, 1>}, {pipeline_mode = #tpu.pipeline_mode<synchronous>, transform_indices = @transform_9, window_bounds = array<i64: 8, 128>}, {pipeline_mode = #tpu.pipeline_mode<synchronous>, transform_indices = @transform_10, window_bounds = array<i64: 1, 128>}, {transform_indices = @transform_11, window_bounds = array<i64: 1, 16, 16, 128>}]} {
    %c0 = arith.constant 0 : index
    %c0_0 = arith.constant 0 : index
    %c0_1 = arith.constant 0 : index
    %c0_2 = arith.constant 0 : index
    %0 = vector.load %arg1[%c0, %c0_0, %c0_1, %c0_2] : memref<1x16x16x128xf32, #tpu.memory_space<vmem>>, vector<1x16x16x128xf32>
    %1 = vector.shape_cast %0 : vector<1x16x16x128xf32> to vector<16x16x128xf32>
    %2 = vector.shape_cast %1 : vector<16x16x128xf32> to vector<256x128xf32>
    %3 = arith.truncf %2 : vector<256x128xf32> to vector<256x128xbf16>
    %c0_3 = arith.constant 0 : index
    %c0_4 = arith.constant 0 : index
    %4 = vector.load %arg2[%c0_3, %c0_4] : memref<128x128xbf16, #tpu.memory_space<vmem>>, vector<128x128xbf16>
    %cst = arith.constant dense<0.000000e+00> : vector<256x128xf32>
    %5 = tpu.matmul %3, %4, %cst {dimension_numbers = #tpu.dot_dimension_numbers<[1], [0], [0], [1], [0, 0, 1, 1], [], []>} : vector<256x128xbf16>, vector<128x128xbf16>, vector<256x128xf32> -> vector<256x128xf32>
    %c0_5 = arith.constant 0 : index
    %c0_6 = arith.constant 0 : index
    %6 = vector.load %arg3[%c0_5, %c0_6] : memref<1x128xf32, #tpu.memory_space<vmem>>, vector<1x128xf32>
    %7 = vector.broadcast %6 : vector<1x128xf32> to vector<256x128xf32>
    %8 = arith.addf %5, %7 : vector<256x128xf32>
    %cst_7 = arith.constant 0.000000e+00 : f32
    %9 = vector.broadcast %cst_7 : f32 to vector<256x128xf32>
    %10 = arith.maximumf %8, %9 : vector<256x128xf32>
    %cst_8 = arith.constant 0.000000e+00 : bf16
    %11 = vector.broadcast %cst_8 : bf16 to vector<2x24x128xbf16>
    %c0_9 = arith.constant 0 : index
    %c0_10 = arith.constant 0 : index
    %c0_11 = arith.constant 0 : index
    %12 = vector.load %arg13[%c0_9, %c0_10, %c0_11] : memref<20x24x128xbf16, #tpu.memory_space<vmem>>, vector<2x24x128xbf16>
    tpu.vector_store %arg13[%c0_9, %c0_10, %c0_11], %11 {strides = array<i32>} : memref<20x24x128xbf16, #tpu.memory_space<vmem>>, vector<2x24x128xbf16>,
    %cst_12 = arith.constant 0.000000e+00 : bf16
    %13 = vector.broadcast %cst_12 : bf16 to vector<2x24x128xbf16>
    %c18 = arith.constant 18 : index
    %c0_13 = arith.constant 0 : index
    %c0_14 = arith.constant 0 : index
    %14 = vector.load %arg13[%c18, %c0_13, %c0_14] : memref<20x24x128xbf16, #tpu.memory_space<vmem>>, vector<2x24x128xbf16>
    tpu.vector_store %arg13[%c18, %c0_13, %c0_14], %13 {strides = array<i32>} : memref<20x24x128xbf16, #tpu.memory_space<vmem>>, vector<2x24x128xbf16>,
    %cst_15 = arith.constant 0.000000e+00 : bf16
    %15 = vector.broadcast %cst_15 : bf16 to vector<16x2x128xbf16>
    %c2 = arith.constant 2 : index
    %c0_16 = arith.constant 0 : index
    %c0_17 = arith.constant 0 : index
    %16 = vector.load %arg13[%c2, %c0_16, %c0_17] : memref<20x24x128xbf16, #tpu.memory_space<vmem>>, vector<16x2x128xbf16>
    tpu.vector_store %arg13[%c2, %c0_16, %c0_17], %15 {strides = array<i32>} : memref<20x24x128xbf16, #tpu.memory_space<vmem>>, vector<16x2x128xbf16>,
    %cst_18 = arith.constant 0.000000e+00 : bf16
    %17 = vector.broadcast %cst_18 : bf16 to vector<16x6x128xbf16>
    %c2_19 = arith.constant 2 : index
    %c18_20 = arith.constant 18 : index
    %c0_21 = arith.constant 0 : index
    %18 = vector.load %arg13[%c2_19, %c18_20, %c0_21] : memref<20x24x128xbf16, #tpu.memory_space<vmem>>, vector<16x6x128xbf16>
    tpu.vector_store %arg13[%c2_19, %c18_20, %c0_21], %17 {strides = array<i32>} : memref<20x24x128xbf16, #tpu.memory_space<vmem>>, vector<16x6x128xbf16>,
    %19 = vector.shape_cast %10 : vector<256x128xf32> to vector<16x16x128xf32>
    %20 = arith.truncf %19 : vector<16x16x128xf32> to vector<16x16x128xbf16>
    %c2_22 = arith.constant 2 : index
    %c2_23 = arith.constant 2 : index
    %c0_24 = arith.constant 0 : index
    %21 = vector.load %arg13[%c2_22, %c2_23, %c0_24] : memref<20x24x128xbf16, #tpu.memory_space<vmem>>, vector<16x16x128xbf16>
    tpu.vector_store %arg13[%c2_22, %c2_23, %c0_24], %20 {strides = array<i32>} : memref<20x24x128xbf16, #tpu.memory_space<vmem>>, vector<16x16x128xbf16>,
    %c0_25 = arith.constant 0 : index
    %c0_26 = arith.constant 0 : index
    %c0_27 = arith.constant 0 : index
    %22 = vector.load %arg13[%c0_25, %c0_26, %c0_27] : memref<20x24x128xbf16, #tpu.memory_space<vmem>>, vector<16x16x128xbf16>
    %23 = vector.shape_cast %22 : vector<16x16x128xbf16> to vector<256x128xbf16>
    %c0_28 = arith.constant 0 : index
    %c0_29 = arith.constant 0 : index
    %c0_30 = arith.constant 0 : index
    %24 = vector.load %arg4[%c0_28, %c0_29, %c0_30] : memref<9x128x128xbf16, #tpu.memory_space<vmem>>, vector<1x128x128xbf16>
    %25 = vector.shape_cast %24 : vector<1x128x128xbf16> to vector<128x128xbf16>
    %cst_31 = arith.constant dense<0.000000e+00> : vector<256x128xf32>
    %26 = tpu.matmul %23, %25, %cst_31 {dimension_numbers = #tpu.dot_dimension_numbers<[1], [0], [0], [1], [0, 0, 1, 1], [], []>} : vector<256x128xbf16>, vector<128x128xbf16>, vector<256x128xf32> -> vector<256x128xf32>
    %c0_32 = arith.constant 0 : index
    %c0_33 = arith.constant 0 : index
    %27 = vector.load %arg14[%c0_32, %c0_33] : memref<256x128xf32, #tpu.memory_space<vmem>>, vector<256x128xf32>
    tpu.vector_store %arg14[%c0_32, %c0_33], %26 {strides = array<i32>} : memref<256x128xf32, #tpu.memory_space<vmem>>, vector<256x128xf32>,
    %c0_34 = arith.constant 0 : index
    %c0_35 = arith.constant 0 : index
    %28 = vector.load %arg14[%c0_34, %c0_35] : memref<256x128xf32, #tpu.memory_space<vmem>>, vector<256x128xf32>
    %c0_36 = arith.constant 0 : index
    %c2_37 = arith.constant 2 : index
    %c0_38 = arith.constant 0 : index
    %29 = vector.load %arg13[%c0_36, %c2_37, %c0_38] : memref<20x24x128xbf16, #tpu.memory_space<vmem>>, vector<16x16x128xbf16>
    %30 = vector.shape_cast %29 : vector<16x16x128xbf16> to vector<256x128xbf16>
    %c1 = arith.constant 1 : index
    %c0_39 = arith.constant 0 : index
    %c0_40 = arith.constant 0 : index
    %31 = vector.load %arg4[%c1, %c0_39, %c0_40] : memref<9x128x128xbf16, #tpu.memory_space<vmem>>, vector<1x128x128xbf16>
    %32 = vector.shape_cast %31 : vector<1x128x128xbf16> to vector<128x128xbf16>
    %cst_41 = arith.constant dense<0.000000e+00> : vector<256x128xf32>
    %33 = tpu.matmul %30, %32, %cst_41 {dimension_numbers = #tpu.dot_dimension_numbers<[1], [0], [0], [1], [0, 0, 1, 1], [], []>} : vector<256x128xbf16>, vector<128x128xbf16>, vector<256x128xf32> -> vector<256x128xf32>
    %34 = arith.addf %28, %33 : vector<256x128xf32>
    %c0_42 = arith.constant 0 : index
    %c0_43 = arith.constant 0 : index
    %35 = vector.load %arg14[%c0_42, %c0_43] : memref<256x128xf32, #tpu.memory_space<vmem>>, vector<256x128xf32>
    tpu.vector_store %arg14[%c0_42, %c0_43], %34 {strides = array<i32>} : memref<256x128xf32, #tpu.memory_space<vmem>>, vector<256x128xf32>,
    %c0_44 = arith.constant 0 : index
    %c0_45 = arith.constant 0 : index
    %36 = vector.load %arg14[%c0_44, %c0_45] : memref<256x128xf32, #tpu.memory_space<vmem>>, vector<256x128xf32>
    %c0_46 = arith.constant 0 : index
    %c4 = arith.constant 4 : index
    %c0_47 = arith.constant 0 : index
    %37 = vector.load %arg13[%c0_46, %c4, %c0_47] : memref<20x24x128xbf16, #tpu.memory_space<vmem>>, vector<16x16x128xbf16>
    %38 = vector.shape_cast %37 : vector<16x16x128xbf16> to vector<256x128xbf16>
    %c2_48 = arith.constant 2 : index
    %c0_49 = arith.constant 0 : index
    %c0_50 = arith.constant 0 : index
    %39 = vector.load %arg4[%c2_48, %c0_49, %c0_50] : memref<9x128x128xbf16, #tpu.memory_space<vmem>>, vector<1x128x128xbf16>
    %40 = vector.shape_cast %39 : vector<1x128x128xbf16> to vector<128x128xbf16>
    %cst_51 = arith.constant dense<0.000000e+00> : vector<256x128xf32>
    %41 = tpu.matmul %38, %40, %cst_51 {dimension_numbers = #tpu.dot_dimension_numbers<[1], [0], [0], [1], [0, 0, 1, 1], [], []>} : vector<256x128xbf16>, vector<128x128xbf16>, vector<256x128xf32> -> vector<256x128xf32>
    %42 = arith.addf %36, %41 : vector<256x128xf32>
    %c0_52 = arith.constant 0 : index
    %c0_53 = arith.constant 0 : index
    %43 = vector.load %arg14[%c0_52, %c0_53] : memref<256x128xf32, #tpu.memory_space<vmem>>, vector<256x128xf32>
    tpu.vector_store %arg14[%c0_52, %c0_53], %42 {strides = array<i32>} : memref<256x128xf32, #tpu.memory_space<vmem>>, vector<256x128xf32>,
    %c0_54 = arith.constant 0 : index
    %c0_55 = arith.constant 0 : index
    %44 = vector.load %arg14[%c0_54, %c0_55] : memref<256x128xf32, #tpu.memory_space<vmem>>, vector<256x128xf32>
    %c2_56 = arith.constant 2 : index
    %c0_57 = arith.constant 0 : index
    %c0_58 = arith.constant 0 : index
    %45 = vector.load %arg13[%c2_56, %c0_57, %c0_58] : memref<20x24x128xbf16, #tpu.memory_space<vmem>>, vector<16x16x128xbf16>
    %46 = vector.shape_cast %45 : vector<16x16x128xbf16> to vector<256x128xbf16>
    %c3 = arith.constant 3 : index
    %c0_59 = arith.constant 0 : index
    %c0_60 = arith.constant 0 : index
    %47 = vector.load %arg4[%c3, %c0_59, %c0_60] : memref<9x128x128xbf16, #tpu.memory_space<vmem>>, vector<1x128x128xbf16>
    %48 = vector.shape_cast %47 : vector<1x128x128xbf16> to vector<128x128xbf16>
    %cst_61 = arith.constant dense<0.000000e+00> : vector<256x128xf32>
    %49 = tpu.matmul %46, %48, %cst_61 {dimension_numbers = #tpu.dot_dimension_numbers<[1], [0], [0], [1], [0, 0, 1, 1], [], []>} : vector<256x128xbf16>, vector<128x128xbf16>, vector<256x128xf32> -> vector<256x128xf32>
    %50 = arith.addf %44, %49 : vector<256x128xf32>
    %c0_62 = arith.constant 0 : index
    %c0_63 = arith.constant 0 : index
    %51 = vector.load %arg14[%c0_62, %c0_63] : memref<256x128xf32, #tpu.memory_space<vmem>>, vector<256x128xf32>
    tpu.vector_store %arg14[%c0_62, %c0_63], %50 {strides = array<i32>} : memref<256x128xf32, #tpu.memory_space<vmem>>, vector<256x128xf32>,
    %c0_64 = arith.constant 0 : index
    %c0_65 = arith.constant 0 : index
    %52 = vector.load %arg14[%c0_64, %c0_65] : memref<256x128xf32, #tpu.memory_space<vmem>>, vector<256x128xf32>
    %c2_66 = arith.constant 2 : index
    %c2_67 = arith.constant 2 : index
    %c0_68 = arith.constant 0 : index
    %53 = vector.load %arg13[%c2_66, %c2_67, %c0_68] : memref<20x24x128xbf16, #tpu.memory_space<vmem>>, vector<16x16x128xbf16>
    %54 = vector.shape_cast %53 : vector<16x16x128xbf16> to vector<256x128xbf16>
    %c4_69 = arith.constant 4 : index
    %c0_70 = arith.constant 0 : index
    %c0_71 = arith.constant 0 : index
    %55 = vector.load %arg4[%c4_69, %c0_70, %c0_71] : memref<9x128x128xbf16, #tpu.memory_space<vmem>>, vector<1x128x128xbf16>
    %56 = vector.shape_cast %55 : vector<1x128x128xbf16> to vector<128x128xbf16>
    %cst_72 = arith.constant dense<0.000000e+00> : vector<256x128xf32>
    %57 = tpu.matmul %54, %56, %cst_72 {dimension_numbers = #tpu.dot_dimension_numbers<[1], [0], [0], [1], [0, 0, 1, 1], [], []>} : vector<256x128xbf16>, vector<128x128xbf16>, vector<256x128xf32> -> vector<256x128xf32>
    %58 = arith.addf %52, %57 : vector<256x128xf32>
    %c0_73 = arith.constant 0 : index
    %c0_74 = arith.constant 0 : index
    %59 = vector.load %arg14[%c0_73, %c0_74] : memref<256x128xf32, #tpu.memory_space<vmem>>, vector<256x128xf32>
    tpu.vector_store %arg14[%c0_73, %c0_74], %58 {strides = array<i32>} : memref<256x128xf32, #tpu.memory_space<vmem>>, vector<256x128xf32>,
    %c0_75 = arith.constant 0 : index
    %c0_76 = arith.constant 0 : index
    %60 = vector.load %arg14[%c0_75, %c0_76] : memref<256x128xf32, #tpu.memory_space<vmem>>, vector<256x128xf32>
    %c2_77 = arith.constant 2 : index
    %c4_78 = arith.constant 4 : index
    %c0_79 = arith.constant 0 : index
    %61 = vector.load %arg13[%c2_77, %c4_78, %c0_79] : memref<20x24x128xbf16, #tpu.memory_space<vmem>>, vector<16x16x128xbf16>
    %62 = vector.shape_cast %61 : vector<16x16x128xbf16> to vector<256x128xbf16>
    %c5 = arith.constant 5 : index
    %c0_80 = arith.constant 0 : index
    %c0_81 = arith.constant 0 : index
    %63 = vector.load %arg4[%c5, %c0_80, %c0_81] : memref<9x128x128xbf16, #tpu.memory_space<vmem>>, vector<1x128x128xbf16>
    %64 = vector.shape_cast %63 : vector<1x128x128xbf16> to vector<128x128xbf16>
    %cst_82 = arith.constant dense<0.000000e+00> : vector<256x128xf32>
    %65 = tpu.matmul %62, %64, %cst_82 {dimension_numbers = #tpu.dot_dimension_numbers<[1], [0], [0], [1], [0, 0, 1, 1], [], []>} : vector<256x128xbf16>, vector<128x128xbf16>, vector<256x128xf32> -> vector<256x128xf32>
    %66 = arith.addf %60, %65 : vector<256x128xf32>
    %c0_83 = arith.constant 0 : index
    %c0_84 = arith.constant 0 : index
    %67 = vector.load %arg14[%c0_83, %c0_84] : memref<256x128xf32, #tpu.memory_space<vmem>>, vector<256x128xf32>
    tpu.vector_store %arg14[%c0_83, %c0_84], %66 {strides = array<i32>} : memref<256x128xf32, #tpu.memory_space<vmem>>, vector<256x128xf32>,
    %c0_85 = arith.constant 0 : index
    %c0_86 = arith.constant 0 : index
    %68 = vector.load %arg14[%c0_85, %c0_86] : memref<256x128xf32, #tpu.memory_space<vmem>>, vector<256x128xf32>
    %c4_87 = arith.constant 4 : index
    %c0_88 = arith.constant 0 : index
    %c0_89 = arith.constant 0 : index
    %69 = vector.load %arg13[%c4_87, %c0_88, %c0_89] : memref<20x24x128xbf16, #tpu.memory_space<vmem>>, vector<16x16x128xbf16>
    %70 = vector.shape_cast %69 : vector<16x16x128xbf16> to vector<256x128xbf16>
    %c6 = arith.constant 6 : index
    %c0_90 = arith.constant 0 : index
    %c0_91 = arith.constant 0 : index
    %71 = vector.load %arg4[%c6, %c0_90, %c0_91] : memref<9x128x128xbf16, #tpu.memory_space<vmem>>, vector<1x128x128xbf16>
    %72 = vector.shape_cast %71 : vector<1x128x128xbf16> to vector<128x128xbf16>
    %cst_92 = arith.constant dense<0.000000e+00> : vector<256x128xf32>
    %73 = tpu.matmul %70, %72, %cst_92 {dimension_numbers = #tpu.dot_dimension_numbers<[1], [0], [0], [1], [0, 0, 1, 1], [], []>} : vector<256x128xbf16>, vector<128x128xbf16>, vector<256x128xf32> -> vector<256x128xf32>
    %74 = arith.addf %68, %73 : vector<256x128xf32>
    %c0_93 = arith.constant 0 : index
    %c0_94 = arith.constant 0 : index
    %75 = vector.load %arg14[%c0_93, %c0_94] : memref<256x128xf32, #tpu.memory_space<vmem>>, vector<256x128xf32>
    tpu.vector_store %arg14[%c0_93, %c0_94], %74 {strides = array<i32>} : memref<256x128xf32, #tpu.memory_space<vmem>>, vector<256x128xf32>,
    %c0_95 = arith.constant 0 : index
    %c0_96 = arith.constant 0 : index
    %76 = vector.load %arg14[%c0_95, %c0_96] : memref<256x128xf32, #tpu.memory_space<vmem>>, vector<256x128xf32>
    %c4_97 = arith.constant 4 : index
    %c2_98 = arith.constant 2 : index
    %c0_99 = arith.constant 0 : index
    %77 = vector.load %arg13[%c4_97, %c2_98, %c0_99] : memref<20x24x128xbf16, #tpu.memory_space<vmem>>, vector<16x16x128xbf16>
    %78 = vector.shape_cast %77 : vector<16x16x128xbf16> to vector<256x128xbf16>
    %c7 = arith.constant 7 : index
    %c0_100 = arith.constant 0 : index
    %c0_101 = arith.constant 0 : index
    %79 = vector.load %arg4[%c7, %c0_100, %c0_101] : memref<9x128x128xbf16, #tpu.memory_space<vmem>>, vector<1x128x128xbf16>
    %80 = vector.shape_cast %79 : vector<1x128x128xbf16> to vector<128x128xbf16>
    %cst_102 = arith.constant dense<0.000000e+00> : vector<256x128xf32>
    %81 = tpu.matmul %78, %80, %cst_102 {dimension_numbers = #tpu.dot_dimension_numbers<[1], [0], [0], [1], [0, 0, 1, 1], [], []>} : vector<256x128xbf16>, vector<128x128xbf16>, vector<256x128xf32> -> vector<256x128xf32>
    %82 = arith.addf %76, %81 : vector<256x128xf32>
    %c0_103 = arith.constant 0 : index
    %c0_104 = arith.constant 0 : index
    %83 = vector.load %arg14[%c0_103, %c0_104] : memref<256x128xf32, #tpu.memory_space<vmem>>, vector<256x128xf32>
    tpu.vector_store %arg14[%c0_103, %c0_104], %82 {strides = array<i32>} : memref<256x128xf32, #tpu.memory_space<vmem>>, vector<256x128xf32>,
    %c0_105 = arith.constant 0 : index
    %c0_106 = arith.constant 0 : index
    %84 = vector.load %arg14[%c0_105, %c0_106] : memref<256x128xf32, #tpu.memory_space<vmem>>, vector<256x128xf32>
    %c4_107 = arith.constant 4 : index
    %c4_108 = arith.constant 4 : index
    %c0_109 = arith.constant 0 : index
    %85 = vector.load %arg13[%c4_107, %c4_108, %c0_109] : memref<20x24x128xbf16, #tpu.memory_space<vmem>>, vector<16x16x128xbf16>
    %86 = vector.shape_cast %85 : vector<16x16x128xbf16> to vector<256x128xbf16>
    %c8 = arith.constant 8 : index
    %c0_110 = arith.constant 0 : index
    %c0_111 = arith.constant 0 : index
    %87 = vector.load %arg4[%c8, %c0_110, %c0_111] : memref<9x128x128xbf16, #tpu.memory_space<vmem>>, vector<1x128x128xbf16>
    %88 = vector.shape_cast %87 : vector<1x128x128xbf16> to vector<128x128xbf16>
    %cst_112 = arith.constant dense<0.000000e+00> : vector<256x128xf32>
    %89 = tpu.matmul %86, %88, %cst_112 {dimension_numbers = #tpu.dot_dimension_numbers<[1], [0], [0], [1], [0, 0, 1, 1], [], []>} : vector<256x128xbf16>, vector<128x128xbf16>, vector<256x128xf32> -> vector<256x128xf32>
    %90 = arith.addf %84, %89 : vector<256x128xf32>
    %c0_113 = arith.constant 0 : index
    %c0_114 = arith.constant 0 : index
    %91 = vector.load %arg14[%c0_113, %c0_114] : memref<256x128xf32, #tpu.memory_space<vmem>>, vector<256x128xf32>
    tpu.vector_store %arg14[%c0_113, %c0_114], %90 {strides = array<i32>} : memref<256x128xf32, #tpu.memory_space<vmem>>, vector<256x128xf32>,
    %c0_115 = arith.constant 0 : index
    %c0_116 = arith.constant 0 : index
    %92 = vector.load %arg14[%c0_115, %c0_116] : memref<256x128xf32, #tpu.memory_space<vmem>>, vector<256x128xf32>
    %c0_117 = arith.constant 0 : index
    %c0_118 = arith.constant 0 : index
    %93 = vector.load %arg5[%c0_117, %c0_118] : memref<1x128xf32, #tpu.memory_space<vmem>>, vector<1x128xf32>
    %94 = vector.broadcast %93 : vector<1x128xf32> to vector<256x128xf32>
    %95 = arith.addf %92, %94 : vector<256x128xf32>
    %cst_119 = arith.constant 0.000000e+00 : f32
    %96 = vector.broadcast %cst_119 : f32 to vector<256x128xf32>
    %97 = arith.maximumf %95, %96 : vector<256x128xf32>
    %98 = arith.truncf %97 : vector<256x128xf32> to vector<256x128xbf16>
    %c0_120 = arith.constant 0 : index
    %c0_121 = arith.constant 0 : index
    %99 = vector.load %arg6[%c0_120, %c0_121] : memref<128x128xbf16, #tpu.memory_space<vmem>>, vector<128x128xbf16>
    %cst_122 = arith.constant dense<0.000000e+00> : vector<256x128xf32>
    %100 = tpu.matmul %98, %99, %cst_122 {dimension_numbers = #tpu.dot_dimension_numbers<[1], [0], [0], [1], [0, 0, 1, 1], [], []>} : vector<256x128xbf16>, vector<128x128xbf16>, vector<256x128xf32> -> vector<256x128xf32>
    %c0_123 = arith.constant 0 : index
    %c0_124 = arith.constant 0 : index
    %101 = vector.load %arg7[%c0_123, %c0_124] : memref<1x128xf32, #tpu.memory_space<vmem>>, vector<1x128xf32>
    %102 = vector.broadcast %101 : vector<1x128xf32> to vector<256x128xf32>
    %103 = arith.addf %100, %102 : vector<256x128xf32>
    %cst_125 = arith.constant dense<0.000000e+00> : vector<128xf32>
    %104 = vector.multi_reduction <add>, %103, %cst_125 [0] : vector<256x128xf32> to vector<128xf32>
    %105 = vector.shape_cast %104 : vector<128xf32> to vector<1x128xf32>
    %cst_126 = arith.constant 2.560000e+02 : f32
    %106 = vector.broadcast %cst_126 : f32 to vector<1x128xf32>
    %107 = arith.divf %105, %106 : vector<1x128xf32>
    %c0_127 = arith.constant 0 : index
    %c0_128 = arith.constant 0 : index
    %108 = vector.load %arg8[%c0_127, %c0_128] : memref<8x128xf32, #tpu.memory_space<vmem>>, vector<8x128xf32>
    %109 = vector.broadcast %107 : vector<1x128xf32> to vector<8x128xf32>
    %110 = arith.mulf %108, %109 : vector<8x128xf32>
    %cst_129 = arith.constant dense<0.000000e+00> : vector<8xf32>
    %111 = vector.multi_reduction <add>, %110, %cst_129 [1] : vector<8x128xf32> to vector<8xf32>
    %112 = vector.shape_cast %111 : vector<8xf32> to vector<8x1xf32>
    %c0_130 = arith.constant 0 : index
    %c0_131 = arith.constant 0 : index
    %113 = vector.load %arg9[%c0_130, %c0_131] : memref<8x1xf32, #tpu.memory_space<vmem>>, vector<8x1xf32>
    %114 = arith.addf %112, %113 : vector<8x1xf32>
    %cst_132 = arith.constant 0.000000e+00 : f32
    %115 = vector.broadcast %cst_132 : f32 to vector<8x1xf32>
    %116 = arith.maximumf %114, %115 : vector<8x1xf32>
    %c0_133 = arith.constant 0 : index
    %c0_134 = arith.constant 0 : index
    %117 = vector.load %arg10[%c0_133, %c0_134] : memref<8x128xf32, #tpu.memory_space<vmem>>, vector<8x128xf32>
    %118 = vector.broadcast %116 : vector<8x1xf32> to vector<8x128xf32>
    %119 = arith.mulf %117, %118 : vector<8x128xf32>
    %cst_135 = arith.constant dense<0.000000e+00> : vector<128xf32>
    %120 = vector.multi_reduction <add>, %119, %cst_135 [0] : vector<8x128xf32> to vector<128xf32>
    %121 = vector.shape_cast %120 : vector<128xf32> to vector<1x128xf32>
    %c0_136 = arith.constant 0 : index
    %c0_137 = arith.constant 0 : index
    %122 = vector.load %arg11[%c0_136, %c0_137] : memref<1x128xf32, #tpu.memory_space<vmem>>, vector<1x128xf32>
    %123 = arith.addf %121, %122 : vector<1x128xf32>
    %cst_138 = arith.constant 0.000000e+00 : f32
    %124 = vector.broadcast %cst_138 : f32 to vector<1x128xf32>
    %125 = arith.subf %124, %123 : vector<1x128xf32>
    %126 = math.exp %125 : vector<1x128xf32>
    %cst_139 = arith.constant 1.000000e+00 : f32
    %127 = vector.broadcast %cst_139 : f32 to vector<1x128xf32>
    %128 = arith.addf %127, %126 : vector<1x128xf32>
    %cst_140 = arith.constant 1.000000e+00 : f32
    %129 = vector.broadcast %cst_140 : f32 to vector<1x128xf32>
    %130 = arith.divf %129, %128 : vector<1x128xf32>
    %c0_141 = arith.constant 0 : index
    %c0_142 = arith.constant 0 : index
    %c0_143 = arith.constant 0 : index
    %c0_144 = arith.constant 0 : index
    %131 = vector.load %arg1[%c0_141, %c0_142, %c0_143, %c0_144] : memref<1x16x16x128xf32, #tpu.memory_space<vmem>>, vector<1x16x16x128xf32>
    %132 = vector.shape_cast %131 : vector<1x16x16x128xf32> to vector<16x16x128xf32>
    %133 = vector.shape_cast %132 : vector<16x16x128xf32> to vector<256x128xf32>
    %134 = vector.broadcast %130 : vector<1x128xf32> to vector<256x128xf32>
    %135 = arith.mulf %103, %134 : vector<256x128xf32>
    %136 = arith.addf %135, %133 : vector<256x128xf32>
    %cst_145 = arith.constant 0.000000e+00 : f32
    %137 = vector.broadcast %cst_145 : f32 to vector<256x128xf32>
    %138 = arith.maximumf %136, %137 : vector<256x128xf32>
    %139 = vector.shape_cast %138 : vector<256x128xf32> to vector<16x16x128xf32>
    %140 = arith.truncf %139 : vector<16x16x128xf32> to vector<16x16x128xbf16>
    %c0_146 = arith.constant 0 : index
    %c0_147 = arith.constant 0 : index
    %c0_148 = arith.constant 0 : index
    %c0_149 = arith.constant 0 : index
    %141 = vector.load %arg12[%c0_146, %c0_147, %c0_148, %c0_149] : memref<1x16x16x128xbf16, #tpu.memory_space<vmem>>, vector<1x16x16x128xbf16>
    %142 = vector.shape_cast %141 : vector<1x16x16x128xbf16> to vector<16x16x128xbf16>
    %143 = vector.shape_cast %140 : vector<16x16x128xbf16> to vector<1x16x16x128xbf16>
    tpu.vector_store %arg12[%c0_146, %c0_147, %c0_148, %c0_149], %143 {strides = array<i32>} : memref<1x16x16x128xbf16, #tpu.memory_space<vmem>>, vector<1x16x16x128xbf16>,
    return
  }
  func.func @transform_0(%arg0: i32) -> (i32, i32, i32, i32) {
    %c0_i32 = arith.constant 0 : i32
    %c0_i32_0 = arith.constant 0 : i32
    %c0_i32_1 = arith.constant 0 : i32
    %c0_i32_2 = arith.constant 0 : i32
    return %arg0, %c0_i32, %c0_i32_0, %c0_i32_1 : i32, i32, i32, i32
  }
  func.func @transform_1(%arg0: i32) -> (i32, i32) {
    %c0_i32 = arith.constant 0 : i32
    %c0_i32_0 = arith.constant 0 : i32
    %c0_i32_1 = arith.constant 0 : i32
    return %c0_i32, %c0_i32_0 : i32, i32
  }
  func.func @transform_2(%arg0: i32) -> (i32, i32) {
    %c0_i32 = arith.constant 0 : i32
    %c0_i32_0 = arith.constant 0 : i32
    %c0_i32_1 = arith.constant 0 : i32
    return %c0_i32, %c0_i32_0 : i32, i32
  }
  func.func @transform_3(%arg0: i32) -> (i32, i32, i32) {
    %c0_i32 = arith.constant 0 : i32
    %c0_i32_0 = arith.constant 0 : i32
    %c0_i32_1 = arith.constant 0 : i32
    %c0_i32_2 = arith.constant 0 : i32
    return %c0_i32, %c0_i32_0, %c0_i32_1 : i32, i32, i32
  }
  func.func @transform_4(%arg0: i32) -> (i32, i32) {
    %c0_i32 = arith.constant 0 : i32
    %c0_i32_0 = arith.constant 0 : i32
    %c0_i32_1 = arith.constant 0 : i32
    return %c0_i32, %c0_i32_0 : i32, i32
  }
  func.func @transform_5(%arg0: i32) -> (i32, i32) {
    %c0_i32 = arith.constant 0 : i32
    %c0_i32_0 = arith.constant 0 : i32
    %c0_i32_1 = arith.constant 0 : i32
    return %c0_i32, %c0_i32_0 : i32, i32
  }
  func.func @transform_6(%arg0: i32) -> (i32, i32) {
    %c0_i32 = arith.constant 0 : i32
    %c0_i32_0 = arith.constant 0 : i32
    %c0_i32_1 = arith.constant 0 : i32
    return %c0_i32, %c0_i32_0 : i32, i32
  }
  func.func @transform_7(%arg0: i32) -> (i32, i32) {
    %c0_i32 = arith.constant 0 : i32
    %c0_i32_0 = arith.constant 0 : i32
    %c0_i32_1 = arith.constant 0 : i32
    return %c0_i32, %c0_i32_0 : i32, i32
  }
  func.func @transform_8(%arg0: i32) -> (i32, i32) {
    %c0_i32 = arith.constant 0 : i32
    %c0_i32_0 = arith.constant 0 : i32
    %c0_i32_1 = arith.constant 0 : i32
    return %c0_i32, %c0_i32_0 : i32, i32
  }
  func.func @transform_9(%arg0: i32) -> (i32, i32) {
    %c0_i32 = arith.constant 0 : i32
    %c0_i32_0 = arith.constant 0 : i32
    %c0_i32_1 = arith.constant 0 : i32
    return %c0_i32, %c0_i32_0 : i32, i32
  }
  func.func @transform_10(%arg0: i32) -> (i32, i32) {
    %c0_i32 = arith.constant 0 : i32
    %c0_i32_0 = arith.constant 0 : i32
    %c0_i32_1 = arith.constant 0 : i32
    return %c0_i32, %c0_i32_0 : i32, i32
  }
  func.func @transform_11(%arg0: i32) -> (i32, i32, i32, i32) {
    %c0_i32 = arith.constant 0 : i32
    %c0_i32_0 = arith.constant 0 : i32
    %c0_i32_1 = arith.constant 0 : i32
    %c0_i32_2 = arith.constant 0 : i32
    return %arg0, %c0_i32, %c0_i32_0, %c0_i32_1 : i32, i32, i32, i32
  }
}

</mosaic_0001>

<llo_original>
// kernel: tpu_custom_call.1
$region0: #{tpu_custom_call.1}
  #allocation0 [shape = 'u32[]', space=smem, size = 0x4, offset = 0x4, fixed_abs, tag = 'smem constant byte address 0x4 - core index']
  #allocation1 [shape = 'u32[144,128]{1,0:T(1,128)}', space=vmem, size = 0x12000, scoped, tag = 'internal scratch']
  #allocation2 [shape = 'bf16[20,24,128]{2,1,0:T(8,128)(2,1)}', space=vmem, size = 0x1e000, scoped, tag = 'scratch operand']
  #allocation3 [shape = 'f32[256,128]{1,0:T(8,128)}', space=vmem, size = 0x20000, scoped, tag = 'scratch operand']
  %s0 = inlined_call_operand.hbm [shape: f32[2,16,16,128], index: 0, kind: input, shape index: {}]
  %s1 = inlined_call_operand.hbm [shape: bf16[128,128], index: 1, kind: input, shape index: {}]
  %s2 = inlined_call_operand.hbm [shape: f32[1,128], index: 2, kind: input, shape index: {}]
  %s3 = inlined_call_operand.hbm [shape: bf16[9,128,128], index: 3, kind: input, shape index: {}]
  %s4 = inlined_call_operand.vmem [shape: f32[1,128], index: 4, kind: input, shape index: {}]
  %s5 = inlined_call_operand.hbm [shape: bf16[128,128], index: 5, kind: input, shape index: {}]
  %s6 = inlined_call_operand.vmem [shape: f32[1,128], index: 6, kind: input, shape index: {}]
  %s7 = inlined_call_operand.vmem [shape: f32[8,128], index: 7, kind: input, shape index: {}]
  %s8 = inlined_call_operand.vmem [shape: f32[8,1], index: 8, kind: input, shape index: {}]
  %s9 = inlined_call_operand.vmem [shape: f32[8,128], index: 9, kind: input, shape index: {}]
  %s10 = inlined_call_operand.vmem [shape: f32[1,128], index: 10, kind: input, shape index: {}]
  %s11 = inlined_call_operand.hbm [shape: bf16[2,16,16,128], index: 11, kind: output, shape index: {}]
  %s12 = sld [smem:[#allocation0]]
  $region97: #{tpu_custom_call.1} parent=0
    _
  %s14 = ssub.s32 1, %s12
  %s15 = scalar_select 0, %s14, %s12
  $region1: #{tpu_custom_call.1} parent=0
    #allocation4 [shape = 'u8[262144]{0}', space=vmem, size = 0x40000, scoped, tag = 'input window, operand 0']
    #allocation5 [shape = 's32[2]{0}', space=sflag, size = 0x8, scoped, tag = 'scoped memory for tpu_custom_call.1']
    #allocation6 [shape = 's32[2]{0}', space=sflag, size = 0x8, scoped, tag = 'scoped memory for tpu_custom_call.1']
    #allocation7 [shape = 'u8[32768]{0}', space=vmem, size = 0x8000, scoped, tag = 'input window, operand 1, single buffered']
    #allocation8 [shape = 's32[1]{0}', space=sflag, size = 0x4, scoped, tag = 'scoped memory for tpu_custom_call.1']
    #allocation9 [shape = 'u8[512]{0}', space=vmem, size = 0x400, scoped, tag = 'input window, operand 2, single buffered']
    #allocation10 [shape = 'u8[294912]{0}', space=vmem, size = 0x48000, scoped, tag = 'input window, operand 3, single buffered']
    #allocation11 [shape = 's32[1]{0}', space=sflag, size = 0x4, scoped, tag = 'scoped memory for tpu_custom_call.1']
    #allocation12 [shape = 'u8[32768]{0}', space=vmem, size = 0x8000, scoped, tag = 'input window, operand 5, single buffered']
    #allocation13 [shape = 'u8[131072]{0}', space=vmem, size = 0x20000, scoped, tag = 'output window, operand 0']
    %16 = vsyncpa [#allocation5], 0
    %s17 = scalar_lea.sflag [#allocation5], 1
    %18 = vsyncpa %s17, 0
    %19 = vsyncpa [#allocation8], 0
    %20 = vsyncpa [#allocation11], 0
    %21 = vsyncpa [#allocation6], 0
    %s22 = scalar_lea.sflag [#allocation6], 1
    %23 = vsyncpa %s22, 0
    loop: start=0, step=1, limit=4
    $region2: #{tpu_custom_call.1} parent=1 // loop_pre_header
      _
    $region3: #{tpu_custom_call.1} parent=1 // loop_header
      %s25 = sphi 0, %s29
      %p26 = scmp.ge.s32.totalorder %s25, 4
      %s35 = sphi 0, %s37
      %s38 = sphi 0, %s35
      %s39 = sphi 0, %s38
      %s55 = sphi 0, %s39
      %s59 = sphi 0, %s59
      %s61 = sphi 0, %s59
      %s62 = sphi 0, %s61
      %s76 = sphi 0, %s62
      %s80 = sphi 0, %s80
      %s82 = sphi 0, %s80
      %s83 = sphi 0, %s82
      %s97 = sphi 0, %s83
      %s101 = sphi 0, %s101
      %s103 = sphi 0, %s101
      %s104 = sphi 0, %s103
      %s118 = sphi 0, %s104
      %s122 = sphi 0, %s122
      %s124 = sphi 0, %s122
      %s125 = sphi 0, %s124
      %s139 = sphi 0, %s125
      %s143 = sphi 0, %s143
      %s145 = sphi 0, %s143
      %s146 = sphi 0, %s145
      %s160 = sphi 0, %s146
      %s164 = sphi 0, %s164
      %s166 = sphi 0, %s164
      %s167 = sphi 0, %s166
      %s181 = sphi 0, %s167
      %s185 = sphi 0, %s185
      %s187 = sphi 0, %s185
      %s188 = sphi 0, %s187
      %s202 = sphi 0, %s188
      %s206 = sphi 0, %s206
      %s208 = sphi 0, %s206
      %s209 = sphi 0, %s208
      %s223 = sphi 0, %s209
      %s227 = sphi 0, %s227
      %s229 = sphi 0, %s227
      %s230 = sphi 0, %s229
      %s244 = sphi 0, %s230
      %s248 = sphi 0, %s248
      %s250 = sphi 0, %s248
      %s251 = sphi 0, %s250
      %s265 = sphi 0, %s251
      %s271 = sphi 0, %s273
      %s274 = sphi 0, %s271
      %s275 = sphi 0, %s274
      %s291 = sphi 0, %s275
    $region4: #{tpu_custom_call.1} parent=1 // loop_header_branch
      %28 = sbr.rel (%p26) target = $region8
    $region5: #{tpu_custom_call.1} parent=1 // loop_body
      %s30 = ssub.s32 %s25, 1
      %s31 = ssub.s32 %s25, 2
      %s32 = sadd.s32 %s25, 1
      %s33 = ssub.s32 %s25, %s32
      %p34 = scmp.eq.s32.totalorder %s33, 0
      %s36 = sadd.s32 %s35, 1
      %s37 = scalar_select %p34, %s35, %s36
      %p40 = pneg %p34
      %p41 = scmp.eq.s32.totalorder %s25, 1
      %p42 = por %p40, %p41
      %p43 = scmp.ne.s32.totalorder %s35, %s38
      %p44 = scmp.eq.s32.totalorder %s25, 0
      %p45 = por %p43, %p44
      %p46 = scmp.ne.s32.totalorder %s35, %s38
      %p47 = scmp.eq.s32.totalorder %s30, 1
      %p48 = por %p46, %p47
      %p49 = scmp.ne.s32.totalorder %s38, %s39
      %p50 = scmp.eq.s32.totalorder %s30, 0
      %p51 = por %p49, %p50
      %p52 = scmp.ne.s32.totalorder %s38, %s39
      %p53 = scmp.eq.s32.totalorder %s31, 1
      %p54 = por %p52, %p53
      %p56 = scmp.ne.s32.totalorder %s39, %s55
      %p57 = scmp.eq.s32.totalorder %s31, 0
      %p58 = por %p56, %p57
      %s60 = sadd.s32 %s59, 1
      %p63 = scmp.eq.s32.totalorder %s25, 1
      %p64 = scmp.ne.s32.totalorder %s59, %s61
      %p65 = scmp.eq.s32.totalorder %s25, 0
      %p66 = por %p64, %p65
      %p67 = scmp.ne.s32.totalorder %s59, %s61
      %p68 = scmp.eq.s32.totalorder %s30, 1
      %p69 = por %p67, %p68
      %p70 = scmp.ne.s32.totalorder %s61, %s62
      %p71 = scmp.eq.s32.totalorder %s30, 0
      %p72 = por %p70, %p71
      %p73 = scmp.ne.s32.totalorder %s61, %s62
      %p74 = scmp.eq.s32.totalorder %s31, 1
      %p75 = por %p73, %p74
      %p77 = scmp.ne.s32.totalorder %s62, %s76
      %p78 = scmp.eq.s32.totalorder %s31, 0
      %p79 = por %p77, %p78
      %s81 = sadd.s32 %s80, 1
      %p84 = scmp.eq.s32.totalorder %s25, 1
      %p85 = scmp.ne.s32.totalorder %s80, %s82
      %p86 = scmp.eq.s32.totalorder %s25, 0
      %p87 = por %p85, %p86
      %p88 = scmp.ne.s32.totalorder %s80, %s82
      %p89 = scmp.eq.s32.totalorder %s30, 1
      %p90 = por %p88, %p89
      %p91 = scmp.ne.s32.totalorder %s82, %s83
      %p92 = scmp.eq.s32.totalorder %s30, 0
      %p93 = por %p91, %p92
      %p94 = scmp.ne.s32.totalorder %s82, %s83
      %p95 = scmp.eq.s32.totalorder %s31, 1
      %p96 = por %p94, %p95
      %p98 = scmp.ne.s32.totalorder %s83, %s97
      %p99 = scmp.eq.s32.totalorder %s31, 0
      %p100 = por %p98, %p99
      %s102 = sadd.s32 %s101, 1
      %p105 = scmp.eq.s32.totalorder %s25, 1
      %p106 = scmp.ne.s32.totalorder %s101, %s103
      %p107 = scmp.eq.s32.totalorder %s25, 0
      %p108 = por %p106, %p107
      %p109 = scmp.ne.s32.totalorder %s101, %s103
      %p110 = scmp.eq.s32.totalorder %s30, 1
      %p111 = por %p109, %p110
      %p112 = scmp.ne.s32.totalorder %s103, %s104
      %p113 = scmp.eq.s32.totalorder %s30, 0
      %p114 = por %p112, %p113
      %p115 = scmp.ne.s32.totalorder %s103, %s104
      %p116 = scmp.eq.s32.totalorder %s31, 1
      %p117 = por %p115, %p116
      %p119 = scmp.ne.s32.totalorder %s104, %s118
      %p120 = scmp.eq.s32.totalorder %s31, 0
      %p121 = por %p119, %p120
      %s123 = sadd.s32 %s122, 1
      %p126 = scmp.eq.s32.totalorder %s25, 1
      %p127 = scmp.ne.s32.totalorder %s122, %s124
      %p128 = scmp.eq.s32.totalorder %s25, 0
      %p129 = por %p127, %p128
      %p130 = scmp.ne.s32.totalorder %s122, %s124
      %p131 = scmp.eq.s32.totalorder %s30, 1
      %p132 = por %p130, %p131
      %p133 = scmp.ne.s32.totalorder %s124, %s125
      %p134 = scmp.eq.s32.totalorder %s30, 0
      %p135 = por %p133, %p134
      %p136 = scmp.ne.s32.totalorder %s124, %s125
      %p137 = scmp.eq.s32.totalorder %s31, 1
      %p138 = por %p136, %p137
      %p140 = scmp.ne.s32.totalorder %s125, %s139
      %p141 = scmp.eq.s32.totalorder %s31, 0
      %p142 = por %p140, %p141
      %s144 = sadd.s32 %s143, 1
      %p147 = scmp.eq.s32.totalorder %s25, 1
      %p148 = scmp.ne.s32.totalorder %s143, %s145
      %p149 = scmp.eq.s32.totalorder %s25, 0
      %p150 = por %p148, %p149
      %p151 = scmp.ne.s32.totalorder %s143, %s145
      %p152 = scmp.eq.s32.totalorder %s30, 1
      %p153 = por %p151, %p152
      %p154 = scmp.ne.s32.totalorder %s145, %s146
      %p155 = scmp.eq.s32.totalorder %s30, 0
      %p156 = por %p154, %p155
      %p157 = scmp.ne.s32.totalorder %s145, %s146
      %p158 = scmp.eq.s32.totalorder %s31, 1
      %p159 = por %p157, %p158
      %p161 = scmp.ne.s32.totalorder %s146, %s160
      %p162 = scmp.eq.s32.totalorder %s31, 0
      %p163 = por %p161, %p162
      %s165 = sadd.s32 %s164, 1
      %p168 = scmp.eq.s32.totalorder %s25, 1
      %p169 = scmp.ne.s32.totalorder %s164, %s166
      %p170 = scmp.eq.s32.totalorder %s25, 0
      %p171 = por %p169, %p170
      %p172 = scmp.ne.s32.totalorder %s164, %s166
      %p173 = scmp.eq.s32.totalorder %s30, 1
      %p174 = por %p172, %p173
      %p175 = scmp.ne.s32.totalorder %s166, %s167
      %p176 = scmp.eq.s32.totalorder %s30, 0
      %p177 = por %p175, %p176
      %p178 = scmp.ne.s32.totalorder %s166, %s167
      %p179 = scmp.eq.s32.totalorder %s31, 1
      %p180 = por %p178, %p179
      %p182 = scmp.ne.s32.totalorder %s167, %s181
      %p183 = scmp.eq.s32.totalorder %s31, 0
      %p184 = por %p182, %p183
      %s186 = sadd.s32 %s185, 1
      %p189 = scmp.eq.s32.totalorder %s25, 1
      %p190 = scmp.ne.s32.totalorder %s185, %s187
      %p191 = scmp.eq.s32.totalorder %s25, 0
      %p192 = por %p190, %p191
      %p193 = scmp.ne.s32.totalorder %s185, %s187
      %p194 = scmp.eq.s32.totalorder %s30, 1
      %p195 = por %p193, %p194
      %p196 = scmp.ne.s32.totalorder %s187, %s188
      %p197 = scmp.eq.s32.totalorder %s30, 0
      %p198 = por %p196, %p197
      %p199 = scmp.ne.s32.totalorder %s187, %s188
      %p200 = scmp.eq.s32.totalorder %s31, 1
      %p201 = por %p199, %p200
      %p203 = scmp.ne.s32.totalorder %s188, %s202
      %p204 = scmp.eq.s32.totalorder %s31, 0
      %p205 = por %p203, %p204
      %s207 = sadd.s32 %s206, 1
      %p210 = scmp.eq.s32.totalorder %s25, 1
      %p211 = scmp.ne.s32.totalorder %s206, %s208
      %p212 = scmp.eq.s32.totalorder %s25, 0
      %p213 = por %p211, %p212
      %p214 = scmp.ne.s32.totalorder %s206, %s208
      %p215 = scmp.eq.s32.totalorder %s30, 1
      %p216 = por %p214, %p215
      %p217 = scmp.ne.s32.totalorder %s208, %s209
      %p218 = scmp.eq.s32.totalorder %s30, 0
      %p219 = por %p217, %p218
      %p220 = scmp.ne.s32.totalorder %s208, %s209
      %p221 = scmp.eq.s32.totalorder %s31, 1
      %p222 = por %p220, %p221
      %p224 = scmp.ne.s32.totalorder %s209, %s223
      %p225 = scmp.eq.s32.totalorder %s31, 0
      %p226 = por %p224, %p225
      %s228 = sadd.s32 %s227, 1
      %p231 = scmp.eq.s32.totalorder %s25, 1
      %p232 = scmp.ne.s32.totalorder %s227, %s229
      %p233 = scmp.eq.s32.totalorder %s25, 0
      %p234 = por %p232, %p233
      %p235 = scmp.ne.s32.totalorder %s227, %s229
      %p236 = scmp.eq.s32.totalorder %s30, 1
      %p237 = por %p235, %p236
      %p238 = scmp.ne.s32.totalorder %s229, %s230
      %p239 = scmp.eq.s32.totalorder %s30, 0
      %p240 = por %p238, %p239
      %p241 = scmp.ne.s32.totalorder %s229, %s230
      %p242 = scmp.eq.s32.totalorder %s31, 1
      %p243 = por %p241, %p242
      %p245 = scmp.ne.s32.totalorder %s230, %s244
      %p246 = scmp.eq.s32.totalorder %s31, 0
      %p247 = por %p245, %p246
      %s249 = sadd.s32 %s248, 1
      %p252 = scmp.eq.s32.totalorder %s25, 1
      %p253 = scmp.ne.s32.totalorder %s248, %s250
      %p254 = scmp.eq.s32.totalorder %s25, 0
      %p255 = por %p253, %p254
      %p256 = scmp.ne.s32.totalorder %s248, %s250
      %p257 = scmp.eq.s32.totalorder %s30, 1
      %p258 = por %p256, %p257
      %p259 = scmp.ne.s32.totalorder %s250, %s251
      %p260 = scmp.eq.s32.totalorder %s30, 0
      %p261 = por %p259, %p260
      %p262 = scmp.ne.s32.totalorder %s250, %s251
      %p263 = scmp.eq.s32.totalorder %s31, 1
      %p264 = por %p262, %p263
      %p266 = scmp.ne.s32.totalorder %s251, %s265
      %p267 = scmp.eq.s32.totalorder %s31, 0
      %p268 = por %p266, %p267
      %s269 = ssub.s32 %s25, %s32
      %p270 = scmp.eq.s32.totalorder %s269, 0
      %s272 = sadd.s32 %s271, 1
      %s273 = scalar_select %p270, %s271, %s272
      %p276 = pneg %p270
      %p277 = scmp.eq.s32.totalorder %s25, 1
      %p278 = por %p276, %p277
      %p279 = scmp.ne.s32.totalorder %s271, %s274
      %p280 = scmp.eq.s32.totalorder %s25, 0
      %p281 = por %p279, %p280
      %p282 = scmp.ne.s32.totalorder %s271, %s274
      %p283 = scmp.eq.s32.totalorder %s30, 1
      %p284 = por %p282, %p283
      %p285 = scmp.ne.s32.totalorder %s274, %s275
      %p286 = scmp.eq.s32.totalorder %s30, 0
      %p287 = por %p285, %p286
      %p288 = scmp.ne.s32.totalorder %s274, %s275
      %p289 = scmp.eq.s32.totalorder %s31, 1
      %p290 = por %p288, %p289
      %p292 = scmp.ne.s32.totalorder %s275, %s291
      %p293 = scmp.eq.s32.totalorder %s31, 0
      %p294 = por %p292, %p293
      %p295 = scmp.le.s32.totalorder 1, %s25
      %p296 = scmp.lt.s32.totalorder %s25, 3
      %p297 = pnand %p295, %p296
      %p298 = pneg %p297
      // Predicated region
      $region9: #{tpu_custom_call.1} parent=5 // pred_check
        _
      $region10: #{tpu_custom_call.1} parent=5 // pred_check_branch
        %300 = sbr.rel (%p297) target = $region12
      $region11: #{tpu_custom_call.1} parent=5 // pred_region
        %s301 = ssub.s32 %s25, 1
        // Predicated region
        $region13: #{tpu_custom_call.1} parent=11 // pred_check
          %p302 = pneg %p72
        $region14: #{tpu_custom_call.1} parent=11 // pred_check_branch
          %304 = sbr.rel (%p302) target = $region16
        $region15: #{tpu_custom_call.1} parent=11 // pred_region
          %s306 = ssub.s32 1024, 1024
          %307 = vsyncadd [#allocation8], %s306
          %s308 = sshll.u32 [#allocation7], 4
          %s309 = int_to_ptr.vmem [resolvable:$true] %s308
          %314 = dma.hbm_to_vmem [thread:$0]  %s1, 1024, %s309, [#allocation8], 64, 64, 4
        $region16: #{tpu_custom_call.1} parent=11 // pred_fallthru
          _
        // Predicated region
        $region17: #{tpu_custom_call.1} parent=11 // pred_check
          %p315 = pneg %p93
        $region18: #{tpu_custom_call.1} parent=11 // pred_check_branch
          %317 = sbr.rel (%p315) target = $region20
        $region19: #{tpu_custom_call.1} parent=11 // pred_region
          %s319 = ssub.s32 16, 16
          %320 = vsyncadd [#allocation8], %s319
          %s322 = sshll.u32 [#allocation9], 4
          %s323 = int_to_ptr.vmem [resolvable:$true] %s322
          %325 = dma.hbm_to_vmem [thread:$0]  %s2, 16, %s323, [#allocation8]
        $region20: #{tpu_custom_call.1} parent=11 // pred_fallthru
          _
        // Predicated region
        $region21: #{tpu_custom_call.1} parent=11 // pred_check
          %p326 = pneg %p114
        $region22: #{tpu_custom_call.1} parent=11 // pred_check_branch
          %328 = sbr.rel (%p326) target = $region24
        $region23: #{tpu_custom_call.1} parent=11 // pred_region
          %s330 = ssub.s32 9216, 9216
          %331 = vsyncadd [#allocation11], %s330
          %s332 = sshll.u32 [#allocation10], 4
          %s333 = int_to_ptr.vmem [resolvable:$true] %s332
          %338 = dma.hbm_to_vmem [thread:$0]  %s3, 9216, %s333, [#allocation11], 64, 64, 4
        $region24: #{tpu_custom_call.1} parent=11 // pred_fallthru
          _
        // Predicated region
        $region25: #{tpu_custom_call.1} parent=11 // pred_check
          %p339 = pneg %p135
        $region26: #{tpu_custom_call.1} parent=11 // pred_check_branch
          %341 = sbr.rel (%p339) target = $region28
        $region27: #{tpu_custom_call.1} parent=11 // pred_region
          _
        $region28: #{tpu_custom_call.1} parent=11 // pred_fallthru
          _
        // Predicated region
        $region29: #{tpu_custom_call.1} parent=11 // pred_check
          %p342 = pneg %p156
        $region30: #{tpu_custom_call.1} parent=11 // pred_check_branch
          %344 = sbr.rel (%p342) target = $region32
        $region31: #{tpu_custom_call.1} parent=11 // pred_region
          %s346 = ssub.s32 1024, 1024
          %347 = vsyncadd [#allocation11], %s346
          %s348 = sshll.u32 [#allocation12], 4
          %s349 = int_to_ptr.vmem [resolvable:$true] %s348
          %354 = dma.hbm_to_vmem [thread:$0]  %s5, 1024, %s349, [#allocation11], 64, 64, 4
        $region32: #{tpu_custom_call.1} parent=11 // pred_fallthru
          _
        // Predicated region
        $region33: #{tpu_custom_call.1} parent=11 // pred_check
          %p355 = pneg %p177
        $region34: #{tpu_custom_call.1} parent=11 // pred_check_branch
          %357 = sbr.rel (%p355) target = $region36
        $region35: #{tpu_custom_call.1} parent=11 // pred_region
          _
        $region36: #{tpu_custom_call.1} parent=11 // pred_fallthru
          _
        // Predicated region
        $region37: #{tpu_custom_call.1} parent=11 // pred_check
          %p358 = pneg %p198
        $region38: #{tpu_custom_call.1} parent=11 // pred_check_branch
          %360 = sbr.rel (%p358) target = $region40
        $region39: #{tpu_custom_call.1} parent=11 // pred_region
          _
        $region40: #{tpu_custom_call.1} parent=11 // pred_fallthru
          _
        // Predicated region
        $region41: #{tpu_custom_call.1} parent=11 // pred_check
          %p361 = pneg %p219
        $region42: #{tpu_custom_call.1} parent=11 // pred_check_branch
          %363 = sbr.rel (%p361) target = $region44
        $region43: #{tpu_custom_call.1} parent=11 // pred_region
          _
        $region44: #{tpu_custom_call.1} parent=11 // pred_fallthru
          _
        // Predicated region
        $region45: #{tpu_custom_call.1} parent=11 // pred_check
          %p364 = pneg %p240
        $region46: #{tpu_custom_call.1} parent=11 // pred_check_branch
          %366 = sbr.rel (%p364) target = $region48
        $region47: #{tpu_custom_call.1} parent=11 // pred_region
          _
        $region48: #{tpu_custom_call.1} parent=11 // pred_fallthru
          _
        // Predicated region
        $region49: #{tpu_custom_call.1} parent=11 // pred_check
          %p367 = pneg %p261
        $region50: #{tpu_custom_call.1} parent=11 // pred_check_branch
          %369 = sbr.rel (%p367) target = $region52
        $region51: #{tpu_custom_call.1} parent=11 // pred_region
          _
        $region52: #{tpu_custom_call.1} parent=11 // pred_fallthru
          _
      $region12: #{tpu_custom_call.1} parent=5 // pred_fallthru
        _
      %p370 = scmp.lt.s32.totalorder %s25, 2
      // Predicated region
      $region53: #{tpu_custom_call.1} parent=5 // pred_check
        %p371 = pneg %p370
      $region54: #{tpu_custom_call.1} parent=5 // pred_check_branch
        %373 = sbr.rel (%p371) target = $region56
      $region55: #{tpu_custom_call.1} parent=5 // pred_region
        // Predicated region
        $region57: #{tpu_custom_call.1} parent=55 // pred_check
          %p374 = pneg %p45
        $region58: #{tpu_custom_call.1} parent=55 // pred_check_branch
          %376 = sbr.rel (%p374) target = $region60
        $region59: #{tpu_custom_call.1} parent=55 // pred_region
          %s377 = sand.u32 %s35, 1
          %s378 = scalar_lea.sflag [#allocation5], %s377
          %s379 = sand.u32 %s35, 1
          %s380 = smul.addr %s379, 256
          %s381 = scalar_lea.vmem [#allocation4], %s380
          %s383 = ssub.s32 4096, 4096
          %384 = vsyncadd %s378, %s383
          %s385 = smul.addr %s25, 32
          %s386 = smul.addr %s385, 128
          %s387 = scalar_lea.hbm %s0, %s386
          %s388 = sshll.u32 %s381, 4
          %s389 = int_to_ptr.vmem [resolvable:$true] %s388
          %394 = dma.hbm_to_vmem [thread:$0]  %s387, 4096, %s389, %s378, 128, 128, 8
        $region60: #{tpu_custom_call.1} parent=55 // pred_fallthru
          _
      $region56: #{tpu_custom_call.1} parent=5 // pred_fallthru
        _
      %p395 = scmp.le.s32.totalorder 1, %s25
      %p396 = scmp.lt.s32.totalorder %s25, 3
      %p397 = pnand %p395, %p396
      %p398 = pneg %p397
      // Predicated region
      $region61: #{tpu_custom_call.1} parent=5 // pred_check
        _
      $region62: #{tpu_custom_call.1} parent=5 // pred_check_branch
        %400 = sbr.rel (%p397) target = $region64
      $region63: #{tpu_custom_call.1} parent=5 // pred_region
        %s401 = ssub.s32 %s25, 1
        %s402 = sand.u32 %s38, 1
        %s403 = scalar_lea.sflag [#allocation5], %s402
        %s404 = sand.u32 %s38, 1
        %s405 = smul.addr %s404, 256
        %s406 = scalar_lea.vmem [#allocation4], %s405
        // Predicated region
        $region65: #{tpu_custom_call.1} parent=63 // pred_check
          %p407 = pneg %p51
        $region66: #{tpu_custom_call.1} parent=63 // pred_check_branch
          %409 = sbr.rel (%p407) target = $region68
        $region67: #{tpu_custom_call.1} parent=63 // pred_region
          %410 = dma.done %s403, 4096
        $region68: #{tpu_custom_call.1} parent=63 // pred_fallthru
          _
        // Predicated region
        $region69: #{tpu_custom_call.1} parent=63 // pred_check
          %p411 = pneg %p72
        $region70: #{tpu_custom_call.1} parent=63 // pred_check_branch
          %413 = sbr.rel (%p411) target = $region72
        $region71: #{tpu_custom_call.1} parent=63 // pred_region
          %414 = dma.done [#allocation8], 1024
        $region72: #{tpu_custom_call.1} parent=63 // pred_fallthru
          _
        // Predicated region
        $region73: #{tpu_custom_call.1} parent=63 // pred_check
          %p415 = pneg %p93
        $region74: #{tpu_custom_call.1} parent=63 // pred_check_branch
          %417 = sbr.rel (%p415) target = $region76
        $region75: #{tpu_custom_call.1} parent=63 // pred_region
          %418 = dma.done [#allocation8], 16
        $region76: #{tpu_custom_call.1} parent=63 // pred_fallthru
          _
        // Predicated region
        $region77: #{tpu_custom_call.1} parent=63 // pred_check
          %p419 = pneg %p114
        $region78: #{tpu_custom_call.1} parent=63 // pred_check_branch
          %421 = sbr.rel (%p419) target = $region80
        $region79: #{tpu_custom_call.1} parent=63 // pred_region
          %422 = dma.done [#allocation11], 9216
        $region80: #{tpu_custom_call.1} parent=63 // pred_fallthru
          _
        // Predicated region
        $region81: #{tpu_custom_call.1} parent=63 // pred_check
          %p423 = pneg %p156
        $region82: #{tpu_custom_call.1} parent=63 // pred_check_branch
          %425 = sbr.rel (%p423) target = $region84
        $region83: #{tpu_custom_call.1} parent=63 // pred_region
          %426 = dma.done [#allocation11], 1024
        $region84: #{tpu_custom_call.1} parent=63 // pred_fallthru
          _
        %s427 = sand.u32 %s38, 1
        %s428 = scalar_lea.sflag [#allocation5], %s427
        %s429 = sand.u32 %s38, 1
        %s430 = smul.addr %s429, 256
        %s431 = scalar_lea.vmem [#allocation4], %s430
        %p432 = pneg %p51
        %p433 = pneg %p48
        %p434 = pneg %p72
        %p435 = pneg %p69
        %p436 = pneg %p93
        %p437 = pneg %p90
        %p438 = pneg %p114
        %p439 = pneg %p111
        %p440 = pneg %p135
        %p441 = pneg %p132
        %p442 = pneg %p156
        %p443 = pneg %p153
        %p444 = pneg %p177
        %p445 = pneg %p174
        %p446 = pneg %p198
        %p447 = pneg %p195
        %p448 = pneg %p219
        %p449 = pneg %p216
        %p450 = pneg %p240
        %p451 = pneg %p237
        %p452 = pneg %p261
        %p453 = pneg %p258
        %p454 = pneg %p287
        %p455 = pneg %p284
        %s456 = sand.u32 %s274, 1
        %s457 = scalar_lea.sflag [#allocation6], %s456
        %s458 = sand.u32 %s274, 1
        %s459 = smul.addr %s458, 128
        %s460 = scalar_lea.vmem [#allocation13], %s459
        %v462 = vld [vmem:[%s406] sm:$0xff]
        %v463 = vld [vmem:[%s406 + $0x8] sm:$0xff]
        %v464 = vld [vmem:[%s406 + $0x10] sm:$0xff]
        %v465 = vld [vmem:[%s406 + $0x18] sm:$0xff]
        %v466 = vld [vmem:[%s406 + $0x20] sm:$0xff]
        %v467 = vld [vmem:[%s406 + $0x28] sm:$0xff]
        %v468 = vld [vmem:[%s406 + $0x30] sm:$0xff]
        %v469 = vld [vmem:[%s406 + $0x38] sm:$0xff]
        %v470 = vld [vmem:[%s406 + $0x40] sm:$0xff]
        %v471 = vld [vmem:[%s406 + $0x48] sm:$0xff]
        %v472 = vld [vmem:[%s406 + $0x50] sm:$0xff]
        %v473 = vld [vmem:[%s406 + $0x58] sm:$0xff]
        %v474 = vld [vmem:[%s406 + $0x60] sm:$0xff]
        %v475 = vld [vmem:[%s406 + $0x68] sm:$0xff]
        %v476 = vld [vmem:[%s406 + $0x70] sm:$0xff]
        %v477 = vld [vmem:[%s406 + $0x78] sm:$0xff]
        %v478 = vld [vmem:[%s406 + $0x80] sm:$0xff]
        %v479 = vld [vmem:[%s406 + $0x88] sm:$0xff]
        %v480 = vld [vmem:[%s406 + $0x90] sm:$0xff]
        %v481 = vld [vmem:[%s406 + $0x98] sm:$0xff]
        %v482 = vld [vmem:[%s406 + $0xa0] sm:$0xff]
        %v483 = vld [vmem:[%s406 + $0xa8] sm:$0xff]
        %v484 = vld [vmem:[%s406 + $0xb0] sm:$0xff]
        %v485 = vld [vmem:[%s406 + $0xb8] sm:$0xff]
        %v486 = vld [vmem:[%s406 + $0xc0] sm:$0xff]
        %v487 = vld [vmem:[%s406 + $0xc8] sm:$0xff]
        %v488 = vld [vmem:[%s406 + $0xd0] sm:$0xff]
        %v489 = vld [vmem:[%s406 + $0xd8] sm:$0xff]
        %v490 = vld [vmem:[%s406 + $0xe0] sm:$0xff]
        %v491 = vld [vmem:[%s406 + $0xe8] sm:$0xff]
        %v492 = vld [vmem:[%s406 + $0xf0] sm:$0xff]
        %v493 = vld [vmem:[%s406 + $0xf8] sm:$0xff]
        %v494 = vpack.c.bf16 %v463, %v462
        %v495 = vpack.c.bf16 %v465, %v464
        %v496 = vpack.c.bf16 %v467, %v466
        %v497 = vpack.c.bf16 %v469, %v468
        %v498 = vpack.c.bf16 %v471, %v470
        %v499 = vpack.c.bf16 %v473, %v472
        %v500 = vpack.c.bf16 %v475, %v474
        %v501 = vpack.c.bf16 %v477, %v476
        %v502 = vpack.c.bf16 %v479, %v478
        %v503 = vpack.c.bf16 %v481, %v480
        %v504 = vpack.c.bf16 %v483, %v482
        %v505 = vpack.c.bf16 %v485, %v484
        %v506 = vpack.c.bf16 %v487, %v486
        %v507 = vpack.c.bf16 %v489, %v488
        %v508 = vpack.c.bf16 %v491, %v490
        %v509 = vpack.c.bf16 %v493, %v492
        %v510 = vld [vmem:[#allocation7] sm:$0xf]
        %v511 = vld [vmem:[#allocation7 + $0x4] sm:$0xf]
        %v512 = vld [vmem:[#allocation7 + $0x8] sm:$0xf]
        %v513 = vld [vmem:[#allocation7 + $0xc] sm:$0xf]
        %v514 = vld [vmem:[#allocation7 + $0x10] sm:$0xf]
        %v515 = vld [vmem:[#allocation7 + $0x14] sm:$0xf]
        %v516 = vld [vmem:[#allocation7 + $0x18] sm:$0xf]
        %v517 = vld [vmem:[#allocation7 + $0x1c] sm:$0xf]
        %v518 = vld [vmem:[#allocation7 + $0x20] sm:$0xf]
        %v519 = vld [vmem:[#allocation7 + $0x24] sm:$0xf]
        %v520 = vld [vmem:[#allocation7 + $0x28] sm:$0xf]
        %v521 = vld [vmem:[#allocation7 + $0x2c] sm:$0xf]
        %v522 = vld [vmem:[#allocation7 + $0x30] sm:$0xf]
        %v523 = vld [vmem:[#allocation7 + $0x34] sm:$0xf]
        %v524 = vld [vmem:[#allocation7 + $0x38] sm:$0xf]
        %v525 = vld [vmem:[#allocation7 + $0x3c] sm:$0xf]
        %v526 = vld [vmem:[#allocation9] sm:$0x1]
        %v528 = vlaneseq
        %v529 = vshrl.u32 %v528, 7
        %v530 = vsub.s32 0, %v529
        %v531 = vrot.slane %v526, %v530
        %v549 = vunpack.c.l.b16 %v510
        %v550 = vunpack.c.l.b16 %v511
        %v551 = vunpack.c.l.b16 %v512
        %v552 = vunpack.c.l.b16 %v513
        %v553 = vunpack.c.l.b16 %v514
        %v554 = vunpack.c.l.b16 %v515
        %v555 = vunpack.c.l.b16 %v516
        %v556 = vunpack.c.l.b16 %v517
        %v557 = vunpack.c.l.b16 %v518
        %v558 = vunpack.c.l.b16 %v519
        %v559 = vunpack.c.l.b16 %v520
        %v560 = vunpack.c.l.b16 %v521
        %v561 = vunpack.c.l.b16 %v522
        %v562 = vunpack.c.l.b16 %v523
        %v563 = vunpack.c.l.b16 %v524
        %v564 = vunpack.c.l.b16 %v525
        %v565 = vpack.c.b16 %v550, %v549
        %v566 = vpack.c.b16 %v552, %v551
        %v567 = vpack.c.b16 %v554, %v553
        %v568 = vpack.c.b16 %v556, %v555
        %v569 = vpack.c.b16 %v558, %v557
        %v570 = vpack.c.b16 %v560, %v559
        %v571 = vpack.c.b16 %v562, %v561
        %v572 = vpack.c.b16 %v564, %v563
        %581 = vmatprep.subr.bf16.mxu0 0
        %582 = vmatpush1.bf16.msra.mxu0 %v565
        %583 = vmatprep.subr.bf16.mxu0 0
        %584 = vmatpush1.bf16.msra.mxu0 %v566
        %585 = vmatprep.subr.bf16.mxu0 0
        %586 = vmatpush1.bf16.msra.mxu0 %v567
        %587 = vmatprep.subr.bf16.mxu0 0
        %588 = vmatpush1.bf16.msra.mxu0 %v568
        %589 = vmatprep.subr.bf16.mxu0 0
        %590 = vmatpush1.bf16.msra.mxu0 %v569
        %591 = vmatprep.subr.bf16.mxu0 0
        %592 = vmatpush1.bf16.msra.mxu0 %v570
        %593 = vmatprep.subr.bf16.mxu0 0
        %594 = vmatpush1.bf16.msra.mxu0 %v571
        %595 = vmatprep.subr.bf16.mxu0 0
        %596 = vmatpush1.bf16.msra.mxu0 %v572
        %597 = vmatprep.subr.bf16.mxu0 0
        %598 = vmatpush1.bf16.msra.mxu0 0
        %599 = vmatprep.subr.bf16.mxu0 0
        %600 = vmatpush1.bf16.msra.mxu0 0
        %601 = vmatprep.subr.bf16.mxu0 0
        %602 = vmatpush1.bf16.msra.mxu0 0
        %603 = vmatprep.subr.bf16.mxu0 0
        %604 = vmatpush1.bf16.msra.mxu0 0
        %605 = vmatprep.subr.bf16.mxu0 0
        %606 = vmatpush1.bf16.msra.mxu0 0
        %607 = vmatprep.subr.bf16.mxu0 0
        %608 = vmatpush1.bf16.msra.mxu0 0
        %609 = vmatprep.subr.bf16.mxu0 0
        %610 = vmatpush1.bf16.msra.mxu0 0
        %611 = vmatprep.subr.bf16.mxu0 0
        %612 = vmatpush1.bf16.msra.mxu0 0
        %613 = vmatprep.mubr.bf16.mxu0 0
        %614 = vmatmul.mubr.bf16.gmra.mrb[0].mxu0 %v494
        %v615 = vpop.f32.mrb[0].mxu0
        %v616 = vadd.f32 %v531, %v615
        %v617 = vpop.f32.mrb[0].mxu0
        %v618 = vpop.f32.mrb[0].mxu0
        %v619 = vadd.f32 %v531, %v618
        %v620 = vpop.f32.mrb[0].mxu0
        %621 = vmatprep.mubr.bf16.mxu0 0
        %622 = vmatmul.mubr.bf16.gmra.mrb[0].mxu0 %v495
        %v623 = vpop.f32.mrb[0].mxu0
        %v624 = vadd.f32 %v531, %v623
        %v625 = vpop.f32.mrb[0].mxu0
        %v626 = vpop.f32.mrb[0].mxu0
        %v627 = vadd.f32 %v531, %v626
        %v628 = vpop.f32.mrb[0].mxu0
        %629 = vmatprep.mubr.bf16.mxu0 0
        %630 = vmatmul.mubr.bf16.gmra.mrb[0].mxu0 %v496
        %v631 = vpop.f32.mrb[0].mxu0
        %v632 = vadd.f32 %v531, %v631
        %v633 = vpop.f32.mrb[0].mxu0
        %v634 = vpop.f32.mrb[0].mxu0
        %v635 = vadd.f32 %v531, %v634
        %v636 = vpop.f32.mrb[0].mxu0
        %637 = vmatprep.mubr.bf16.mxu0 0
        %638 = vmatmul.mubr.bf16.gmra.mrb[0].mxu0 %v497
        %v639 = vpop.f32.mrb[0].mxu0
        %v640 = vadd.f32 %v531, %v639
        %v641 = vpop.f32.mrb[0].mxu0
        %v642 = vpop.f32.mrb[0].mxu0
        %v643 = vadd.f32 %v531, %v642
        %v644 = vpop.f32.mrb[0].mxu0
        %645 = vmatprep.mubr.bf16.mxu0 0
        %646 = vmatmul.mubr.bf16.gmra.mrb[0].mxu0 %v498
        %v647 = vpop.f32.mrb[0].mxu0
        %v648 = vadd.f32 %v531, %v647
        %v649 = vpop.f32.mrb[0].mxu0
        %v650 = vpop.f32.mrb[0].mxu0
        %v651 = vadd.f32 %v531, %v650
        %v652 = vpop.f32.mrb[0].mxu0
        %653 = vmatprep.mubr.bf16.mxu0 0
        %654 = vmatmul.mubr.bf16.gmra.mrb[0].mxu0 %v499
        %v655 = vpop.f32.mrb[0].mxu0
        %v656 = vadd.f32 %v531, %v655
        %v657 = vpop.f32.mrb[0].mxu0
        %v658 = vpop.f32.mrb[0].mxu0
        %v659 = vadd.f32 %v531, %v658
        %v660 = vpop.f32.mrb[0].mxu0
        %661 = vmatprep.mubr.bf16.mxu0 0
        %662 = vmatmul.mubr.bf16.gmra.mrb[0].mxu0 %v500
        %v663 = vpop.f32.mrb[0].mxu0
        %v664 = vadd.f32 %v531, %v663
        %v665 = vpop.f32.mrb[0].mxu0
        %v666 = vpop.f32.mrb[0].mxu0
        %v667 = vadd.f32 %v531, %v666
        %v668 = vpop.f32.mrb[0].mxu0
        %669 = vmatprep.mubr.bf16.mxu0 0
        %670 = vmatmul.mubr.bf16.gmra.mrb[0].mxu0 %v501
        %v671 = vpop.f32.mrb[0].mxu0
        %v672 = vadd.f32 %v531, %v671
        %v673 = vpop.f32.mrb[0].mxu0
        %v674 = vpop.f32.mrb[0].mxu0
        %v675 = vadd.f32 %v531, %v674
        %v676 = vpop.f32.mrb[0].mxu0
        %677 = vmatprep.mubr.bf16.mxu0 0
        %678 = vmatmul.mubr.bf16.gmra.mrb[0].mxu0 %v502
        %v679 = vpop.f32.mrb[0].mxu0
        %v680 = vadd.f32 %v531, %v679
        %v681 = vpop.f32.mrb[0].mxu0
        %v682 = vpop.f32.mrb[0].mxu0
        %v683 = vadd.f32 %v531, %v682
        %v684 = vpop.f32.mrb[0].mxu0
        %685 = vmatprep.mubr.bf16.mxu0 0
        %686 = vmatmul.mubr.bf16.gmra.mrb[0].mxu0 %v503
        %v687 = vpop.f32.mrb[0].mxu0
        %v688 = vadd.f32 %v531, %v687
        %v689 = vpop.f32.mrb[0].mxu0
        %v690 = vpop.f32.mrb[0].mxu0
        %v691 = vadd.f32 %v531, %v690
        %v692 = vpop.f32.mrb[0].mxu0
        %693 = vmatprep.mubr.bf16.mxu0 0
        %694 = vmatmul.mubr.bf16.gmra.mrb[0].mxu0 %v504
        %v695 = vpop.f32.mrb[0].mxu0
        %v696 = vadd.f32 %v531, %v695
        %v697 = vpop.f32.mrb[0].mxu0
        %v698 = vpop.f32.mrb[0].mxu0
        %v699 = vadd.f32 %v531, %v698
        %v700 = vpop.f32.mrb[0].mxu0
        %701 = vmatprep.mubr.bf16.mxu0 0
        %702 = vmatmul.mubr.bf16.gmra.mrb[0].mxu0 %v505
        %v703 = vpop.f32.mrb[0].mxu0
        %v704 = vadd.f32 %v531, %v703
        %v705 = vpop.f32.mrb[0].mxu0
        %v706 = vpop.f32.mrb[0].mxu0
        %v707 = vadd.f32 %v531, %v706
        %v708 = vpop.f32.mrb[0].mxu0
        %709 = vmatprep.mubr.bf16.mxu0 0
        %710 = vmatmul.mubr.bf16.gmra.mrb[0].mxu0 %v506
        %v711 = vpop.f32.mrb[0].mxu0
        %v712 = vadd.f32 %v531, %v711
        %v713 = vpop.f32.mrb[0].mxu0
        %v714 = vpop.f32.mrb[0].mxu0
        %v715 = vadd.f32 %v531, %v714
        %v716 = vpop.f32.mrb[0].mxu0
        %717 = vmatprep.mubr.bf16.mxu0 0
        %718 = vmatmul.mubr.bf16.gmra.mrb[0].mxu0 %v507
        %v719 = vpop.f32.mrb[0].mxu0
        %v720 = vadd.f32 %v531, %v719
        %v721 = vpop.f32.mrb[0].mxu0
        %v722 = vpop.f32.mrb[0].mxu0
        %v723 = vadd.f32 %v531, %v722
        %v724 = vpop.f32.mrb[0].mxu0
        %725 = vmatprep.mubr.bf16.mxu0 0
        %726 = vmatmul.mubr.bf16.gmra.mrb[0].mxu0 %v508
        %v727 = vpop.f32.mrb[0].mxu0
        %v728 = vadd.f32 %v531, %v727
        %v729 = vpop.f32.mrb[0].mxu0
        %v730 = vpop.f32.mrb[0].mxu0
        %v731 = vadd.f32 %v531, %v730
        %v732 = vpop.f32.mrb[0].mxu0
        %733 = vmatprep.mubr.bf16.mxu0 0
        %734 = vmatmul.mubr.bf16.gmra.mrb[0].mxu0 %v509
        %v735 = vpop.f32.mrb[0].mxu0
        %v736 = vadd.f32 %v531, %v735
        %v737 = vpop.f32.mrb[0].mxu0
        %v738 = vpop.f32.mrb[0].mxu0
        %v739 = vadd.f32 %v531, %v738
        %v740 = vpop.f32.mrb[0].mxu0
        %741 = vdwg.mxu0
        %v742 = vmax.f32 %v616, 0.0
        %v743 = vmax.f32 %v619, 0.0
        %v744 = vmax.f32 %v624, 0.0
        %v745 = vmax.f32 %v627, 0.0
        %v746 = vmax.f32 %v632, 0.0
        %v747 = vmax.f32 %v635, 0.0
        %v748 = vmax.f32 %v640, 0.0
        %v749 = vmax.f32 %v643, 0.0
        %v750 = vmax.f32 %v648, 0.0
        %v751 = vmax.f32 %v651, 0.0
        %v752 = vmax.f32 %v656, 0.0
        %v753 = vmax.f32 %v659, 0.0
        %v754 = vmax.f32 %v664, 0.0
        %v755 = vmax.f32 %v667, 0.0
        %v756 = vmax.f32 %v672, 0.0
        %v757 = vmax.f32 %v675, 0.0
        %v758 = vmax.f32 %v680, 0.0
        %v759 = vmax.f32 %v683, 0.0
        %v760 = vmax.f32 %v688, 0.0
        %v761 = vmax.f32 %v691, 0.0
        %v762 = vmax.f32 %v696, 0.0
        %v763 = vmax.f32 %v699, 0.0
        %v764 = vmax.f32 %v704, 0.0
        %v765 = vmax.f32 %v707, 0.0
        %v766 = vmax.f32 %v712, 0.0
        %v767 = vmax.f32 %v715, 0.0
        %v768 = vmax.f32 %v720, 0.0
        %v769 = vmax.f32 %v723, 0.0
        %v770 = vmax.f32 %v728, 0.0
        %v771 = vmax.f32 %v731, 0.0
        %v772 = vmax.f32 %v736, 0.0
        %v773 = vmax.f32 %v739, 0.0
        %774 = vst [vmem:[#allocation2] sm:$0xf] 0
        %775 = vst [vmem:[#allocation2 + $0x4] sm:$0xf] 0
        %776 = vst [vmem:[#allocation2 + $0x8] sm:$0xf] 0
        %777 = vst [vmem:[#allocation2 + $0xc] sm:$0xf] 0
        %778 = vst [vmem:[#allocation2 + $0x10] sm:$0xf] 0
        %779 = vst [vmem:[#allocation2 + $0x14] sm:$0xf] 0
        %s780 = scalar_lea.vmem [#allocation2], 216
        %781 = vst [vmem:[%s780] sm:$0xf] 0
        %782 = vst [vmem:[%s780 + $0x4] sm:$0xf] 0
        %783 = vst [vmem:[%s780 + $0x8] sm:$0xf] 0
        %784 = vst [vmem:[%s780 + $0xc] sm:$0xf] 0
        %785 = vst [vmem:[%s780 + $0x10] sm:$0xf] 0
        %786 = vst [vmem:[%s780 + $0x14] sm:$0xf] 0
        %s787 = scalar_lea.vmem [#allocation2], 24
        %788 = vst [vmem:[%s787] sm:$0x1] 0
        %789 = vst [vmem:[%s787 + $0xc] sm:$0x1] 0
        %790 = vst [vmem:[%s787 + $0x18] sm:$0x1] 0
        %791 = vst [vmem:[%s787 + $0x24] sm:$0x1] 0
        %792 = vst [vmem:[%s787 + $0x30] sm:$0x1] 0
        %793 = vst [vmem:[%s787 + $0x3c] sm:$0x1] 0
        %794 = vst [vmem:[%s787 + $0x48] sm:$0x1] 0
        %795 = vst [vmem:[%s787 + $0x54] sm:$0x1] 0
        %796 = vst [vmem:[%s787 + $0x60] sm:$0x1] 0
        %797 = vst [vmem:[%s787 + $0x6c] sm:$0x1] 0
        %798 = vst [vmem:[%s787 + $0x78] sm:$0x1] 0
        %799 = vst [vmem:[%s787 + $0x84] sm:$0x1] 0
        %800 = vst [vmem:[%s787 + $0x90] sm:$0x1] 0
        %801 = vst [vmem:[%s787 + $0x9c] sm:$0x1] 0
        %802 = vst [vmem:[%s787 + $0xa8] sm:$0x1] 0
        %803 = vst [vmem:[%s787 + $0xb4] sm:$0x1] 0
        %804 = vst [vmem:[%s787 + $0x8] sm:$0xe] 0
        %805 = vst [vmem:[%s787 + $0x14] sm:$0xe] 0
        %806 = vst [vmem:[%s787 + $0x20] sm:$0xe] 0
        %807 = vst [vmem:[%s787 + $0x2c] sm:$0xe] 0
        %808 = vst [vmem:[%s787 + $0x38] sm:$0xe] 0
        %809 = vst [vmem:[%s787 + $0x44] sm:$0xe] 0
        %810 = vst [vmem:[%s787 + $0x50] sm:$0xe] 0
        %811 = vst [vmem:[%s787 + $0x5c] sm:$0xe] 0
        %812 = vst [vmem:[%s787 + $0x68] sm:$0xe] 0
        %813 = vst [vmem:[%s787 + $0x74] sm:$0xe] 0
        %814 = vst [vmem:[%s787 + $0x80] sm:$0xe] 0
        %815 = vst [vmem:[%s787 + $0x8c] sm:$0xe] 0
        %816 = vst [vmem:[%s787 + $0x98] sm:$0xe] 0
        %817 = vst [vmem:[%s787 + $0xa4] sm:$0xe] 0
        %818 = vst [vmem:[%s787 + $0xb0] sm:$0xe] 0
        %819 = vst [vmem:[%s787 + $0xbc] sm:$0xe] 0
        %v820 = vpack.c.bf16 %v743, %v742
        %v821 = vpack.c.bf16 %v745, %v744
        %v822 = vpack.c.bf16 %v747, %v746
        %v823 = vpack.c.bf16 %v749, %v748
        %v824 = vpack.c.bf16 %v751, %v750
        %v825 = vpack.c.bf16 %v753, %v752
        %v826 = vpack.c.bf16 %v755, %v754
        %v827 = vpack.c.bf16 %v757, %v756
        %v828 = vpack.c.bf16 %v759, %v758
        %v829 = vpack.c.bf16 %v761, %v760
        %v830 = vpack.c.bf16 %v763, %v762
        %v831 = vpack.c.bf16 %v765, %v764
        %v832 = vpack.c.bf16 %v767, %v766
        %v833 = vpack.c.bf16 %v769, %v768
        %v834 = vpack.c.bf16 %v771, %v770
        %v835 = vpack.c.bf16 %v773, %v772
        %v852 = vunpack.c.l.b16 %v820
        %v853 = vunpack.c.h.b16 %v820
        %v854 = vunpack.c.l.b16 %v821
        %v855 = vunpack.c.h.b16 %v821
        %v856 = vunpack.c.l.b16 %v822
        %v857 = vunpack.c.h.b16 %v822
        %v858 = vunpack.c.l.b16 %v823
        %v859 = vunpack.c.h.b16 %v823
        %v860 = vunpack.c.l.b16 %v824
        %v861 = vunpack.c.h.b16 %v824
        %v862 = vunpack.c.l.b16 %v825
        %v863 = vunpack.c.h.b16 %v825
        %v864 = vunpack.c.l.b16 %v826
        %v865 = vunpack.c.h.b16 %v826
        %v866 = vunpack.c.l.b16 %v827
        %v867 = vunpack.c.h.b16 %v827
        %v868 = vunpack.c.l.b16 %v828
        %v869 = vunpack.c.h.b16 %v828
        %v870 = vunpack.c.l.b16 %v829
        %v871 = vunpack.c.h.b16 %v829
        %v872 = vunpack.c.l.b16 %v830
        %v873 = vunpack.c.h.b16 %v830
        %v874 = vunpack.c.l.b16 %v831
        %v875 = vunpack.c.h.b16 %v831
        %v876 = vunpack.c.l.b16 %v832
        %v877 = vunpack.c.h.b16 %v832
        %v878 = vunpack.c.l.b16 %v833
        %v879 = vunpack.c.h.b16 %v833
        %v880 = vunpack.c.l.b16 %v834
        %v881 = vunpack.c.h.b16 %v834
        %v882 = vunpack.c.l.b16 %v835
        %v883 = vunpack.c.h.b16 %v835
        %v884 = vpack.c.b16 %v852, %v852
        %v885 = vpack.c.b16 %v853, %v853
        %v886 = vpack.c.b16 %v854, %v854
        %v887 = vpack.c.b16 %v855, %v855
        %v888 = vpack.c.b16 %v856, %v856
        %v889 = vpack.c.b16 %v857, %v857
        %v890 = vpack.c.b16 %v858, %v858
        %v891 = vpack.c.b16 %v859, %v859
        %v892 = vpack.c.b16 %v860, %v860
        %v893 = vpack.c.b16 %v861, %v861
        %v894 = vpack.c.b16 %v862, %v862
        %v895 = vpack.c.b16 %v863, %v863
        %v896 = vpack.c.b16 %v864, %v864
        %v897 = vpack.c.b16 %v865, %v865
        %v898 = vpack.c.b16 %v866, %v866
        %v899 = vpack.c.b16 %v867, %v867
        %v900 = vpack.c.b16 %v868, %v868
        %v901 = vpack.c.b16 %v869, %v869
        %v902 = vpack.c.b16 %v870, %v870
        %v903 = vpack.c.b16 %v871, %v871
        %v904 = vpack.c.b16 %v872, %v872
        %v905 = vpack.c.b16 %v873, %v873
        %v906 = vpack.c.b16 %v874, %v874
        %v907 = vpack.c.b16 %v875, %v875
        %v908 = vpack.c.b16 %v876, %v876
        %v909 = vpack.c.b16 %v877, %v877
        %v910 = vpack.c.b16 %v878, %v878
        %v911 = vpack.c.b16 %v879, %v879
        %v912 = vpack.c.b16 %v880, %v880
        %v913 = vpack.c.b16 %v881, %v881
        %v914 = vpack.c.b16 %v882, %v882
        %v915 = vpack.c.b16 %v883, %v883
        %vm916 = vcmask 1040384
        %vm917 = vcmask 1044484
        %vm918 = vmor %vm916, %vm917
        %v919 = vrot.slane %v884, 7
        %v920 = vrot.slane %v919, 4
        %v921 = vrot.slane %v885, 7
        %v922 = vsel %vm918, %v920, %v921
        %v923 = vrot.slane %v921, 4
        %v924 = vrot.slane %v886, 7
        %v925 = vrot.slane %v924, 4
        %v926 = vrot.slane %v887, 7
        %v927 = vsel %vm918, %v925, %v926
        %v928 = vrot.slane %v926, 4
        %v929 = vrot.slane %v888, 7
        %v930 = vrot.slane %v929, 4
        %v931 = vrot.slane %v889, 7
        %v932 = vsel %vm918, %v930, %v931
        %v933 = vrot.slane %v931, 4
        %v934 = vrot.slane %v890, 7
        %v935 = vrot.slane %v934, 4
        %v936 = vrot.slane %v891, 7
        %v937 = vsel %vm918, %v935, %v936
        %v938 = vrot.slane %v936, 4
        %v939 = vrot.slane %v892, 7
        %v940 = vrot.slane %v939, 4
        %v941 = vrot.slane %v893, 7
        %v942 = vsel %vm918, %v940, %v941
        %v943 = vrot.slane %v941, 4
        %v944 = vrot.slane %v894, 7
        %v945 = vrot.slane %v944, 4
        %v946 = vrot.slane %v895, 7
        %v947 = vsel %vm918, %v945, %v946
        %v948 = vrot.slane %v946, 4
        %v949 = vrot.slane %v896, 7
        %v950 = vrot.slane %v949, 4
        %v951 = vrot.slane %v897, 7
        %v952 = vsel %vm918, %v950, %v951
        %v953 = vrot.slane %v951, 4
        %v954 = vrot.slane %v898, 7
        %v955 = vrot.slane %v954, 4
        %v956 = vrot.slane %v899, 7
        %v957 = vsel %vm918, %v955, %v956
        %v958 = vrot.slane %v956, 4
        %v959 = vrot.slane %v900, 7
        %v960 = vrot.slane %v959, 4
        %v961 = vrot.slane %v901, 7
        %v962 = vsel %vm918, %v960, %v961
        %v963 = vrot.slane %v961, 4
        %v964 = vrot.slane %v902, 7
        %v965 = vrot.slane %v964, 4
        %v966 = vrot.slane %v903, 7
        %v967 = vsel %vm918, %v965, %v966
        %v968 = vrot.slane %v966, 4
        %v969 = vrot.slane %v904, 7
        %v970 = vrot.slane %v969, 4
        %v971 = vrot.slane %v905, 7
        %v972 = vsel %vm918, %v970, %v971
        %v973 = vrot.slane %v971, 4
        %v974 = vrot.slane %v906, 7
        %v975 = vrot.slane %v974, 4
        %v976 = vrot.slane %v907, 7
        %v977 = vsel %vm918, %v975, %v976
        %v978 = vrot.slane %v976, 4
        %v979 = vrot.slane %v908, 7
        %v980 = vrot.slane %v979, 4
        %v981 = vrot.slane %v909, 7
        %v982 = vsel %vm918, %v980, %v981
        %v983 = vrot.slane %v981, 4
        %v984 = vrot.slane %v910, 7
        %v985 = vrot.slane %v984, 4
        %v986 = vrot.slane %v911, 7
        %v987 = vsel %vm918, %v985, %v986
        %v988 = vrot.slane %v986, 4
        %v989 = vrot.slane %v912, 7
        %v990 = vrot.slane %v989, 4
        %v991 = vrot.slane %v913, 7
        %v992 = vsel %vm918, %v990, %v991
        %v993 = vrot.slane %v991, 4
        %v994 = vrot.slane %v914, 7
        %v995 = vrot.slane %v994, 4
        %v996 = vrot.slane %v915, 7
        %v997 = vsel %vm918, %v995, %v996
        %v998 = vrot.slane %v996, 4
        %1047 = vst [vmem:[%s787] sm:$0xe] %v919
        %1048 = vst [vmem:[%s787 + $0x4] sm:$0xf] %v922
        %1049 = vst [vmem:[%s787 + $0x8] sm:$0x1] %v923
        %1050 = vst [vmem:[%s787 + $0xc] sm:$0xe] %v924
        %1051 = vst [vmem:[%s787 + $0x10] sm:$0xf] %v927
        %1052 = vst [vmem:[%s787 + $0x14] sm:$0x1] %v928
        %1053 = vst [vmem:[%s787 + $0x18] sm:$0xe] %v929
        %1054 = vst [vmem:[%s787 + $0x1c] sm:$0xf] %v932
        %1055 = vst [vmem:[%s787 + $0x20] sm:$0x1] %v933
        %1056 = vst [vmem:[%s787 + $0x24] sm:$0xe] %v934
        %1057 = vst [vmem:[%s787 + $0x28] sm:$0xf] %v937
        %1058 = vst [vmem:[%s787 + $0x2c] sm:$0x1] %v938
        %1059 = vst [vmem:[%s787 + $0x30] sm:$0xe] %v939
        %1060 = vst [vmem:[%s787 + $0x34] sm:$0xf] %v942
        %1061 = vst [vmem:[%s787 + $0x38] sm:$0x1] %v943
        %1062 = vst [vmem:[%s787 + $0x3c] sm:$0xe] %v944
        %1063 = vst [vmem:[%s787 + $0x40] sm:$0xf] %v947
        %1064 = vst [vmem:[%s787 + $0x44] sm:$0x1] %v948
        %1065 = vst [vmem:[%s787 + $0x48] sm:$0xe] %v949
        %1066 = vst [vmem:[%s787 + $0x4c] sm:$0xf] %v952
        %1067 = vst [vmem:[%s787 + $0x50] sm:$0x1] %v953
        %1068 = vst [vmem:[%s787 + $0x54] sm:$0xe] %v954
        %1069 = vst [vmem:[%s787 + $0x58] sm:$0xf] %v957
        %1070 = vst [vmem:[%s787 + $0x5c] sm:$0x1] %v958
        %1071 = vst [vmem:[%s787 + $0x60] sm:$0xe] %v959
        %1072 = vst [vmem:[%s787 + $0x64] sm:$0xf] %v962
        %1073 = vst [vmem:[%s787 + $0x68] sm:$0x1] %v963
        %1074 = vst [vmem:[%s787 + $0x6c] sm:$0xe] %v964
        %1075 = vst [vmem:[%s787 + $0x70] sm:$0xf] %v967
        %1076 = vst [vmem:[%s787 + $0x74] sm:$0x1] %v968
        %1077 = vst [vmem:[%s787 + $0x78] sm:$0xe] %v969
        %1078 = vst [vmem:[%s787 + $0x7c] sm:$0xf] %v972
        %1079 = vst [vmem:[%s787 + $0x80] sm:$0x1] %v973
        %1080 = vst [vmem:[%s787 + $0x84] sm:$0xe] %v974
        %1081 = vst [vmem:[%s787 + $0x88] sm:$0xf] %v977
        %1082 = vst [vmem:[%s787 + $0x8c] sm:$0x1] %v978
        %1083 = vst [vmem:[%s787 + $0x90] sm:$0xe] %v979
        %1084 = vst [vmem:[%s787 + $0x94] sm:$0xf] %v982
        %1085 = vst [vmem:[%s787 + $0x98] sm:$0x1] %v983
        %1086 = vst [vmem:[%s787 + $0x9c] sm:$0xe] %v984
        %1087 = vst [vmem:[%s787 + $0xa0] sm:$0xf] %v987
        %1088 = vst [vmem:[%s787 + $0xa4] sm:$0x1] %v988
        %1089 = vst [vmem:[%s787 + $0xa8] sm:$0xe] %v989
        %1090 = vst [vmem:[%s787 + $0xac] sm:$0xf] %v992
        %1091 = vst [vmem:[%s787 + $0xb0] sm:$0x1] %v993
        %1092 = vst [vmem:[%s787 + $0xb4] sm:$0xe] %v994
        %1093 = vst [vmem:[%s787 + $0xb8] sm:$0xf] %v997
        %1094 = vst [vmem:[%s787 + $0xbc] sm:$0x1] %v998
        %v1095 = vld [vmem:[#allocation2] sm:$0xf]
        %v1096 = vld [vmem:[#allocation2 + $0x4] sm:$0xf]
        %v1097 = vld [vmem:[#allocation2 + $0xc] sm:$0xf]
        %v1098 = vld [vmem:[#allocation2 + $0x10] sm:$0xf]
        %v1099 = vld [vmem:[#allocation2 + $0x18] sm:$0xf]
        %v1100 = vld [vmem:[#allocation2 + $0x1c] sm:$0xf]
        %v1101 = vld [vmem:[#allocation2 + $0x24] sm:$0xf]
        %v1102 = vld [vmem:[#allocation2 + $0x28] sm:$0xf]
        %v1103 = vld [vmem:[#allocation2 + $0x30] sm:$0xf]
        %v1104 = vld [vmem:[#allocation2 + $0x34] sm:$0xf]
        %v1105 = vld [vmem:[#allocation2 + $0x3c] sm:$0xf]
        %v1106 = vld [vmem:[#allocation2 + $0x40] sm:$0xf]
        %v1107 = vld [vmem:[#allocation2 + $0x48] sm:$0xf]
        %v1108 = vld [vmem:[#allocation2 + $0x4c] sm:$0xf]
        %v1109 = vld [vmem:[#allocation2 + $0x54] sm:$0xf]
        %v1110 = vld [vmem:[#allocation2 + $0x58] sm:$0xf]
        %v1111 = vld [vmem:[#allocation2 + $0x60] sm:$0xf]
        %v1112 = vld [vmem:[#allocation2 + $0x64] sm:$0xf]
        %v1113 = vld [vmem:[#allocation2 + $0x6c] sm:$0xf]
        %v1114 = vld [vmem:[#allocation2 + $0x70] sm:$0xf]
        %v1115 = vld [vmem:[#allocation2 + $0x78] sm:$0xf]
        %v1116 = vld [vmem:[#allocation2 + $0x7c] sm:$0xf]
        %v1117 = vld [vmem:[#allocation2 + $0x84] sm:$0xf]
        %v1118 = vld [vmem:[#allocation2 + $0x88] sm:$0xf]
        %v1119 = vld [vmem:[#allocation2 + $0x90] sm:$0xf]
        %v1120 = vld [vmem:[#allocation2 + $0x94] sm:$0xf]
        %v1121 = vld [vmem:[#allocation2 + $0x9c] sm:$0xf]
        %v1122 = vld [vmem:[#allocation2 + $0xa0] sm:$0xf]
        %v1123 = vld [vmem:[#allocation2 + $0xa8] sm:$0xf]
        %v1124 = vld [vmem:[#allocation2 + $0xac] sm:$0xf]
        %v1125 = vld [vmem:[#allocation2 + $0xb4] sm:$0xf]
        %v1126 = vld [vmem:[#allocation2 + $0xb8] sm:$0xf]
        %v1127 = vld [vmem:[#allocation10] sm:$0xf]
        %v1128 = vld [vmem:[#allocation10 + $0x4] sm:$0xf]
        %v1129 = vld [vmem:[#allocation10 + $0x8] sm:$0xf]
        %v1130 = vld [vmem:[#allocation10 + $0xc] sm:$0xf]
        %v1131 = vld [vmem:[#allocation10 + $0x10] sm:$0xf]
        %v1132 = vld [vmem:[#allocation10 + $0x14] sm:$0xf]
        %v1133 = vld [vmem:[#allocation10 + $0x18] sm:$0xf]
        %v1134 = vld [vmem:[#allocation10 + $0x1c] sm:$0xf]
        %v1135 = vld [vmem:[#allocation10 + $0x20] sm:$0xf]
        %v1136 = vld [vmem:[#allocation10 + $0x24] sm:$0xf]
        %v1137 = vld [vmem:[#allocation10 + $0x28] sm:$0xf]
        %v1138 = vld [vmem:[#allocation10 + $0x2c] sm:$0xf]
        %v1139 = vld [vmem:[#allocation10 + $0x30] sm:$0xf]
        %v1140 = vld [vmem:[#allocation10 + $0x34] sm:$0xf]
        %v1141 = vld [vmem:[#allocation10 + $0x38] sm:$0xf]
        %v1142 = vld [vmem:[#allocation10 + $0x3c] sm:$0xf]
        %v1175 = vunpack.c.l.b16 %v1095
        %v1176 = vunpack.c.l.b16 %v1096
        %v1177 = vunpack.c.l.b16 %v1097
        %v1178 = vunpack.c.l.b16 %v1098
        %v1179 = vunpack.c.l.b16 %v1099
        %v1180 = vunpack.c.l.b16 %v1100
        %v1181 = vunpack.c.l.b16 %v1101
        %v1182 = vunpack.c.l.b16 %v1102
        %v1183 = vunpack.c.l.b16 %v1103
        %v1184 = vunpack.c.l.b16 %v1104
        %v1185 = vunpack.c.l.b16 %v1105
        %v1186 = vunpack.c.l.b16 %v1106
        %v1187 = vunpack.c.l.b16 %v1107
        %v1188 = vunpack.c.l.b16 %v1108
        %v1189 = vunpack.c.l.b16 %v1109
        %v1190 = vunpack.c.l.b16 %v1110
        %v1191 = vunpack.c.l.b16 %v1111
        %v1192 = vunpack.c.l.b16 %v1112
        %v1193 = vunpack.c.l.b16 %v1113
        %v1194 = vunpack.c.l.b16 %v1114
        %v1195 = vunpack.c.l.b16 %v1115
        %v1196 = vunpack.c.l.b16 %v1116
        %v1197 = vunpack.c.l.b16 %v1117
        %v1198 = vunpack.c.l.b16 %v1118
        %v1199 = vunpack.c.l.b16 %v1119
        %v1200 = vunpack.c.l.b16 %v1120
        %v1201 = vunpack.c.l.b16 %v1121
        %v1202 = vunpack.c.l.b16 %v1122
        %v1203 = vunpack.c.l.b16 %v1123
        %v1204 = vunpack.c.l.b16 %v1124
        %v1205 = vunpack.c.l.b16 %v1125
        %v1206 = vunpack.c.l.b16 %v1126
        %v1207 = vpack.c.b16 %v1176, %v1175
        %v1208 = vpack.c.b16 %v1178, %v1177
        %v1209 = vpack.c.b16 %v1180, %v1179
        %v1210 = vpack.c.b16 %v1182, %v1181
        %v1211 = vpack.c.b16 %v1184, %v1183
        %v1212 = vpack.c.b16 %v1186, %v1185
        %v1213 = vpack.c.b16 %v1188, %v1187
        %v1214 = vpack.c.b16 %v1190, %v1189
        %v1215 = vpack.c.b16 %v1192, %v1191
        %v1216 = vpack.c.b16 %v1194, %v1193
        %v1217 = vpack.c.b16 %v1196, %v1195
        %v1218 = vpack.c.b16 %v1198, %v1197
        %v1219 = vpack.c.b16 %v1200, %v1199
        %v1220 = vpack.c.b16 %v1202, %v1201
        %v1221 = vpack.c.b16 %v1204, %v1203
        %v1222 = vpack.c.b16 %v1206, %v1205
        %v1255 = vunpack.c.l.b16 %v1127
        %v1256 = vunpack.c.l.b16 %v1128
        %v1257 = vunpack.c.l.b16 %v1129
        %v1258 = vunpack.c.l.b16 %v1130
        %v1259 = vunpack.c.l.b16 %v1131
        %v1260 = vunpack.c.l.b16 %v1132
        %v1261 = vunpack.c.l.b16 %v1133
        %v1262 = vunpack.c.l.b16 %v1134
        %v1263 = vunpack.c.l.b16 %v1135
        %v1264 = vunpack.c.l.b16 %v1136
        %v1265 = vunpack.c.l.b16 %v1137
        %v1266 = vunpack.c.l.b16 %v1138
        %v1267 = vunpack.c.l.b16 %v1139
        %v1268 = vunpack.c.l.b16 %v1140
        %v1269 = vunpack.c.l.b16 %v1141
        %v1270 = vunpack.c.l.b16 %v1142
        %v1271 = vpack.c.b16 %v1256, %v1255
        %v1272 = vpack.c.b16 %v1258, %v1257
        %v1273 = vpack.c.b16 %v1260, %v1259
        %v1274 = vpack.c.b16 %v1262, %v1261
        %v1275 = vpack.c.b16 %v1264, %v1263
        %v1276 = vpack.c.b16 %v1266, %v1265
        %v1277 = vpack.c.b16 %v1268, %v1267
        %v1278 = vpack.c.b16 %v1270, %v1269
        %1287 = vmatprep.subr.bf16.mxu0 0
        %1288 = vmatpush1.bf16.msra.mxu0 %v1271
        %1289 = vmatprep.subr.bf16.mxu0 0
        %1290 = vmatpush1.bf16.msra.mxu0 %v1272
        %1291 = vmatprep.subr.bf16.mxu0 0
        %1292 = vmatpush1.bf16.msra.mxu0 %v1273
        %1293 = vmatprep.subr.bf16.mxu0 0
        %1294 = vmatpush1.bf16.msra.mxu0 %v1274
        %1295 = vmatprep.subr.bf16.mxu0 0
        %1296 = vmatpush1.bf16.msra.mxu0 %v1275
        %1297 = vmatprep.subr.bf16.mxu0 0
        %1298 = vmatpush1.bf16.msra.mxu0 %v1276
        %1299 = vmatprep.subr.bf16.mxu0 0
        %1300 = vmatpush1.bf16.msra.mxu0 %v1277
        %1301 = vmatprep.subr.bf16.mxu0 0
        %1302 = vmatpush1.bf16.msra.mxu0 %v1278
        %1303 = vmatprep.subr.bf16.mxu0 0
        %1304 = vmatpush1.bf16.msra.mxu0 0
        %1305 = vmatprep.subr.bf16.mxu0 0
        %1306 = vmatpush1.bf16.msra.mxu0 0
        %1307 = vmatprep.subr.bf16.mxu0 0
        %1308 = vmatpush1.bf16.msra.mxu0 0
        %1309 = vmatprep.subr.bf16.mxu0 0
        %1310 = vmatpush1.bf16.msra.mxu0 0
        %1311 = vmatprep.subr.bf16.mxu0 0
        %1312 = vmatpush1.bf16.msra.mxu0 0
        %1313 = vmatprep.subr.bf16.mxu0 0
        %1314 = vmatpush1.bf16.msra.mxu0 0
        %1315 = vmatprep.subr.bf16.mxu0 0
        %1316 = vmatpush1.bf16.msra.mxu0 0
        %1317 = vmatprep.subr.bf16.mxu0 0
        %1318 = vmatpush1.bf16.msra.mxu0 0
        %1319 = vmatprep.mubr.bf16.mxu0 0
        %1320 = vmatmul.mubr.bf16.gmra.mrb[0].mxu0 %v1207
        %v1321 = vpop.f32.mrb[0].mxu0
        %v1322 = vadd.f32 0.0, %v1321
        %v1323 = vpop.f32.mrb[0].mxu0
        %v1324 = vpop.f32.mrb[0].mxu0
        %v1325 = vadd.f32 0.0, %v1324
        %v1326 = vpop.f32.mrb[0].mxu0
        %1327 = vmatprep.mubr.bf16.mxu0 0
        %1328 = vmatmul.mubr.bf16.gmra.mrb[0].mxu0 %v1208
        %v1329 = vpop.f32.mrb[0].mxu0
        %v1330 = vadd.f32 0.0, %v1329
        %v1331 = vpop.f32.mrb[0].mxu0
        %v1332 = vpop.f32.mrb[0].mxu0
        %v1333 = vadd.f32 0.0, %v1332
        %v1334 = vpop.f32.mrb[0].mxu0
        %1335 = vmatprep.mubr.bf16.mxu0 0
        %1336 = vmatmul.mubr.bf16.gmra.mrb[0].mxu0 %v1209
        %v1337 = vpop.f32.mrb[0].mxu0
        %v1338 = vadd.f32 0.0, %v1337
        %v1339 = vpop.f32.mrb[0].mxu0
        %v1340 = vpop.f32.mrb[0].mxu0
        %v1341 = vadd.f32 0.0, %v1340
        %v1342 = vpop.f32.mrb[0].mxu0
        %1343 = vmatprep.mubr.bf16.mxu0 0
        %1344 = vmatmul.mubr.bf16.gmra.mrb[0].mxu0 %v1210
        %v1345 = vpop.f32.mrb[0].mxu0
        %v1346 = vadd.f32 0.0, %v1345
        %v1347 = vpop.f32.mrb[0].mxu0
        %v1348 = vpop.f32.mrb[0].mxu0
        %v1349 = vadd.f32 0.0, %v1348
        %v1350 = vpop.f32.mrb[0].mxu0
        %1351 = vmatprep.mubr.bf16.mxu0 0
        %1352 = vmatmul.mubr.bf16.gmra.mrb[0].mxu0 %v1211
        %v1353 = vpop.f32.mrb[0].mxu0
        %v1354 = vadd.f32 0.0, %v1353
        %v1355 = vpop.f32.mrb[0].mxu0
        %v1356 = vpop.f32.mrb[0].mxu0
        %v1357 = vadd.f32 0.0, %v1356
        %v1358 = vpop.f32.mrb[0].mxu0
        %1359 = vmatprep.mubr.bf16.mxu0 0
        %1360 = vmatmul.mubr.bf16.gmra.mrb[0].mxu0 %v1212
        %v1361 = vpop.f32.mrb[0].mxu0
        %v1362 = vadd.f32 0.0, %v1361
        %v1363 = vpop.f32.mrb[0].mxu0
        %v1364 = vpop.f32.mrb[0].mxu0
        %v1365 = vadd.f32 0.0, %v1364
        %v1366 = vpop.f32.mrb[0].mxu0
        %1367 = vmatprep.mubr.bf16.mxu0 0
        %1368 = vmatmul.mubr.bf16.gmra.mrb[0].mxu0 %v1213
        %v1369 = vpop.f32.mrb[0].mxu0
        %v1370 = vadd.f32 0.0, %v1369
        %v1371 = vpop.f32.mrb[0].mxu0
        %v1372 = vpop.f32.mrb[0].mxu0
        %v1373 = vadd.f32 0.0, %v1372
        %v1374 = vpop.f32.mrb[0].mxu0
        %1375 = vmatprep.mubr.bf16.mxu0 0
        %1376 = vmatmul.mubr.bf16.gmra.mrb[0].mxu0 %v1214
        %v1377 = vpop.f32.mrb[0].mxu0
        %v1378 = vadd.f32 0.0, %v1377
        %v1379 = vpop.f32.mrb[0].mxu0
        %v1380 = vpop.f32.mrb[0].mxu0
        %v1381 = vadd.f32 0.0, %v1380
        %v1382 = vpop.f32.mrb[0].mxu0
        %1383 = vmatprep.mubr.bf16.mxu0 0
        %1384 = vmatmul.mubr.bf16.gmra.mrb[0].mxu0 %v1215
        %v1385 = vpop.f32.mrb[0].mxu0
        %v1386 = vadd.f32 0.0, %v1385
        %v1387 = vpop.f32.mrb[0].mxu0
        %v1388 = vpop.f32.mrb[0].mxu0
        %v1389 = vadd.f32 0.0, %v1388
        %v1390 = vpop.f32.mrb[0].mxu0
        %1391 = vmatprep.mubr.bf16.mxu0 0
        %1392 = vmatmul.mubr.bf16.gmra.mrb[0].mxu0 %v1216
        %v1393 = vpop.f32.mrb[0].mxu0
        %v1394 = vadd.f32 0.0, %v1393
        %v1395 = vpop.f32.mrb[0].mxu0
        %v1396 = vpop.f32.mrb[0].mxu0
        %v1397 = vadd.f32 0.0, %v1396
        %v1398 = vpop.f32.mrb[0].mxu0
        %1399 = vmatprep.mubr.bf16.mxu0 0
        %1400 = vmatmul.mubr.bf16.gmra.mrb[0].mxu0 %v1217
        %v1401 = vpop.f32.mrb[0].mxu0
        %v1402 = vadd.f32 0.0, %v1401
        %v1403 = vpop.f32.mrb[0].mxu0
        %v1404 = vpop.f32.mrb[0].mxu0
        %v1405 = vadd.f32 0.0, %v1404
        %v1406 = vpop.f32.mrb[0].mxu0
        %1407 = vmatprep.mubr.bf16.mxu0 0
        %1408 = vmatmul.mubr.bf16.gmra.mrb[0].mxu0 %v1218
        %v1409 = vpop.f32.mrb[0].mxu0
        %v1410 = vadd.f32 0.0, %v1409
        %v1411 = vpop.f32.mrb[0].mxu0
        %v1412 = vpop.f32.mrb[0].mxu0
        %v1413 = vadd.f32 0.0, %v1412
        %v1414 = vpop.f32.mrb[0].mxu0
        %1415 = vmatprep.mubr.bf16.mxu0 0
        %1416 = vmatmul.mubr.bf16.gmra.mrb[0].mxu0 %v1219
        %v1417 = vpop.f32.mrb[0].mxu0
        %v1418 = vadd.f32 0.0, %v1417
        %v1419 = vpop.f32.mrb[0].mxu0
        %v1420 = vpop.f32.mrb[0].mxu0
        %v1421 = vadd.f32 0.0, %v1420
        %v1422 = vpop.f32.mrb[0].mxu0
        %1423 = vmatprep.mubr.bf16.mxu0 0
        %1424 = vmatmul.mubr.bf16.gmra.mrb[0].mxu0 %v1220
        %v1425 = vpop.f32.mrb[0].mxu0
        %v1426 = vadd.f32 0.0, %v1425
        %v1427 = vpop.f32.mrb[0].mxu0
        %v1428 = vpop.f32.mrb[0].mxu0
        %v1429 = vadd.f32 0.0, %v1428
        %v1430 = vpop.f32.mrb[0].mxu0
        %1431 = vmatprep.mubr.bf16.mxu0 0
        %1432 = vmatmul.mubr.bf16.gmra.mrb[0].mxu0 %v1221
        %v1433 = vpop.f32.mrb[0].mxu0
        %v1434 = vadd.f32 0.0, %v1433
        %v1435 = vpop.f32.mrb[0].mxu0
        %v1436 = vpop.f32.mrb[0].mxu0
        %v1437 = vadd.f32 0.0, %v1436
        %v1438 = vpop.f32.mrb[0].mxu0
        %1439 = vmatprep.mubr.bf16.mxu0 0
        %1440 = vmatmul.mubr.bf16.gmra.mrb[0].mxu0 %v1222
        %v1441 = vpop.f32.mrb[0].mxu0
        %v1442 = vadd.f32 0.0, %v1441
        %v1443 = vpop.f32.mrb[0].mxu0
        %v1444 = vpop.f32.mrb[0].mxu0
        %v1445 = vadd.f32 0.0, %v1444
        %v1446 = vpop.f32.mrb[0].mxu0
        %1447 = vdwg.mxu0
        %1448 = vst [vmem:[#allocation3] sm:$0xff] %v1322
        %1449 = vst [vmem:[#allocation3 + $0x8] sm:$0xff] %v1325
        %1450 = vst [vmem:[#allocation3 + $0x10] sm:$0xff] %v1330
        %1451 = vst [vmem:[#allocation3 + $0x18] sm:$0xff] %v1333
        %1452 = vst [vmem:[#allocation3 + $0x20] sm:$0xff] %v1338
        %1453 = vst [vmem:[#allocation3 + $0x28] sm:$0xff] %v1341
        %1454 = vst [vmem:[#allocation3 + $0x30] sm:$0xff] %v1346
        %1455 = vst [vmem:[#allocation3 + $0x38] sm:$0xff] %v1349
        %1456 = vst [vmem:[#allocation3 + $0x40] sm:$0xff] %v1354
        %1457 = vst [vmem:[#allocation3 + $0x48] sm:$0xff] %v1357
        %1458 = vst [vmem:[#allocation3 + $0x50] sm:$0xff] %v1362
        %1459 = vst [vmem:[#allocation3 + $0x58] sm:$0xff] %v1365
        %1460 = vst [vmem:[#allocation3 + $0x60] sm:$0xff] %v1370
        %1461 = vst [vmem:[#allocation3 + $0x68] sm:$0xff] %v1373
        %1462 = vst [vmem:[#allocation3 + $0x70] sm:$0xff] %v1378
        %1463 = vst [vmem:[#allocation3 + $0x78] sm:$0xff] %v1381
        %1464 = vst [vmem:[#allocation3 + $0x80] sm:$0xff] %v1386
        %1465 = vst [vmem:[#allocation3 + $0x88] sm:$0xff] %v1389
        %1466 = vst [vmem:[#allocation3 + $0x90] sm:$0xff] %v1394
        %1467 = vst [vmem:[#allocation3 + $0x98] sm:$0xff] %v1397
        %1468 = vst [vmem:[#allocation3 + $0xa0] sm:$0xff] %v1402
        %1469 = vst [vmem:[#allocation3 + $0xa8] sm:$0xff] %v1405
        %1470 = vst [vmem:[#allocation3 + $0xb0] sm:$0xff] %v1410
        %1471 = vst [vmem:[#allocation3 + $0xb8] sm:$0xff] %v1413
        %1472 = vst [vmem:[#allocation3 + $0xc0] sm:$0xff] %v1418
        %1473 = vst [vmem:[#allocation3 + $0xc8] sm:$0xff] %v1421
        %1474 = vst [vmem:[#allocation3 + $0xd0] sm:$0xff] %v1426
        %1475 = vst [vmem:[#allocation3 + $0xd8] sm:$0xff] %v1429
        %1476 = vst [vmem:[#allocation3 + $0xe0] sm:$0xff] %v1434
        %1477 = vst [vmem:[#allocation3 + $0xe8] sm:$0xff] %v1437
        %1478 = vst [vmem:[#allocation3 + $0xf0] sm:$0xff] %v1442
        %1479 = vst [vmem:[#allocation3 + $0xf8] sm:$0xff] %v1445
        %v1480 = vld [vmem:[#allocation3] sm:$0xff]
        %v1481 = vld [vmem:[#allocation3 + $0x8] sm:$0xff]
        %v1482 = vld [vmem:[#allocation3 + $0x10] sm:$0xff]
        %v1483 = vld [vmem:[#allocation3 + $0x18] sm:$0xff]
        %v1484 = vld [vmem:[#allocation3 + $0x20] sm:$0xff]
        %v1485 = vld [vmem:[#allocation3 + $0x28] sm:$0xff]
        %v1486 = vld [vmem:[#allocation3 + $0x30] sm:$0xff]
        %v1487 = vld [vmem:[#allocation3 + $0x38] sm:$0xff]
        %v1488 = vld [vmem:[#allocation3 + $0x40] sm:$0xff]
        %v1489 = vld [vmem:[#allocation3 + $0x48] sm:$0xff]
        %v1490 = vld [vmem:[#allocation3 + $0x50] sm:$0xff]
        %v1491 = vld [vmem:[#allocation3 + $0x58] sm:$0xff]
        %v1492 = vld [vmem:[#allocation3 + $0x60] sm:$0xff]
        %v1493 = vld [vmem:[#allocation3 + $0x68] sm:$0xff]
        %v1494 = vld [vmem:[#allocation3 + $0x70] sm:$0xff]
        %v1495 = vld [vmem:[#allocation3 + $0x78] sm:$0xff]
        %v1496 = vld [vmem:[#allocation3 + $0x80] sm:$0xff]
        %v1497 = vld [vmem:[#allocation3 + $0x88] sm:$0xff]
        %v1498 = vld [vmem:[#allocation3 + $0x90] sm:$0xff]
        %v1499 = vld [vmem:[#allocation3 + $0x98] sm:$0xff]
        %v1500 = vld [vmem:[#allocation3 + $0xa0] sm:$0xff]
        %v1501 = vld [vmem:[#allocation3 + $0xa8] sm:$0xff]
        %v1502 = vld [vmem:[#allocation3 + $0xb0] sm:$0xff]
        %v1503 = vld [vmem:[#allocation3 + $0xb8] sm:$0xff]
        %v1504 = vld [vmem:[#allocation3 + $0xc0] sm:$0xff]
        %v1505 = vld [vmem:[#allocation3 + $0xc8] sm:$0xff]
        %v1506 = vld [vmem:[#allocation3 + $0xd0] sm:$0xff]
        %v1507 = vld [vmem:[#allocation3 + $0xd8] sm:$0xff]
        %v1508 = vld [vmem:[#allocation3 + $0xe0] sm:$0xff]
        %v1509 = vld [vmem:[#allocation3 + $0xe8] sm:$0xff]
        %v1510 = vld [vmem:[#allocation3 + $0xf0] sm:$0xff]
        %v1511 = vld [vmem:[#allocation3 + $0xf8] sm:$0xff]
        %v1512 = vld [vmem:[#allocation2] sm:$0xe]
        %v1513 = vld [vmem:[#allocation2 + $0x4] sm:$0xf]
        %v1514 = vld [vmem:[#allocation2 + $0x8] sm:$0x1]
        %v1515 = vld [vmem:[#allocation2 + $0xc] sm:$0xe]
        %v1516 = vld [vmem:[#allocation2 + $0x10] sm:$0xf]
        %v1517 = vld [vmem:[#allocation2 + $0x14] sm:$0x1]
        %v1518 = vld [vmem:[#allocation2 + $0x18] sm:$0xe]
        %v1519 = vld [vmem:[#allocation2 + $0x1c] sm:$0xf]
        %v1520 = vld [vmem:[#allocation2 + $0x20] sm:$0x1]
        %v1521 = vld [vmem:[#allocation2 + $0x24] sm:$0xe]
        %v1522 = vld [vmem:[#allocation2 + $0x28] sm:$0xf]
        %v1523 = vld [vmem:[#allocation2 + $0x2c] sm:$0x1]
        %v1524 = vld [vmem:[#allocation2 + $0x30] sm:$0xe]
        %v1525 = vld [vmem:[#allocation2 + $0x34] sm:$0xf]
        %v1526 = vld [vmem:[#allocation2 + $0x38] sm:$0x1]
        %v1527 = vld [vmem:[#allocation2 + $0x3c] sm:$0xe]
        %v1528 = vld [vmem:[#allocation2 + $0x40] sm:$0xf]
        %v1529 = vld [vmem:[#allocation2 + $0x44] sm:$0x1]
        %v1530 = vld [vmem:[#allocation2 + $0x48] sm:$0xe]
        %v1531 = vld [vmem:[#allocation2 + $0x4c] sm:$0xf]
        %v1532 = vld [vmem:[#allocation2 + $0x50] sm:$0x1]
        %v1533 = vld [vmem:[#allocation2 + $0x54] sm:$0xe]
        %v1534 = vld [vmem:[#allocation2 + $0x58] sm:$0xf]
        %v1535 = vld [vmem:[#allocation2 + $0x5c] sm:$0x1]
        %v1536 = vld [vmem:[#allocation2 + $0x60] sm:$0xe]
        %v1537 = vld [vmem:[#allocation2 + $0x64] sm:$0xf]
        %v1538 = vld [vmem:[#allocation2 + $0x68] sm:$0x1]
        %v1539 = vld [vmem:[#allocation2 + $0x6c] sm:$0xe]
        %v1540 = vld [vmem:[#allocation2 + $0x70] sm:$0xf]
        %v1541 = vld [vmem:[#allocation2 + $0x74] sm:$0x1]
        %v1542 = vld [vmem:[#allocation2 + $0x78] sm:$0xe]
        %v1543 = vld [vmem:[#allocation2 + $0x7c] sm:$0xf]
        %v1544 = vld [vmem:[#allocation2 + $0x80] sm:$0x1]
        %v1545 = vld [vmem:[#allocation2 + $0x84] sm:$0xe]
        %v1546 = vld [vmem:[#allocation2 + $0x88] sm:$0xf]
        %v1547 = vld [vmem:[#allocation2 + $0x8c] sm:$0x1]
        %v1548 = vld [vmem:[#allocation2 + $0x90] sm:$0xe]
        %v1549 = vld [vmem:[#allocation2 + $0x94] sm:$0xf]
        %v1550 = vld [vmem:[#allocation2 + $0x98] sm:$0x1]
        %v1551 = vld [vmem:[#allocation2 + $0x9c] sm:$0xe]
        %v1552 = vld [vmem:[#allocation2 + $0xa0] sm:$0xf]
        %v1553 = vld [vmem:[#allocation2 + $0xa4] sm:$0x1]
        %v1554 = vld [vmem:[#allocation2 + $0xa8] sm:$0xe]
        %v1555 = vld [vmem:[#allocation2 + $0xac] sm:$0xf]
        %v1556 = vld [vmem:[#allocation2 + $0xb0] sm:$0x1]
        %v1557 = vld [vmem:[#allocation2 + $0xb4] sm:$0xe]
        %v1558 = vld [vmem:[#allocation2 + $0xb8] sm:$0xf]
        %v1559 = vld [vmem:[#allocation2 + $0xbc] sm:$0x1]
        %vm1608 = vcmask 1042432
        %vm1609 = vcmask 1046532
        %vm1610 = vmor %vm1608, %vm1609
        %v1611 = vrot.slane %v1512, 5
        %v1612 = vrot.slane %v1611, 4
        %v1613 = vrot.slane %v1513, 5
        %v1614 = vsel %vm1610, %v1612, %v1613
        %v1615 = vrot.slane %v1613, 4
        %v1616 = vrot.slane %v1514, 5
        %v1617 = vsel %vm1610, %v1615, %v1616
        %v1618 = vrot.slane %v1515, 5
        %v1619 = vrot.slane %v1618, 4
        %v1620 = vrot.slane %v1516, 5
        %v1621 = vsel %vm1610, %v1619, %v1620
        %v1622 = vrot.slane %v1620, 4
        %v1623 = vrot.slane %v1517, 5
        %v1624 = vsel %vm1610, %v1622, %v1623
        %v1625 = vrot.slane %v1518, 5
        %v1626 = vrot.slane %v1625, 4
        %v1627 = vrot.slane %v1519, 5
        %v1628 = vsel %vm1610, %v1626, %v1627
        %v1629 = vrot.slane %v1627, 4
        %v1630 = vrot.slane %v1520, 5
        %v1631 = vsel %vm1610, %v1629, %v1630
        %v1632 = vrot.slane %v1521, 5
        %v1633 = vrot.slane %v1632, 4
        %v1634 = vrot.slane %v1522, 5
        %v1635 = vsel %vm1610, %v1633, %v1634
        %v1636 = vrot.slane %v1634, 4
        %v1637 = vrot.slane %v1523, 5
        %v1638 = vsel %vm1610, %v1636, %v1637
        %v1639 = vrot.slane %v1524, 5
        %v1640 = vrot.slane %v1639, 4
        %v1641 = vrot.slane %v1525, 5
        %v1642 = vsel %vm1610, %v1640, %v1641
        %v1643 = vrot.slane %v1641, 4
        %v1644 = vrot.slane %v1526, 5
        %v1645 = vsel %vm1610, %v1643, %v1644
        %v1646 = vrot.slane %v1527, 5
        %v1647 = vrot.slane %v1646, 4
        %v1648 = vrot.slane %v1528, 5
        %v1649 = vsel %vm1610, %v1647, %v1648
        %v1650 = vrot.slane %v1648, 4
        %v1651 = vrot.slane %v1529, 5
        %v1652 = vsel %vm1610, %v1650, %v1651
        %v1653 = vrot.slane %v1530, 5
        %v1654 = vrot.slane %v1653, 4
        %v1655 = vrot.slane %v1531, 5
        %v1656 = vsel %vm1610, %v1654, %v1655
        %v1657 = vrot.slane %v1655, 4
        %v1658 = vrot.slane %v1532, 5
        %v1659 = vsel %vm1610, %v1657, %v1658
        %v1660 = vrot.slane %v1533, 5
        %v1661 = vrot.slane %v1660, 4
        %v1662 = vrot.slane %v1534, 5
        %v1663 = vsel %vm1610, %v1661, %v1662
        %v1664 = vrot.slane %v1662, 4
        %v1665 = vrot.slane %v1535, 5
        %v1666 = vsel %vm1610, %v1664, %v1665
        %v1667 = vrot.slane %v1536, 5
        %v1668 = vrot.slane %v1667, 4
        %v1669 = vrot.slane %v1537, 5
        %v1670 = vsel %vm1610, %v1668, %v1669
        %v1671 = vrot.slane %v1669, 4
        %v1672 = vrot.slane %v1538, 5
        %v1673 = vsel %vm1610, %v1671, %v1672
        %v1674 = vrot.slane %v1539, 5
        %v1675 = vrot.slane %v1674, 4
        %v1676 = vrot.slane %v1540, 5
        %v1677 = vsel %vm1610, %v1675, %v1676
        %v1678 = vrot.slane %v1676, 4
        %v1679 = vrot.slane %v1541, 5
        %v1680 = vsel %vm1610, %v1678, %v1679
        %v1681 = vrot.slane %v1542, 5
        %v1682 = vrot.slane %v1681, 4
        %v1683 = vrot.slane %v1543, 5
        %v1684 = vsel %vm1610, %v1682, %v1683
        %v1685 = vrot.slane %v1683, 4
        %v1686 = vrot.slane %v1544, 5
        %v1687 = vsel %vm1610, %v1685, %v1686
        %v1688 = vrot.slane %v1545, 5
        %v1689 = vrot.slane %v1688, 4
        %v1690 = vrot.slane %v1546, 5
        %v1691 = vsel %vm1610, %v1689, %v1690
        %v1692 = vrot.slane %v1690, 4
        %v1693 = vrot.slane %v1547, 5
        %v1694 = vsel %vm1610, %v1692, %v1693
        %v1695 = vrot.slane %v1548, 5
        %v1696 = vrot.slane %v1695, 4
        %v1697 = vrot.slane %v1549, 5
        %v1698 = vsel %vm1610, %v1696, %v1697
        %v1699 = vrot.slane %v1697, 4
        %v1700 = vrot.slane %v1550, 5
        %v1701 = vsel %vm1610, %v1699, %v1700
        %v1702 = vrot.slane %v1551, 5
        %v1703 = vrot.slane %v1702, 4
        %v1704 = vrot.slane %v1552, 5
        %v1705 = vsel %vm1610, %v1703, %v1704
        %v1706 = vrot.slane %v1704, 4
        %v1707 = vrot.slane %v1553, 5
        %v1708 = vsel %vm1610, %v1706, %v1707
        %v1709 = vrot.slane %v1554, 5
        %v1710 = vrot.slane %v1709, 4
        %v1711 = vrot.slane %v1555, 5
        %v1712 = vsel %vm1610, %v1710, %v1711
        %v1713 = vrot.slane %v1711, 4
        %v1714 = vrot.slane %v1556, 5
        %v1715 = vsel %vm1610, %v1713, %v1714
        %v1716 = vrot.slane %v1557, 5
        %v1717 = vrot.slane %v1716, 4
        %v1718 = vrot.slane %v1558, 5
        %v1719 = vsel %vm1610, %v1717, %v1718
        %v1720 = vrot.slane %v1718, 4
        %v1721 = vrot.slane %v1559, 5
        %v1722 = vsel %vm1610, %v1720, %v1721
        %s1723 = scalar_lea.vmem [#allocation10], 64
        %v1724 = vld [vmem:[%s1723] sm:$0xf]
        %v1725 = vld [vmem:[%s1723 + $0x4] sm:$0xf]
        %v1726 = vld [vmem:[%s1723 + $0x8] sm:$0xf]
        %v1727 = vld [vmem:[%s1723 + $0xc] sm:$0xf]
        %v1728 = vld [vmem:[%s1723 + $0x10] sm:$0xf]
        %v1729 = vld [vmem:[%s1723 + $0x14] sm:$0xf]
        %v1730 = vld [vmem:[%s1723 + $0x18] sm:$0xf]
        %v1731 = vld [vmem:[%s1723 + $0x1c] sm:$0xf]
        %v1732 = vld [vmem:[%s1723 + $0x20] sm:$0xf]
        %v1733 = vld [vmem:[%s1723 + $0x24] sm:$0xf]
        %v1734 = vld [vmem:[%s1723 + $0x28] sm:$0xf]
        %v1735 = vld [vmem:[%s1723 + $0x2c] sm:$0xf]
        %v1736 = vld [vmem:[%s1723 + $0x30] sm:$0xf]
        %v1737 = vld [vmem:[%s1723 + $0x34] sm:$0xf]
        %v1738 = vld [vmem:[%s1723 + $0x38] sm:$0xf]
        %v1739 = vld [vmem:[%s1723 + $0x3c] sm:$0xf]
        %v1740 = vunpack.c.l.b16 %v1614
        %v1741 = vunpack.c.l.b16 %v1617
        %v1742 = vunpack.c.l.b16 %v1621
        %v1743 = vunpack.c.l.b16 %v1624
        %v1744 = vunpack.c.l.b16 %v1628
        %v1745 = vunpack.c.l.b16 %v1631
        %v1746 = vunpack.c.l.b16 %v1635
        %v1747 = vunpack.c.l.b16 %v1638
        %v1748 = vunpack.c.l.b16 %v1642
        %v1749 = vunpack.c.l.b16 %v1645
        %v1750 = vunpack.c.l.b16 %v1649
        %v1751 = vunpack.c.l.b16 %v1652
        %v1752 = vunpack.c.l.b16 %v1656
        %v1753 = vunpack.c.l.b16 %v1659
        %v1754 = vunpack.c.l.b16 %v1663
        %v1755 = vunpack.c.l.b16 %v1666
        %v1756 = vunpack.c.l.b16 %v1670
        %v1757 = vunpack.c.l.b16 %v1673
        %v1758 = vunpack.c.l.b16 %v1677
        %v1759 = vunpack.c.l.b16 %v1680
        %v1760 = vunpack.c.l.b16 %v1684
        %v1761 = vunpack.c.l.b16 %v1687
        %v1762 = vunpack.c.l.b16 %v1691
        %v1763 = vunpack.c.l.b16 %v1694
        %v1764 = vunpack.c.l.b16 %v1698
        %v1765 = vunpack.c.l.b16 %v1701
        %v1766 = vunpack.c.l.b16 %v1705
        %v1767 = vunpack.c.l.b16 %v1708
        %v1768 = vunpack.c.l.b16 %v1712
        %v1769 = vunpack.c.l.b16 %v1715
        %v1770 = vunpack.c.l.b16 %v1719
        %v1771 = vunpack.c.l.b16 %v1722
        %v1772 = vpack.c.b16 %v1741, %v1740
        %v1773 = vpack.c.b16 %v1743, %v1742
        %v1774 = vpack.c.b16 %v1745, %v1744
        %v1775 = vpack.c.b16 %v1747, %v1746
        %v1776 = vpack.c.b16 %v1749, %v1748
        %v1777 = vpack.c.b16 %v1751, %v1750
        %v1778 = vpack.c.b16 %v1753, %v1752
        %v1779 = vpack.c.b16 %v1755, %v1754
        %v1780 = vpack.c.b16 %v1757, %v1756
        %v1781 = vpack.c.b16 %v1759, %v1758
        %v1782 = vpack.c.b16 %v1761, %v1760
        %v1783 = vpack.c.b16 %v1763, %v1762
        %v1784 = vpack.c.b16 %v1765, %v1764
        %v1785 = vpack.c.b16 %v1767, %v1766
        %v1786 = vpack.c.b16 %v1769, %v1768
        %v1787 = vpack.c.b16 %v1771, %v1770
        %v1820 = vunpack.c.l.b16 %v1724
        %v1821 = vunpack.c.l.b16 %v1725
        %v1822 = vunpack.c.l.b16 %v1726
        %v1823 = vunpack.c.l.b16 %v1727
        %v1824 = vunpack.c.l.b16 %v1728
        %v1825 = vunpack.c.l.b16 %v1729
        %v1826 = vunpack.c.l.b16 %v1730
        %v1827 = vunpack.c.l.b16 %v1731
        %v1828 = vunpack.c.l.b16 %v1732
        %v1829 = vunpack.c.l.b16 %v1733
        %v1830 = vunpack.c.l.b16 %v1734
        %v1831 = vunpack.c.l.b16 %v1735
        %v1832 = vunpack.c.l.b16 %v1736
        %v1833 = vunpack.c.l.b16 %v1737
        %v1834 = vunpack.c.l.b16 %v1738
        %v1835 = vunpack.c.l.b16 %v1739
        %v1836 = vpack.c.b16 %v1821, %v1820
        %v1837 = vpack.c.b16 %v1823, %v1822
        %v1838 = vpack.c.b16 %v1825, %v1824
        %v1839 = vpack.c.b16 %v1827, %v1826
        %v1840 = vpack.c.b16 %v1829, %v1828
        %v1841 = vpack.c.b16 %v1831, %v1830
        %v1842 = vpack.c.b16 %v1833, %v1832
        %v1843 = vpack.c.b16 %v1835, %v1834
        %1852 = vmatprep.subr.bf16.mxu0 0
        %1853 = vmatpush1.bf16.msra.mxu0 %v1836
        %1854 = vmatprep.subr.bf16.mxu0 0
        %1855 = vmatpush1.bf16.msra.mxu0 %v1837
        %1856 = vmatprep.subr.bf16.mxu0 0
        %1857 = vmatpush1.bf16.msra.mxu0 %v1838
        %1858 = vmatprep.subr.bf16.mxu0 0
        %1859 = vmatpush1.bf16.msra.mxu0 %v1839
        %1860 = vmatprep.subr.bf16.mxu0 0
        %1861 = vmatpush1.bf16.msra.mxu0 %v1840
        %1862 = vmatprep.subr.bf16.mxu0 0
        %1863 = vmatpush1.bf16.msra.mxu0 %v1841
        %1864 = vmatprep.subr.bf16.mxu0 0
        %1865 = vmatpush1.bf16.msra.mxu0 %v1842
        %1866 = vmatprep.subr.bf16.mxu0 0
        %1867 = vmatpush1.bf16.msra.mxu0 %v1843
        %1868 = vmatprep.subr.bf16.mxu0 0
        %1869 = vmatpush1.bf16.msra.mxu0 0
        %1870 = vmatprep.subr.bf16.mxu0 0
        %1871 = vmatpush1.bf16.msra.mxu0 0
        %1872 = vmatprep.subr.bf16.mxu0 0
        %1873 = vmatpush1.bf16.msra.mxu0 0
        %1874 = vmatprep.subr.bf16.mxu0 0
        %1875 = vmatpush1.bf16.msra.mxu0 0
        %1876 = vmatprep.subr.bf16.mxu0 0
        %1877 = vmatpush1.bf16.msra.mxu0 0
        %1878 = vmatprep.subr.bf16.mxu0 0
        %1879 = vmatpush1.bf16.msra.mxu0 0
        %1880 = vmatprep.subr.bf16.mxu0 0
        %1881 = vmatpush1.bf16.msra.mxu0 0
        %1882 = vmatprep.subr.bf16.mxu0 0
        %1883 = vmatpush1.bf16.msra.mxu0 0
        %1884 = vmatprep.mubr.bf16.mxu0 0
        %1885 = vmatmul.mubr.bf16.gmra.mrb[0].mxu0 %v1772
        %v1886 = vpop.f32.mrb[0].mxu0
        %v1887 = vadd.f32 0.0, %v1886
        %v1888 = vpop.f32.mrb[0].mxu0
        %v1889 = vpop.f32.mrb[0].mxu0
        %v1890 = vadd.f32 0.0, %v1889
        %v1891 = vpop.f32.mrb[0].mxu0
        %1892 = vmatprep.mubr.bf16.mxu0 0
        %1893 = vmatmul.mubr.bf16.gmra.mrb[0].mxu0 %v1773
        %v1894 = vpop.f32.mrb[0].mxu0
        %v1895 = vadd.f32 0.0, %v1894
        %v1896 = vpop.f32.mrb[0].mxu0
        %v1897 = vpop.f32.mrb[0].mxu0
        %v1898 = vadd.f32 0.0, %v1897
        %v1899 = vpop.f32.mrb[0].mxu0
        %1900 = vmatprep.mubr.bf16.mxu0 0
        %1901 = vmatmul.mubr.bf16.gmra.mrb[0].mxu0 %v1774
        %v1902 = vpop.f32.mrb[0].mxu0
        %v1903 = vadd.f32 0.0, %v1902
        %v1904 = vpop.f32.mrb[0].mxu0
        %v1905 = vpop.f32.mrb[0].mxu0
        %v1906 = vadd.f32 0.0, %v1905
        %v1907 = vpop.f32.mrb[0].mxu0
        %1908 = vmatprep.mubr.bf16.mxu0 0
        %1909 = vmatmul.mubr.bf16.gmra.mrb[0].mxu0 %v1775
        %v1910 = vpop.f32.mrb[0].mxu0
        %v1911 = vadd.f32 0.0, %v1910
        %v1912 = vpop.f32.mrb[0].mxu0
        %v1913 = vpop.f32.mrb[0].mxu0
        %v1914 = vadd.f32 0.0, %v1913
        %v1915 = vpop.f32.mrb[0].mxu0
        %1916 = vmatprep.mubr.bf16.mxu0 0
        %1917 = vmatmul.mubr.bf16.gmra.mrb[0].mxu0 %v1776
        %v1918 = vpop.f32.mrb[0].mxu0
        %v1919 = vadd.f32 0.0, %v1918
        %v1920 = vpop.f32.mrb[0].mxu0
        %v1921 = vpop.f32.mrb[0].mxu0
        %v1922 = vadd.f32 0.0, %v1921
        %v1923 = vpop.f32.mrb[0].mxu0
        %1924 = vmatprep.mubr.bf16.mxu0 0
        %1925 = vmatmul.mubr.bf16.gmra.mrb[0].mxu0 %v1777
        %v1926 = vpop.f32.mrb[0].mxu0
        %v1927 = vadd.f32 0.0, %v1926
        %v1928 = vpop.f32.mrb[0].mxu0
        %v1929 = vpop.f32.mrb[0].mxu0
        %v1930 = vadd.f32 0.0, %v1929
        %v1931 = vpop.f32.mrb[0].mxu0
        %1932 = vmatprep.mubr.bf16.mxu0 0
        %1933 = vmatmul.mubr.bf16.gmra.mrb[0].mxu0 %v1778
        %v1934 = vpop.f32.mrb[0].mxu0
        %v1935 = vadd.f32 0.0, %v1934
        %v1936 = vpop.f32.mrb[0].mxu0
        %v1937 = vpop.f32.mrb[0].mxu0
        %v1938 = vadd.f32 0.0, %v1937
        %v1939 = vpop.f32.mrb[0].mxu0
        %1940 = vmatprep.mubr.bf16.mxu0 0
        %1941 = vmatmul.mubr.bf16.gmra.mrb[0].mxu0 %v1779
        %v1942 = vpop.f32.mrb[0].mxu0
        %v1943 = vadd.f32 0.0, %v1942
        %v1944 = vpop.f32.mrb[0].mxu0
        %v1945 = vpop.f32.mrb[0].mxu0
        %v1946 = vadd.f32 0.0, %v1945
        %v1947 = vpop.f32.mrb[0].mxu0
        %1948 = vmatprep.mubr.bf16.mxu0 0
        %1949 = vmatmul.mubr.bf16.gmra.mrb[0].mxu0 %v1780
        %v1950 = vpop.f32.mrb[0].mxu0
        %v1951 = vadd.f32 0.0, %v1950
        %v1952 = vpop.f32.mrb[0].mxu0
        %v1953 = vpop.f32.mrb[0].mxu0
        %v1954 = vadd.f32 0.0, %v1953
        %v1955 = vpop.f32.mrb[0].mxu0
        %1956 = vmatprep.mubr.bf16.mxu0 0
        %1957 = vmatmul.mubr.bf16.gmra.mrb[0].mxu0 %v1781
        %v1958 = vpop.f32.mrb[0].mxu0
        %v1959 = vadd.f32 0.0, %v1958
        %v1960 = vpop.f32.mrb[0].mxu0
        %v1961 = vpop.f32.mrb[0].mxu0
        %v1962 = vadd.f32 0.0, %v1961
        %v1963 = vpop.f32.mrb[0].mxu0
        %1964 = vmatprep.mubr.bf16.mxu0 0
        %1965 = vmatmul.mubr.bf16.gmra.mrb[0].mxu0 %v1782
        %v1966 = vpop.f32.mrb[0].mxu0
        %v1967 = vadd.f32 0.0, %v1966
        %v1968 = vpop.f32.mrb[0].mxu0
        %v1969 = vpop.f32.mrb[0].mxu0
        %v1970 = vadd.f32 0.0, %v1969
        %v1971 = vpop.f32.mrb[0].mxu0
        %1972 = vmatprep.mubr.bf16.mxu0 0
        %1973 = vmatmul.mubr.bf16.gmra.mrb[0].mxu0 %v1783
        %v1974 = vpop.f32.mrb[0].mxu0
        %v1975 = vadd.f32 0.0, %v1974
        %v1976 = vpop.f32.mrb[0].mxu0
        %v1977 = vpop.f32.mrb[0].mxu0
        %v1978 = vadd.f32 0.0, %v1977
        %v1979 = vpop.f32.mrb[0].mxu0
        %1980 = vmatprep.mubr.bf16.mxu0 0
        %1981 = vmatmul.mubr.bf16.gmra.mrb[0].mxu0 %v1784
        %v1982 = vpop.f32.mrb[0].mxu0
        %v1983 = vadd.f32 0.0, %v1982
        %v1984 = vpop.f32.mrb[0].mxu0
        %v1985 = vpop.f32.mrb[0].mxu0
        %v1986 = vadd.f32 0.0, %v1985
        %v1987 = vpop.f32.mrb[0].mxu0
        %1988 = vmatprep.mubr.bf16.mxu0 0
        %1989 = vmatmul.mubr.bf16.gmra.mrb[0].mxu0 %v1785
        %v1990 = vpop.f32.mrb[0].mxu0
        %v1991 = vadd.f32 0.0, %v1990
        %v1992 = vpop.f32.mrb[0].mxu0
        %v1993 = vpop.f32.mrb[0].mxu0
        %v1994 = vadd.f32 0.0, %v1993
        %v1995 = vpop.f32.mrb[0].mxu0
        %1996 = vmatprep.mubr.bf16.mxu0 0
        %1997 = vmatmul.mubr.bf16.gmra.mrb[0].mxu0 %v1786
        %v1998 = vpop.f32.mrb[0].mxu0
        %v1999 = vadd.f32 0.0, %v1998
        %v2000 = vpop.f32.mrb[0].mxu0
        %v2001 = vpop.f32.mrb[0].mxu0
        %v2002 = vadd.f32 0.0, %v2001
        %v2003 = vpop.f32.mrb[0].mxu0
        %2004 = vmatprep.mubr.bf16.mxu0 0
        %2005 = vmatmul.mubr.bf16.gmra.mrb[0].mxu0 %v1787
        %v2006 = vpop.f32.mrb[0].mxu0
        %v2007 = vadd.f32 0.0, %v2006
        %v2008 = vpop.f32.mrb[0].mxu0
        %v2009 = vpop.f32.mrb[0].mxu0
        %v2010 = vadd.f32 0.0, %v2009
        %v2011 = vpop.f32.mrb[0].mxu0
        %2012 = vdwg.mxu0
        %v2013 = vadd.f32 %v1480, %v1887
        %v2014 = vadd.f32 %v1481, %v1890
        %v2015 = vadd.f32 %v1482, %v1895
        %v2016 = vadd.f32 %v1483, %v1898
        %v2017 = vadd.f32 %v1484, %v1903
        %v2018 = vadd.f32 %v1485, %v1906
        %v2019 = vadd.f32 %v1486, %v1911
        %v2020 = vadd.f32 %v1487, %v1914
        %v2021 = vadd.f32 %v1488, %v1919
        %v2022 = vadd.f32 %v1489, %v1922
        %v2023 = vadd.f32 %v1490, %v1927
        %v2024 = vadd.f32 %v1491, %v1930
        %v2025 = vadd.f32 %v1492, %v1935
        %v2026 = vadd.f32 %v1493, %v1938
        %v2027 = vadd.f32 %v1494, %v1943
        %v2028 = vadd.f32 %v1495, %v1946
        %v2029 = vadd.f32 %v1496, %v1951
        %v2030 = vadd.f32 %v1497, %v1954
        %v2031 = vadd.f32 %v1498, %v1959
        %v2032 = vadd.f32 %v1499, %v1962
        %v2033 = vadd.f32 %v1500, %v1967
        %v2034 = vadd.f32 %v1501, %v1970
        %v2035 = vadd.f32 %v1502, %v1975
        %v2036 = vadd.f32 %v1503, %v1978
        %v2037 = vadd.f32 %v1504, %v1983
        %v2038 = vadd.f32 %v1505, %v1986
        %v2039 = vadd.f32 %v1506, %v1991
        %v2040 = vadd.f32 %v1507, %v1994
        %v2041 = vadd.f32 %v1508, %v1999
        %v2042 = vadd.f32 %v1509, %v2002
        %v2043 = vadd.f32 %v1510, %v2007
        %v2044 = vadd.f32 %v1511, %v2010
        %2045 = vst [vmem:[#allocation3] sm:$0xff] %v2013
        %2046 = vst [vmem:[#allocation3 + $0x8] sm:$0xff] %v2014
        %2047 = vst [vmem:[#allocation3 + $0x10] sm:$0xff] %v2015
        %2048 = vst [vmem:[#allocation3 + $0x18] sm:$0xff] %v2016
        %2049 = vst [vmem:[#allocation3 + $0x20] sm:$0xff] %v2017
        %2050 = vst [vmem:[#allocation3 + $0x28] sm:$0xff] %v2018
        %2051 = vst [vmem:[#allocation3 + $0x30] sm:$0xff] %v2019
        %2052 = vst [vmem:[#allocation3 + $0x38] sm:$0xff] %v2020
        %2053 = vst [vmem:[#allocation3 + $0x40] sm:$0xff] %v2021
        %2054 = vst [vmem:[#allocation3 + $0x48] sm:$0xff] %v2022
        %2055 = vst [vmem:[#allocation3 + $0x50] sm:$0xff] %v2023
        %2056 = vst [vmem:[#allocation3 + $0x58] sm:$0xff] %v2024
        %2057 = vst [vmem:[#allocation3 + $0x60] sm:$0xff] %v2025
        %2058 = vst [vmem:[#allocation3 + $0x68] sm:$0xff] %v2026
        %2059 = vst [vmem:[#allocation3 + $0x70] sm:$0xff] %v2027
        %2060 = vst [vmem:[#allocation3 + $0x78] sm:$0xff] %v2028
        %2061 = vst [vmem:[#allocation3 + $0x80] sm:$0xff] %v2029
        %2062 = vst [vmem:[#allocation3 + $0x88] sm:$0xff] %v2030
        %2063 = vst [vmem:[#allocation3 + $0x90] sm:$0xff] %v2031
        %2064 = vst [vmem:[#allocation3 + $0x98] sm:$0xff] %v2032
        %2065 = vst [vmem:[#allocation3 + $0xa0] sm:$0xff] %v2033
        %2066 = vst [vmem:[#allocation3 + $0xa8] sm:$0xff] %v2034
        %2067 = vst [vmem:[#allocation3 + $0xb0] sm:$0xff] %v2035
        %2068 = vst [vmem:[#allocation3 + $0xb8] sm:$0xff] %v2036
        %2069 = vst [vmem:[#allocation3 + $0xc0] sm:$0xff] %v2037
        %2070 = vst [vmem:[#allocation3 + $0xc8] sm:$0xff] %v2038
        %2071 = vst [vmem:[#allocation3 + $0xd0] sm:$0xff] %v2039
        %2072 = vst [vmem:[#allocation3 + $0xd8] sm:$0xff] %v2040
        %2073 = vst [vmem:[#allocation3 + $0xe0] sm:$0xff] %v2041
        %2074 = vst [vmem:[#allocation3 + $0xe8] sm:$0xff] %v2042
        %2075 = vst [vmem:[#allocation3 + $0xf0] sm:$0xff] %v2043
        %2076 = vst [vmem:[#allocation3 + $0xf8] sm:$0xff] %v2044
        %v2077 = vld [vmem:[#allocation3] sm:$0xff]
        %v2078 = vld [vmem:[#allocation3 + $0x8] sm:$0xff]
        %v2079 = vld [vmem:[#allocation3 + $0x10] sm:$0xff]
        %v2080 = vld [vmem:[#allocation3 + $0x18] sm:$0xff]
        %v2081 = vld [vmem:[#allocation3 + $0x20] sm:$0xff]
        %v2082 = vld [vmem:[#allocation3 + $0x28] sm:$0xff]
        %v2083 = vld [vmem:[#allocation3 + $0x30] sm:$0xff]
        %v2084 = vld [vmem:[#allocation3 + $0x38] sm:$0xff]
        %v2085 = vld [vmem:[#allocation3 + $0x40] sm:$0xff]
        %v2086 = vld [vmem:[#allocation3 + $0x48] sm:$0xff]
        %v2087 = vld [vmem:[#allocation3 + $0x50] sm:$0xff]
        %v2088 = vld [vmem:[#allocation3 + $0x58] sm:$0xff]
        %v2089 = vld [vmem:[#allocation3 + $0x60] sm:$0xff]
        %v2090 = vld [vmem:[#allocation3 + $0x68] sm:$0xff]
        %v2091 = vld [vmem:[#allocation3 + $0x70] sm:$0xff]
        %v2092 = vld [vmem:[#allocation3 + $0x78] sm:$0xff]
        %v2093 = vld [vmem:[#allocation3 + $0x80] sm:$0xff]
        %v2094 = vld [vmem:[#allocation3 + $0x88] sm:$0xff]
        %v2095 = vld [vmem:[#allocation3 + $0x90] sm:$0xff]
        %v2096 = vld [vmem:[#allocation3 + $0x98] sm:$0xff]
        %v2097 = vld [vmem:[#allocation3 + $0xa0] sm:$0xff]
        %v2098 = vld [vmem:[#allocation3 + $0xa8] sm:$0xff]
        %v2099 = vld [vmem:[#allocation3 + $0xb0] sm:$0xff]
        %v2100 = vld [vmem:[#allocation3 + $0xb8] sm:$0xff]
        %v2101 = vld [vmem:[#allocation3 + $0xc0] sm:$0xff]
        %v2102 = vld [vmem:[#allocation3 + $0xc8] sm:$0xff]
        %v2103 = vld [vmem:[#allocation3 + $0xd0] sm:$0xff]
        %v2104 = vld [vmem:[#allocation3 + $0xd8] sm:$0xff]
        %v2105 = vld [vmem:[#allocation3 + $0xe0] sm:$0xff]
        %v2106 = vld [vmem:[#allocation3 + $0xe8] sm:$0xff]
        %v2107 = vld [vmem:[#allocation3 + $0xf0] sm:$0xff]
        %v2108 = vld [vmem:[#allocation3 + $0xf8] sm:$0xff]
        %v2109 = vld [vmem:[#allocation2] sm:$0xc]
        %v2110 = vld [vmem:[#allocation2 + $0x4] sm:$0xf]
        %v2111 = vld [vmem:[#allocation2 + $0x8] sm:$0x3]
        %v2112 = vld [vmem:[#allocation2 + $0xc] sm:$0xc]
        %v2113 = vld [vmem:[#allocation2 + $0x10] sm:$0xf]
        %v2114 = vld [vmem:[#allocation2 + $0x14] sm:$0x3]
        %v2115 = vld [vmem:[#allocation2 + $0x18] sm:$0xc]
        %v2116 = vld [vmem:[#allocation2 + $0x1c] sm:$0xf]
        %v2117 = vld [vmem:[#allocation2 + $0x20] sm:$0x3]
        %v2118 = vld [vmem:[#allocation2 + $0x24] sm:$0xc]
        %v2119 = vld [vmem:[#allocation2 + $0x28] sm:$0xf]
        %v2120 = vld [vmem:[#allocation2 + $0x2c] sm:$0x3]
        %v2121 = vld [vmem:[#allocation2 + $0x30] sm:$0xc]
        %v2122 = vld [vmem:[#allocation2 + $0x34] sm:$0xf]
        %v2123 = vld [vmem:[#allocation2 + $0x38] sm:$0x3]
        %v2124 = vld [vmem:[#allocation2 + $0x3c] sm:$0xc]
        %v2125 = vld [vmem:[#allocation2 + $0x40] sm:$0xf]
        %v2126 = vld [vmem:[#allocation2 + $0x44] sm:$0x3]
        %v2127 = vld [vmem:[#allocation2 + $0x48] sm:$0xc]
        %v2128 = vld [vmem:[#allocation2 + $0x4c] sm:$0xf]
        %v2129 = vld [vmem:[#allocation2 + $0x50] sm:$0x3]
        %v2130 = vld [vmem:[#allocation2 + $0x54] sm:$0xc]
        %v2131 = vld [vmem:[#allocation2 + $0x58] sm:$0xf]
        %v2132 = vld [vmem:[#allocation2 + $0x5c] sm:$0x3]
        %v2133 = vld [vmem:[#allocation2 + $0x60] sm:$0xc]
        %v2134 = vld [vmem:[#allocation2 + $0x64] sm:$0xf]
        %v2135 = vld [vmem:[#allocation2 + $0x68] sm:$0x3]
        %v2136 = vld [vmem:[#allocation2 + $0x6c] sm:$0xc]
        %v2137 = vld [vmem:[#allocation2 + $0x70] sm:$0xf]
        %v2138 = vld [vmem:[#allocation2 + $0x74] sm:$0x3]
        %v2139 = vld [vmem:[#allocation2 + $0x78] sm:$0xc]
        %v2140 = vld [vmem:[#allocation2 + $0x7c] sm:$0xf]
        %v2141 = vld [vmem:[#allocation2 + $0x80] sm:$0x3]
        %v2142 = vld [vmem:[#allocation2 + $0x84] sm:$0xc]
        %v2143 = vld [vmem:[#allocation2 + $0x88] sm:$0xf]
        %v2144 = vld [vmem:[#allocation2 + $0x8c] sm:$0x3]
        %v2145 = vld [vmem:[#allocation2 + $0x90] sm:$0xc]
        %v2146 = vld [vmem:[#allocation2 + $0x94] sm:$0xf]
        %v2147 = vld [vmem:[#allocation2 + $0x98] sm:$0x3]
        %v2148 = vld [vmem:[#allocation2 + $0x9c] sm:$0xc]
        %v2149 = vld [vmem:[#allocation2 + $0xa0] sm:$0xf]
        %v2150 = vld [vmem:[#allocation2 + $0xa4] sm:$0x3]
        %v2151 = vld [vmem:[#allocation2 + $0xa8] sm:$0xc]
        %v2152 = vld [vmem:[#allocation2 + $0xac] sm:$0xf]
        %v2153 = vld [vmem:[#allocation2 + $0xb0] sm:$0x3]
        %v2154 = vld [vmem:[#allocation2 + $0xb4] sm:$0xc]
        %v2155 = vld [vmem:[#allocation2 + $0xb8] sm:$0xf]
        %v2156 = vld [vmem:[#allocation2 + $0xbc] sm:$0x3]
        %vm2205 = vcmask 1041408
        %vm2206 = vcmask 1045508
        %vm2207 = vmor %vm2205, %vm2206
        %v2208 = vrot.slane %v2109, 6
        %v2209 = vrot.slane %v2208, 4
        %v2210 = vrot.slane %v2110, 6
        %v2211 = vsel %vm2207, %v2209, %v2210
        %v2212 = vrot.slane %v2210, 4
        %v2213 = vrot.slane %v2111, 6
        %v2214 = vsel %vm2207, %v2212, %v2213
        %v2215 = vrot.slane %v2112, 6
        %v2216 = vrot.slane %v2215, 4
        %v2217 = vrot.slane %v2113, 6
        %v2218 = vsel %vm2207, %v2216, %v2217
        %v2219 = vrot.slane %v2217, 4
        %v2220 = vrot.slane %v2114, 6
        %v2221 = vsel %vm2207, %v2219, %v2220
        %v2222 = vrot.slane %v2115, 6
        %v2223 = vrot.slane %v2222, 4
        %v2224 = vrot.slane %v2116, 6
        %v2225 = vsel %vm2207, %v2223, %v2224
        %v2226 = vrot.slane %v2224, 4
        %v2227 = vrot.slane %v2117, 6
        %v2228 = vsel %vm2207, %v2226, %v2227
        %v2229 = vrot.slane %v2118, 6
        %v2230 = vrot.slane %v2229, 4
        %v2231 = vrot.slane %v2119, 6
        %v2232 = vsel %vm2207, %v2230, %v2231
        %v2233 = vrot.slane %v2231, 4
        %v2234 = vrot.slane %v2120, 6
        %v2235 = vsel %vm2207, %v2233, %v2234
        %v2236 = vrot.slane %v2121, 6
        %v2237 = vrot.slane %v2236, 4
        %v2238 = vrot.slane %v2122, 6
        %v2239 = vsel %vm2207, %v2237, %v2238
        %v2240 = vrot.slane %v2238, 4
        %v2241 = vrot.slane %v2123, 6
        %v2242 = vsel %vm2207, %v2240, %v2241
        %v2243 = vrot.slane %v2124, 6
        %v2244 = vrot.slane %v2243, 4
        %v2245 = vrot.slane %v2125, 6
        %v2246 = vsel %vm2207, %v2244, %v2245
        %v2247 = vrot.slane %v2245, 4
        %v2248 = vrot.slane %v2126, 6
        %v2249 = vsel %vm2207, %v2247, %v2248
        %v2250 = vrot.slane %v2127, 6
        %v2251 = vrot.slane %v2250, 4
        %v2252 = vrot.slane %v2128, 6
        %v2253 = vsel %vm2207, %v2251, %v2252
        %v2254 = vrot.slane %v2252, 4
        %v2255 = vrot.slane %v2129, 6
        %v2256 = vsel %vm2207, %v2254, %v2255
        %v2257 = vrot.slane %v2130, 6
        %v2258 = vrot.slane %v2257, 4
        %v2259 = vrot.slane %v2131, 6
        %v2260 = vsel %vm2207, %v2258, %v2259
        %v2261 = vrot.slane %v2259, 4
        %v2262 = vrot.slane %v2132, 6
        %v2263 = vsel %vm2207, %v2261, %v2262
        %v2264 = vrot.slane %v2133, 6
        %v2265 = vrot.slane %v2264, 4
        %v2266 = vrot.slane %v2134, 6
        %v2267 = vsel %vm2207, %v2265, %v2266
        %v2268 = vrot.slane %v2266, 4
        %v2269 = vrot.slane %v2135, 6
        %v2270 = vsel %vm2207, %v2268, %v2269
        %v2271 = vrot.slane %v2136, 6
        %v2272 = vrot.slane %v2271, 4
        %v2273 = vrot.slane %v2137, 6
        %v2274 = vsel %vm2207, %v2272, %v2273
        %v2275 = vrot.slane %v2273, 4
        %v2276 = vrot.slane %v2138, 6
        %v2277 = vsel %vm2207, %v2275, %v2276
        %v2278 = vrot.slane %v2139, 6
        %v2279 = vrot.slane %v2278, 4
        %v2280 = vrot.slane %v2140, 6
        %v2281 = vsel %vm2207, %v2279, %v2280
        %v2282 = vrot.slane %v2280, 4
        %v2283 = vrot.slane %v2141, 6
        %v2284 = vsel %vm2207, %v2282, %v2283
        %v2285 = vrot.slane %v2142, 6
        %v2286 = vrot.slane %v2285, 4
        %v2287 = vrot.slane %v2143, 6
        %v2288 = vsel %vm2207, %v2286, %v2287
        %v2289 = vrot.slane %v2287, 4
        %v2290 = vrot.slane %v2144, 6
        %v2291 = vsel %vm2207, %v2289, %v2290
        %v2292 = vrot.slane %v2145, 6
        %v2293 = vrot.slane %v2292, 4
        %v2294 = vrot.slane %v2146, 6
        %v2295 = vsel %vm2207, %v2293, %v2294
        %v2296 = vrot.slane %v2294, 4
        %v2297 = vrot.slane %v2147, 6
        %v2298 = vsel %vm2207, %v2296, %v2297
        %v2299 = vrot.slane %v2148, 6
        %v2300 = vrot.slane %v2299, 4
        %v2301 = vrot.slane %v2149, 6
        %v2302 = vsel %vm2207, %v2300, %v2301
        %v2303 = vrot.slane %v2301, 4
        %v2304 = vrot.slane %v2150, 6
        %v2305 = vsel %vm2207, %v2303, %v2304
        %v2306 = vrot.slane %v2151, 6
        %v2307 = vrot.slane %v2306, 4
        %v2308 = vrot.slane %v2152, 6
        %v2309 = vsel %vm2207, %v2307, %v2308
        %v2310 = vrot.slane %v2308, 4
        %v2311 = vrot.slane %v2153, 6
        %v2312 = vsel %vm2207, %v2310, %v2311
        %v2313 = vrot.slane %v2154, 6
        %v2314 = vrot.slane %v2313, 4
        %v2315 = vrot.slane %v2155, 6
        %v2316 = vsel %vm2207, %v2314, %v2315
        %v2317 = vrot.slane %v2315, 4
        %v2318 = vrot.slane %v2156, 6
        %v2319 = vsel %vm2207, %v2317, %v2318
        %s2320 = scalar_lea.vmem [#allocation10], 128
        %v2321 = vld [vmem:[%s2320] sm:$0xf]
        %v2322 = vld [vmem:[%s2320 + $0x4] sm:$0xf]
        %v2323 = vld [vmem:[%s2320 + $0x8] sm:$0xf]
        %v2324 = vld [vmem:[%s2320 + $0xc] sm:$0xf]
        %v2325 = vld [vmem:[%s2320 + $0x10] sm:$0xf]
        %v2326 = vld [vmem:[%s2320 + $0x14] sm:$0xf]
        %v2327 = vld [vmem:[%s2320 + $0x18] sm:$0xf]
        %v2328 = vld [vmem:[%s2320 + $0x1c] sm:$0xf]
        %v2329 = vld [vmem:[%s2320 + $0x20] sm:$0xf]
        %v2330 = vld [vmem:[%s2320 + $0x24] sm:$0xf]
        %v2331 = vld [vmem:[%s2320 + $0x28] sm:$0xf]
        %v2332 = vld [vmem:[%s2320 + $0x2c] sm:$0xf]
        %v2333 = vld [vmem:[%s2320 + $0x30] sm:$0xf]
        %v2334 = vld [vmem:[%s2320 + $0x34] sm:$0xf]
        %v2335 = vld [vmem:[%s2320 + $0x38] sm:$0xf]
        %v2336 = vld [vmem:[%s2320 + $0x3c] sm:$0xf]
        %v2337 = vunpack.c.l.b16 %v2211
        %v2338 = vunpack.c.l.b16 %v2214
        %v2339 = vunpack.c.l.b16 %v2218
        %v2340 = vunpack.c.l.b16 %v2221
        %v2341 = vunpack.c.l.b16 %v2225
        %v2342 = vunpack.c.l.b16 %v2228
        %v2343 = vunpack.c.l.b16 %v2232
        %v2344 = vunpack.c.l.b16 %v2235
        %v2345 = vunpack.c.l.b16 %v2239
        %v2346 = vunpack.c.l.b16 %v2242
        %v2347 = vunpack.c.l.b16 %v2246
        %v2348 = vunpack.c.l.b16 %v2249
        %v2349 = vunpack.c.l.b16 %v2253
        %v2350 = vunpack.c.l.b16 %v2256
        %v2351 = vunpack.c.l.b16 %v2260
        %v2352 = vunpack.c.l.b16 %v2263
        %v2353 = vunpack.c.l.b16 %v2267
        %v2354 = vunpack.c.l.b16 %v2270
        %v2355 = vunpack.c.l.b16 %v2274
        %v2356 = vunpack.c.l.b16 %v2277
        %v2357 = vunpack.c.l.b16 %v2281
        %v2358 = vunpack.c.l.b16 %v2284
        %v2359 = vunpack.c.l.b16 %v2288
        %v2360 = vunpack.c.l.b16 %v2291
        %v2361 = vunpack.c.l.b16 %v2295
        %v2362 = vunpack.c.l.b16 %v2298
        %v2363 = vunpack.c.l.b16 %v2302
        %v2364 = vunpack.c.l.b16 %v2305
        %v2365 = vunpack.c.l.b16 %v2309
        %v2366 = vunpack.c.l.b16 %v2312
        %v2367 = vunpack.c.l.b16 %v2316
        %v2368 = vunpack.c.l.b16 %v2319
        %v2369 = vpack.c.b16 %v2338, %v2337
        %v2370 = vpack.c.b16 %v2340, %v2339
        %v2371 = vpack.c.b16 %v2342, %v2341
        %v2372 = vpack.c.b16 %v2344, %v2343
        %v2373 = vpack.c.b16 %v2346, %v2345
        %v2374 = vpack.c.b16 %v2348, %v2347
        %v2375 = vpack.c.b16 %v2350, %v2349
        %v2376 = vpack.c.b16 %v2352, %v2351
        %v2377 = vpack.c.b16 %v2354, %v2353
        %v2378 = vpack.c.b16 %v2356, %v2355
        %v2379 = vpack.c.b16 %v2358, %v2357
        %v2380 = vpack.c.b16 %v2360, %v2359
        %v2381 = vpack.c.b16 %v2362, %v2361
        %v2382 = vpack.c.b16 %v2364, %v2363
        %v2383 = vpack.c.b16 %v2366, %v2365
        %v2384 = vpack.c.b16 %v2368, %v2367
        %v2417 = vunpack.c.l.b16 %v2321
        %v2418 = vunpack.c.l.b16 %v2322
        %v2419 = vunpack.c.l.b16 %v2323
        %v2420 = vunpack.c.l.b16 %v2324
        %v2421 = vunpack.c.l.b16 %v2325
        %v2422 = vunpack.c.l.b16 %v2326
        %v2423 = vunpack.c.l.b16 %v2327
        %v2424 = vunpack.c.l.b16 %v2328
        %v2425 = vunpack.c.l.b16 %v2329
        %v2426 = vunpack.c.l.b16 %v2330
        %v2427 = vunpack.c.l.b16 %v2331
        %v2428 = vunpack.c.l.b16 %v2332
        %v2429 = vunpack.c.l.b16 %v2333
        %v2430 = vunpack.c.l.b16 %v2334
        %v2431 = vunpack.c.l.b16 %v2335
        %v2432 = vunpack.c.l.b16 %v2336
        %v2433 = vpack.c.b16 %v2418, %v2417
        %v2434 = vpack.c.b16 %v2420, %v2419
        %v2435 = vpack.c.b16 %v2422, %v2421
        %v2436 = vpack.c.b16 %v2424, %v2423
        %v2437 = vpack.c.b16 %v2426, %v2425
        %v2438 = vpack.c.b16 %v2428, %v2427
        %v2439 = vpack.c.b16 %v2430, %v2429
        %v2440 = vpack.c.b16 %v2432, %v2431
        %2449 = vmatprep.subr.bf16.mxu0 0
        %2450 = vmatpush1.bf16.msra.mxu0 %v2433
        %2451 = vmatprep.subr.bf16.mxu0 0
        %2452 = vmatpush1.bf16.msra.mxu0 %v2434
        %2453 = vmatprep.subr.bf16.mxu0 0
        %2454 = vmatpush1.bf16.msra.mxu0 %v2435
        %2455 = vmatprep.subr.bf16.mxu0 0
        %2456 = vmatpush1.bf16.msra.mxu0 %v2436
        %2457 = vmatprep.subr.bf16.mxu0 0
        %2458 = vmatpush1.bf16.msra.mxu0 %v2437
        %2459 = vmatprep.subr.bf16.mxu0 0
        %2460 = vmatpush1.bf16.msra.mxu0 %v2438
        %2461 = vmatprep.subr.bf16.mxu0 0
        %2462 = vmatpush1.bf16.msra.mxu0 %v2439
        %2463 = vmatprep.subr.bf16.mxu0 0
        %2464 = vmatpush1.bf16.msra.mxu0 %v2440
        %2465 = vmatprep.subr.bf16.mxu0 0
        %2466 = vmatpush1.bf16.msra.mxu0 0
        %2467 = vmatprep.subr.bf16.mxu0 0
        %2468 = vmatpush1.bf16.msra.mxu0 0
        %2469 = vmatprep.subr.bf16.mxu0 0
        %2470 = vmatpush1.bf16.msra.mxu0 0
        %2471 = vmatprep.subr.bf16.mxu0 0
        %2472 = vmatpush1.bf16.msra.mxu0 0
        %2473 = vmatprep.subr.bf16.mxu0 0
        %2474 = vmatpush1.bf16.msra.mxu0 0
        %2475 = vmatprep.subr.bf16.mxu0 0
        %2476 = vmatpush1.bf16.msra.mxu0 0
        %2477 = vmatprep.subr.bf16.mxu0 0
        %2478 = vmatpush1.bf16.msra.mxu0 0
        %2479 = vmatprep.subr.bf16.mxu0 0
        %2480 = vmatpush1.bf16.msra.mxu0 0
        %2481 = vmatprep.mubr.bf16.mxu0 0
        %2482 = vmatmul.mubr.bf16.gmra.mrb[0].mxu0 %v2369
        %v2483 = vpop.f32.mrb[0].mxu0
        %v2484 = vadd.f32 0.0, %v2483
        %v2485 = vpop.f32.mrb[0].mxu0
        %v2486 = vpop.f32.mrb[0].mxu0
        %v2487 = vadd.f32 0.0, %v2486
        %v2488 = vpop.f32.mrb[0].mxu0
        %2489 = vmatprep.mubr.bf16.mxu0 0
        %2490 = vmatmul.mubr.bf16.gmra.mrb[0].mxu0 %v2370
        %v2491 = vpop.f32.mrb[0].mxu0
        %v2492 = vadd.f32 0.0, %v2491
        %v2493 = vpop.f32.mrb[0].mxu0
        %v2494 = vpop.f32.mrb[0].mxu0
        %v2495 = vadd.f32 0.0, %v2494
        %v2496 = vpop.f32.mrb[0].mxu0
        %2497 = vmatprep.mubr.bf16.mxu0 0
        %2498 = vmatmul.mubr.bf16.gmra.mrb[0].mxu0 %v2371
        %v2499 = vpop.f32.mrb[0].mxu0
        %v2500 = vadd.f32 0.0, %v2499
        %v2501 = vpop.f32.mrb[0].mxu0
        %v2502 = vpop.f32.mrb[0].mxu0
        %v2503 = vadd.f32 0.0, %v2502
        %v2504 = vpop.f32.mrb[0].mxu0
        %2505 = vmatprep.mubr.bf16.mxu0 0
        %2506 = vmatmul.mubr.bf16.gmra.mrb[0].mxu0 %v2372
        %v2507 = vpop.f32.mrb[0].mxu0
        %v2508 = vadd.f32 0.0, %v2507
        %v2509 = vpop.f32.mrb[0].mxu0
        %v2510 = vpop.f32.mrb[0].mxu0
        %v2511 = vadd.f32 0.0, %v2510
        %v2512 = vpop.f32.mrb[0].mxu0
        %2513 = vmatprep.mubr.bf16.mxu0 0
        %2514 = vmatmul.mubr.bf16.gmra.mrb[0].mxu0 %v2373
        %v2515 = vpop.f32.mrb[0].mxu0
        %v2516 = vadd.f32 0.0, %v2515
        %v2517 = vpop.f32.mrb[0].mxu0
        %v2518 = vpop.f32.mrb[0].mxu0
        %v2519 = vadd.f32 0.0, %v2518
        %v2520 = vpop.f32.mrb[0].mxu0
        %2521 = vmatprep.mubr.bf16.mxu0 0
        %2522 = vmatmul.mubr.bf16.gmra.mrb[0].mxu0 %v2374
        %v2523 = vpop.f32.mrb[0].mxu0
        %v2524 = vadd.f32 0.0, %v2523
        %v2525 = vpop.f32.mrb[0].mxu0
        %v2526 = vpop.f32.mrb[0].mxu0
        %v2527 = vadd.f32 0.0, %v2526
        %v2528 = vpop.f32.mrb[0].mxu0
        %2529 = vmatprep.mubr.bf16.mxu0 0
        %2530 = vmatmul.mubr.bf16.gmra.mrb[0].mxu0 %v2375
        %v2531 = vpop.f32.mrb[0].mxu0
        %v2532 = vadd.f32 0.0, %v2531
        %v2533 = vpop.f32.mrb[0].mxu0
        %v2534 = vpop.f32.mrb[0].mxu0
        %v2535 = vadd.f32 0.0, %v2534
        %v2536 = vpop.f32.mrb[0].mxu0
        %2537 = vmatprep.mubr.bf16.mxu0 0
        %2538 = vmatmul.mubr.bf16.gmra.mrb[0].mxu0 %v2376
        %v2539 = vpop.f32.mrb[0].mxu0
        %v2540 = vadd.f32 0.0, %v2539
        %v2541 = vpop.f32.mrb[0].mxu0
        %v2542 = vpop.f32.mrb[0].mxu0
        %v2543 = vadd.f32 0.0, %v2542
        %v2544 = vpop.f32.mrb[0].mxu0
        %2545 = vmatprep.mubr.bf16.mxu0 0
        %2546 = vmatmul.mubr.bf16.gmra.mrb[0].mxu0 %v2377
        %v2547 = vpop.f32.mrb[0].mxu0
        %v2548 = vadd.f32 0.0, %v2547
        %v2549 = vpop.f32.mrb[0].mxu0
        %v2550 = vpop.f32.mrb[0].mxu0
        %v2551 = vadd.f32 0.0, %v2550
        %v2552 = vpop.f32.mrb[0].mxu0
        %2553 = vmatprep.mubr.bf16.mxu0 0
        %2554 = vmatmul.mubr.bf16.gmra.mrb[0].mxu0 %v2378
        %v2555 = vpop.f32.mrb[0].mxu0
        %v2556 = vadd.f32 0.0, %v2555
        %v2557 = vpop.f32.mrb[0].mxu0
        %v2558 = vpop.f32.mrb[0].mxu0
        %v2559 = vadd.f32 0.0, %v2558
        %v2560 = vpop.f32.mrb[0].mxu0
        %2561 = vmatprep.mubr.bf16.mxu0 0
        %2562 = vmatmul.mubr.bf16.gmra.mrb[0].mxu0 %v2379
        %v2563 = vpop.f32.mrb[0].mxu0
        %v2564 = vadd.f32 0.0, %v2563
        %v2565 = vpop.f32.mrb[0].mxu0
        %v2566 = vpop.f32.mrb[0].mxu0
        %v2567 = vadd.f32 0.0, %v2566
        %v2568 = vpop.f32.mrb[0].mxu0
        %2569 = vmatprep.mubr.bf16.mxu0 0
        %2570 = vmatmul.mubr.bf16.gmra.mrb[0].mxu0 %v2380
        %v2571 = vpop.f32.mrb[0].mxu0
        %v2572 = vadd.f32 0.0, %v2571
        %v2573 = vpop.f32.mrb[0].mxu0
        %v2574 = vpop.f32.mrb[0].mxu0
        %v2575 = vadd.f32 0.0, %v2574
        %v2576 = vpop.f32.mrb[0].mxu0
        %2577 = vmatprep.mubr.bf16.mxu0 0
        %2578 = vmatmul.mubr.bf16.gmra.mrb[0].mxu0 %v2381
        %v2579 = vpop.f32.mrb[0].mxu0
        %v2580 = vadd.f32 0.0, %v2579
        %v2581 = vpop.f32.mrb[0].mxu0
        %v2582 = vpop.f32.mrb[0].mxu0
        %v2583 = vadd.f32 0.0, %v2582
        %v2584 = vpop.f32.mrb[0].mxu0
        %2585 = vmatprep.mubr.bf16.mxu0 0
        %2586 = vmatmul.mubr.bf16.gmra.mrb[0].mxu0 %v2382
        %v2587 = vpop.f32.mrb[0].mxu0
        %v2588 = vadd.f32 0.0, %v2587
        %v2589 = vpop.f32.mrb[0].mxu0
        %v2590 = vpop.f32.mrb[0].mxu0
        %v2591 = vadd.f32 0.0, %v2590
        %v2592 = vpop.f32.mrb[0].mxu0
        %2593 = vmatprep.mubr.bf16.mxu0 0
        %2594 = vmatmul.mubr.bf16.gmra.mrb[0].mxu0 %v2383
        %v2595 = vpop.f32.mrb[0].mxu0
        %v2596 = vadd.f32 0.0, %v2595
        %v2597 = vpop.f32.mrb[0].mxu0
        %v2598 = vpop.f32.mrb[0].mxu0
        %v2599 = vadd.f32 0.0, %v2598
        %v2600 = vpop.f32.mrb[0].mxu0
        %2601 = vmatprep.mubr.bf16.mxu0 0
        %2602 = vmatmul.mubr.bf16.gmra.mrb[0].mxu0 %v2384
        %v2603 = vpop.f32.mrb[0].mxu0
        %v2604 = vadd.f32 0.0, %v2603
        %v2605 = vpop.f32.mrb[0].mxu0
        %v2606 = vpop.f32.mrb[0].mxu0
        %v2607 = vadd.f32 0.0, %v2606
        %v2608 = vpop.f32.mrb[0].mxu0
        %2609 = vdwg.mxu0
        %v2610 = vadd.f32 %v2077, %v2484
        %v2611 = vadd.f32 %v2078, %v2487
        %v2612 = vadd.f32 %v2079, %v2492
        %v2613 = vadd.f32 %v2080, %v2495
        %v2614 = vadd.f32 %v2081, %v2500
        %v2615 = vadd.f32 %v2082, %v2503
        %v2616 = vadd.f32 %v2083, %v2508
        %v2617 = vadd.f32 %v2084, %v2511
        %v2618 = vadd.f32 %v2085, %v2516
        %v2619 = vadd.f32 %v2086, %v2519
        %v2620 = vadd.f32 %v2087, %v2524
        %v2621 = vadd.f32 %v2088, %v2527
        %v2622 = vadd.f32 %v2089, %v2532
        %v2623 = vadd.f32 %v2090, %v2535
        %v2624 = vadd.f32 %v2091, %v2540
        %v2625 = vadd.f32 %v2092, %v2543
        %v2626 = vadd.f32 %v2093, %v2548
        %v2627 = vadd.f32 %v2094, %v2551
        %v2628 = vadd.f32 %v2095, %v2556
        %v2629 = vadd.f32 %v2096, %v2559
        %v2630 = vadd.f32 %v2097, %v2564
        %v2631 = vadd.f32 %v2098, %v2567
        %v2632 = vadd.f32 %v2099, %v2572
        %v2633 = vadd.f32 %v2100, %v2575
        %v2634 = vadd.f32 %v2101, %v2580
        %v2635 = vadd.f32 %v2102, %v2583
        %v2636 = vadd.f32 %v2103, %v2588
        %v2637 = vadd.f32 %v2104, %v2591
        %v2638 = vadd.f32 %v2105, %v2596
        %v2639 = vadd.f32 %v2106, %v2599
        %v2640 = vadd.f32 %v2107, %v2604
        %v2641 = vadd.f32 %v2108, %v2607
        %2642 = vst [vmem:[#allocation3] sm:$0xff] %v2610
        %2643 = vst [vmem:[#allocation3 + $0x8] sm:$0xff] %v2611
        %2644 = vst [vmem:[#allocation3 + $0x10] sm:$0xff] %v2612
        %2645 = vst [vmem:[#allocation3 + $0x18] sm:$0xff] %v2613
        %2646 = vst [vmem:[#allocation3 + $0x20] sm:$0xff] %v2614
        %2647 = vst [vmem:[#allocation3 + $0x28] sm:$0xff] %v2615
        %2648 = vst [vmem:[#allocation3 + $0x30] sm:$0xff] %v2616
        %2649 = vst [vmem:[#allocation3 + $0x38] sm:$0xff] %v2617
        %2650 = vst [vmem:[#allocation3 + $0x40] sm:$0xff] %v2618
        %2651 = vst [vmem:[#allocation3 + $0x48] sm:$0xff] %v2619
        %2652 = vst [vmem:[#allocation3 + $0x50] sm:$0xff] %v2620
        %2653 = vst [vmem:[#allocation3 + $0x58] sm:$0xff] %v2621
        %2654 = vst [vmem:[#allocation3 + $0x60] sm:$0xff] %v2622
        %2655 = vst [vmem:[#allocation3 + $0x68] sm:$0xff] %v2623
        %2656 = vst [vmem:[#allocation3 + $0x70] sm:$0xff] %v2624
        %2657 = vst [vmem:[#allocation3 + $0x78] sm:$0xff] %v2625
        %2658 = vst [vmem:[#allocation3 + $0x80] sm:$0xff] %v2626
        %2659 = vst [vmem:[#allocation3 + $0x88] sm:$0xff] %v2627
        %2660 = vst [vmem:[#allocation3 + $0x90] sm:$0xff] %v2628
        %2661 = vst [vmem:[#allocation3 + $0x98] sm:$0xff] %v2629
        %2662 = vst [vmem:[#allocation3 + $0xa0] sm:$0xff] %v2630
        %2663 = vst [vmem:[#allocation3 + $0xa8] sm:$0xff] %v2631
        %2664 = vst [vmem:[#allocation3 + $0xb0] sm:$0xff] %v2632
        %2665 = vst [vmem:[#allocation3 + $0xb8] sm:$0xff] %v2633
        %2666 = vst [vmem:[#allocation3 + $0xc0] sm:$0xff] %v2634
        %2667 = vst [vmem:[#allocation3 + $0xc8] sm:$0xff] %v2635
        %2668 = vst [vmem:[#allocation3 + $0xd0] sm:$0xff] %v2636
        %2669 = vst [vmem:[#allocation3 + $0xd8] sm:$0xff] %v2637
        %2670 = vst [vmem:[#allocation3 + $0xe0] sm:$0xff] %v2638
        %2671 = vst [vmem:[#allocation3 + $0xe8] sm:$0xff] %v2639
        %2672 = vst [vmem:[#allocation3 + $0xf0] sm:$0xff] %v2640
        %2673 = vst [vmem:[#allocation3 + $0xf8] sm:$0xff] %v2641
        %v2674 = vld [vmem:[#allocation3] sm:$0xff]
        %v2675 = vld [vmem:[#allocation3 + $0x8] sm:$0xff]
        %v2676 = vld [vmem:[#allocation3 + $0x10] sm:$0xff]
        %v2677 = vld [vmem:[#allocation3 + $0x18] sm:$0xff]
        %v2678 = vld [vmem:[#allocation3 + $0x20] sm:$0xff]
        %v2679 = vld [vmem:[#allocation3 + $0x28] sm:$0xff]
        %v2680 = vld [vmem:[#allocation3 + $0x30] sm:$0xff]
        %v2681 = vld [vmem:[#allocation3 + $0x38] sm:$0xff]
        %v2682 = vld [vmem:[#allocation3 + $0x40] sm:$0xff]
        %v2683 = vld [vmem:[#allocation3 + $0x48] sm:$0xff]
        %v2684 = vld [vmem:[#allocation3 + $0x50] sm:$0xff]
        %v2685 = vld [vmem:[#allocation3 + $0x58] sm:$0xff]
        %v2686 = vld [vmem:[#allocation3 + $0x60] sm:$0xff]
        %v2687 = vld [vmem:[#allocation3 + $0x68] sm:$0xff]
        %v2688 = vld [vmem:[#allocation3 + $0x70] sm:$0xff]
        %v2689 = vld [vmem:[#allocation3 + $0x78] sm:$0xff]
        %v2690 = vld [vmem:[#allocation3 + $0x80] sm:$0xff]
        %v2691 = vld [vmem:[#allocation3 + $0x88] sm:$0xff]
        %v2692 = vld [vmem:[#allocation3 + $0x90] sm:$0xff]
        %v2693 = vld [vmem:[#allocation3 + $0x98] sm:$0xff]
        %v2694 = vld [vmem:[#allocation3 + $0xa0] sm:$0xff]
        %v2695 = vld [vmem:[#allocation3 + $0xa8] sm:$0xff]
        %v2696 = vld [vmem:[#allocation3 + $0xb0] sm:$0xff]
        %v2697 = vld [vmem:[#allocation3 + $0xb8] sm:$0xff]
        %v2698 = vld [vmem:[#allocation3 + $0xc0] sm:$0xff]
        %v2699 = vld [vmem:[#allocation3 + $0xc8] sm:$0xff]
        %v2700 = vld [vmem:[#allocation3 + $0xd0] sm:$0xff]
        %v2701 = vld [vmem:[#allocation3 + $0xd8] sm:$0xff]
        %v2702 = vld [vmem:[#allocation3 + $0xe0] sm:$0xff]
        %v2703 = vld [vmem:[#allocation3 + $0xe8] sm:$0xff]
        %v2704 = vld [vmem:[#allocation3 + $0xf0] sm:$0xff]
        %v2705 = vld [vmem:[#allocation3 + $0xf8] sm:$0xff]
        %v2706 = vld [vmem:[%s787] sm:$0xf]
        %v2707 = vld [vmem:[%s787 + $0x4] sm:$0xf]
        %v2708 = vld [vmem:[%s787 + $0xc] sm:$0xf]
        %v2709 = vld [vmem:[%s787 + $0x10] sm:$0xf]
        %v2710 = vld [vmem:[%s787 + $0x18] sm:$0xf]
        %v2711 = vld [vmem:[%s787 + $0x1c] sm:$0xf]
        %v2712 = vld [vmem:[%s787 + $0x24] sm:$0xf]
        %v2713 = vld [vmem:[%s787 + $0x28] sm:$0xf]
        %v2714 = vld [vmem:[%s787 + $0x30] sm:$0xf]
        %v2715 = vld [vmem:[%s787 + $0x34] sm:$0xf]
        %v2716 = vld [vmem:[%s787 + $0x3c] sm:$0xf]
        %v2717 = vld [vmem:[%s787 + $0x40] sm:$0xf]
        %v2718 = vld [vmem:[%s787 + $0x48] sm:$0xf]
        %v2719 = vld [vmem:[%s787 + $0x4c] sm:$0xf]
        %v2720 = vld [vmem:[%s787 + $0x54] sm:$0xf]
        %v2721 = vld [vmem:[%s787 + $0x58] sm:$0xf]
        %v2722 = vld [vmem:[%s787 + $0x60] sm:$0xf]
        %v2723 = vld [vmem:[%s787 + $0x64] sm:$0xf]
        %v2724 = vld [vmem:[%s787 + $0x6c] sm:$0xf]
        %v2725 = vld [vmem:[%s787 + $0x70] sm:$0xf]
        %v2726 = vld [vmem:[%s787 + $0x78] sm:$0xf]
        %v2727 = vld [vmem:[%s787 + $0x7c] sm:$0xf]
        %v2728 = vld [vmem:[%s787 + $0x84] sm:$0xf]
        %v2729 = vld [vmem:[%s787 + $0x88] sm:$0xf]
        %v2730 = vld [vmem:[%s787 + $0x90] sm:$0xf]
        %v2731 = vld [vmem:[%s787 + $0x94] sm:$0xf]
        %v2732 = vld [vmem:[%s787 + $0x9c] sm:$0xf]
        %v2733 = vld [vmem:[%s787 + $0xa0] sm:$0xf]
        %v2734 = vld [vmem:[%s787 + $0xa8] sm:$0xf]
        %v2735 = vld [vmem:[%s787 + $0xac] sm:$0xf]
        %v2736 = vld [vmem:[%s787 + $0xb4] sm:$0xf]
        %v2737 = vld [vmem:[%s787 + $0xb8] sm:$0xf]
        %s2738 = scalar_lea.vmem [#allocation10], 192
        %v2739 = vld [vmem:[%s2738] sm:$0xf]
        %v2740 = vld [vmem:[%s2738 + $0x4] sm:$0xf]
        %v2741 = vld [vmem:[%s2738 + $0x8] sm:$0xf]
        %v2742 = vld [vmem:[%s2738 + $0xc] sm:$0xf]
        %v2743 = vld [vmem:[%s2738 + $0x10] sm:$0xf]
        %v2744 = vld [vmem:[%s2738 + $0x14] sm:$0xf]
        %v2745 = vld [vmem:[%s2738 + $0x18] sm:$0xf]
        %v2746 = vld [vmem:[%s2738 + $0x1c] sm:$0xf]
        %v2747 = vld [vmem:[%s2738 + $0x20] sm:$0xf]
        %v2748 = vld [vmem:[%s2738 + $0x24] sm:$0xf]
        %v2749 = vld [vmem:[%s2738 + $0x28] sm:$0xf]
        %v2750 = vld [vmem:[%s2738 + $0x2c] sm:$0xf]
        %v2751 = vld [vmem:[%s2738 + $0x30] sm:$0xf]
        %v2752 = vld [vmem:[%s2738 + $0x34] sm:$0xf]
        %v2753 = vld [vmem:[%s2738 + $0x38] sm:$0xf]
        %v2754 = vld [vmem:[%s2738 + $0x3c] sm:$0xf]
        %v2787 = vunpack.c.l.b16 %v2706
        %v2788 = vunpack.c.l.b16 %v2707
        %v2789 = vunpack.c.l.b16 %v2708
        %v2790 = vunpack.c.l.b16 %v2709
        %v2791 = vunpack.c.l.b16 %v2710
        %v2792 = vunpack.c.l.b16 %v2711
        %v2793 = vunpack.c.l.b16 %v2712
        %v2794 = vunpack.c.l.b16 %v2713
        %v2795 = vunpack.c.l.b16 %v2714
        %v2796 = vunpack.c.l.b16 %v2715
        %v2797 = vunpack.c.l.b16 %v2716
        %v2798 = vunpack.c.l.b16 %v2717
        %v2799 = vunpack.c.l.b16 %v2718
        %v2800 = vunpack.c.l.b16 %v2719
        %v2801 = vunpack.c.l.b16 %v2720
        %v2802 = vunpack.c.l.b16 %v2721
        %v2803 = vunpack.c.l.b16 %v2722
        %v2804 = vunpack.c.l.b16 %v2723
        %v2805 = vunpack.c.l.b16 %v2724
        %v2806 = vunpack.c.l.b16 %v2725
        %v2807 = vunpack.c.l.b16 %v2726
        %v2808 = vunpack.c.l.b16 %v2727
        %v2809 = vunpack.c.l.b16 %v2728
        %v2810 = vunpack.c.l.b16 %v2729
        %v2811 = vunpack.c.l.b16 %v2730
        %v2812 = vunpack.c.l.b16 %v2731
        %v2813 = vunpack.c.l.b16 %v2732
        %v2814 = vunpack.c.l.b16 %v2733
        %v2815 = vunpack.c.l.b16 %v2734
        %v2816 = vunpack.c.l.b16 %v2735
        %v2817 = vunpack.c.l.b16 %v2736
        %v2818 = vunpack.c.l.b16 %v2737
        %v2819 = vpack.c.b16 %v2788, %v2787
        %v2820 = vpack.c.b16 %v2790, %v2789
        %v2821 = vpack.c.b16 %v2792, %v2791
        %v2822 = vpack.c.b16 %v2794, %v2793
        %v2823 = vpack.c.b16 %v2796, %v2795
        %v2824 = vpack.c.b16 %v2798, %v2797
        %v2825 = vpack.c.b16 %v2800, %v2799
        %v2826 = vpack.c.b16 %v2802, %v2801
        %v2827 = vpack.c.b16 %v2804, %v2803
        %v2828 = vpack.c.b16 %v2806, %v2805
        %v2829 = vpack.c.b16 %v2808, %v2807
        %v2830 = vpack.c.b16 %v2810, %v2809
        %v2831 = vpack.c.b16 %v2812, %v2811
        %v2832 = vpack.c.b16 %v2814, %v2813
        %v2833 = vpack.c.b16 %v2816, %v2815
        %v2834 = vpack.c.b16 %v2818, %v2817
        %v2867 = vunpack.c.l.b16 %v2739
        %v2868 = vunpack.c.l.b16 %v2740
        %v2869 = vunpack.c.l.b16 %v2741
        %v2870 = vunpack.c.l.b16 %v2742
        %v2871 = vunpack.c.l.b16 %v2743
        %v2872 = vunpack.c.l.b16 %v2744
        %v2873 = vunpack.c.l.b16 %v2745
        %v2874 = vunpack.c.l.b16 %v2746
        %v2875 = vunpack.c.l.b16 %v2747
        %v2876 = vunpack.c.l.b16 %v2748
        %v2877 = vunpack.c.l.b16 %v2749
        %v2878 = vunpack.c.l.b16 %v2750
        %v2879 = vunpack.c.l.b16 %v2751
        %v2880 = vunpack.c.l.b16 %v2752
        %v2881 = vunpack.c.l.b16 %v2753
        %v2882 = vunpack.c.l.b16 %v2754
        %v2883 = vpack.c.b16 %v2868, %v2867
        %v2884 = vpack.c.b16 %v2870, %v2869
        %v2885 = vpack.c.b16 %v2872, %v2871
        %v2886 = vpack.c.b16 %v2874, %v2873
        %v2887 = vpack.c.b16 %v2876, %v2875
        %v2888 = vpack.c.b16 %v2878, %v2877
        %v2889 = vpack.c.b16 %v2880, %v2879
        %v2890 = vpack.c.b16 %v2882, %v2881
        %2899 = vmatprep.subr.bf16.mxu0 0
        %2900 = vmatpush1.bf16.msra.mxu0 %v2883
        %2901 = vmatprep.subr.bf16.mxu0 0
        %2902 = vmatpush1.bf16.msra.mxu0 %v2884
        %2903 = vmatprep.subr.bf16.mxu0 0
        %2904 = vmatpush1.bf16.msra.mxu0 %v2885
        %2905 = vmatprep.subr.bf16.mxu0 0
        %2906 = vmatpush1.bf16.msra.mxu0 %v2886
        %2907 = vmatprep.subr.bf16.mxu0 0
        %2908 = vmatpush1.bf16.msra.mxu0 %v2887
        %2909 = vmatprep.subr.bf16.mxu0 0
        %2910 = vmatpush1.bf16.msra.mxu0 %v2888
        %2911 = vmatprep.subr.bf16.mxu0 0
        %2912 = vmatpush1.bf16.msra.mxu0 %v2889
        %2913 = vmatprep.subr.bf16.mxu0 0
        %2914 = vmatpush1.bf16.msra.mxu0 %v2890
        %2915 = vmatprep.subr.bf16.mxu0 0
        %2916 = vmatpush1.bf16.msra.mxu0 0
        %2917 = vmatprep.subr.bf16.mxu0 0
        %2918 = vmatpush1.bf16.msra.mxu0 0
        %2919 = vmatprep.subr.bf16.mxu0 0
        %2920 = vmatpush1.bf16.msra.mxu0 0
        %2921 = vmatprep.subr.bf16.mxu0 0
        %2922 = vmatpush1.bf16.msra.mxu0 0
        %2923 = vmatprep.subr.bf16.mxu0 0
        %2924 = vmatpush1.bf16.msra.mxu0 0
        %2925 = vmatprep.subr.bf16.mxu0 0
        %2926 = vmatpush1.bf16.msra.mxu0 0
        %2927 = vmatprep.subr.bf16.mxu0 0
        %2928 = vmatpush1.bf16.msra.mxu0 0
        %2929 = vmatprep.subr.bf16.mxu0 0
        %2930 = vmatpush1.bf16.msra.mxu0 0
        %2931 = vmatprep.mubr.bf16.mxu0 0
        %2932 = vmatmul.mubr.bf16.gmra.mrb[0].mxu0 %v2819
        %v2933 = vpop.f32.mrb[0].mxu0
        %v2934 = vadd.f32 0.0, %v2933
        %v2935 = vpop.f32.mrb[0].mxu0
        %v2936 = vpop.f32.mrb[0].mxu0
        %v2937 = vadd.f32 0.0, %v2936
        %v2938 = vpop.f32.mrb[0].mxu0
        %2939 = vmatprep.mubr.bf16.mxu0 0
        %2940 = vmatmul.mubr.bf16.gmra.mrb[0].mxu0 %v2820
        %v2941 = vpop.f32.mrb[0].mxu0
        %v2942 = vadd.f32 0.0, %v2941
        %v2943 = vpop.f32.mrb[0].mxu0
        %v2944 = vpop.f32.mrb[0].mxu0
        %v2945 = vadd.f32 0.0, %v2944
        %v2946 = vpop.f32.mrb[0].mxu0
        %2947 = vmatprep.mubr.bf16.mxu0 0
        %2948 = vmatmul.mubr.bf16.gmra.mrb[0].mxu0 %v2821
        %v2949 = vpop.f32.mrb[0].mxu0
        %v2950 = vadd.f32 0.0, %v2949
        %v2951 = vpop.f32.mrb[0].mxu0
        %v2952 = vpop.f32.mrb[0].mxu0
        %v2953 = vadd.f32 0.0, %v2952
        %v2954 = vpop.f32.mrb[0].mxu0
        %2955 = vmatprep.mubr.bf16.mxu0 0
        %2956 = vmatmul.mubr.bf16.gmra.mrb[0].mxu0 %v2822
        %v2957 = vpop.f32.mrb[0].mxu0
        %v2958 = vadd.f32 0.0, %v2957
        %v2959 = vpop.f32.mrb[0].mxu0
        %v2960 = vpop.f32.mrb[0].mxu0
        %v2961 = vadd.f32 0.0, %v2960
        %v2962 = vpop.f32.mrb[0].mxu0
        %2963 = vmatprep.mubr.bf16.mxu0 0
        %2964 = vmatmul.mubr.bf16.gmra.mrb[0].mxu0 %v2823
        %v2965 = vpop.f32.mrb[0].mxu0
        %v2966 = vadd.f32 0.0, %v2965
        %v2967 = vpop.f32.mrb[0].mxu0
        %v2968 = vpop.f32.mrb[0].mxu0
        %v2969 = vadd.f32 0.0, %v2968
        %v2970 = vpop.f32.mrb[0].mxu0
        %2971 = vmatprep.mubr.bf16.mxu0 0
        %2972 = vmatmul.mubr.bf16.gmra.mrb[0].mxu0 %v2824
        %v2973 = vpop.f32.mrb[0].mxu0
        %v2974 = vadd.f32 0.0, %v2973
        %v2975 = vpop.f32.mrb[0].mxu0
        %v2976 = vpop.f32.mrb[0].mxu0
        %v2977 = vadd.f32 0.0, %v2976
        %v2978 = vpop.f32.mrb[0].mxu0
        %2979 = vmatprep.mubr.bf16.mxu0 0
        %2980 = vmatmul.mubr.bf16.gmra.mrb[0].mxu0 %v2825
        %v2981 = vpop.f32.mrb[0].mxu0
        %v2982 = vadd.f32 0.0, %v2981
        %v2983 = vpop.f32.mrb[0].mxu0
        %v2984 = vpop.f32.mrb[0].mxu0
        %v2985 = vadd.f32 0.0, %v2984
        %v2986 = vpop.f32.mrb[0].mxu0
        %2987 = vmatprep.mubr.bf16.mxu0 0
        %2988 = vmatmul.mubr.bf16.gmra.mrb[0].mxu0 %v2826
        %v2989 = vpop.f32.mrb[0].mxu0
        %v2990 = vadd.f32 0.0, %v2989
        %v2991 = vpop.f32.mrb[0].mxu0
        %v2992 = vpop.f32.mrb[0].mxu0
        %v2993 = vadd.f32 0.0, %v2992
        %v2994 = vpop.f32.mrb[0].mxu0
        %2995 = vmatprep.mubr.bf16.mxu0 0
        %2996 = vmatmul.mubr.bf16.gmra.mrb[0].mxu0 %v2827
        %v2997 = vpop.f32.mrb[0].mxu0
        %v2998 = vadd.f32 0.0, %v2997
        %v2999 = vpop.f32.mrb[0].mxu0
        %v3000 = vpop.f32.mrb[0].mxu0
        %v3001 = vadd.f32 0.0, %v3000
        %v3002 = vpop.f32.mrb[0].mxu0
        %3003 = vmatprep.mubr.bf16.mxu0 0
        %3004 = vmatmul.mubr.bf16.gmra.mrb[0].mxu0 %v2828
        %v3005 = vpop.f32.mrb[0].mxu0
        %v3006 = vadd.f32 0.0, %v3005
        %v3007 = vpop.f32.mrb[0].mxu0
        %v3008 = vpop.f32.mrb[0].mxu0
        %v3009 = vadd.f32 0.0, %v3008
        %v3010 = vpop.f32.mrb[0].mxu0
        %3011 = vmatprep.mubr.bf16.mxu0 0
        %3012 = vmatmul.mubr.bf16.gmra.mrb[0].mxu0 %v2829
        %v3013 = vpop.f32.mrb[0].mxu0
        %v3014 = vadd.f32 0.0, %v3013
        %v3015 = vpop.f32.mrb[0].mxu0
        %v3016 = vpop.f32.mrb[0].mxu0
        %v3017 = vadd.f32 0.0, %v3016
        %v3018 = vpop.f32.mrb[0].mxu0
        %3019 = vmatprep.mubr.bf16.mxu0 0
        %3020 = vmatmul.mubr.bf16.gmra.mrb[0].mxu0 %v2830
        %v3021 = vpop.f32.mrb[0].mxu0
        %v3022 = vadd.f32 0.0, %v3021
        %v3023 = vpop.f32.mrb[0].mxu0
        %v3024 = vpop.f32.mrb[0].mxu0
        %v3025 = vadd.f32 0.0, %v3024
        %v3026 = vpop.f32.mrb[0].mxu0
        %3027 = vmatprep.mubr.bf16.mxu0 0
        %3028 = vmatmul.mubr.bf16.gmra.mrb[0].mxu0 %v2831
        %v3029 = vpop.f32.mrb[0].mxu0
        %v3030 = vadd.f32 0.0, %v3029
        %v3031 = vpop.f32.mrb[0].mxu0
        %v3032 = vpop.f32.mrb[0].mxu0
        %v3033 = vadd.f32 0.0, %v3032
        %v3034 = vpop.f32.mrb[0].mxu0
        %3035 = vmatprep.mubr.bf16.mxu0 0
        %3036 = vmatmul.mubr.bf16.gmra.mrb[0].mxu0 %v2832
        %v3037 = vpop.f32.mrb[0].mxu0
        %v3038 = vadd.f32 0.0, %v3037
        %v3039 = vpop.f32.mrb[0].mxu0
        %v3040 = vpop.f32.mrb[0].mxu0
        %v3041 = vadd.f32 0.0, %v3040
        %v3042 = vpop.f32.mrb[0].mxu0
        %3043 = vmatprep.mubr.bf16.mxu0 0
        %3044 = vmatmul.mubr.bf16.gmra.mrb[0].mxu0 %v2833
        %v3045 = vpop.f32.mrb[0].mxu0
        %v3046 = vadd.f32 0.0, %v3045
        %v3047 = vpop.f32.mrb[0].mxu0
        %v3048 = vpop.f32.mrb[0].mxu0
        %v3049 = vadd.f32 0.0, %v3048
        %v3050 = vpop.f32.mrb[0].mxu0
        %3051 = vmatprep.mubr.bf16.mxu0 0
        %3052 = vmatmul.mubr.bf16.gmra.mrb[0].mxu0 %v2834
        %v3053 = vpop.f32.mrb[0].mxu0
        %v3054 = vadd.f32 0.0, %v3053
        %v3055 = vpop.f32.mrb[0].mxu0
        %v3056 = vpop.f32.mrb[0].mxu0
        %v3057 = vadd.f32 0.0, %v3056
        %v3058 = vpop.f32.mrb[0].mxu0
        %3059 = vdwg.mxu0
        %v3060 = vadd.f32 %v2674, %v2934
        %v3061 = vadd.f32 %v2675, %v2937
        %v3062 = vadd.f32 %v2676, %v2942
        %v3063 = vadd.f32 %v2677, %v2945
        %v3064 = vadd.f32 %v2678, %v2950
        %v3065 = vadd.f32 %v2679, %v2953
        %v3066 = vadd.f32 %v2680, %v2958
        %v3067 = vadd.f32 %v2681, %v2961
        %v3068 = vadd.f32 %v2682, %v2966
        %v3069 = vadd.f32 %v2683, %v2969
        %v3070 = vadd.f32 %v2684, %v2974
        %v3071 = vadd.f32 %v2685, %v2977
        %v3072 = vadd.f32 %v2686, %v2982
        %v3073 = vadd.f32 %v2687, %v2985
        %v3074 = vadd.f32 %v2688, %v2990
        %v3075 = vadd.f32 %v2689, %v2993
        %v3076 = vadd.f32 %v2690, %v2998
        %v3077 = vadd.f32 %v2691, %v3001
        %v3078 = vadd.f32 %v2692, %v3006
        %v3079 = vadd.f32 %v2693, %v3009
        %v3080 = vadd.f32 %v2694, %v3014
        %v3081 = vadd.f32 %v2695, %v3017
        %v3082 = vadd.f32 %v2696, %v3022
        %v3083 = vadd.f32 %v2697, %v3025
        %v3084 = vadd.f32 %v2698, %v3030
        %v3085 = vadd.f32 %v2699, %v3033
        %v3086 = vadd.f32 %v2700, %v3038
        %v3087 = vadd.f32 %v2701, %v3041
        %v3088 = vadd.f32 %v2702, %v3046
        %v3089 = vadd.f32 %v2703, %v3049
        %v3090 = vadd.f32 %v2704, %v3054
        %v3091 = vadd.f32 %v2705, %v3057
        %3092 = vst [vmem:[#allocation3] sm:$0xff] %v3060
        %3093 = vst [vmem:[#allocation3 + $0x8] sm:$0xff] %v3061
        %3094 = vst [vmem:[#allocation3 + $0x10] sm:$0xff] %v3062
        %3095 = vst [vmem:[#allocation3 + $0x18] sm:$0xff] %v3063
        %3096 = vst [vmem:[#allocation3 + $0x20] sm:$0xff] %v3064
        %3097 = vst [vmem:[#allocation3 + $0x28] sm:$0xff] %v3065
        %3098 = vst [vmem:[#allocation3 + $0x30] sm:$0xff] %v3066
        %3099 = vst [vmem:[#allocation3 + $0x38] sm:$0xff] %v3067
        %3100 = vst [vmem:[#allocation3 + $0x40] sm:$0xff] %v3068
        %3101 = vst [vmem:[#allocation3 + $0x48] sm:$0xff] %v3069
        %3102 = vst [vmem:[#allocation3 + $0x50] sm:$0xff] %v3070
        %3103 = vst [vmem:[#allocation3 + $0x58] sm:$0xff] %v3071
        %3104 = vst [vmem:[#allocation3 + $0x60] sm:$0xff] %v3072
        %3105 = vst [vmem:[#allocation3 + $0x68] sm:$0xff] %v3073
        %3106 = vst [vmem:[#allocation3 + $0x70] sm:$0xff] %v3074
        %3107 = vst [vmem:[#allocation3 + $0x78] sm:$0xff] %v3075
        %3108 = vst [vmem:[#allocation3 + $0x80] sm:$0xff] %v3076
        %3109 = vst [vmem:[#allocation3 + $0x88] sm:$0xff] %v3077
        %3110 = vst [vmem:[#allocation3 + $0x90] sm:$0xff] %v3078
        %3111 = vst [vmem:[#allocation3 + $0x98] sm:$0xff] %v3079
        %3112 = vst [vmem:[#allocation3 + $0xa0] sm:$0xff] %v3080
        %3113 = vst [vmem:[#allocation3 + $0xa8] sm:$0xff] %v3081
        %3114 = vst [vmem:[#allocation3 + $0xb0] sm:$0xff] %v3082
        %3115 = vst [vmem:[#allocation3 + $0xb8] sm:$0xff] %v3083
        %3116 = vst [vmem:[#allocation3 + $0xc0] sm:$0xff] %v3084
        %3117 = vst [vmem:[#allocation3 + $0xc8] sm:$0xff] %v3085
        %3118 = vst [vmem:[#allocation3 + $0xd0] sm:$0xff] %v3086
        %3119 = vst [vmem:[#allocation3 + $0xd8] sm:$0xff] %v3087
        %3120 = vst [vmem:[#allocation3 + $0xe0] sm:$0xff] %v3088
        %3121 = vst [vmem:[#allocation3 + $0xe8] sm:$0xff] %v3089
        %3122 = vst [vmem:[#allocation3 + $0xf0] sm:$0xff] %v3090
        %3123 = vst [vmem:[#allocation3 + $0xf8] sm:$0xff] %v3091
        %v3124 = vld [vmem:[#allocation3] sm:$0xff]
        %v3125 = vld [vmem:[#allocation3 + $0x8] sm:$0xff]
        %v3126 = vld [vmem:[#allocation3 + $0x10] sm:$0xff]
        %v3127 = vld [vmem:[#allocation3 + $0x18] sm:$0xff]
        %v3128 = vld [vmem:[#allocation3 + $0x20] sm:$0xff]
        %v3129 = vld [vmem:[#allocation3 + $0x28] sm:$0xff]
        %v3130 = vld [vmem:[#allocation3 + $0x30] sm:$0xff]
        %v3131 = vld [vmem:[#allocation3 + $0x38] sm:$0xff]
        %v3132 = vld [vmem:[#allocation3 + $0x40] sm:$0xff]
        %v3133 = vld [vmem:[#allocation3 + $0x48] sm:$0xff]
        %v3134 = vld [vmem:[#allocation3 + $0x50] sm:$0xff]
        %v3135 = vld [vmem:[#allocation3 + $0x58] sm:$0xff]
        %v3136 = vld [vmem:[#allocation3 + $0x60] sm:$0xff]
        %v3137 = vld [vmem:[#allocation3 + $0x68] sm:$0xff]
        %v3138 = vld [vmem:[#allocation3 + $0x70] sm:$0xff]
        %v3139 = vld [vmem:[#allocation3 + $0x78] sm:$0xff]
        %v3140 = vld [vmem:[#allocation3 + $0x80] sm:$0xff]
        %v3141 = vld [vmem:[#allocation3 + $0x88] sm:$0xff]
        %v3142 = vld [vmem:[#allocation3 + $0x90] sm:$0xff]
        %v3143 = vld [vmem:[#allocation3 + $0x98] sm:$0xff]
        %v3144 = vld [vmem:[#allocation3 + $0xa0] sm:$0xff]
        %v3145 = vld [vmem:[#allocation3 + $0xa8] sm:$0xff]
        %v3146 = vld [vmem:[#allocation3 + $0xb0] sm:$0xff]
        %v3147 = vld [vmem:[#allocation3 + $0xb8] sm:$0xff]
        %v3148 = vld [vmem:[#allocation3 + $0xc0] sm:$0xff]
        %v3149 = vld [vmem:[#allocation3 + $0xc8] sm:$0xff]
        %v3150 = vld [vmem:[#allocation3 + $0xd0] sm:$0xff]
        %v3151 = vld [vmem:[#allocation3 + $0xd8] sm:$0xff]
        %v3152 = vld [vmem:[#allocation3 + $0xe0] sm:$0xff]
        %v3153 = vld [vmem:[#allocation3 + $0xe8] sm:$0xff]
        %v3154 = vld [vmem:[#allocation3 + $0xf0] sm:$0xff]
        %v3155 = vld [vmem:[#allocation3 + $0xf8] sm:$0xff]
        %v3156 = vld [vmem:[%s787] sm:$0xe]
        %v3157 = vld [vmem:[%s787 + $0x4] sm:$0xf]
        %v3158 = vld [vmem:[%s787 + $0x8] sm:$0x1]
        %v3159 = vld [vmem:[%s787 + $0xc] sm:$0xe]
        %v3160 = vld [vmem:[%s787 + $0x10] sm:$0xf]
        %v3161 = vld [vmem:[%s787 + $0x14] sm:$0x1]
        %v3162 = vld [vmem:[%s787 + $0x18] sm:$0xe]
        %v3163 = vld [vmem:[%s787 + $0x1c] sm:$0xf]
        %v3164 = vld [vmem:[%s787 + $0x20] sm:$0x1]
        %v3165 = vld [vmem:[%s787 + $0x24] sm:$0xe]
        %v3166 = vld [vmem:[%s787 + $0x28] sm:$0xf]
        %v3167 = vld [vmem:[%s787 + $0x2c] sm:$0x1]
        %v3168 = vld [vmem:[%s787 + $0x30] sm:$0xe]
        %v3169 = vld [vmem:[%s787 + $0x34] sm:$0xf]
        %v3170 = vld [vmem:[%s787 + $0x38] sm:$0x1]
        %v3171 = vld [vmem:[%s787 + $0x3c] sm:$0xe]
        %v3172 = vld [vmem:[%s787 + $0x40] sm:$0xf]
        %v3173 = vld [vmem:[%s787 + $0x44] sm:$0x1]
        %v3174 = vld [vmem:[%s787 + $0x48] sm:$0xe]
        %v3175 = vld [vmem:[%s787 + $0x4c] sm:$0xf]
        %v3176 = vld [vmem:[%s787 + $0x50] sm:$0x1]
        %v3177 = vld [vmem:[%s787 + $0x54] sm:$0xe]
        %v3178 = vld [vmem:[%s787 + $0x58] sm:$0xf]
        %v3179 = vld [vmem:[%s787 + $0x5c] sm:$0x1]
        %v3180 = vld [vmem:[%s787 + $0x60] sm:$0xe]
        %v3181 = vld [vmem:[%s787 + $0x64] sm:$0xf]
        %v3182 = vld [vmem:[%s787 + $0x68] sm:$0x1]
        %v3183 = vld [vmem:[%s787 + $0x6c] sm:$0xe]
        %v3184 = vld [vmem:[%s787 + $0x70] sm:$0xf]
        %v3185 = vld [vmem:[%s787 + $0x74] sm:$0x1]
        %v3186 = vld [vmem:[%s787 + $0x78] sm:$0xe]
        %v3187 = vld [vmem:[%s787 + $0x7c] sm:$0xf]
        %v3188 = vld [vmem:[%s787 + $0x80] sm:$0x1]
        %v3189 = vld [vmem:[%s787 + $0x84] sm:$0xe]
        %v3190 = vld [vmem:[%s787 + $0x88] sm:$0xf]
        %v3191 = vld [vmem:[%s787 + $0x8c] sm:$0x1]
        %v3192 = vld [vmem:[%s787 + $0x90] sm:$0xe]
        %v3193 = vld [vmem:[%s787 + $0x94] sm:$0xf]
        %v3194 = vld [vmem:[%s787 + $0x98] sm:$0x1]
        %v3195 = vld [vmem:[%s787 + $0x9c] sm:$0xe]
        %v3196 = vld [vmem:[%s787 + $0xa0] sm:$0xf]
        %v3197 = vld [vmem:[%s787 + $0xa4] sm:$0x1]
        %v3198 = vld [vmem:[%s787 + $0xa8] sm:$0xe]
        %v3199 = vld [vmem:[%s787 + $0xac] sm:$0xf]
        %v3200 = vld [vmem:[%s787 + $0xb0] sm:$0x1]
        %v3201 = vld [vmem:[%s787 + $0xb4] sm:$0xe]
        %v3202 = vld [vmem:[%s787 + $0xb8] sm:$0xf]
        %v3203 = vld [vmem:[%s787 + $0xbc] sm:$0x1]
        %v3252 = vrot.slane %v3156, 5
        %v3253 = vrot.slane %v3252, 4
        %v3254 = vrot.slane %v3157, 5
        %v3255 = vsel %vm1610, %v3253, %v3254
        %v3256 = vrot.slane %v3254, 4
        %v3257 = vrot.slane %v3158, 5
        %v3258 = vsel %vm1610, %v3256, %v3257
        %v3259 = vrot.slane %v3159, 5
        %v3260 = vrot.slane %v3259, 4
        %v3261 = vrot.slane %v3160, 5
        %v3262 = vsel %vm1610, %v3260, %v3261
        %v3263 = vrot.slane %v3261, 4
        %v3264 = vrot.slane %v3161, 5
        %v3265 = vsel %vm1610, %v3263, %v3264
        %v3266 = vrot.slane %v3162, 5
        %v3267 = vrot.slane %v3266, 4
        %v3268 = vrot.slane %v3163, 5
        %v3269 = vsel %vm1610, %v3267, %v3268
        %v3270 = vrot.slane %v3268, 4
        %v3271 = vrot.slane %v3164, 5
        %v3272 = vsel %vm1610, %v3270, %v3271
        %v3273 = vrot.slane %v3165, 5
        %v3274 = vrot.slane %v3273, 4
        %v3275 = vrot.slane %v3166, 5
        %v3276 = vsel %vm1610, %v3274, %v3275
        %v3277 = vrot.slane %v3275, 4
        %v3278 = vrot.slane %v3167, 5
        %v3279 = vsel %vm1610, %v3277, %v3278
        %v3280 = vrot.slane %v3168, 5
        %v3281 = vrot.slane %v3280, 4
        %v3282 = vrot.slane %v3169, 5
        %v3283 = vsel %vm1610, %v3281, %v3282
        %v3284 = vrot.slane %v3282, 4
        %v3285 = vrot.slane %v3170, 5
        %v3286 = vsel %vm1610, %v3284, %v3285
        %v3287 = vrot.slane %v3171, 5
        %v3288 = vrot.slane %v3287, 4
        %v3289 = vrot.slane %v3172, 5
        %v3290 = vsel %vm1610, %v3288, %v3289
        %v3291 = vrot.slane %v3289, 4
        %v3292 = vrot.slane %v3173, 5
        %v3293 = vsel %vm1610, %v3291, %v3292
        %v3294 = vrot.slane %v3174, 5
        %v3295 = vrot.slane %v3294, 4
        %v3296 = vrot.slane %v3175, 5
        %v3297 = vsel %vm1610, %v3295, %v3296
        %v3298 = vrot.slane %v3296, 4
        %v3299 = vrot.slane %v3176, 5
        %v3300 = vsel %vm1610, %v3298, %v3299
        %v3301 = vrot.slane %v3177, 5
        %v3302 = vrot.slane %v3301, 4
        %v3303 = vrot.slane %v3178, 5
        %v3304 = vsel %vm1610, %v3302, %v3303
        %v3305 = vrot.slane %v3303, 4
        %v3306 = vrot.slane %v3179, 5
        %v3307 = vsel %vm1610, %v3305, %v3306
        %v3308 = vrot.slane %v3180, 5
        %v3309 = vrot.slane %v3308, 4
        %v3310 = vrot.slane %v3181, 5
        %v3311 = vsel %vm1610, %v3309, %v3310
        %v3312 = vrot.slane %v3310, 4
        %v3313 = vrot.slane %v3182, 5
        %v3314 = vsel %vm1610, %v3312, %v3313
        %v3315 = vrot.slane %v3183, 5
        %v3316 = vrot.slane %v3315, 4
        %v3317 = vrot.slane %v3184, 5
        %v3318 = vsel %vm1610, %v3316, %v3317
        %v3319 = vrot.slane %v3317, 4
        %v3320 = vrot.slane %v3185, 5
        %v3321 = vsel %vm1610, %v3319, %v3320
        %v3322 = vrot.slane %v3186, 5
        %v3323 = vrot.slane %v3322, 4
        %v3324 = vrot.slane %v3187, 5
        %v3325 = vsel %vm1610, %v3323, %v3324
        %v3326 = vrot.slane %v3324, 4
        %v3327 = vrot.slane %v3188, 5
        %v3328 = vsel %vm1610, %v3326, %v3327
        %v3329 = vrot.slane %v3189, 5
        %v3330 = vrot.slane %v3329, 4
        %v3331 = vrot.slane %v3190, 5
        %v3332 = vsel %vm1610, %v3330, %v3331
        %v3333 = vrot.slane %v3331, 4
        %v3334 = vrot.slane %v3191, 5
        %v3335 = vsel %vm1610, %v3333, %v3334
        %v3336 = vrot.slane %v3192, 5
        %v3337 = vrot.slane %v3336, 4
        %v3338 = vrot.slane %v3193, 5
        %v3339 = vsel %vm1610, %v3337, %v3338
        %v3340 = vrot.slane %v3338, 4
        %v3341 = vrot.slane %v3194, 5
        %v3342 = vsel %vm1610, %v3340, %v3341
        %v3343 = vrot.slane %v3195, 5
        %v3344 = vrot.slane %v3343, 4
        %v3345 = vrot.slane %v3196, 5
        %v3346 = vsel %vm1610, %v3344, %v3345
        %v3347 = vrot.slane %v3345, 4
        %v3348 = vrot.slane %v3197, 5
        %v3349 = vsel %vm1610, %v3347, %v3348
        %v3350 = vrot.slane %v3198, 5
        %v3351 = vrot.slane %v3350, 4
        %v3352 = vrot.slane %v3199, 5
        %v3353 = vsel %vm1610, %v3351, %v3352
        %v3354 = vrot.slane %v3352, 4
        %v3355 = vrot.slane %v3200, 5
        %v3356 = vsel %vm1610, %v3354, %v3355
        %v3357 = vrot.slane %v3201, 5
        %v3358 = vrot.slane %v3357, 4
        %v3359 = vrot.slane %v3202, 5
        %v3360 = vsel %vm1610, %v3358, %v3359
        %v3361 = vrot.slane %v3359, 4
        %v3362 = vrot.slane %v3203, 5
        %v3363 = vsel %vm1610, %v3361, %v3362
        %s3364 = scalar_lea.vmem [#allocation10], 256
        %v3365 = vld [vmem:[%s3364] sm:$0xf]
        %v3366 = vld [vmem:[%s3364 + $0x4] sm:$0xf]
        %v3367 = vld [vmem:[%s3364 + $0x8] sm:$0xf]
        %v3368 = vld [vmem:[%s3364 + $0xc] sm:$0xf]
        %v3369 = vld [vmem:[%s3364 + $0x10] sm:$0xf]
        %v3370 = vld [vmem:[%s3364 + $0x14] sm:$0xf]
        %v3371 = vld [vmem:[%s3364 + $0x18] sm:$0xf]
        %v3372 = vld [vmem:[%s3364 + $0x1c] sm:$0xf]
        %v3373 = vld [vmem:[%s3364 + $0x20] sm:$0xf]
        %v3374 = vld [vmem:[%s3364 + $0x24] sm:$0xf]
        %v3375 = vld [vmem:[%s3364 + $0x28] sm:$0xf]
        %v3376 = vld [vmem:[%s3364 + $0x2c] sm:$0xf]
        %v3377 = vld [vmem:[%s3364 + $0x30] sm:$0xf]
        %v3378 = vld [vmem:[%s3364 + $0x34] sm:$0xf]
        %v3379 = vld [vmem:[%s3364 + $0x38] sm:$0xf]
        %v3380 = vld [vmem:[%s3364 + $0x3c] sm:$0xf]
        %v3381 = vunpack.c.l.b16 %v3255
        %v3382 = vunpack.c.l.b16 %v3258
        %v3383 = vunpack.c.l.b16 %v3262
        %v3384 = vunpack.c.l.b16 %v3265
        %v3385 = vunpack.c.l.b16 %v3269
        %v3386 = vunpack.c.l.b16 %v3272
        %v3387 = vunpack.c.l.b16 %v3276
        %v3388 = vunpack.c.l.b16 %v3279
        %v3389 = vunpack.c.l.b16 %v3283
        %v3390 = vunpack.c.l.b16 %v3286
        %v3391 = vunpack.c.l.b16 %v3290
        %v3392 = vunpack.c.l.b16 %v3293
        %v3393 = vunpack.c.l.b16 %v3297
        %v3394 = vunpack.c.l.b16 %v3300
        %v3395 = vunpack.c.l.b16 %v3304
        %v3396 = vunpack.c.l.b16 %v3307
        %v3397 = vunpack.c.l.b16 %v3311
        %v3398 = vunpack.c.l.b16 %v3314
        %v3399 = vunpack.c.l.b16 %v3318
        %v3400 = vunpack.c.l.b16 %v3321
        %v3401 = vunpack.c.l.b16 %v3325
        %v3402 = vunpack.c.l.b16 %v3328
        %v3403 = vunpack.c.l.b16 %v3332
        %v3404 = vunpack.c.l.b16 %v3335
        %v3405 = vunpack.c.l.b16 %v3339
        %v3406 = vunpack.c.l.b16 %v3342
        %v3407 = vunpack.c.l.b16 %v3346
        %v3408 = vunpack.c.l.b16 %v3349
        %v3409 = vunpack.c.l.b16 %v3353
        %v3410 = vunpack.c.l.b16 %v3356
        %v3411 = vunpack.c.l.b16 %v3360
        %v3412 = vunpack.c.l.b16 %v3363
        %v3413 = vpack.c.b16 %v3382, %v3381
        %v3414 = vpack.c.b16 %v3384, %v3383
        %v3415 = vpack.c.b16 %v3386, %v3385
        %v3416 = vpack.c.b16 %v3388, %v3387
        %v3417 = vpack.c.b16 %v3390, %v3389
        %v3418 = vpack.c.b16 %v3392, %v3391
        %v3419 = vpack.c.b16 %v3394, %v3393
        %v3420 = vpack.c.b16 %v3396, %v3395
        %v3421 = vpack.c.b16 %v3398, %v3397
        %v3422 = vpack.c.b16 %v3400, %v3399
        %v3423 = vpack.c.b16 %v3402, %v3401
        %v3424 = vpack.c.b16 %v3404, %v3403
        %v3425 = vpack.c.b16 %v3406, %v3405
        %v3426 = vpack.c.b16 %v3408, %v3407
        %v3427 = vpack.c.b16 %v3410, %v3409
        %v3428 = vpack.c.b16 %v3412, %v3411
        %v3461 = vunpack.c.l.b16 %v3365
        %v3462 = vunpack.c.l.b16 %v3366
        %v3463 = vunpack.c.l.b16 %v3367
        %v3464 = vunpack.c.l.b16 %v3368
        %v3465 = vunpack.c.l.b16 %v3369
        %v3466 = vunpack.c.l.b16 %v3370
        %v3467 = vunpack.c.l.b16 %v3371
        %v3468 = vunpack.c.l.b16 %v3372
        %v3469 = vunpack.c.l.b16 %v3373
        %v3470 = vunpack.c.l.b16 %v3374
        %v3471 = vunpack.c.l.b16 %v3375
        %v3472 = vunpack.c.l.b16 %v3376
        %v3473 = vunpack.c.l.b16 %v3377
        %v3474 = vunpack.c.l.b16 %v3378
        %v3475 = vunpack.c.l.b16 %v3379
        %v3476 = vunpack.c.l.b16 %v3380
        %v3477 = vpack.c.b16 %v3462, %v3461
        %v3478 = vpack.c.b16 %v3464, %v3463
        %v3479 = vpack.c.b16 %v3466, %v3465
        %v3480 = vpack.c.b16 %v3468, %v3467
        %v3481 = vpack.c.b16 %v3470, %v3469
        %v3482 = vpack.c.b16 %v3472, %v3471
        %v3483 = vpack.c.b16 %v3474, %v3473
        %v3484 = vpack.c.b16 %v3476, %v3475
        %3493 = vmatprep.subr.bf16.mxu0 0
        %3494 = vmatpush1.bf16.msra.mxu0 %v3477
        %3495 = vmatprep.subr.bf16.mxu0 0
        %3496 = vmatpush1.bf16.msra.mxu0 %v3478
        %3497 = vmatprep.subr.bf16.mxu0 0
        %3498 = vmatpush1.bf16.msra.mxu0 %v3479
        %3499 = vmatprep.subr.bf16.mxu0 0
        %3500 = vmatpush1.bf16.msra.mxu0 %v3480
        %3501 = vmatprep.subr.bf16.mxu0 0
        %3502 = vmatpush1.bf16.msra.mxu0 %v3481
        %3503 = vmatprep.subr.bf16.mxu0 0
        %3504 = vmatpush1.bf16.msra.mxu0 %v3482
        %3505 = vmatprep.subr.bf16.mxu0 0
        %3506 = vmatpush1.bf16.msra.mxu0 %v3483
        %3507 = vmatprep.subr.bf16.mxu0 0
        %3508 = vmatpush1.bf16.msra.mxu0 %v3484
        %3509 = vmatprep.subr.bf16.mxu0 0
        %3510 = vmatpush1.bf16.msra.mxu0 0
        %3511 = vmatprep.subr.bf16.mxu0 0
        %3512 = vmatpush1.bf16.msra.mxu0 0
        %3513 = vmatprep.subr.bf16.mxu0 0
        %3514 = vmatpush1.bf16.msra.mxu0 0
        %3515 = vmatprep.subr.bf16.mxu0 0
        %3516 = vmatpush1.bf16.msra.mxu0 0
        %3517 = vmatprep.subr.bf16.mxu0 0
        %3518 = vmatpush1.bf16.msra.mxu0 0
        %3519 = vmatprep.subr.bf16.mxu0 0
        %3520 = vmatpush1.bf16.msra.mxu0 0
        %3521 = vmatprep.subr.bf16.mxu0 0
        %3522 = vmatpush1.bf16.msra.mxu0 0
        %3523 = vmatprep.subr.bf16.mxu0 0
        %3524 = vmatpush1.bf16.msra.mxu0 0
        %3525 = vmatprep.mubr.bf16.mxu0 0
        %3526 = vmatmul.mubr.bf16.gmra.mrb[0].mxu0 %v3413
        %v3527 = vpop.f32.mrb[0].mxu0
        %v3528 = vadd.f32 0.0, %v3527
        %v3529 = vpop.f32.mrb[0].mxu0
        %v3530 = vpop.f32.mrb[0].mxu0
        %v3531 = vadd.f32 0.0, %v3530
        %v3532 = vpop.f32.mrb[0].mxu0
        %3533 = vmatprep.mubr.bf16.mxu0 0
        %3534 = vmatmul.mubr.bf16.gmra.mrb[0].mxu0 %v3414
        %v3535 = vpop.f32.mrb[0].mxu0
        %v3536 = vadd.f32 0.0, %v3535
        %v3537 = vpop.f32.mrb[0].mxu0
        %v3538 = vpop.f32.mrb[0].mxu0
        %v3539 = vadd.f32 0.0, %v3538
        %v3540 = vpop.f32.mrb[0].mxu0
        %3541 = vmatprep.mubr.bf16.mxu0 0
        %3542 = vmatmul.mubr.bf16.gmra.mrb[0].mxu0 %v3415
        %v3543 = vpop.f32.mrb[0].mxu0
        %v3544 = vadd.f32 0.0, %v3543
        %v3545 = vpop.f32.mrb[0].mxu0
        %v3546 = vpop.f32.mrb[0].mxu0
        %v3547 = vadd.f32 0.0, %v3546
        %v3548 = vpop.f32.mrb[0].mxu0
        %3549 = vmatprep.mubr.bf16.mxu0 0
        %3550 = vmatmul.mubr.bf16.gmra.mrb[0].mxu0 %v3416
        %v3551 = vpop.f32.mrb[0].mxu0
        %v3552 = vadd.f32 0.0, %v3551
        %v3553 = vpop.f32.mrb[0].mxu0
        %v3554 = vpop.f32.mrb[0].mxu0
        %v3555 = vadd.f32 0.0, %v3554
        %v3556 = vpop.f32.mrb[0].mxu0
        %3557 = vmatprep.mubr.bf16.mxu0 0
        %3558 = vmatmul.mubr.bf16.gmra.mrb[0].mxu0 %v3417
        %v3559 = vpop.f32.mrb[0].mxu0
        %v3560 = vadd.f32 0.0, %v3559
        %v3561 = vpop.f32.mrb[0].mxu0
        %v3562 = vpop.f32.mrb[0].mxu0
        %v3563 = vadd.f32 0.0, %v3562
        %v3564 = vpop.f32.mrb[0].mxu0
        %3565 = vmatprep.mubr.bf16.mxu0 0
        %3566 = vmatmul.mubr.bf16.gmra.mrb[0].mxu0 %v3418
        %v3567 = vpop.f32.mrb[0].mxu0
        %v3568 = vadd.f32 0.0, %v3567
        %v3569 = vpop.f32.mrb[0].mxu0
        %v3570 = vpop.f32.mrb[0].mxu0
        %v3571 = vadd.f32 0.0, %v3570
        %v3572 = vpop.f32.mrb[0].mxu0
        %3573 = vmatprep.mubr.bf16.mxu0 0
        %3574 = vmatmul.mubr.bf16.gmra.mrb[0].mxu0 %v3419
        %v3575 = vpop.f32.mrb[0].mxu0
        %v3576 = vadd.f32 0.0, %v3575
        %v3577 = vpop.f32.mrb[0].mxu0
        %v3578 = vpop.f32.mrb[0].mxu0
        %v3579 = vadd.f32 0.0, %v3578
        %v3580 = vpop.f32.mrb[0].mxu0
        %3581 = vmatprep.mubr.bf16.mxu0 0
        %3582 = vmatmul.mubr.bf16.gmra.mrb[0].mxu0 %v3420
        %v3583 = vpop.f32.mrb[0].mxu0
        %v3584 = vadd.f32 0.0, %v3583
        %v3585 = vpop.f32.mrb[0].mxu0
        %v3586 = vpop.f32.mrb[0].mxu0
        %v3587 = vadd.f32 0.0, %v3586
        %v3588 = vpop.f32.mrb[0].mxu0
        %3589 = vmatprep.mubr.bf16.mxu0 0
        %3590 = vmatmul.mubr.bf16.gmra.mrb[0].mxu0 %v3421
        %v3591 = vpop.f32.mrb[0].mxu0
        %v3592 = vadd.f32 0.0, %v3591
        %v3593 = vpop.f32.mrb[0].mxu0
        %v3594 = vpop.f32.mrb[0].mxu0
        %v3595 = vadd.f32 0.0, %v3594
        %v3596 = vpop.f32.mrb[0].mxu0
        %3597 = vmatprep.mubr.bf16.mxu0 0
        %3598 = vmatmul.mubr.bf16.gmra.mrb[0].mxu0 %v3422
        %v3599 = vpop.f32.mrb[0].mxu0
        %v3600 = vadd.f32 0.0, %v3599
        %v3601 = vpop.f32.mrb[0].mxu0
        %v3602 = vpop.f32.mrb[0].mxu0
        %v3603 = vadd.f32 0.0, %v3602
        %v3604 = vpop.f32.mrb[0].mxu0
        %3605 = vmatprep.mubr.bf16.mxu0 0
        %3606 = vmatmul.mubr.bf16.gmra.mrb[0].mxu0 %v3423
        %v3607 = vpop.f32.mrb[0].mxu0
        %v3608 = vadd.f32 0.0, %v3607
        %v3609 = vpop.f32.mrb[0].mxu0
        %v3610 = vpop.f32.mrb[0].mxu0
        %v3611 = vadd.f32 0.0, %v3610
        %v3612 = vpop.f32.mrb[0].mxu0
        %3613 = vmatprep.mubr.bf16.mxu0 0
        %3614 = vmatmul.mubr.bf16.gmra.mrb[0].mxu0 %v3424
        %v3615 = vpop.f32.mrb[0].mxu0
        %v3616 = vadd.f32 0.0, %v3615
        %v3617 = vpop.f32.mrb[0].mxu0
        %v3618 = vpop.f32.mrb[0].mxu0
        %v3619 = vadd.f32 0.0, %v3618
        %v3620 = vpop.f32.mrb[0].mxu0
        %3621 = vmatprep.mubr.bf16.mxu0 0
        %3622 = vmatmul.mubr.bf16.gmra.mrb[0].mxu0 %v3425
        %v3623 = vpop.f32.mrb[0].mxu0
        %v3624 = vadd.f32 0.0, %v3623
        %v3625 = vpop.f32.mrb[0].mxu0
        %v3626 = vpop.f32.mrb[0].mxu0
        %v3627 = vadd.f32 0.0, %v3626
        %v3628 = vpop.f32.mrb[0].mxu0
        %3629 = vmatprep.mubr.bf16.mxu0 0
        %3630 = vmatmul.mubr.bf16.gmra.mrb[0].mxu0 %v3426
        %v3631 = vpop.f32.mrb[0].mxu0
        %v3632 = vadd.f32 0.0, %v3631
        %v3633 = vpop.f32.mrb[0].mxu0
        %v3634 = vpop.f32.mrb[0].mxu0
        %v3635 = vadd.f32 0.0, %v3634
        %v3636 = vpop.f32.mrb[0].mxu0
        %3637 = vmatprep.mubr.bf16.mxu0 0
        %3638 = vmatmul.mubr.bf16.gmra.mrb[0].mxu0 %v3427
        %v3639 = vpop.f32.mrb[0].mxu0
        %v3640 = vadd.f32 0.0, %v3639
        %v3641 = vpop.f32.mrb[0].mxu0
        %v3642 = vpop.f32.mrb[0].mxu0
        %v3643 = vadd.f32 0.0, %v3642
        %v3644 = vpop.f32.mrb[0].mxu0
        %3645 = vmatprep.mubr.bf16.mxu0 0
        %3646 = vmatmul.mubr.bf16.gmra.mrb[0].mxu0 %v3428
        %v3647 = vpop.f32.mrb[0].mxu0
        %v3648 = vadd.f32 0.0, %v3647
        %v3649 = vpop.f32.mrb[0].mxu0
        %v3650 = vpop.f32.mrb[0].mxu0
        %v3651 = vadd.f32 0.0, %v3650
        %v3652 = vpop.f32.mrb[0].mxu0
        %3653 = vdwg.mxu0
        %v3654 = vadd.f32 %v3124, %v3528
        %v3655 = vadd.f32 %v3125, %v3531
        %v3656 = vadd.f32 %v3126, %v3536
        %v3657 = vadd.f32 %v3127, %v3539
        %v3658 = vadd.f32 %v3128, %v3544
        %v3659 = vadd.f32 %v3129, %v3547
        %v3660 = vadd.f32 %v3130, %v3552
        %v3661 = vadd.f32 %v3131, %v3555
        %v3662 = vadd.f32 %v3132, %v3560
        %v3663 = vadd.f32 %v3133, %v3563
        %v3664 = vadd.f32 %v3134, %v3568
        %v3665 = vadd.f32 %v3135, %v3571
        %v3666 = vadd.f32 %v3136, %v3576
        %v3667 = vadd.f32 %v3137, %v3579
        %v3668 = vadd.f32 %v3138, %v3584
        %v3669 = vadd.f32 %v3139, %v3587
        %v3670 = vadd.f32 %v3140, %v3592
        %v3671 = vadd.f32 %v3141, %v3595
        %v3672 = vadd.f32 %v3142, %v3600
        %v3673 = vadd.f32 %v3143, %v3603
        %v3674 = vadd.f32 %v3144, %v3608
        %v3675 = vadd.f32 %v3145, %v3611
        %v3676 = vadd.f32 %v3146, %v3616
        %v3677 = vadd.f32 %v3147, %v3619
        %v3678 = vadd.f32 %v3148, %v3624
        %v3679 = vadd.f32 %v3149, %v3627
        %v3680 = vadd.f32 %v3150, %v3632
        %v3681 = vadd.f32 %v3151, %v3635
        %v3682 = vadd.f32 %v3152, %v3640
        %v3683 = vadd.f32 %v3153, %v3643
        %v3684 = vadd.f32 %v3154, %v3648
        %v3685 = vadd.f32 %v3155, %v3651
        %3686 = vst [vmem:[#allocation3] sm:$0xff] %v3654
        %3687 = vst [vmem:[#allocation3 + $0x8] sm:$0xff] %v3655
        %3688 = vst [vmem:[#allocation3 + $0x10] sm:$0xff] %v3656
        %3689 = vst [vmem:[#allocation3 + $0x18] sm:$0xff] %v3657
        %3690 = vst [vmem:[#allocation3 + $0x20] sm:$0xff] %v3658
        %3691 = vst [vmem:[#allocation3 + $0x28] sm:$0xff] %v3659
        %3692 = vst [vmem:[#allocation3 + $0x30] sm:$0xff] %v3660
        %3693 = vst [vmem:[#allocation3 + $0x38] sm:$0xff] %v3661
        %3694 = vst [vmem:[#allocation3 + $0x40] sm:$0xff] %v3662
        %3695 = vst [vmem:[#allocation3 + $0x48] sm:$0xff] %v3663
        %3696 = vst [vmem:[#allocation3 + $0x50] sm:$0xff] %v3664
        %3697 = vst [vmem:[#allocation3 + $0x58] sm:$0xff] %v3665
        %3698 = vst [vmem:[#allocation3 + $0x60] sm:$0xff] %v3666
        %3699 = vst [vmem:[#allocation3 + $0x68] sm:$0xff] %v3667
        %3700 = vst [vmem:[#allocation3 + $0x70] sm:$0xff] %v3668
        %3701 = vst [vmem:[#allocation3 + $0x78] sm:$0xff] %v3669
        %3702 = vst [vmem:[#allocation3 + $0x80] sm:$0xff] %v3670
        %3703 = vst [vmem:[#allocation3 + $0x88] sm:$0xff] %v3671
        %3704 = vst [vmem:[#allocation3 + $0x90] sm:$0xff] %v3672
        %3705 = vst [vmem:[#allocation3 + $0x98] sm:$0xff] %v3673
        %3706 = vst [vmem:[#allocation3 + $0xa0] sm:$0xff] %v3674
        %3707 = vst [vmem:[#allocation3 + $0xa8] sm:$0xff] %v3675
        %3708 = vst [vmem:[#allocation3 + $0xb0] sm:$0xff] %v3676
        %3709 = vst [vmem:[#allocation3 + $0xb8] sm:$0xff] %v3677
        %3710 = vst [vmem:[#allocation3 + $0xc0] sm:$0xff] %v3678
        %3711 = vst [vmem:[#allocation3 + $0xc8] sm:$0xff] %v3679
        %3712 = vst [vmem:[#allocation3 + $0xd0] sm:$0xff] %v3680
        %3713 = vst [vmem:[#allocation3 + $0xd8] sm:$0xff] %v3681
        %3714 = vst [vmem:[#allocation3 + $0xe0] sm:$0xff] %v3682
        %3715 = vst [vmem:[#allocation3 + $0xe8] sm:$0xff] %v3683
        %3716 = vst [vmem:[#allocation3 + $0xf0] sm:$0xff] %v3684
        %3717 = vst [vmem:[#allocation3 + $0xf8] sm:$0xff] %v3685
        %v3718 = vld [vmem:[#allocation3] sm:$0xff]
        %v3719 = vld [vmem:[#allocation3 + $0x8] sm:$0xff]
        %v3720 = vld [vmem:[#allocation3 + $0x10] sm:$0xff]
        %v3721 = vld [vmem:[#allocation3 + $0x18] sm:$0xff]
        %v3722 = vld [vmem:[#allocation3 + $0x20] sm:$0xff]
        %v3723 = vld [vmem:[#allocation3 + $0x28] sm:$0xff]
        %v3724 = vld [vmem:[#allocation3 + $0x30] sm:$0xff]
        %v3725 = vld [vmem:[#allocation3 + $0x38] sm:$0xff]
        %v3726 = vld [vmem:[#allocation3 + $0x40] sm:$0xff]
        %v3727 = vld [vmem:[#allocation3 + $0x48] sm:$0xff]
        %v3728 = vld [vmem:[#allocation3 + $0x50] sm:$0xff]
        %v3729 = vld [vmem:[#allocation3 + $0x58] sm:$0xff]
        %v3730 = vld [vmem:[#allocation3 + $0x60] sm:$0xff]
        %v3731 = vld [vmem:[#allocation3 + $0x68] sm:$0xff]
        %v3732 = vld [vmem:[#allocation3 + $0x70] sm:$0xff]
        %v3733 = vld [vmem:[#allocation3 + $0x78] sm:$0xff]
        %v3734 = vld [vmem:[#allocation3 + $0x80] sm:$0xff]
        %v3735 = vld [vmem:[#allocation3 + $0x88] sm:$0xff]
        %v3736 = vld [vmem:[#allocation3 + $0x90] sm:$0xff]
        %v3737 = vld [vmem:[#allocation3 + $0x98] sm:$0xff]
        %v3738 = vld [vmem:[#allocation3 + $0xa0] sm:$0xff]
        %v3739 = vld [vmem:[#allocation3 + $0xa8] sm:$0xff]
        %v3740 = vld [vmem:[#allocation3 + $0xb0] sm:$0xff]
        %v3741 = vld [vmem:[#allocation3 + $0xb8] sm:$0xff]
        %v3742 = vld [vmem:[#allocation3 + $0xc0] sm:$0xff]
        %v3743 = vld [vmem:[#allocation3 + $0xc8] sm:$0xff]
        %v3744 = vld [vmem:[#allocation3 + $0xd0] sm:$0xff]
        %v3745 = vld [vmem:[#allocation3 + $0xd8] sm:$0xff]
        %v3746 = vld [vmem:[#allocation3 + $0xe0] sm:$0xff]
        %v3747 = vld [vmem:[#allocation3 + $0xe8] sm:$0xff]
        %v3748 = vld [vmem:[#allocation3 + $0xf0] sm:$0xff]
        %v3749 = vld [vmem:[#allocation3 + $0xf8] sm:$0xff]
        %v3750 = vld [vmem:[%s787] sm:$0xc]
        %v3751 = vld [vmem:[%s787 + $0x4] sm:$0xf]
        %v3752 = vld [vmem:[%s787 + $0x8] sm:$0x3]
        %v3753 = vld [vmem:[%s787 + $0xc] sm:$0xc]
        %v3754 = vld [vmem:[%s787 + $0x10] sm:$0xf]
        %v3755 = vld [vmem:[%s787 + $0x14] sm:$0x3]
        %v3756 = vld [vmem:[%s787 + $0x18] sm:$0xc]
        %v3757 = vld [vmem:[%s787 + $0x1c] sm:$0xf]
        %v3758 = vld [vmem:[%s787 + $0x20] sm:$0x3]
        %v3759 = vld [vmem:[%s787 + $0x24] sm:$0xc]
        %v3760 = vld [vmem:[%s787 + $0x28] sm:$0xf]
        %v3761 = vld [vmem:[%s787 + $0x2c] sm:$0x3]
        %v3762 = vld [vmem:[%s787 + $0x30] sm:$0xc]
        %v3763 = vld [vmem:[%s787 + $0x34] sm:$0xf]
        %v3764 = vld [vmem:[%s787 + $0x38] sm:$0x3]
        %v3765 = vld [vmem:[%s787 + $0x3c] sm:$0xc]
        %v3766 = vld [vmem:[%s787 + $0x40] sm:$0xf]
        %v3767 = vld [vmem:[%s787 + $0x44] sm:$0x3]
        %v3768 = vld [vmem:[%s787 + $0x48] sm:$0xc]
        %v3769 = vld [vmem:[%s787 + $0x4c] sm:$0xf]
        %v3770 = vld [vmem:[%s787 + $0x50] sm:$0x3]
        %v3771 = vld [vmem:[%s787 + $0x54] sm:$0xc]
        %v3772 = vld [vmem:[%s787 + $0x58] sm:$0xf]
        %v3773 = vld [vmem:[%s787 + $0x5c] sm:$0x3]
        %v3774 = vld [vmem:[%s787 + $0x60] sm:$0xc]
        %v3775 = vld [vmem:[%s787 + $0x64] sm:$0xf]
        %v3776 = vld [vmem:[%s787 + $0x68] sm:$0x3]
        %v3777 = vld [vmem:[%s787 + $0x6c] sm:$0xc]
        %v3778 = vld [vmem:[%s787 + $0x70] sm:$0xf]
        %v3779 = vld [vmem:[%s787 + $0x74] sm:$0x3]
        %v3780 = vld [vmem:[%s787 + $0x78] sm:$0xc]
        %v3781 = vld [vmem:[%s787 + $0x7c] sm:$0xf]
        %v3782 = vld [vmem:[%s787 + $0x80] sm:$0x3]
        %v3783 = vld [vmem:[%s787 + $0x84] sm:$0xc]
        %v3784 = vld [vmem:[%s787 + $0x88] sm:$0xf]
        %v3785 = vld [vmem:[%s787 + $0x8c] sm:$0x3]
        %v3786 = vld [vmem:[%s787 + $0x90] sm:$0xc]
        %v3787 = vld [vmem:[%s787 + $0x94] sm:$0xf]
        %v3788 = vld [vmem:[%s787 + $0x98] sm:$0x3]
        %v3789 = vld [vmem:[%s787 + $0x9c] sm:$0xc]
        %v3790 = vld [vmem:[%s787 + $0xa0] sm:$0xf]
        %v3791 = vld [vmem:[%s787 + $0xa4] sm:$0x3]
        %v3792 = vld [vmem:[%s787 + $0xa8] sm:$0xc]
        %v3793 = vld [vmem:[%s787 + $0xac] sm:$0xf]
        %v3794 = vld [vmem:[%s787 + $0xb0] sm:$0x3]
        %v3795 = vld [vmem:[%s787 + $0xb4] sm:$0xc]
        %v3796 = vld [vmem:[%s787 + $0xb8] sm:$0xf]
        %v3797 = vld [vmem:[%s787 + $0xbc] sm:$0x3]
        %v3846 = vrot.slane %v3750, 6
        %v3847 = vrot.slane %v3846, 4
        %v3848 = vrot.slane %v3751, 6
        %v3849 = vsel %vm2207, %v3847, %v3848
        %v3850 = vrot.slane %v3848, 4
        %v3851 = vrot.slane %v3752, 6
        %v3852 = vsel %vm2207, %v3850, %v3851
        %v3853 = vrot.slane %v3753, 6
        %v3854 = vrot.slane %v3853, 4
        %v3855 = vrot.slane %v3754, 6
        %v3856 = vsel %vm2207, %v3854, %v3855
        %v3857 = vrot.slane %v3855, 4
        %v3858 = vrot.slane %v3755, 6
        %v3859 = vsel %vm2207, %v3857, %v3858
        %v3860 = vrot.slane %v3756, 6
        %v3861 = vrot.slane %v3860, 4
        %v3862 = vrot.slane %v3757, 6
        %v3863 = vsel %vm2207, %v3861, %v3862
        %v3864 = vrot.slane %v3862, 4
        %v3865 = vrot.slane %v3758, 6
        %v3866 = vsel %vm2207, %v3864, %v3865
        %v3867 = vrot.slane %v3759, 6
        %v3868 = vrot.slane %v3867, 4
        %v3869 = vrot.slane %v3760, 6
        %v3870 = vsel %vm2207, %v3868, %v3869
        %v3871 = vrot.slane %v3869, 4
        %v3872 = vrot.slane %v3761, 6
        %v3873 = vsel %vm2207, %v3871, %v3872
        %v3874 = vrot.slane %v3762, 6
        %v3875 = vrot.slane %v3874, 4
        %v3876 = vrot.slane %v3763, 6
        %v3877 = vsel %vm2207, %v3875, %v3876
        %v3878 = vrot.slane %v3876, 4
        %v3879 = vrot.slane %v3764, 6
        %v3880 = vsel %vm2207, %v3878, %v3879
        %v3881 = vrot.slane %v3765, 6
        %v3882 = vrot.slane %v3881, 4
        %v3883 = vrot.slane %v3766, 6
        %v3884 = vsel %vm2207, %v3882, %v3883
        %v3885 = vrot.slane %v3883, 4
        %v3886 = vrot.slane %v3767, 6
        %v3887 = vsel %vm2207, %v3885, %v3886
        %v3888 = vrot.slane %v3768, 6
        %v3889 = vrot.slane %v3888, 4
        %v3890 = vrot.slane %v3769, 6
        %v3891 = vsel %vm2207, %v3889, %v3890
        %v3892 = vrot.slane %v3890, 4
        %v3893 = vrot.slane %v3770, 6
        %v3894 = vsel %vm2207, %v3892, %v3893
        %v3895 = vrot.slane %v3771, 6
        %v3896 = vrot.slane %v3895, 4
        %v3897 = vrot.slane %v3772, 6
        %v3898 = vsel %vm2207, %v3896, %v3897
        %v3899 = vrot.slane %v3897, 4
        %v3900 = vrot.slane %v3773, 6
        %v3901 = vsel %vm2207, %v3899, %v3900
        %v3902 = vrot.slane %v3774, 6
        %v3903 = vrot.slane %v3902, 4
        %v3904 = vrot.slane %v3775, 6
        %v3905 = vsel %vm2207, %v3903, %v3904
        %v3906 = vrot.slane %v3904, 4
        %v3907 = vrot.slane %v3776, 6
        %v3908 = vsel %vm2207, %v3906, %v3907
        %v3909 = vrot.slane %v3777, 6
        %v3910 = vrot.slane %v3909, 4
        %v3911 = vrot.slane %v3778, 6
        %v3912 = vsel %vm2207, %v3910, %v3911
        %v3913 = vrot.slane %v3911, 4
        %v3914 = vrot.slane %v3779, 6
        %v3915 = vsel %vm2207, %v3913, %v3914
        %v3916 = vrot.slane %v3780, 6
        %v3917 = vrot.slane %v3916, 4
        %v3918 = vrot.slane %v3781, 6
        %v3919 = vsel %vm2207, %v3917, %v3918
        %v3920 = vrot.slane %v3918, 4
        %v3921 = vrot.slane %v3782, 6
        %v3922 = vsel %vm2207, %v3920, %v3921
        %v3923 = vrot.slane %v3783, 6
        %v3924 = vrot.slane %v3923, 4
        %v3925 = vrot.slane %v3784, 6
        %v3926 = vsel %vm2207, %v3924, %v3925
        %v3927 = vrot.slane %v3925, 4
        %v3928 = vrot.slane %v3785, 6
        %v3929 = vsel %vm2207, %v3927, %v3928
        %v3930 = vrot.slane %v3786, 6
        %v3931 = vrot.slane %v3930, 4
        %v3932 = vrot.slane %v3787, 6
        %v3933 = vsel %vm2207, %v3931, %v3932
        %v3934 = vrot.slane %v3932, 4
        %v3935 = vrot.slane %v3788, 6
        %v3936 = vsel %vm2207, %v3934, %v3935
        %v3937 = vrot.slane %v3789, 6
        %v3938 = vrot.slane %v3937, 4
        %v3939 = vrot.slane %v3790, 6
        %v3940 = vsel %vm2207, %v3938, %v3939
        %v3941 = vrot.slane %v3939, 4
        %v3942 = vrot.slane %v3791, 6
        %v3943 = vsel %vm2207, %v3941, %v3942
        %v3944 = vrot.slane %v3792, 6
        %v3945 = vrot.slane %v3944, 4
        %v3946 = vrot.slane %v3793, 6
        %v3947 = vsel %vm2207, %v3945, %v3946
        %v3948 = vrot.slane %v3946, 4
        %v3949 = vrot.slane %v3794, 6
        %v3950 = vsel %vm2207, %v3948, %v3949
        %v3951 = vrot.slane %v3795, 6
        %v3952 = vrot.slane %v3951, 4
        %v3953 = vrot.slane %v3796, 6
        %v3954 = vsel %vm2207, %v3952, %v3953
        %v3955 = vrot.slane %v3953, 4
        %v3956 = vrot.slane %v3797, 6
        %v3957 = vsel %vm2207, %v3955, %v3956
        %s3958 = scalar_lea.vmem [#allocation10], 320
        %v3959 = vld [vmem:[%s3958] sm:$0xf]
        %v3960 = vld [vmem:[%s3958 + $0x4] sm:$0xf]
        %v3961 = vld [vmem:[%s3958 + $0x8] sm:$0xf]
        %v3962 = vld [vmem:[%s3958 + $0xc] sm:$0xf]
        %v3963 = vld [vmem:[%s3958 + $0x10] sm:$0xf]
        %v3964 = vld [vmem:[%s3958 + $0x14] sm:$0xf]
        %v3965 = vld [vmem:[%s3958 + $0x18] sm:$0xf]
        %v3966 = vld [vmem:[%s3958 + $0x1c] sm:$0xf]
        %v3967 = vld [vmem:[%s3958 + $0x20] sm:$0xf]
        %v3968 = vld [vmem:[%s3958 + $0x24] sm:$0xf]
        %v3969 = vld [vmem:[%s3958 + $0x28] sm:$0xf]
        %v3970 = vld [vmem:[%s3958 + $0x2c] sm:$0xf]
        %v3971 = vld [vmem:[%s3958 + $0x30] sm:$0xf]
        %v3972 = vld [vmem:[%s3958 + $0x34] sm:$0xf]
        %v3973 = vld [vmem:[%s3958 + $0x38] sm:$0xf]
        %v3974 = vld [vmem:[%s3958 + $0x3c] sm:$0xf]
        %v3975 = vunpack.c.l.b16 %v3849
        %v3976 = vunpack.c.l.b16 %v3852
        %v3977 = vunpack.c.l.b16 %v3856
        %v3978 = vunpack.c.l.b16 %v3859
        %v3979 = vunpack.c.l.b16 %v3863
        %v3980 = vunpack.c.l.b16 %v3866
        %v3981 = vunpack.c.l.b16 %v3870
        %v3982 = vunpack.c.l.b16 %v3873
        %v3983 = vunpack.c.l.b16 %v3877
        %v3984 = vunpack.c.l.b16 %v3880
        %v3985 = vunpack.c.l.b16 %v3884
        %v3986 = vunpack.c.l.b16 %v3887
        %v3987 = vunpack.c.l.b16 %v3891
        %v3988 = vunpack.c.l.b16 %v3894
        %v3989 = vunpack.c.l.b16 %v3898
        %v3990 = vunpack.c.l.b16 %v3901
        %v3991 = vunpack.c.l.b16 %v3905
        %v3992 = vunpack.c.l.b16 %v3908
        %v3993 = vunpack.c.l.b16 %v3912
        %v3994 = vunpack.c.l.b16 %v3915
        %v3995 = vunpack.c.l.b16 %v3919
        %v3996 = vunpack.c.l.b16 %v3922
        %v3997 = vunpack.c.l.b16 %v3926
        %v3998 = vunpack.c.l.b16 %v3929
        %v3999 = vunpack.c.l.b16 %v3933
        %v4000 = vunpack.c.l.b16 %v3936
        %v4001 = vunpack.c.l.b16 %v3940
        %v4002 = vunpack.c.l.b16 %v3943
        %v4003 = vunpack.c.l.b16 %v3947
        %v4004 = vunpack.c.l.b16 %v3950
        %v4005 = vunpack.c.l.b16 %v3954
        %v4006 = vunpack.c.l.b16 %v3957
        %v4007 = vpack.c.b16 %v3976, %v3975
        %v4008 = vpack.c.b16 %v3978, %v3977
        %v4009 = vpack.c.b16 %v3980, %v3979
        %v4010 = vpack.c.b16 %v3982, %v3981
        %v4011 = vpack.c.b16 %v3984, %v3983
        %v4012 = vpack.c.b16 %v3986, %v3985
        %v4013 = vpack.c.b16 %v3988, %v3987
        %v4014 = vpack.c.b16 %v3990, %v3989
        %v4015 = vpack.c.b16 %v3992, %v3991
        %v4016 = vpack.c.b16 %v3994, %v3993
        %v4017 = vpack.c.b16 %v3996, %v3995
        %v4018 = vpack.c.b16 %v3998, %v3997
        %v4019 = vpack.c.b16 %v4000, %v3999
        %v4020 = vpack.c.b16 %v4002, %v4001
        %v4021 = vpack.c.b16 %v4004, %v4003
        %v4022 = vpack.c.b16 %v4006, %v4005
        %v4055 = vunpack.c.l.b16 %v3959
        %v4056 = vunpack.c.l.b16 %v3960
        %v4057 = vunpack.c.l.b16 %v3961
        %v4058 = vunpack.c.l.b16 %v3962
        %v4059 = vunpack.c.l.b16 %v3963
        %v4060 = vunpack.c.l.b16 %v3964
        %v4061 = vunpack.c.l.b16 %v3965
        %v4062 = vunpack.c.l.b16 %v3966
        %v4063 = vunpack.c.l.b16 %v3967
        %v4064 = vunpack.c.l.b16 %v3968
        %v4065 = vunpack.c.l.b16 %v3969
        %v4066 = vunpack.c.l.b16 %v3970
        %v4067 = vunpack.c.l.b16 %v3971
        %v4068 = vunpack.c.l.b16 %v3972
        %v4069 = vunpack.c.l.b16 %v3973
        %v4070 = vunpack.c.l.b16 %v3974
        %v4071 = vpack.c.b16 %v4056, %v4055
        %v4072 = vpack.c.b16 %v4058, %v4057
        %v4073 = vpack.c.b16 %v4060, %v4059
        %v4074 = vpack.c.b16 %v4062, %v4061
        %v4075 = vpack.c.b16 %v4064, %v4063
        %v4076 = vpack.c.b16 %v4066, %v4065
        %v4077 = vpack.c.b16 %v4068, %v4067
        %v4078 = vpack.c.b16 %v4070, %v4069
        %4087 = vmatprep.subr.bf16.mxu0 0
        %4088 = vmatpush1.bf16.msra.mxu0 %v4071
        %4089 = vmatprep.subr.bf16.mxu0 0
        %4090 = vmatpush1.bf16.msra.mxu0 %v4072
        %4091 = vmatprep.subr.bf16.mxu0 0
        %4092 = vmatpush1.bf16.msra.mxu0 %v4073
        %4093 = vmatprep.subr.bf16.mxu0 0
        %4094 = vmatpush1.bf16.msra.mxu0 %v4074
        %4095 = vmatprep.subr.bf16.mxu0 0
        %4096 = vmatpush1.bf16.msra.mxu0 %v4075
        %4097 = vmatprep.subr.bf16.mxu0 0
        %4098 = vmatpush1.bf16.msra.mxu0 %v4076
        %4099 = vmatprep.subr.bf16.mxu0 0
        %4100 = vmatpush1.bf16.msra.mxu0 %v4077
        %4101 = vmatprep.subr.bf16.mxu0 0
        %4102 = vmatpush1.bf16.msra.mxu0 %v4078
        %4103 = vmatprep.subr.bf16.mxu0 0
        %4104 = vmatpush1.bf16.msra.mxu0 0
        %4105 = vmatprep.subr.bf16.mxu0 0
        %4106 = vmatpush1.bf16.msra.mxu0 0
        %4107 = vmatprep.subr.bf16.mxu0 0
        %4108 = vmatpush1.bf16.msra.mxu0 0
        %4109 = vmatprep.subr.bf16.mxu0 0
        %4110 = vmatpush1.bf16.msra.mxu0 0
        %4111 = vmatprep.subr.bf16.mxu0 0
        %4112 = vmatpush1.bf16.msra.mxu0 0
        %4113 = vmatprep.subr.bf16.mxu0 0
        %4114 = vmatpush1.bf16.msra.mxu0 0
        %4115 = vmatprep.subr.bf16.mxu0 0
        %4116 = vmatpush1.bf16.msra.mxu0 0
        %4117 = vmatprep.subr.bf16.mxu0 0
        %4118 = vmatpush1.bf16.msra.mxu0 0
        %4119 = vmatprep.mubr.bf16.mxu0 0
        %4120 = vmatmul.mubr.bf16.gmra.mrb[0].mxu0 %v4007
        %v4121 = vpop.f32.mrb[0].mxu0
        %v4122 = vadd.f32 0.0, %v4121
        %v4123 = vpop.f32.mrb[0].mxu0
        %v4124 = vpop.f32.mrb[0].mxu0
        %v4125 = vadd.f32 0.0, %v4124
        %v4126 = vpop.f32.mrb[0].mxu0
        %4127 = vmatprep.mubr.bf16.mxu0 0
        %4128 = vmatmul.mubr.bf16.gmra.mrb[0].mxu0 %v4008
        %v4129 = vpop.f32.mrb[0].mxu0
        %v4130 = vadd.f32 0.0, %v4129
        %v4131 = vpop.f32.mrb[0].mxu0
        %v4132 = vpop.f32.mrb[0].mxu0
        %v4133 = vadd.f32 0.0, %v4132
        %v4134 = vpop.f32.mrb[0].mxu0
        %4135 = vmatprep.mubr.bf16.mxu0 0
        %4136 = vmatmul.mubr.bf16.gmra.mrb[0].mxu0 %v4009
        %v4137 = vpop.f32.mrb[0].mxu0
        %v4138 = vadd.f32 0.0, %v4137
        %v4139 = vpop.f32.mrb[0].mxu0
        %v4140 = vpop.f32.mrb[0].mxu0
        %v4141 = vadd.f32 0.0, %v4140
        %v4142 = vpop.f32.mrb[0].mxu0
        %4143 = vmatprep.mubr.bf16.mxu0 0
        %4144 = vmatmul.mubr.bf16.gmra.mrb[0].mxu0 %v4010
        %v4145 = vpop.f32.mrb[0].mxu0
        %v4146 = vadd.f32 0.0, %v4145
        %v4147 = vpop.f32.mrb[0].mxu0
        %v4148 = vpop.f32.mrb[0].mxu0
        %v4149 = vadd.f32 0.0, %v4148
        %v4150 = vpop.f32.mrb[0].mxu0
        %4151 = vmatprep.mubr.bf16.mxu0 0
        %4152 = vmatmul.mubr.bf16.gmra.mrb[0].mxu0 %v4011
        %v4153 = vpop.f32.mrb[0].mxu0
        %v4154 = vadd.f32 0.0, %v4153
        %v4155 = vpop.f32.mrb[0].mxu0
        %v4156 = vpop.f32.mrb[0].mxu0
        %v4157 = vadd.f32 0.0, %v4156
        %v4158 = vpop.f32.mrb[0].mxu0
        %4159 = vmatprep.mubr.bf16.mxu0 0
        %4160 = vmatmul.mubr.bf16.gmra.mrb[0].mxu0 %v4012
        %v4161 = vpop.f32.mrb[0].mxu0
        %v4162 = vadd.f32 0.0, %v4161
        %v4163 = vpop.f32.mrb[0].mxu0
        %v4164 = vpop.f32.mrb[0].mxu0
        %v4165 = vadd.f32 0.0, %v4164
        %v4166 = vpop.f32.mrb[0].mxu0
        %4167 = vmatprep.mubr.bf16.mxu0 0
        %4168 = vmatmul.mubr.bf16.gmra.mrb[0].mxu0 %v4013
        %v4169 = vpop.f32.mrb[0].mxu0
        %v4170 = vadd.f32 0.0, %v4169
        %v4171 = vpop.f32.mrb[0].mxu0
        %v4172 = vpop.f32.mrb[0].mxu0
        %v4173 = vadd.f32 0.0, %v4172
        %v4174 = vpop.f32.mrb[0].mxu0
        %4175 = vmatprep.mubr.bf16.mxu0 0
        %4176 = vmatmul.mubr.bf16.gmra.mrb[0].mxu0 %v4014
        %v4177 = vpop.f32.mrb[0].mxu0
        %v4178 = vadd.f32 0.0, %v4177
        %v4179 = vpop.f32.mrb[0].mxu0
        %v4180 = vpop.f32.mrb[0].mxu0
        %v4181 = vadd.f32 0.0, %v4180
        %v4182 = vpop.f32.mrb[0].mxu0
        %4183 = vmatprep.mubr.bf16.mxu0 0
        %4184 = vmatmul.mubr.bf16.gmra.mrb[0].mxu0 %v4015
        %v4185 = vpop.f32.mrb[0].mxu0
        %v4186 = vadd.f32 0.0, %v4185
        %v4187 = vpop.f32.mrb[0].mxu0
        %v4188 = vpop.f32.mrb[0].mxu0
        %v4189 = vadd.f32 0.0, %v4188
        %v4190 = vpop.f32.mrb[0].mxu0
        %4191 = vmatprep.mubr.bf16.mxu0 0
        %4192 = vmatmul.mubr.bf16.gmra.mrb[0].mxu0 %v4016
        %v4193 = vpop.f32.mrb[0].mxu0
        %v4194 = vadd.f32 0.0, %v4193
        %v4195 = vpop.f32.mrb[0].mxu0
        %v4196 = vpop.f32.mrb[0].mxu0
        %v4197 = vadd.f32 0.0, %v4196
        %v4198 = vpop.f32.mrb[0].mxu0
        %4199 = vmatprep.mubr.bf16.mxu0 0
        %4200 = vmatmul.mubr.bf16.gmra.mrb[0].mxu0 %v4017
        %v4201 = vpop.f32.mrb[0].mxu0
        %v4202 = vadd.f32 0.0, %v4201
        %v4203 = vpop.f32.mrb[0].mxu0
        %v4204 = vpop.f32.mrb[0].mxu0
        %v4205 = vadd.f32 0.0, %v4204
        %v4206 = vpop.f32.mrb[0].mxu0
        %4207 = vmatprep.mubr.bf16.mxu0 0
        %4208 = vmatmul.mubr.bf16.gmra.mrb[0].mxu0 %v4018
        %v4209 = vpop.f32.mrb[0].mxu0
        %v4210 = vadd.f32 0.0, %v4209
        %v4211 = vpop.f32.mrb[0].mxu0
        %v4212 = vpop.f32.mrb[0].mxu0
        %v4213 = vadd.f32 0.0, %v4212
        %v4214 = vpop.f32.mrb[0].mxu0
        %4215 = vmatprep.mubr.bf16.mxu0 0
        %4216 = vmatmul.mubr.bf16.gmra.mrb[0].mxu0 %v4019
        %v4217 = vpop.f32.mrb[0].mxu0
        %v4218 = vadd.f32 0.0, %v4217
        %v4219 = vpop.f32.mrb[0].mxu0
        %v4220 = vpop.f32.mrb[0].mxu0
        %v4221 = vadd.f32 0.0, %v4220
        %v4222 = vpop.f32.mrb[0].mxu0
        %4223 = vmatprep.mubr.bf16.mxu0 0
        %4224 = vmatmul.mubr.bf16.gmra.mrb[0].mxu0 %v4020
        %v4225 = vpop.f32.mrb[0].mxu0
        %v4226 = vadd.f32 0.0, %v4225
        %v4227 = vpop.f32.mrb[0].mxu0
        %v4228 = vpop.f32.mrb[0].mxu0
        %v4229 = vadd.f32 0.0, %v4228
        %v4230 = vpop.f32.mrb[0].mxu0
        %4231 = vmatprep.mubr.bf16.mxu0 0
        %4232 = vmatmul.mubr.bf16.gmra.mrb[0].mxu0 %v4021
        %v4233 = vpop.f32.mrb[0].mxu0
        %v4234 = vadd.f32 0.0, %v4233
        %v4235 = vpop.f32.mrb[0].mxu0
        %v4236 = vpop.f32.mrb[0].mxu0
        %v4237 = vadd.f32 0.0, %v4236
        %v4238 = vpop.f32.mrb[0].mxu0
        %4239 = vmatprep.mubr.bf16.mxu0 0
        %4240 = vmatmul.mubr.bf16.gmra.mrb[0].mxu0 %v4022
        %v4241 = vpop.f32.mrb[0].mxu0
        %v4242 = vadd.f32 0.0, %v4241
        %v4243 = vpop.f32.mrb[0].mxu0
        %v4244 = vpop.f32.mrb[0].mxu0
        %v4245 = vadd.f32 0.0, %v4244
        %v4246 = vpop.f32.mrb[0].mxu0
        %4247 = vdwg.mxu0
        %v4248 = vadd.f32 %v3718, %v4122
        %v4249 = vadd.f32 %v3719, %v4125
        %v4250 = vadd.f32 %v3720, %v4130
        %v4251 = vadd.f32 %v3721, %v4133
        %v4252 = vadd.f32 %v3722, %v4138
        %v4253 = vadd.f32 %v3723, %v4141
        %v4254 = vadd.f32 %v3724, %v4146
        %v4255 = vadd.f32 %v3725, %v4149
        %v4256 = vadd.f32 %v3726, %v4154
        %v4257 = vadd.f32 %v3727, %v4157
        %v4258 = vadd.f32 %v3728, %v4162
        %v4259 = vadd.f32 %v3729, %v4165
        %v4260 = vadd.f32 %v3730, %v4170
        %v4261 = vadd.f32 %v3731, %v4173
        %v4262 = vadd.f32 %v3732, %v4178
        %v4263 = vadd.f32 %v3733, %v4181
        %v4264 = vadd.f32 %v3734, %v4186
        %v4265 = vadd.f32 %v3735, %v4189
        %v4266 = vadd.f32 %v3736, %v4194
        %v4267 = vadd.f32 %v3737, %v4197
        %v4268 = vadd.f32 %v3738, %v4202
        %v4269 = vadd.f32 %v3739, %v4205
        %v4270 = vadd.f32 %v3740, %v4210
        %v4271 = vadd.f32 %v3741, %v4213
        %v4272 = vadd.f32 %v3742, %v4218
        %v4273 = vadd.f32 %v3743, %v4221
        %v4274 = vadd.f32 %v3744, %v4226
        %v4275 = vadd.f32 %v3745, %v4229
        %v4276 = vadd.f32 %v3746, %v4234
        %v4277 = vadd.f32 %v3747, %v4237
        %v4278 = vadd.f32 %v3748, %v4242
        %v4279 = vadd.f32 %v3749, %v4245
        %4280 = vst [vmem:[#allocation3] sm:$0xff] %v4248
        %4281 = vst [vmem:[#allocation3 + $0x8] sm:$0xff] %v4249
        %4282 = vst [vmem:[#allocation3 + $0x10] sm:$0xff] %v4250
        %4283 = vst [vmem:[#allocation3 + $0x18] sm:$0xff] %v4251
        %4284 = vst [vmem:[#allocation3 + $0x20] sm:$0xff] %v4252
        %4285 = vst [vmem:[#allocation3 + $0x28] sm:$0xff] %v4253
        %4286 = vst [vmem:[#allocation3 + $0x30] sm:$0xff] %v4254
        %4287 = vst [vmem:[#allocation3 + $0x38] sm:$0xff] %v4255
        %4288 = vst [vmem:[#allocation3 + $0x40] sm:$0xff] %v4256
        %4289 = vst [vmem:[#allocation3 + $0x48] sm:$0xff] %v4257
        %4290 = vst [vmem:[#allocation3 + $0x50] sm:$0xff] %v4258
        %4291 = vst [vmem:[#allocation3 + $0x58] sm:$0xff] %v4259
        %4292 = vst [vmem:[#allocation3 + $0x60] sm:$0xff] %v4260
        %4293 = vst [vmem:[#allocation3 + $0x68] sm:$0xff] %v4261
        %4294 = vst [vmem:[#allocation3 + $0x70] sm:$0xff] %v4262
        %4295 = vst [vmem:[#allocation3 + $0x78] sm:$0xff] %v4263
        %4296 = vst [vmem:[#allocation3 + $0x80] sm:$0xff] %v4264
        %4297 = vst [vmem:[#allocation3 + $0x88] sm:$0xff] %v4265
        %4298 = vst [vmem:[#allocation3 + $0x90] sm:$0xff] %v4266
        %4299 = vst [vmem:[#allocation3 + $0x98] sm:$0xff] %v4267
        %4300 = vst [vmem:[#allocation3 + $0xa0] sm:$0xff] %v4268
        %4301 = vst [vmem:[#allocation3 + $0xa8] sm:$0xff] %v4269
        %4302 = vst [vmem:[#allocation3 + $0xb0] sm:$0xff] %v4270
        %4303 = vst [vmem:[#allocation3 + $0xb8] sm:$0xff] %v4271
        %4304 = vst [vmem:[#allocation3 + $0xc0] sm:$0xff] %v4272
        %4305 = vst [vmem:[#allocation3 + $0xc8] sm:$0xff] %v4273
        %4306 = vst [vmem:[#allocation3 + $0xd0] sm:$0xff] %v4274
        %4307 = vst [vmem:[#allocation3 + $0xd8] sm:$0xff] %v4275
        %4308 = vst [vmem:[#allocation3 + $0xe0] sm:$0xff] %v4276
        %4309 = vst [vmem:[#allocation3 + $0xe8] sm:$0xff] %v4277
        %4310 = vst [vmem:[#allocation3 + $0xf0] sm:$0xff] %v4278
        %4311 = vst [vmem:[#allocation3 + $0xf8] sm:$0xff] %v4279
        %v4312 = vld [vmem:[#allocation3] sm:$0xff]
        %v4313 = vld [vmem:[#allocation3 + $0x8] sm:$0xff]
        %v4314 = vld [vmem:[#allocation3 + $0x10] sm:$0xff]
        %v4315 = vld [vmem:[#allocation3 + $0x18] sm:$0xff]
        %v4316 = vld [vmem:[#allocation3 + $0x20] sm:$0xff]
        %v4317 = vld [vmem:[#allocation3 + $0x28] sm:$0xff]
        %v4318 = vld [vmem:[#allocation3 + $0x30] sm:$0xff]
        %v4319 = vld [vmem:[#allocation3 + $0x38] sm:$0xff]
        %v4320 = vld [vmem:[#allocation3 + $0x40] sm:$0xff]
        %v4321 = vld [vmem:[#allocation3 + $0x48] sm:$0xff]
        %v4322 = vld [vmem:[#allocation3 + $0x50] sm:$0xff]
        %v4323 = vld [vmem:[#allocation3 + $0x58] sm:$0xff]
        %v4324 = vld [vmem:[#allocation3 + $0x60] sm:$0xff]
        %v4325 = vld [vmem:[#allocation3 + $0x68] sm:$0xff]
        %v4326 = vld [vmem:[#allocation3 + $0x70] sm:$0xff]
        %v4327 = vld [vmem:[#allocation3 + $0x78] sm:$0xff]
        %v4328 = vld [vmem:[#allocation3 + $0x80] sm:$0xff]
        %v4329 = vld [vmem:[#allocation3 + $0x88] sm:$0xff]
        %v4330 = vld [vmem:[#allocation3 + $0x90] sm:$0xff]
        %v4331 = vld [vmem:[#allocation3 + $0x98] sm:$0xff]
        %v4332 = vld [vmem:[#allocation3 + $0xa0] sm:$0xff]
        %v4333 = vld [vmem:[#allocation3 + $0xa8] sm:$0xff]
        %v4334 = vld [vmem:[#allocation3 + $0xb0] sm:$0xff]
        %v4335 = vld [vmem:[#allocation3 + $0xb8] sm:$0xff]
        %v4336 = vld [vmem:[#allocation3 + $0xc0] sm:$0xff]
        %v4337 = vld [vmem:[#allocation3 + $0xc8] sm:$0xff]
        %v4338 = vld [vmem:[#allocation3 + $0xd0] sm:$0xff]
        %v4339 = vld [vmem:[#allocation3 + $0xd8] sm:$0xff]
        %v4340 = vld [vmem:[#allocation3 + $0xe0] sm:$0xff]
        %v4341 = vld [vmem:[#allocation3 + $0xe8] sm:$0xff]
        %v4342 = vld [vmem:[#allocation3 + $0xf0] sm:$0xff]
        %v4343 = vld [vmem:[#allocation3 + $0xf8] sm:$0xff]
        %s4344 = scalar_lea.vmem [#allocation2], 48
        %v4345 = vld [vmem:[%s4344] sm:$0xf]
        %v4346 = vld [vmem:[%s4344 + $0x4] sm:$0xf]
        %v4347 = vld [vmem:[%s4344 + $0xc] sm:$0xf]
        %v4348 = vld [vmem:[%s4344 + $0x10] sm:$0xf]
        %v4349 = vld [vmem:[%s4344 + $0x18] sm:$0xf]
        %v4350 = vld [vmem:[%s4344 + $0x1c] sm:$0xf]
        %v4351 = vld [vmem:[%s4344 + $0x24] sm:$0xf]
        %v4352 = vld [vmem:[%s4344 + $0x28] sm:$0xf]
        %v4353 = vld [vmem:[%s4344 + $0x30] sm:$0xf]
        %v4354 = vld [vmem:[%s4344 + $0x34] sm:$0xf]
        %v4355 = vld [vmem:[%s4344 + $0x3c] sm:$0xf]
        %v4356 = vld [vmem:[%s4344 + $0x40] sm:$0xf]
        %v4357 = vld [vmem:[%s4344 + $0x48] sm:$0xf]
        %v4358 = vld [vmem:[%s4344 + $0x4c] sm:$0xf]
        %v4359 = vld [vmem:[%s4344 + $0x54] sm:$0xf]
        %v4360 = vld [vmem:[%s4344 + $0x58] sm:$0xf]
        %v4361 = vld [vmem:[%s4344 + $0x60] sm:$0xf]
        %v4362 = vld [vmem:[%s4344 + $0x64] sm:$0xf]
        %v4363 = vld [vmem:[%s4344 + $0x6c] sm:$0xf]
        %v4364 = vld [vmem:[%s4344 + $0x70] sm:$0xf]
        %v4365 = vld [vmem:[%s4344 + $0x78] sm:$0xf]
        %v4366 = vld [vmem:[%s4344 + $0x7c] sm:$0xf]
        %v4367 = vld [vmem:[%s4344 + $0x84] sm:$0xf]
        %v4368 = vld [vmem:[%s4344 + $0x88] sm:$0xf]
        %v4369 = vld [vmem:[%s4344 + $0x90] sm:$0xf]
        %v4370 = vld [vmem:[%s4344 + $0x94] sm:$0xf]
        %v4371 = vld [vmem:[%s4344 + $0x9c] sm:$0xf]
        %v4372 = vld [vmem:[%s4344 + $0xa0] sm:$0xf]
        %v4373 = vld [vmem:[%s4344 + $0xa8] sm:$0xf]
        %v4374 = vld [vmem:[%s4344 + $0xac] sm:$0xf]
        %v4375 = vld [vmem:[%s4344 + $0xb4] sm:$0xf]
        %v4376 = vld [vmem:[%s4344 + $0xb8] sm:$0xf]
        %s4377 = scalar_lea.vmem [#allocation10], 384
        %v4378 = vld [vmem:[%s4377] sm:$0xf]
        %v4379 = vld [vmem:[%s4377 + $0x4] sm:$0xf]
        %v4380 = vld [vmem:[%s4377 + $0x8] sm:$0xf]
        %v4381 = vld [vmem:[%s4377 + $0xc] sm:$0xf]
        %v4382 = vld [vmem:[%s4377 + $0x10] sm:$0xf]
        %v4383 = vld [vmem:[%s4377 + $0x14] sm:$0xf]
        %v4384 = vld [vmem:[%s4377 + $0x18] sm:$0xf]
        %v4385 = vld [vmem:[%s4377 + $0x1c] sm:$0xf]
        %v4386 = vld [vmem:[%s4377 + $0x20] sm:$0xf]
        %v4387 = vld [vmem:[%s4377 + $0x24] sm:$0xf]
        %v4388 = vld [vmem:[%s4377 + $0x28] sm:$0xf]
        %v4389 = vld [vmem:[%s4377 + $0x2c] sm:$0xf]
        %v4390 = vld [vmem:[%s4377 + $0x30] sm:$0xf]
        %v4391 = vld [vmem:[%s4377 + $0x34] sm:$0xf]
        %v4392 = vld [vmem:[%s4377 + $0x38] sm:$0xf]
        %v4393 = vld [vmem:[%s4377 + $0x3c] sm:$0xf]
        %v4426 = vunpack.c.l.b16 %v4345
        %v4427 = vunpack.c.l.b16 %v4346
        %v4428 = vunpack.c.l.b16 %v4347
        %v4429 = vunpack.c.l.b16 %v4348
        %v4430 = vunpack.c.l.b16 %v4349
        %v4431 = vunpack.c.l.b16 %v4350
        %v4432 = vunpack.c.l.b16 %v4351
        %v4433 = vunpack.c.l.b16 %v4352
        %v4434 = vunpack.c.l.b16 %v4353
        %v4435 = vunpack.c.l.b16 %v4354
        %v4436 = vunpack.c.l.b16 %v4355
        %v4437 = vunpack.c.l.b16 %v4356
        %v4438 = vunpack.c.l.b16 %v4357
        %v4439 = vunpack.c.l.b16 %v4358
        %v4440 = vunpack.c.l.b16 %v4359
        %v4441 = vunpack.c.l.b16 %v4360
        %v4442 = vunpack.c.l.b16 %v4361
        %v4443 = vunpack.c.l.b16 %v4362
        %v4444 = vunpack.c.l.b16 %v4363
        %v4445 = vunpack.c.l.b16 %v4364
        %v4446 = vunpack.c.l.b16 %v4365
        %v4447 = vunpack.c.l.b16 %v4366
        %v4448 = vunpack.c.l.b16 %v4367
        %v4449 = vunpack.c.l.b16 %v4368
        %v4450 = vunpack.c.l.b16 %v4369
        %v4451 = vunpack.c.l.b16 %v4370
        %v4452 = vunpack.c.l.b16 %v4371
        %v4453 = vunpack.c.l.b16 %v4372
        %v4454 = vunpack.c.l.b16 %v4373
        %v4455 = vunpack.c.l.b16 %v4374
        %v4456 = vunpack.c.l.b16 %v4375
        %v4457 = vunpack.c.l.b16 %v4376
        %v4458 = vpack.c.b16 %v4427, %v4426
        %v4459 = vpack.c.b16 %v4429, %v4428
        %v4460 = vpack.c.b16 %v4431, %v4430
        %v4461 = vpack.c.b16 %v4433, %v4432
        %v4462 = vpack.c.b16 %v4435, %v4434
        %v4463 = vpack.c.b16 %v4437, %v4436
        %v4464 = vpack.c.b16 %v4439, %v4438
        %v4465 = vpack.c.b16 %v4441, %v4440
        %v4466 = vpack.c.b16 %v4443, %v4442
        %v4467 = vpack.c.b16 %v4445, %v4444
        %v4468 = vpack.c.b16 %v4447, %v4446
        %v4469 = vpack.c.b16 %v4449, %v4448
        %v4470 = vpack.c.b16 %v4451, %v4450
        %v4471 = vpack.c.b16 %v4453, %v4452
        %v4472 = vpack.c.b16 %v4455, %v4454
        %v4473 = vpack.c.b16 %v4457, %v4456
        %v4506 = vunpack.c.l.b16 %v4378
        %v4507 = vunpack.c.l.b16 %v4379
        %v4508 = vunpack.c.l.b16 %v4380
        %v4509 = vunpack.c.l.b16 %v4381
        %v4510 = vunpack.c.l.b16 %v4382
        %v4511 = vunpack.c.l.b16 %v4383
        %v4512 = vunpack.c.l.b16 %v4384
        %v4513 = vunpack.c.l.b16 %v4385
        %v4514 = vunpack.c.l.b16 %v4386
        %v4515 = vunpack.c.l.b16 %v4387
        %v4516 = vunpack.c.l.b16 %v4388
        %v4517 = vunpack.c.l.b16 %v4389
        %v4518 = vunpack.c.l.b16 %v4390
        %v4519 = vunpack.c.l.b16 %v4391
        %v4520 = vunpack.c.l.b16 %v4392
        %v4521 = vunpack.c.l.b16 %v4393
        %v4522 = vpack.c.b16 %v4507, %v4506
        %v4523 = vpack.c.b16 %v4509, %v4508
        %v4524 = vpack.c.b16 %v4511, %v4510
        %v4525 = vpack.c.b16 %v4513, %v4512
        %v4526 = vpack.c.b16 %v4515, %v4514
        %v4527 = vpack.c.b16 %v4517, %v4516
        %v4528 = vpack.c.b16 %v4519, %v4518
        %v4529 = vpack.c.b16 %v4521, %v4520
        %4538 = vmatprep.subr.bf16.mxu0 0
        %4539 = vmatpush1.bf16.msra.mxu0 %v4522
        %4540 = vmatprep.subr.bf16.mxu0 0
        %4541 = vmatpush1.bf16.msra.mxu0 %v4523
        %4542 = vmatprep.subr.bf16.mxu0 0
        %4543 = vmatpush1.bf16.msra.mxu0 %v4524
        %4544 = vmatprep.subr.bf16.mxu0 0
        %4545 = vmatpush1.bf16.msra.mxu0 %v4525
        %4546 = vmatprep.subr.bf16.mxu0 0
        %4547 = vmatpush1.bf16.msra.mxu0 %v4526
        %4548 = vmatprep.subr.bf16.mxu0 0
        %4549 = vmatpush1.bf16.msra.mxu0 %v4527
        %4550 = vmatprep.subr.bf16.mxu0 0
        %4551 = vmatpush1.bf16.msra.mxu0 %v4528
        %4552 = vmatprep.subr.bf16.mxu0 0
        %4553 = vmatpush1.bf16.msra.mxu0 %v4529
        %4554 = vmatprep.subr.bf16.mxu0 0
        %4555 = vmatpush1.bf16.msra.mxu0 0
        %4556 = vmatprep.subr.bf16.mxu0 0
        %4557 = vmatpush1.bf16.msra.mxu0 0
        %4558 = vmatprep.subr.bf16.mxu0 0
        %4559 = vmatpush1.bf16.msra.mxu0 0
        %4560 = vmatprep.subr.bf16.mxu0 0
        %4561 = vmatpush1.bf16.msra.mxu0 0
        %4562 = vmatprep.subr.bf16.mxu0 0
        %4563 = vmatpush1.bf16.msra.mxu0 0
        %4564 = vmatprep.subr.bf16.mxu0 0
        %4565 = vmatpush1.bf16.msra.mxu0 0
        %4566 = vmatprep.subr.bf16.mxu0 0
        %4567 = vmatpush1.bf16.msra.mxu0 0
        %4568 = vmatprep.subr.bf16.mxu0 0
        %4569 = vmatpush1.bf16.msra.mxu0 0
        %4570 = vmatprep.mubr.bf16.mxu0 0
        %4571 = vmatmul.mubr.bf16.gmra.mrb[0].mxu0 %v4458
        %v4572 = vpop.f32.mrb[0].mxu0
        %v4573 = vadd.f32 0.0, %v4572
        %v4574 = vpop.f32.mrb[0].mxu0
        %v4575 = vpop.f32.mrb[0].mxu0
        %v4576 = vadd.f32 0.0, %v4575
        %v4577 = vpop.f32.mrb[0].mxu0
        %4578 = vmatprep.mubr.bf16.mxu0 0
        %4579 = vmatmul.mubr.bf16.gmra.mrb[0].mxu0 %v4459
        %v4580 = vpop.f32.mrb[0].mxu0
        %v4581 = vadd.f32 0.0, %v4580
        %v4582 = vpop.f32.mrb[0].mxu0
        %v4583 = vpop.f32.mrb[0].mxu0
        %v4584 = vadd.f32 0.0, %v4583
        %v4585 = vpop.f32.mrb[0].mxu0
        %4586 = vmatprep.mubr.bf16.mxu0 0
        %4587 = vmatmul.mubr.bf16.gmra.mrb[0].mxu0 %v4460
        %v4588 = vpop.f32.mrb[0].mxu0
        %v4589 = vadd.f32 0.0, %v4588
        %v4590 = vpop.f32.mrb[0].mxu0
        %v4591 = vpop.f32.mrb[0].mxu0
        %v4592 = vadd.f32 0.0, %v4591
        %v4593 = vpop.f32.mrb[0].mxu0
        %4594 = vmatprep.mubr.bf16.mxu0 0
        %4595 = vmatmul.mubr.bf16.gmra.mrb[0].mxu0 %v4461
        %v4596 = vpop.f32.mrb[0].mxu0
        %v4597 = vadd.f32 0.0, %v4596
        %v4598 = vpop.f32.mrb[0].mxu0
        %v4599 = vpop.f32.mrb[0].mxu0
        %v4600 = vadd.f32 0.0, %v4599
        %v4601 = vpop.f32.mrb[0].mxu0
        %4602 = vmatprep.mubr.bf16.mxu0 0
        %4603 = vmatmul.mubr.bf16.gmra.mrb[0].mxu0 %v4462
        %v4604 = vpop.f32.mrb[0].mxu0
        %v4605 = vadd.f32 0.0, %v4604
        %v4606 = vpop.f32.mrb[0].mxu0
        %v4607 = vpop.f32.mrb[0].mxu0
        %v4608 = vadd.f32 0.0, %v4607
        %v4609 = vpop.f32.mrb[0].mxu0
        %4610 = vmatprep.mubr.bf16.mxu0 0
        %4611 = vmatmul.mubr.bf16.gmra.mrb[0].mxu0 %v4463
        %v4612 = vpop.f32.mrb[0].mxu0
        %v4613 = vadd.f32 0.0, %v4612
        %v4614 = vpop.f32.mrb[0].mxu0
        %v4615 = vpop.f32.mrb[0].mxu0
        %v4616 = vadd.f32 0.0, %v4615
        %v4617 = vpop.f32.mrb[0].mxu0
        %4618 = vmatprep.mubr.bf16.mxu0 0
        %4619 = vmatmul.mubr.bf16.gmra.mrb[0].mxu0 %v4464
        %v4620 = vpop.f32.mrb[0].mxu0
        %v4621 = vadd.f32 0.0, %v4620
        %v4622 = vpop.f32.mrb[0].mxu0
        %v4623 = vpop.f32.mrb[0].mxu0
        %v4624 = vadd.f32 0.0, %v4623
        %v4625 = vpop.f32.mrb[0].mxu0
        %4626 = vmatprep.mubr.bf16.mxu0 0
        %4627 = vmatmul.mubr.bf16.gmra.mrb[0].mxu0 %v4465
        %v4628 = vpop.f32.mrb[0].mxu0
        %v4629 = vadd.f32 0.0, %v4628
        %v4630 = vpop.f32.mrb[0].mxu0
        %v4631 = vpop.f32.mrb[0].mxu0
        %v4632 = vadd.f32 0.0, %v4631
        %v4633 = vpop.f32.mrb[0].mxu0
        %4634 = vmatprep.mubr.bf16.mxu0 0
        %4635 = vmatmul.mubr.bf16.gmra.mrb[0].mxu0 %v4466
        %v4636 = vpop.f32.mrb[0].mxu0
        %v4637 = vadd.f32 0.0, %v4636
        %v4638 = vpop.f32.mrb[0].mxu0
        %v4639 = vpop.f32.mrb[0].mxu0
        %v4640 = vadd.f32 0.0, %v4639
        %v4641 = vpop.f32.mrb[0].mxu0
        %4642 = vmatprep.mubr.bf16.mxu0 0
        %4643 = vmatmul.mubr.bf16.gmra.mrb[0].mxu0 %v4467
        %v4644 = vpop.f32.mrb[0].mxu0
        %v4645 = vadd.f32 0.0, %v4644
        %v4646 = vpop.f32.mrb[0].mxu0
        %v4647 = vpop.f32.mrb[0].mxu0
        %v4648 = vadd.f32 0.0, %v4647
        %v4649 = vpop.f32.mrb[0].mxu0
        %4650 = vmatprep.mubr.bf16.mxu0 0
        %4651 = vmatmul.mubr.bf16.gmra.mrb[0].mxu0 %v4468
        %v4652 = vpop.f32.mrb[0].mxu0
        %v4653 = vadd.f32 0.0, %v4652
        %v4654 = vpop.f32.mrb[0].mxu0
        %v4655 = vpop.f32.mrb[0].mxu0
        %v4656 = vadd.f32 0.0, %v4655
        %v4657 = vpop.f32.mrb[0].mxu0
        %4658 = vmatprep.mubr.bf16.mxu0 0
        %4659 = vmatmul.mubr.bf16.gmra.mrb[0].mxu0 %v4469
        %v4660 = vpop.f32.mrb[0].mxu0
        %v4661 = vadd.f32 0.0, %v4660
        %v4662 = vpop.f32.mrb[0].mxu0
        %v4663 = vpop.f32.mrb[0].mxu0
        %v4664 = vadd.f32 0.0, %v4663
        %v4665 = vpop.f32.mrb[0].mxu0
        %4666 = vmatprep.mubr.bf16.mxu0 0
        %4667 = vmatmul.mubr.bf16.gmra.mrb[0].mxu0 %v4470
        %v4668 = vpop.f32.mrb[0].mxu0
        %v4669 = vadd.f32 0.0, %v4668
        %v4670 = vpop.f32.mrb[0].mxu0
        %v4671 = vpop.f32.mrb[0].mxu0
        %v4672 = vadd.f32 0.0, %v4671
        %v4673 = vpop.f32.mrb[0].mxu0
        %4674 = vmatprep.mubr.bf16.mxu0 0
        %4675 = vmatmul.mubr.bf16.gmra.mrb[0].mxu0 %v4471
        %v4676 = vpop.f32.mrb[0].mxu0
        %v4677 = vadd.f32 0.0, %v4676
        %v4678 = vpop.f32.mrb[0].mxu0
        %v4679 = vpop.f32.mrb[0].mxu0
        %v4680 = vadd.f32 0.0, %v4679
        %v4681 = vpop.f32.mrb[0].mxu0
        %4682 = vmatprep.mubr.bf16.mxu0 0
        %4683 = vmatmul.mubr.bf16.gmra.mrb[0].mxu0 %v4472
        %v4684 = vpop.f32.mrb[0].mxu0
        %v4685 = vadd.f32 0.0, %v4684
        %v4686 = vpop.f32.mrb[0].mxu0
        %v4687 = vpop.f32.mrb[0].mxu0
        %v4688 = vadd.f32 0.0, %v4687
        %v4689 = vpop.f32.mrb[0].mxu0
        %4690 = vmatprep.mubr.bf16.mxu0 0
        %4691 = vmatmul.mubr.bf16.gmra.mrb[0].mxu0 %v4473
        %v4692 = vpop.f32.mrb[0].mxu0
        %v4693 = vadd.f32 0.0, %v4692
        %v4694 = vpop.f32.mrb[0].mxu0
        %v4695 = vpop.f32.mrb[0].mxu0
        %v4696 = vadd.f32 0.0, %v4695
        %v4697 = vpop.f32.mrb[0].mxu0
        %4698 = vdwg.mxu0
        %v4699 = vadd.f32 %v4312, %v4573
        %v4700 = vadd.f32 %v4313, %v4576
        %v4701 = vadd.f32 %v4314, %v4581
        %v4702 = vadd.f32 %v4315, %v4584
        %v4703 = vadd.f32 %v4316, %v4589
        %v4704 = vadd.f32 %v4317, %v4592
        %v4705 = vadd.f32 %v4318, %v4597
        %v4706 = vadd.f32 %v4319, %v4600
        %v4707 = vadd.f32 %v4320, %v4605
        %v4708 = vadd.f32 %v4321, %v4608
        %v4709 = vadd.f32 %v4322, %v4613
        %v4710 = vadd.f32 %v4323, %v4616
        %v4711 = vadd.f32 %v4324, %v4621
        %v4712 = vadd.f32 %v4325, %v4624
        %v4713 = vadd.f32 %v4326, %v4629
        %v4714 = vadd.f32 %v4327, %v4632
        %v4715 = vadd.f32 %v4328, %v4637
        %v4716 = vadd.f32 %v4329, %v4640
        %v4717 = vadd.f32 %v4330, %v4645
        %v4718 = vadd.f32 %v4331, %v4648
        %v4719 = vadd.f32 %v4332, %v4653
        %v4720 = vadd.f32 %v4333, %v4656
        %v4721 = vadd.f32 %v4334, %v4661
        %v4722 = vadd.f32 %v4335, %v4664
        %v4723 = vadd.f32 %v4336, %v4669
        %v4724 = vadd.f32 %v4337, %v4672
        %v4725 = vadd.f32 %v4338, %v4677
        %v4726 = vadd.f32 %v4339, %v4680
        %v4727 = vadd.f32 %v4340, %v4685
        %v4728 = vadd.f32 %v4341, %v4688
        %v4729 = vadd.f32 %v4342, %v4693
        %v4730 = vadd.f32 %v4343, %v4696
        %4731 = vst [vmem:[#allocation3] sm:$0xff] %v4699
        %4732 = vst [vmem:[#allocation3 + $0x8] sm:$0xff] %v4700
        %4733 = vst [vmem:[#allocation3 + $0x10] sm:$0xff] %v4701
        %4734 = vst [vmem:[#allocation3 + $0x18] sm:$0xff] %v4702
        %4735 = vst [vmem:[#allocation3 + $0x20] sm:$0xff] %v4703
        %4736 = vst [vmem:[#allocation3 + $0x28] sm:$0xff] %v4704
        %4737 = vst [vmem:[#allocation3 + $0x30] sm:$0xff] %v4705
        %4738 = vst [vmem:[#allocation3 + $0x38] sm:$0xff] %v4706
        %4739 = vst [vmem:[#allocation3 + $0x40] sm:$0xff] %v4707
        %4740 = vst [vmem:[#allocation3 + $0x48] sm:$0xff] %v4708
        %4741 = vst [vmem:[#allocation3 + $0x50] sm:$0xff] %v4709
        %4742 = vst [vmem:[#allocation3 + $0x58] sm:$0xff] %v4710
        %4743 = vst [vmem:[#allocation3 + $0x60] sm:$0xff] %v4711
        %4744 = vst [vmem:[#allocation3 + $0x68] sm:$0xff] %v4712
        %4745 = vst [vmem:[#allocation3 + $0x70] sm:$0xff] %v4713
        %4746 = vst [vmem:[#allocation3 + $0x78] sm:$0xff] %v4714
        %4747 = vst [vmem:[#allocation3 + $0x80] sm:$0xff] %v4715
        %4748 = vst [vmem:[#allocation3 + $0x88] sm:$0xff] %v4716
        %4749 = vst [vmem:[#allocation3 + $0x90] sm:$0xff] %v4717
        %4750 = vst [vmem:[#allocation3 + $0x98] sm:$0xff] %v4718
        %4751 = vst [vmem:[#allocation3 + $0xa0] sm:$0xff] %v4719
        %4752 = vst [vmem:[#allocation3 + $0xa8] sm:$0xff] %v4720
        %4753 = vst [vmem:[#allocation3 + $0xb0] sm:$0xff] %v4721
        %4754 = vst [vmem:[#allocation3 + $0xb8] sm:$0xff] %v4722
        %4755 = vst [vmem:[#allocation3 + $0xc0] sm:$0xff] %v4723
        %4756 = vst [vmem:[#allocation3 + $0xc8] sm:$0xff] %v4724
        %4757 = vst [vmem:[#allocation3 + $0xd0] sm:$0xff] %v4725
        %4758 = vst [vmem:[#allocation3 + $0xd8] sm:$0xff] %v4726
        %4759 = vst [vmem:[#allocation3 + $0xe0] sm:$0xff] %v4727
        %4760 = vst [vmem:[#allocation3 + $0xe8] sm:$0xff] %v4728
        %4761 = vst [vmem:[#allocation3 + $0xf0] sm:$0xff] %v4729
        %4762 = vst [vmem:[#allocation3 + $0xf8] sm:$0xff] %v4730
        %v4763 = vld [vmem:[#allocation3] sm:$0xff]
        %v4764 = vld [vmem:[#allocation3 + $0x8] sm:$0xff]
        %v4765 = vld [vmem:[#allocation3 + $0x10] sm:$0xff]
        %v4766 = vld [vmem:[#allocation3 + $0x18] sm:$0xff]
        %v4767 = vld [vmem:[#allocation3 + $0x20] sm:$0xff]
        %v4768 = vld [vmem:[#allocation3 + $0x28] sm:$0xff]
        %v4769 = vld [vmem:[#allocation3 + $0x30] sm:$0xff]
        %v4770 = vld [vmem:[#allocation3 + $0x38] sm:$0xff]
        %v4771 = vld [vmem:[#allocation3 + $0x40] sm:$0xff]
        %v4772 = vld [vmem:[#allocation3 + $0x48] sm:$0xff]
        %v4773 = vld [vmem:[#allocation3 + $0x50] sm:$0xff]
        %v4774 = vld [vmem:[#allocation3 + $0x58] sm:$0xff]
        %v4775 = vld [vmem:[#allocation3 + $0x60] sm:$0xff]
        %v4776 = vld [vmem:[#allocation3 + $0x68] sm:$0xff]
        %v4777 = vld [vmem:[#allocation3 + $0x70] sm:$0xff]
        %v4778 = vld [vmem:[#allocation3 + $0x78] sm:$0xff]
        %v4779 = vld [vmem:[#allocation3 + $0x80] sm:$0xff]
        %v4780 = vld [vmem:[#allocation3 + $0x88] sm:$0xff]
        %v4781 = vld [vmem:[#allocation3 + $0x90] sm:$0xff]
        %v4782 = vld [vmem:[#allocation3 + $0x98] sm:$0xff]
        %v4783 = vld [vmem:[#allocation3 + $0xa0] sm:$0xff]
        %v4784 = vld [vmem:[#allocation3 + $0xa8] sm:$0xff]
        %v4785 = vld [vmem:[#allocation3 + $0xb0] sm:$0xff]
        %v4786 = vld [vmem:[#allocation3 + $0xb8] sm:$0xff]
        %v4787 = vld [vmem:[#allocation3 + $0xc0] sm:$0xff]
        %v4788 = vld [vmem:[#allocation3 + $0xc8] sm:$0xff]
        %v4789 = vld [vmem:[#allocation3 + $0xd0] sm:$0xff]
        %v4790 = vld [vmem:[#allocation3 + $0xd8] sm:$0xff]
        %v4791 = vld [vmem:[#allocation3 + $0xe0] sm:$0xff]
        %v4792 = vld [vmem:[#allocation3 + $0xe8] sm:$0xff]
        %v4793 = vld [vmem:[#allocation3 + $0xf0] sm:$0xff]
        %v4794 = vld [vmem:[#allocation3 + $0xf8] sm:$0xff]
        %v4795 = vld [vmem:[%s4344] sm:$0xe]
        %v4796 = vld [vmem:[%s4344 + $0x4] sm:$0xf]
        %v4797 = vld [vmem:[%s4344 + $0x8] sm:$0x1]
        %v4798 = vld [vmem:[%s4344 + $0xc] sm:$0xe]
        %v4799 = vld [vmem:[%s4344 + $0x10] sm:$0xf]
        %v4800 = vld [vmem:[%s4344 + $0x14] sm:$0x1]
        %v4801 = vld [vmem:[%s4344 + $0x18] sm:$0xe]
        %v4802 = vld [vmem:[%s4344 + $0x1c] sm:$0xf]
        %v4803 = vld [vmem:[%s4344 + $0x20] sm:$0x1]
        %v4804 = vld [vmem:[%s4344 + $0x24] sm:$0xe]
        %v4805 = vld [vmem:[%s4344 + $0x28] sm:$0xf]
        %v4806 = vld [vmem:[%s4344 + $0x2c] sm:$0x1]
        %v4807 = vld [vmem:[%s4344 + $0x30] sm:$0xe]
        %v4808 = vld [vmem:[%s4344 + $0x34] sm:$0xf]
        %v4809 = vld [vmem:[%s4344 + $0x38] sm:$0x1]
        %v4810 = vld [vmem:[%s4344 + $0x3c] sm:$0xe]
        %v4811 = vld [vmem:[%s4344 + $0x40] sm:$0xf]
        %v4812 = vld [vmem:[%s4344 + $0x44] sm:$0x1]
        %v4813 = vld [vmem:[%s4344 + $0x48] sm:$0xe]
        %v4814 = vld [vmem:[%s4344 + $0x4c] sm:$0xf]
        %v4815 = vld [vmem:[%s4344 + $0x50] sm:$0x1]
        %v4816 = vld [vmem:[%s4344 + $0x54] sm:$0xe]
        %v4817 = vld [vmem:[%s4344 + $0x58] sm:$0xf]
        %v4818 = vld [vmem:[%s4344 + $0x5c] sm:$0x1]
        %v4819 = vld [vmem:[%s4344 + $0x60] sm:$0xe]
        %v4820 = vld [vmem:[%s4344 + $0x64] sm:$0xf]
        %v4821 = vld [vmem:[%s4344 + $0x68] sm:$0x1]
        %v4822 = vld [vmem:[%s4344 + $0x6c] sm:$0xe]
        %v4823 = vld [vmem:[%s4344 + $0x70] sm:$0xf]
        %v4824 = vld [vmem:[%s4344 + $0x74] sm:$0x1]
        %v4825 = vld [vmem:[%s4344 + $0x78] sm:$0xe]
        %v4826 = vld [vmem:[%s4344 + $0x7c] sm:$0xf]
        %v4827 = vld [vmem:[%s4344 + $0x80] sm:$0x1]
        %v4828 = vld [vmem:[%s4344 + $0x84] sm:$0xe]
        %v4829 = vld [vmem:[%s4344 + $0x88] sm:$0xf]
        %v4830 = vld [vmem:[%s4344 + $0x8c] sm:$0x1]
        %v4831 = vld [vmem:[%s4344 + $0x90] sm:$0xe]
        %v4832 = vld [vmem:[%s4344 + $0x94] sm:$0xf]
        %v4833 = vld [vmem:[%s4344 + $0x98] sm:$0x1]
        %v4834 = vld [vmem:[%s4344 + $0x9c] sm:$0xe]
        %v4835 = vld [vmem:[%s4344 + $0xa0] sm:$0xf]
        %v4836 = vld [vmem:[%s4344 + $0xa4] sm:$0x1]
        %v4837 = vld [vmem:[%s4344 + $0xa8] sm:$0xe]
        %v4838 = vld [vmem:[%s4344 + $0xac] sm:$0xf]
        %v4839 = vld [vmem:[%s4344 + $0xb0] sm:$0x1]
        %v4840 = vld [vmem:[%s4344 + $0xb4] sm:$0xe]
        %v4841 = vld [vmem:[%s4344 + $0xb8] sm:$0xf]
        %v4842 = vld [vmem:[%s4344 + $0xbc] sm:$0x1]
        %v4891 = vrot.slane %v4795, 5
        %v4892 = vrot.slane %v4891, 4
        %v4893 = vrot.slane %v4796, 5
        %v4894 = vsel %vm1610, %v4892, %v4893
        %v4895 = vrot.slane %v4893, 4
        %v4896 = vrot.slane %v4797, 5
        %v4897 = vsel %vm1610, %v4895, %v4896
        %v4898 = vrot.slane %v4798, 5
        %v4899 = vrot.slane %v4898, 4
        %v4900 = vrot.slane %v4799, 5
        %v4901 = vsel %vm1610, %v4899, %v4900
        %v4902 = vrot.slane %v4900, 4
        %v4903 = vrot.slane %v4800, 5
        %v4904 = vsel %vm1610, %v4902, %v4903
        %v4905 = vrot.slane %v4801, 5
        %v4906 = vrot.slane %v4905, 4
        %v4907 = vrot.slane %v4802, 5
        %v4908 = vsel %vm1610, %v4906, %v4907
        %v4909 = vrot.slane %v4907, 4
        %v4910 = vrot.slane %v4803, 5
        %v4911 = vsel %vm1610, %v4909, %v4910
        %v4912 = vrot.slane %v4804, 5
        %v4913 = vrot.slane %v4912, 4
        %v4914 = vrot.slane %v4805, 5
        %v4915 = vsel %vm1610, %v4913, %v4914
        %v4916 = vrot.slane %v4914, 4
        %v4917 = vrot.slane %v4806, 5
        %v4918 = vsel %vm1610, %v4916, %v4917
        %v4919 = vrot.slane %v4807, 5
        %v4920 = vrot.slane %v4919, 4
        %v4921 = vrot.slane %v4808, 5
        %v4922 = vsel %vm1610, %v4920, %v4921
        %v4923 = vrot.slane %v4921, 4
        %v4924 = vrot.slane %v4809, 5
        %v4925 = vsel %vm1610, %v4923, %v4924
        %v4926 = vrot.slane %v4810, 5
        %v4927 = vrot.slane %v4926, 4
        %v4928 = vrot.slane %v4811, 5
        %v4929 = vsel %vm1610, %v4927, %v4928
        %v4930 = vrot.slane %v4928, 4
        %v4931 = vrot.slane %v4812, 5
        %v4932 = vsel %vm1610, %v4930, %v4931
        %v4933 = vrot.slane %v4813, 5
        %v4934 = vrot.slane %v4933, 4
        %v4935 = vrot.slane %v4814, 5
        %v4936 = vsel %vm1610, %v4934, %v4935
        %v4937 = vrot.slane %v4935, 4
        %v4938 = vrot.slane %v4815, 5
        %v4939 = vsel %vm1610, %v4937, %v4938
        %v4940 = vrot.slane %v4816, 5
        %v4941 = vrot.slane %v4940, 4
        %v4942 = vrot.slane %v4817, 5
        %v4943 = vsel %vm1610, %v4941, %v4942
        %v4944 = vrot.slane %v4942, 4
        %v4945 = vrot.slane %v4818, 5
        %v4946 = vsel %vm1610, %v4944, %v4945
        %v4947 = vrot.slane %v4819, 5
        %v4948 = vrot.slane %v4947, 4
        %v4949 = vrot.slane %v4820, 5
        %v4950 = vsel %vm1610, %v4948, %v4949
        %v4951 = vrot.slane %v4949, 4
        %v4952 = vrot.slane %v4821, 5
        %v4953 = vsel %vm1610, %v4951, %v4952
        %v4954 = vrot.slane %v4822, 5
        %v4955 = vrot.slane %v4954, 4
        %v4956 = vrot.slane %v4823, 5
        %v4957 = vsel %vm1610, %v4955, %v4956
        %v4958 = vrot.slane %v4956, 4
        %v4959 = vrot.slane %v4824, 5
        %v4960 = vsel %vm1610, %v4958, %v4959
        %v4961 = vrot.slane %v4825, 5
        %v4962 = vrot.slane %v4961, 4
        %v4963 = vrot.slane %v4826, 5
        %v4964 = vsel %vm1610, %v4962, %v4963
        %v4965 = vrot.slane %v4963, 4
        %v4966 = vrot.slane %v4827, 5
        %v4967 = vsel %vm1610, %v4965, %v4966
        %v4968 = vrot.slane %v4828, 5
        %v4969 = vrot.slane %v4968, 4
        %v4970 = vrot.slane %v4829, 5
        %v4971 = vsel %vm1610, %v4969, %v4970
        %v4972 = vrot.slane %v4970, 4
        %v4973 = vrot.slane %v4830, 5
        %v4974 = vsel %vm1610, %v4972, %v4973
        %v4975 = vrot.slane %v4831, 5
        %v4976 = vrot.slane %v4975, 4
        %v4977 = vrot.slane %v4832, 5
        %v4978 = vsel %vm1610, %v4976, %v4977
        %v4979 = vrot.slane %v4977, 4
        %v4980 = vrot.slane %v4833, 5
        %v4981 = vsel %vm1610, %v4979, %v4980
        %v4982 = vrot.slane %v4834, 5
        %v4983 = vrot.slane %v4982, 4
        %v4984 = vrot.slane %v4835, 5
        %v4985 = vsel %vm1610, %v4983, %v4984
        %v4986 = vrot.slane %v4984, 4
        %v4987 = vrot.slane %v4836, 5
        %v4988 = vsel %vm1610, %v4986, %v4987
        %v4989 = vrot.slane %v4837, 5
        %v4990 = vrot.slane %v4989, 4
        %v4991 = vrot.slane %v4838, 5
        %v4992 = vsel %vm1610, %v4990, %v4991
        %v4993 = vrot.slane %v4991, 4
        %v4994 = vrot.slane %v4839, 5
        %v4995 = vsel %vm1610, %v4993, %v4994
        %v4996 = vrot.slane %v4840, 5
        %v4997 = vrot.slane %v4996, 4
        %v4998 = vrot.slane %v4841, 5
        %v4999 = vsel %vm1610, %v4997, %v4998
        %v5000 = vrot.slane %v4998, 4
        %v5001 = vrot.slane %v4842, 5
        %v5002 = vsel %vm1610, %v5000, %v5001
        %s5003 = scalar_lea.vmem [#allocation10], 448
        %v5004 = vld [vmem:[%s5003] sm:$0xf]
        %v5005 = vld [vmem:[%s5003 + $0x4] sm:$0xf]
        %v5006 = vld [vmem:[%s5003 + $0x8] sm:$0xf]
        %v5007 = vld [vmem:[%s5003 + $0xc] sm:$0xf]
        %v5008 = vld [vmem:[%s5003 + $0x10] sm:$0xf]
        %v5009 = vld [vmem:[%s5003 + $0x14] sm:$0xf]
        %v5010 = vld [vmem:[%s5003 + $0x18] sm:$0xf]
        %v5011 = vld [vmem:[%s5003 + $0x1c] sm:$0xf]
        %v5012 = vld [vmem:[%s5003 + $0x20] sm:$0xf]
        %v5013 = vld [vmem:[%s5003 + $0x24] sm:$0xf]
        %v5014 = vld [vmem:[%s5003 + $0x28] sm:$0xf]
        %v5015 = vld [vmem:[%s5003 + $0x2c] sm:$0xf]
        %v5016 = vld [vmem:[%s5003 + $0x30] sm:$0xf]
        %v5017 = vld [vmem:[%s5003 + $0x34] sm:$0xf]
        %v5018 = vld [vmem:[%s5003 + $0x38] sm:$0xf]
        %v5019 = vld [vmem:[%s5003 + $0x3c] sm:$0xf]
        %v5020 = vunpack.c.l.b16 %v4894
        %v5021 = vunpack.c.l.b16 %v4897
        %v5022 = vunpack.c.l.b16 %v4901
        %v5023 = vunpack.c.l.b16 %v4904
        %v5024 = vunpack.c.l.b16 %v4908
        %v5025 = vunpack.c.l.b16 %v4911
        %v5026 = vunpack.c.l.b16 %v4915
        %v5027 = vunpack.c.l.b16 %v4918
        %v5028 = vunpack.c.l.b16 %v4922
        %v5029 = vunpack.c.l.b16 %v4925
        %v5030 = vunpack.c.l.b16 %v4929
        %v5031 = vunpack.c.l.b16 %v4932
        %v5032 = vunpack.c.l.b16 %v4936
        %v5033 = vunpack.c.l.b16 %v4939
        %v5034 = vunpack.c.l.b16 %v4943
        %v5035 = vunpack.c.l.b16 %v4946
        %v5036 = vunpack.c.l.b16 %v4950
        %v5037 = vunpack.c.l.b16 %v4953
        %v5038 = vunpack.c.l.b16 %v4957
        %v5039 = vunpack.c.l.b16 %v4960
        %v5040 = vunpack.c.l.b16 %v4964
        %v5041 = vunpack.c.l.b16 %v4967
        %v5042 = vunpack.c.l.b16 %v4971
        %v5043 = vunpack.c.l.b16 %v4974
        %v5044 = vunpack.c.l.b16 %v4978
        %v5045 = vunpack.c.l.b16 %v4981
        %v5046 = vunpack.c.l.b16 %v4985
        %v5047 = vunpack.c.l.b16 %v4988
        %v5048 = vunpack.c.l.b16 %v4992
        %v5049 = vunpack.c.l.b16 %v4995
        %v5050 = vunpack.c.l.b16 %v4999
        %v5051 = vunpack.c.l.b16 %v5002
        %v5052 = vpack.c.b16 %v5021, %v5020
        %v5053 = vpack.c.b16 %v5023, %v5022
        %v5054 = vpack.c.b16 %v5025, %v5024
        %v5055 = vpack.c.b16 %v5027, %v5026
        %v5056 = vpack.c.b16 %v5029, %v5028
        %v5057 = vpack.c.b16 %v5031, %v5030
        %v5058 = vpack.c.b16 %v5033, %v5032
        %v5059 = vpack.c.b16 %v5035, %v5034
        %v5060 = vpack.c.b16 %v5037, %v5036
        %v5061 = vpack.c.b16 %v5039, %v5038
        %v5062 = vpack.c.b16 %v5041, %v5040
        %v5063 = vpack.c.b16 %v5043, %v5042
        %v5064 = vpack.c.b16 %v5045, %v5044
        %v5065 = vpack.c.b16 %v5047, %v5046
        %v5066 = vpack.c.b16 %v5049, %v5048
        %v5067 = vpack.c.b16 %v5051, %v5050
        %v5100 = vunpack.c.l.b16 %v5004
        %v5101 = vunpack.c.l.b16 %v5005
        %v5102 = vunpack.c.l.b16 %v5006
        %v5103 = vunpack.c.l.b16 %v5007
        %v5104 = vunpack.c.l.b16 %v5008
        %v5105 = vunpack.c.l.b16 %v5009
        %v5106 = vunpack.c.l.b16 %v5010
        %v5107 = vunpack.c.l.b16 %v5011
        %v5108 = vunpack.c.l.b16 %v5012
        %v5109 = vunpack.c.l.b16 %v5013
        %v5110 = vunpack.c.l.b16 %v5014
        %v5111 = vunpack.c.l.b16 %v5015
        %v5112 = vunpack.c.l.b16 %v5016
        %v5113 = vunpack.c.l.b16 %v5017
        %v5114 = vunpack.c.l.b16 %v5018
        %v5115 = vunpack.c.l.b16 %v5019
        %v5116 = vpack.c.b16 %v5101, %v5100
        %v5117 = vpack.c.b16 %v5103, %v5102
        %v5118 = vpack.c.b16 %v5105, %v5104
        %v5119 = vpack.c.b16 %v5107, %v5106
        %v5120 = vpack.c.b16 %v5109, %v5108
        %v5121 = vpack.c.b16 %v5111, %v5110
        %v5122 = vpack.c.b16 %v5113, %v5112
        %v5123 = vpack.c.b16 %v5115, %v5114
        %5132 = vmatprep.subr.bf16.mxu0 0
        %5133 = vmatpush1.bf16.msra.mxu0 %v5116
        %5134 = vmatprep.subr.bf16.mxu0 0
        %5135 = vmatpush1.bf16.msra.mxu0 %v5117
        %5136 = vmatprep.subr.bf16.mxu0 0
        %5137 = vmatpush1.bf16.msra.mxu0 %v5118
        %5138 = vmatprep.subr.bf16.mxu0 0
        %5139 = vmatpush1.bf16.msra.mxu0 %v5119
        %5140 = vmatprep.subr.bf16.mxu0 0
        %5141 = vmatpush1.bf16.msra.mxu0 %v5120
        %5142 = vmatprep.subr.bf16.mxu0 0
        %5143 = vmatpush1.bf16.msra.mxu0 %v5121
        %5144 = vmatprep.subr.bf16.mxu0 0
        %5145 = vmatpush1.bf16.msra.mxu0 %v5122
        %5146 = vmatprep.subr.bf16.mxu0 0
        %5147 = vmatpush1.bf16.msra.mxu0 %v5123
        %5148 = vmatprep.subr.bf16.mxu0 0
        %5149 = vmatpush1.bf16.msra.mxu0 0
        %5150 = vmatprep.subr.bf16.mxu0 0
        %5151 = vmatpush1.bf16.msra.mxu0 0
        %5152 = vmatprep.subr.bf16.mxu0 0
        %5153 = vmatpush1.bf16.msra.mxu0 0
        %5154 = vmatprep.subr.bf16.mxu0 0
        %5155 = vmatpush1.bf16.msra.mxu0 0
        %5156 = vmatprep.subr.bf16.mxu0 0
        %5157 = vmatpush1.bf16.msra.mxu0 0
        %5158 = vmatprep.subr.bf16.mxu0 0
        %5159 = vmatpush1.bf16.msra.mxu0 0
        %5160 = vmatprep.subr.bf16.mxu0 0
        %5161 = vmatpush1.bf16.msra.mxu0 0
        %5162 = vmatprep.subr.bf16.mxu0 0
        %5163 = vmatpush1.bf16.msra.mxu0 0
        %5164 = vmatprep.mubr.bf16.mxu0 0
        %5165 = vmatmul.mubr.bf16.gmra.mrb[0].mxu0 %v5052
        %v5166 = vpop.f32.mrb[0].mxu0
        %v5167 = vadd.f32 0.0, %v5166
        %v5168 = vpop.f32.mrb[0].mxu0
        %v5169 = vpop.f32.mrb[0].mxu0
        %v5170 = vadd.f32 0.0, %v5169
        %v5171 = vpop.f32.mrb[0].mxu0
        %5172 = vmatprep.mubr.bf16.mxu0 0
        %5173 = vmatmul.mubr.bf16.gmra.mrb[0].mxu0 %v5053
        %v5174 = vpop.f32.mrb[0].mxu0
        %v5175 = vadd.f32 0.0, %v5174
        %v5176 = vpop.f32.mrb[0].mxu0
        %v5177 = vpop.f32.mrb[0].mxu0
        %v5178 = vadd.f32 0.0, %v5177
        %v5179 = vpop.f32.mrb[0].mxu0
        %5180 = vmatprep.mubr.bf16.mxu0 0
        %5181 = vmatmul.mubr.bf16.gmra.mrb[0].mxu0 %v5054
        %v5182 = vpop.f32.mrb[0].mxu0
        %v5183 = vadd.f32 0.0, %v5182
        %v5184 = vpop.f32.mrb[0].mxu0
        %v5185 = vpop.f32.mrb[0].mxu0
        %v5186 = vadd.f32 0.0, %v5185
        %v5187 = vpop.f32.mrb[0].mxu0
        %5188 = vmatprep.mubr.bf16.mxu0 0
        %5189 = vmatmul.mubr.bf16.gmra.mrb[0].mxu0 %v5055
        %v5190 = vpop.f32.mrb[0].mxu0
        %v5191 = vadd.f32 0.0, %v5190
        %v5192 = vpop.f32.mrb[0].mxu0
        %v5193 = vpop.f32.mrb[0].mxu0
        %v5194 = vadd.f32 0.0, %v5193
        %v5195 = vpop.f32.mrb[0].mxu0
        %5196 = vmatprep.mubr.bf16.mxu0 0
        %5197 = vmatmul.mubr.bf16.gmra.mrb[0].mxu0 %v5056
        %v5198 = vpop.f32.mrb[0].mxu0
        %v5199 = vadd.f32 0.0, %v5198
        %v5200 = vpop.f32.mrb[0].mxu0
        %v5201 = vpop.f32.mrb[0].mxu0
        %v5202 = vadd.f32 0.0, %v5201
        %v5203 = vpop.f32.mrb[0].mxu0
        %5204 = vmatprep.mubr.bf16.mxu0 0
        %5205 = vmatmul.mubr.bf16.gmra.mrb[0].mxu0 %v5057
        %v5206 = vpop.f32.mrb[0].mxu0
        %v5207 = vadd.f32 0.0, %v5206
        %v5208 = vpop.f32.mrb[0].mxu0
        %v5209 = vpop.f32.mrb[0].mxu0
        %v5210 = vadd.f32 0.0, %v5209
        %v5211 = vpop.f32.mrb[0].mxu0
        %5212 = vmatprep.mubr.bf16.mxu0 0
        %5213 = vmatmul.mubr.bf16.gmra.mrb[0].mxu0 %v5058
        %v5214 = vpop.f32.mrb[0].mxu0
        %v5215 = vadd.f32 0.0, %v5214
        %v5216 = vpop.f32.mrb[0].mxu0
        %v5217 = vpop.f32.mrb[0].mxu0
        %v5218 = vadd.f32 0.0, %v5217
        %v5219 = vpop.f32.mrb[0].mxu0
        %5220 = vmatprep.mubr.bf16.mxu0 0
        %5221 = vmatmul.mubr.bf16.gmra.mrb[0].mxu0 %v5059
        %v5222 = vpop.f32.mrb[0].mxu0
        %v5223 = vadd.f32 0.0, %v5222
        %v5224 = vpop.f32.mrb[0].mxu0
        %v5225 = vpop.f32.mrb[0].mxu0
        %v5226 = vadd.f32 0.0, %v5225
        %v5227 = vpop.f32.mrb[0].mxu0
        %5228 = vmatprep.mubr.bf16.mxu0 0
        %5229 = vmatmul.mubr.bf16.gmra.mrb[0].mxu0 %v5060
        %v5230 = vpop.f32.mrb[0].mxu0
        %v5231 = vadd.f32 0.0, %v5230
        %v5232 = vpop.f32.mrb[0].mxu0
        %v5233 = vpop.f32.mrb[0].mxu0
        %v5234 = vadd.f32 0.0, %v5233
        %v5235 = vpop.f32.mrb[0].mxu0
        %5236 = vmatprep.mubr.bf16.mxu0 0
        %5237 = vmatmul.mubr.bf16.gmra.mrb[0].mxu0 %v5061
        %v5238 = vpop.f32.mrb[0].mxu0
        %v5239 = vadd.f32 0.0, %v5238
        %v5240 = vpop.f32.mrb[0].mxu0
        %v5241 = vpop.f32.mrb[0].mxu0
        %v5242 = vadd.f32 0.0, %v5241
        %v5243 = vpop.f32.mrb[0].mxu0
        %5244 = vmatprep.mubr.bf16.mxu0 0
        %5245 = vmatmul.mubr.bf16.gmra.mrb[0].mxu0 %v5062
        %v5246 = vpop.f32.mrb[0].mxu0
        %v5247 = vadd.f32 0.0, %v5246
        %v5248 = vpop.f32.mrb[0].mxu0
        %v5249 = vpop.f32.mrb[0].mxu0
        %v5250 = vadd.f32 0.0, %v5249
        %v5251 = vpop.f32.mrb[0].mxu0
        %5252 = vmatprep.mubr.bf16.mxu0 0
        %5253 = vmatmul.mubr.bf16.gmra.mrb[0].mxu0 %v5063
        %v5254 = vpop.f32.mrb[0].mxu0
        %v5255 = vadd.f32 0.0, %v5254
        %v5256 = vpop.f32.mrb[0].mxu0
        %v5257 = vpop.f32.mrb[0].mxu0
        %v5258 = vadd.f32 0.0, %v5257
        %v5259 = vpop.f32.mrb[0].mxu0
        %5260 = vmatprep.mubr.bf16.mxu0 0
        %5261 = vmatmul.mubr.bf16.gmra.mrb[0].mxu0 %v5064
        %v5262 = vpop.f32.mrb[0].mxu0
        %v5263 = vadd.f32 0.0, %v5262
        %v5264 = vpop.f32.mrb[0].mxu0
        %v5265 = vpop.f32.mrb[0].mxu0
        %v5266 = vadd.f32 0.0, %v5265
        %v5267 = vpop.f32.mrb[0].mxu0
        %5268 = vmatprep.mubr.bf16.mxu0 0
        %5269 = vmatmul.mubr.bf16.gmra.mrb[0].mxu0 %v5065
        %v5270 = vpop.f32.mrb[0].mxu0
        %v5271 = vadd.f32 0.0, %v5270
        %v5272 = vpop.f32.mrb[0].mxu0
        %v5273 = vpop.f32.mrb[0].mxu0
        %v5274 = vadd.f32 0.0, %v5273
        %v5275 = vpop.f32.mrb[0].mxu0
        %5276 = vmatprep.mubr.bf16.mxu0 0
        %5277 = vmatmul.mubr.bf16.gmra.mrb[0].mxu0 %v5066
        %v5278 = vpop.f32.mrb[0].mxu0
        %v5279 = vadd.f32 0.0, %v5278
        %v5280 = vpop.f32.mrb[0].mxu0
        %v5281 = vpop.f32.mrb[0].mxu0
        %v5282 = vadd.f32 0.0, %v5281
        %v5283 = vpop.f32.mrb[0].mxu0
        %5284 = vmatprep.mubr.bf16.mxu0 0
        %5285 = vmatmul.mubr.bf16.gmra.mrb[0].mxu0 %v5067
        %v5286 = vpop.f32.mrb[0].mxu0
        %v5287 = vadd.f32 0.0, %v5286
        %v5288 = vpop.f32.mrb[0].mxu0
        %v5289 = vpop.f32.mrb[0].mxu0
        %v5290 = vadd.f32 0.0, %v5289
        %v5291 = vpop.f32.mrb[0].mxu0
        %5292 = vdwg.mxu0
        %v5293 = vadd.f32 %v4763, %v5167
        %v5294 = vadd.f32 %v4764, %v5170
        %v5295 = vadd.f32 %v4765, %v5175
        %v5296 = vadd.f32 %v4766, %v5178
        %v5297 = vadd.f32 %v4767, %v5183
        %v5298 = vadd.f32 %v4768, %v5186
        %v5299 = vadd.f32 %v4769, %v5191
        %v5300 = vadd.f32 %v4770, %v5194
        %v5301 = vadd.f32 %v4771, %v5199
        %v5302 = vadd.f32 %v4772, %v5202
        %v5303 = vadd.f32 %v4773, %v5207
        %v5304 = vadd.f32 %v4774, %v5210
        %v5305 = vadd.f32 %v4775, %v5215
        %v5306 = vadd.f32 %v4776, %v5218
        %v5307 = vadd.f32 %v4777, %v5223
        %v5308 = vadd.f32 %v4778, %v5226
        %v5309 = vadd.f32 %v4779, %v5231
        %v5310 = vadd.f32 %v4780, %v5234
        %v5311 = vadd.f32 %v4781, %v5239
        %v5312 = vadd.f32 %v4782, %v5242
        %v5313 = vadd.f32 %v4783, %v5247
        %v5314 = vadd.f32 %v4784, %v5250
        %v5315 = vadd.f32 %v4785, %v5255
        %v5316 = vadd.f32 %v4786, %v5258
        %v5317 = vadd.f32 %v4787, %v5263
        %v5318 = vadd.f32 %v4788, %v5266
        %v5319 = vadd.f32 %v4789, %v5271
        %v5320 = vadd.f32 %v4790, %v5274
        %v5321 = vadd.f32 %v4791, %v5279
        %v5322 = vadd.f32 %v4792, %v5282
        %v5323 = vadd.f32 %v4793, %v5287
        %v5324 = vadd.f32 %v4794, %v5290
        %5325 = vst [vmem:[#allocation3] sm:$0xff] %v5293
        %5326 = vst [vmem:[#allocation3 + $0x8] sm:$0xff] %v5294
        %5327 = vst [vmem:[#allocation3 + $0x10] sm:$0xff] %v5295
        %5328 = vst [vmem:[#allocation3 + $0x18] sm:$0xff] %v5296
        %5329 = vst [vmem:[#allocation3 + $0x20] sm:$0xff] %v5297
        %5330 = vst [vmem:[#allocation3 + $0x28] sm:$0xff] %v5298
        %5331 = vst [vmem:[#allocation3 + $0x30] sm:$0xff] %v5299
        %5332 = vst [vmem:[#allocation3 + $0x38] sm:$0xff] %v5300
        %5333 = vst [vmem:[#allocation3 + $0x40] sm:$0xff] %v5301
        %5334 = vst [vmem:[#allocation3 + $0x48] sm:$0xff] %v5302
        %5335 = vst [vmem:[#allocation3 + $0x50] sm:$0xff] %v5303
        %5336 = vst [vmem:[#allocation3 + $0x58] sm:$0xff] %v5304
        %5337 = vst [vmem:[#allocation3 + $0x60] sm:$0xff] %v5305
        %5338 = vst [vmem:[#allocation3 + $0x68] sm:$0xff] %v5306
        %5339 = vst [vmem:[#allocation3 + $0x70] sm:$0xff] %v5307
        %5340 = vst [vmem:[#allocation3 + $0x78] sm:$0xff] %v5308
        %5341 = vst [vmem:[#allocation3 + $0x80] sm:$0xff] %v5309
        %5342 = vst [vmem:[#allocation3 + $0x88] sm:$0xff] %v5310
        %5343 = vst [vmem:[#allocation3 + $0x90] sm:$0xff] %v5311
        %5344 = vst [vmem:[#allocation3 + $0x98] sm:$0xff] %v5312
        %5345 = vst [vmem:[#allocation3 + $0xa0] sm:$0xff] %v5313
        %5346 = vst [vmem:[#allocation3 + $0xa8] sm:$0xff] %v5314
        %5347 = vst [vmem:[#allocation3 + $0xb0] sm:$0xff] %v5315
        %5348 = vst [vmem:[#allocation3 + $0xb8] sm:$0xff] %v5316
        %5349 = vst [vmem:[#allocation3 + $0xc0] sm:$0xff] %v5317
        %5350 = vst [vmem:[#allocation3 + $0xc8] sm:$0xff] %v5318
        %5351 = vst [vmem:[#allocation3 + $0xd0] sm:$0xff] %v5319
        %5352 = vst [vmem:[#allocation3 + $0xd8] sm:$0xff] %v5320
        %5353 = vst [vmem:[#allocation3 + $0xe0] sm:$0xff] %v5321
        %5354 = vst [vmem:[#allocation3 + $0xe8] sm:$0xff] %v5322
        %5355 = vst [vmem:[#allocation3 + $0xf0] sm:$0xff] %v5323
        %5356 = vst [vmem:[#allocation3 + $0xf8] sm:$0xff] %v5324
        %v5357 = vld [vmem:[#allocation3] sm:$0xff]
        %v5358 = vld [vmem:[#allocation3 + $0x8] sm:$0xff]
        %v5359 = vld [vmem:[#allocation3 + $0x10] sm:$0xff]
        %v5360 = vld [vmem:[#allocation3 + $0x18] sm:$0xff]
        %v5361 = vld [vmem:[#allocation3 + $0x20] sm:$0xff]
        %v5362 = vld [vmem:[#allocation3 + $0x28] sm:$0xff]
        %v5363 = vld [vmem:[#allocation3 + $0x30] sm:$0xff]
        %v5364 = vld [vmem:[#allocation3 + $0x38] sm:$0xff]
        %v5365 = vld [vmem:[#allocation3 + $0x40] sm:$0xff]
        %v5366 = vld [vmem:[#allocation3 + $0x48] sm:$0xff]
        %v5367 = vld [vmem:[#allocation3 + $0x50] sm:$0xff]
        %v5368 = vld [vmem:[#allocation3 + $0x58] sm:$0xff]
        %v5369 = vld [vmem:[#allocation3 + $0x60] sm:$0xff]
        %v5370 = vld [vmem:[#allocation3 + $0x68] sm:$0xff]
        %v5371 = vld [vmem:[#allocation3 + $0x70] sm:$0xff]
        %v5372 = vld [vmem:[#allocation3 + $0x78] sm:$0xff]
        %v5373 = vld [vmem:[#allocation3 + $0x80] sm:$0xff]
        %v5374 = vld [vmem:[#allocation3 + $0x88] sm:$0xff]
        %v5375 = vld [vmem:[#allocation3 + $0x90] sm:$0xff]
        %v5376 = vld [vmem:[#allocation3 + $0x98] sm:$0xff]
        %v5377 = vld [vmem:[#allocation3 + $0xa0] sm:$0xff]
        %v5378 = vld [vmem:[#allocation3 + $0xa8] sm:$0xff]
        %v5379 = vld [vmem:[#allocation3 + $0xb0] sm:$0xff]
        %v5380 = vld [vmem:[#allocation3 + $0xb8] sm:$0xff]
        %v5381 = vld [vmem:[#allocation3 + $0xc0] sm:$0xff]
        %v5382 = vld [vmem:[#allocation3 + $0xc8] sm:$0xff]
        %v5383 = vld [vmem:[#allocation3 + $0xd0] sm:$0xff]
        %v5384 = vld [vmem:[#allocation3 + $0xd8] sm:$0xff]
        %v5385 = vld [vmem:[#allocation3 + $0xe0] sm:$0xff]
        %v5386 = vld [vmem:[#allocation3 + $0xe8] sm:$0xff]
        %v5387 = vld [vmem:[#allocation3 + $0xf0] sm:$0xff]
        %v5388 = vld [vmem:[#allocation3 + $0xf8] sm:$0xff]
        %v5389 = vld [vmem:[%s4344] sm:$0xc]
        %v5390 = vld [vmem:[%s4344 + $0x4] sm:$0xf]
        %v5391 = vld [vmem:[%s4344 + $0x8] sm:$0x3]
        %v5392 = vld [vmem:[%s4344 + $0xc] sm:$0xc]
        %v5393 = vld [vmem:[%s4344 + $0x10] sm:$0xf]
        %v5394 = vld [vmem:[%s4344 + $0x14] sm:$0x3]
        %v5395 = vld [vmem:[%s4344 + $0x18] sm:$0xc]
        %v5396 = vld [vmem:[%s4344 + $0x1c] sm:$0xf]
        %v5397 = vld [vmem:[%s4344 + $0x20] sm:$0x3]
        %v5398 = vld [vmem:[%s4344 + $0x24] sm:$0xc]
        %v5399 = vld [vmem:[%s4344 + $0x28] sm:$0xf]
        %v5400 = vld [vmem:[%s4344 + $0x2c] sm:$0x3]
        %v5401 = vld [vmem:[%s4344 + $0x30] sm:$0xc]
        %v5402 = vld [vmem:[%s4344 + $0x34] sm:$0xf]
        %v5403 = vld [vmem:[%s4344 + $0x38] sm:$0x3]
        %v5404 = vld [vmem:[%s4344 + $0x3c] sm:$0xc]
        %v5405 = vld [vmem:[%s4344 + $0x40] sm:$0xf]
        %v5406 = vld [vmem:[%s4344 + $0x44] sm:$0x3]
        %v5407 = vld [vmem:[%s4344 + $0x48] sm:$0xc]
        %v5408 = vld [vmem:[%s4344 + $0x4c] sm:$0xf]
        %v5409 = vld [vmem:[%s4344 + $0x50] sm:$0x3]
        %v5410 = vld [vmem:[%s4344 + $0x54] sm:$0xc]
        %v5411 = vld [vmem:[%s4344 + $0x58] sm:$0xf]
        %v5412 = vld [vmem:[%s4344 + $0x5c] sm:$0x3]
        %v5413 = vld [vmem:[%s4344 + $0x60] sm:$0xc]
        %v5414 = vld [vmem:[%s4344 + $0x64] sm:$0xf]
        %v5415 = vld [vmem:[%s4344 + $0x68] sm:$0x3]
        %v5416 = vld [vmem:[%s4344 + $0x6c] sm:$0xc]
        %v5417 = vld [vmem:[%s4344 + $0x70] sm:$0xf]
        %v5418 = vld [vmem:[%s4344 + $0x74] sm:$0x3]
        %v5419 = vld [vmem:[%s4344 + $0x78] sm:$0xc]
        %v5420 = vld [vmem:[%s4344 + $0x7c] sm:$0xf]
        %v5421 = vld [vmem:[%s4344 + $0x80] sm:$0x3]
        %v5422 = vld [vmem:[%s4344 + $0x84] sm:$0xc]
        %v5423 = vld [vmem:[%s4344 + $0x88] sm:$0xf]
        %v5424 = vld [vmem:[%s4344 + $0x8c] sm:$0x3]
        %v5425 = vld [vmem:[%s4344 + $0x90] sm:$0xc]
        %v5426 = vld [vmem:[%s4344 + $0x94] sm:$0xf]
        %v5427 = vld [vmem:[%s4344 + $0x98] sm:$0x3]
        %v5428 = vld [vmem:[%s4344 + $0x9c] sm:$0xc]
        %v5429 = vld [vmem:[%s4344 + $0xa0] sm:$0xf]
        %v5430 = vld [vmem:[%s4344 + $0xa4] sm:$0x3]
        %v5431 = vld [vmem:[%s4344 + $0xa8] sm:$0xc]
        %v5432 = vld [vmem:[%s4344 + $0xac] sm:$0xf]
        %v5433 = vld [vmem:[%s4344 + $0xb0] sm:$0x3]
        %v5434 = vld [vmem:[%s4344 + $0xb4] sm:$0xc]
        %v5435 = vld [vmem:[%s4344 + $0xb8] sm:$0xf]
        %v5436 = vld [vmem:[%s4344 + $0xbc] sm:$0x3]
        %v5485 = vrot.slane %v5389, 6
        %v5486 = vrot.slane %v5485, 4
        %v5487 = vrot.slane %v5390, 6
        %v5488 = vsel %vm2207, %v5486, %v5487
        %v5489 = vrot.slane %v5487, 4
        %v5490 = vrot.slane %v5391, 6
        %v5491 = vsel %vm2207, %v5489, %v5490
        %v5492 = vrot.slane %v5392, 6
        %v5493 = vrot.slane %v5492, 4
        %v5494 = vrot.slane %v5393, 6
        %v5495 = vsel %vm2207, %v5493, %v5494
        %v5496 = vrot.slane %v5494, 4
        %v5497 = vrot.slane %v5394, 6
        %v5498 = vsel %vm2207, %v5496, %v5497
        %v5499 = vrot.slane %v5395, 6
        %v5500 = vrot.slane %v5499, 4
        %v5501 = vrot.slane %v5396, 6
        %v5502 = vsel %vm2207, %v5500, %v5501
        %v5503 = vrot.slane %v5501, 4
        %v5504 = vrot.slane %v5397, 6
        %v5505 = vsel %vm2207, %v5503, %v5504
        %v5506 = vrot.slane %v5398, 6
        %v5507 = vrot.slane %v5506, 4
        %v5508 = vrot.slane %v5399, 6
        %v5509 = vsel %vm2207, %v5507, %v5508
        %v5510 = vrot.slane %v5508, 4
        %v5511 = vrot.slane %v5400, 6
        %v5512 = vsel %vm2207, %v5510, %v5511
        %v5513 = vrot.slane %v5401, 6
        %v5514 = vrot.slane %v5513, 4
        %v5515 = vrot.slane %v5402, 6
        %v5516 = vsel %vm2207, %v5514, %v5515
        %v5517 = vrot.slane %v5515, 4
        %v5518 = vrot.slane %v5403, 6
        %v5519 = vsel %vm2207, %v5517, %v5518
        %v5520 = vrot.slane %v5404, 6
        %v5521 = vrot.slane %v5520, 4
        %v5522 = vrot.slane %v5405, 6
        %v5523 = vsel %vm2207, %v5521, %v5522
        %v5524 = vrot.slane %v5522, 4
        %v5525 = vrot.slane %v5406, 6
        %v5526 = vsel %vm2207, %v5524, %v5525
        %v5527 = vrot.slane %v5407, 6
        %v5528 = vrot.slane %v5527, 4
        %v5529 = vrot.slane %v5408, 6
        %v5530 = vsel %vm2207, %v5528, %v5529
        %v5531 = vrot.slane %v5529, 4
        %v5532 = vrot.slane %v5409, 6
        %v5533 = vsel %vm2207, %v5531, %v5532
        %v5534 = vrot.slane %v5410, 6
        %v5535 = vrot.slane %v5534, 4
        %v5536 = vrot.slane %v5411, 6
        %v5537 = vsel %vm2207, %v5535, %v5536
        %v5538 = vrot.slane %v5536, 4
        %v5539 = vrot.slane %v5412, 6
        %v5540 = vsel %vm2207, %v5538, %v5539
        %v5541 = vrot.slane %v5413, 6
        %v5542 = vrot.slane %v5541, 4
        %v5543 = vrot.slane %v5414, 6
        %v5544 = vsel %vm2207, %v5542, %v5543
        %v5545 = vrot.slane %v5543, 4
        %v5546 = vrot.slane %v5415, 6
        %v5547 = vsel %vm2207, %v5545, %v5546
        %v5548 = vrot.slane %v5416, 6
        %v5549 = vrot.slane %v5548, 4
        %v5550 = vrot.slane %v5417, 6
        %v5551 = vsel %vm2207, %v5549, %v5550
        %v5552 = vrot.slane %v5550, 4
        %v5553 = vrot.slane %v5418, 6
        %v5554 = vsel %vm2207, %v5552, %v5553
        %v5555 = vrot.slane %v5419, 6
        %v5556 = vrot.slane %v5555, 4
        %v5557 = vrot.slane %v5420, 6
        %v5558 = vsel %vm2207, %v5556, %v5557
        %v5559 = vrot.slane %v5557, 4
        %v5560 = vrot.slane %v5421, 6
        %v5561 = vsel %vm2207, %v5559, %v5560
        %v5562 = vrot.slane %v5422, 6
        %v5563 = vrot.slane %v5562, 4
        %v5564 = vrot.slane %v5423, 6
        %v5565 = vsel %vm2207, %v5563, %v5564
        %v5566 = vrot.slane %v5564, 4
        %v5567 = vrot.slane %v5424, 6
        %v5568 = vsel %vm2207, %v5566, %v5567
        %v5569 = vrot.slane %v5425, 6
        %v5570 = vrot.slane %v5569, 4
        %v5571 = vrot.slane %v5426, 6
        %v5572 = vsel %vm2207, %v5570, %v5571
        %v5573 = vrot.slane %v5571, 4
        %v5574 = vrot.slane %v5427, 6
        %v5575 = vsel %vm2207, %v5573, %v5574
        %v5576 = vrot.slane %v5428, 6
        %v5577 = vrot.slane %v5576, 4
        %v5578 = vrot.slane %v5429, 6
        %v5579 = vsel %vm2207, %v5577, %v5578
        %v5580 = vrot.slane %v5578, 4
        %v5581 = vrot.slane %v5430, 6
        %v5582 = vsel %vm2207, %v5580, %v5581
        %v5583 = vrot.slane %v5431, 6
        %v5584 = vrot.slane %v5583, 4
        %v5585 = vrot.slane %v5432, 6
        %v5586 = vsel %vm2207, %v5584, %v5585
        %v5587 = vrot.slane %v5585, 4
        %v5588 = vrot.slane %v5433, 6
        %v5589 = vsel %vm2207, %v5587, %v5588
        %v5590 = vrot.slane %v5434, 6
        %v5591 = vrot.slane %v5590, 4
        %v5592 = vrot.slane %v5435, 6
        %v5593 = vsel %vm2207, %v5591, %v5592
        %v5594 = vrot.slane %v5592, 4
        %v5595 = vrot.slane %v5436, 6
        %v5596 = vsel %vm2207, %v5594, %v5595
        %s5597 = scalar_lea.vmem [#allocation10], 512
        %v5598 = vld [vmem:[%s5597] sm:$0xf]
        %v5599 = vld [vmem:[%s5597 + $0x4] sm:$0xf]
        %v5600 = vld [vmem:[%s5597 + $0x8] sm:$0xf]
        %v5601 = vld [vmem:[%s5597 + $0xc] sm:$0xf]
        %v5602 = vld [vmem:[%s5597 + $0x10] sm:$0xf]
        %v5603 = vld [vmem:[%s5597 + $0x14] sm:$0xf]
        %v5604 = vld [vmem:[%s5597 + $0x18] sm:$0xf]
        %v5605 = vld [vmem:[%s5597 + $0x1c] sm:$0xf]
        %v5606 = vld [vmem:[%s5597 + $0x20] sm:$0xf]
        %v5607 = vld [vmem:[%s5597 + $0x24] sm:$0xf]
        %v5608 = vld [vmem:[%s5597 + $0x28] sm:$0xf]
        %v5609 = vld [vmem:[%s5597 + $0x2c] sm:$0xf]
        %v5610 = vld [vmem:[%s5597 + $0x30] sm:$0xf]
        %v5611 = vld [vmem:[%s5597 + $0x34] sm:$0xf]
        %v5612 = vld [vmem:[%s5597 + $0x38] sm:$0xf]
        %v5613 = vld [vmem:[%s5597 + $0x3c] sm:$0xf]
        %v5614 = vunpack.c.l.b16 %v5488
        %v5615 = vunpack.c.l.b16 %v5491
        %v5616 = vunpack.c.l.b16 %v5495
        %v5617 = vunpack.c.l.b16 %v5498
        %v5618 = vunpack.c.l.b16 %v5502
        %v5619 = vunpack.c.l.b16 %v5505
        %v5620 = vunpack.c.l.b16 %v5509
        %v5621 = vunpack.c.l.b16 %v5512
        %v5622 = vunpack.c.l.b16 %v5516
        %v5623 = vunpack.c.l.b16 %v5519
        %v5624 = vunpack.c.l.b16 %v5523
        %v5625 = vunpack.c.l.b16 %v5526
        %v5626 = vunpack.c.l.b16 %v5530
        %v5627 = vunpack.c.l.b16 %v5533
        %v5628 = vunpack.c.l.b16 %v5537
        %v5629 = vunpack.c.l.b16 %v5540
        %v5630 = vunpack.c.l.b16 %v5544
        %v5631 = vunpack.c.l.b16 %v5547
        %v5632 = vunpack.c.l.b16 %v5551
        %v5633 = vunpack.c.l.b16 %v5554
        %v5634 = vunpack.c.l.b16 %v5558
        %v5635 = vunpack.c.l.b16 %v5561
        %v5636 = vunpack.c.l.b16 %v5565
        %v5637 = vunpack.c.l.b16 %v5568
        %v5638 = vunpack.c.l.b16 %v5572
        %v5639 = vunpack.c.l.b16 %v5575
        %v5640 = vunpack.c.l.b16 %v5579
        %v5641 = vunpack.c.l.b16 %v5582
        %v5642 = vunpack.c.l.b16 %v5586
        %v5643 = vunpack.c.l.b16 %v5589
        %v5644 = vunpack.c.l.b16 %v5593
        %v5645 = vunpack.c.l.b16 %v5596
        %v5646 = vpack.c.b16 %v5615, %v5614
        %v5647 = vpack.c.b16 %v5617, %v5616
        %v5648 = vpack.c.b16 %v5619, %v5618
        %v5649 = vpack.c.b16 %v5621, %v5620
        %v5650 = vpack.c.b16 %v5623, %v5622
        %v5651 = vpack.c.b16 %v5625, %v5624
        %v5652 = vpack.c.b16 %v5627, %v5626
        %v5653 = vpack.c.b16 %v5629, %v5628
        %v5654 = vpack.c.b16 %v5631, %v5630
        %v5655 = vpack.c.b16 %v5633, %v5632
        %v5656 = vpack.c.b16 %v5635, %v5634
        %v5657 = vpack.c.b16 %v5637, %v5636
        %v5658 = vpack.c.b16 %v5639, %v5638
        %v5659 = vpack.c.b16 %v5641, %v5640
        %v5660 = vpack.c.b16 %v5643, %v5642
        %v5661 = vpack.c.b16 %v5645, %v5644
        %v5694 = vunpack.c.l.b16 %v5598
        %v5695 = vunpack.c.l.b16 %v5599
        %v5696 = vunpack.c.l.b16 %v5600
        %v5697 = vunpack.c.l.b16 %v5601
        %v5698 = vunpack.c.l.b16 %v5602
        %v5699 = vunpack.c.l.b16 %v5603
        %v5700 = vunpack.c.l.b16 %v5604
        %v5701 = vunpack.c.l.b16 %v5605
        %v5702 = vunpack.c.l.b16 %v5606
        %v5703 = vunpack.c.l.b16 %v5607
        %v5704 = vunpack.c.l.b16 %v5608
        %v5705 = vunpack.c.l.b16 %v5609
        %v5706 = vunpack.c.l.b16 %v5610
        %v5707 = vunpack.c.l.b16 %v5611
        %v5708 = vunpack.c.l.b16 %v5612
        %v5709 = vunpack.c.l.b16 %v5613
        %v5710 = vpack.c.b16 %v5695, %v5694
        %v5711 = vpack.c.b16 %v5697, %v5696
        %v5712 = vpack.c.b16 %v5699, %v5698
        %v5713 = vpack.c.b16 %v5701, %v5700
        %v5714 = vpack.c.b16 %v5703, %v5702
        %v5715 = vpack.c.b16 %v5705, %v5704
        %v5716 = vpack.c.b16 %v5707, %v5706
        %v5717 = vpack.c.b16 %v5709, %v5708
        %5726 = vmatprep.subr.bf16.mxu0 0
        %5727 = vmatpush1.bf16.msra.mxu0 %v5710
        %5728 = vmatprep.subr.bf16.mxu0 0
        %5729 = vmatpush1.bf16.msra.mxu0 %v5711
        %5730 = vmatprep.subr.bf16.mxu0 0
        %5731 = vmatpush1.bf16.msra.mxu0 %v5712
        %5732 = vmatprep.subr.bf16.mxu0 0
        %5733 = vmatpush1.bf16.msra.mxu0 %v5713
        %5734 = vmatprep.subr.bf16.mxu0 0
        %5735 = vmatpush1.bf16.msra.mxu0 %v5714
        %5736 = vmatprep.subr.bf16.mxu0 0
        %5737 = vmatpush1.bf16.msra.mxu0 %v5715
        %5738 = vmatprep.subr.bf16.mxu0 0
        %5739 = vmatpush1.bf16.msra.mxu0 %v5716
        %5740 = vmatprep.subr.bf16.mxu0 0
        %5741 = vmatpush1.bf16.msra.mxu0 %v5717
        %5742 = vmatprep.subr.bf16.mxu0 0
        %5743 = vmatpush1.bf16.msra.mxu0 0
        %5744 = vmatprep.subr.bf16.mxu0 0
        %5745 = vmatpush1.bf16.msra.mxu0 0
        %5746 = vmatprep.subr.bf16.mxu0 0
        %5747 = vmatpush1.bf16.msra.mxu0 0
        %5748 = vmatprep.subr.bf16.mxu0 0
        %5749 = vmatpush1.bf16.msra.mxu0 0
        %5750 = vmatprep.subr.bf16.mxu0 0
        %5751 = vmatpush1.bf16.msra.mxu0 0
        %5752 = vmatprep.subr.bf16.mxu0 0
        %5753 = vmatpush1.bf16.msra.mxu0 0
        %5754 = vmatprep.subr.bf16.mxu0 0
        %5755 = vmatpush1.bf16.msra.mxu0 0
        %5756 = vmatprep.subr.bf16.mxu0 0
        %5757 = vmatpush1.bf16.msra.mxu0 0
        %5758 = vmatprep.mubr.bf16.mxu0 0
        %5759 = vmatmul.mubr.bf16.gmra.mrb[0].mxu0 %v5646
        %v5760 = vpop.f32.mrb[0].mxu0
        %v5761 = vadd.f32 0.0, %v5760
        %v5762 = vpop.f32.mrb[0].mxu0
        %v5763 = vpop.f32.mrb[0].mxu0
        %v5764 = vadd.f32 0.0, %v5763
        %v5765 = vpop.f32.mrb[0].mxu0
        %5766 = vmatprep.mubr.bf16.mxu0 0
        %5767 = vmatmul.mubr.bf16.gmra.mrb[0].mxu0 %v5647
        %v5768 = vpop.f32.mrb[0].mxu0
        %v5769 = vadd.f32 0.0, %v5768
        %v5770 = vpop.f32.mrb[0].mxu0
        %v5771 = vpop.f32.mrb[0].mxu0
        %v5772 = vadd.f32 0.0, %v5771
        %v5773 = vpop.f32.mrb[0].mxu0
        %5774 = vmatprep.mubr.bf16.mxu0 0
        %5775 = vmatmul.mubr.bf16.gmra.mrb[0].mxu0 %v5648
        %v5776 = vpop.f32.mrb[0].mxu0
        %v5777 = vadd.f32 0.0, %v5776
        %v5778 = vpop.f32.mrb[0].mxu0
        %v5779 = vpop.f32.mrb[0].mxu0
        %v5780 = vadd.f32 0.0, %v5779
        %v5781 = vpop.f32.mrb[0].mxu0
        %5782 = vmatprep.mubr.bf16.mxu0 0
        %5783 = vmatmul.mubr.bf16.gmra.mrb[0].mxu0 %v5649
        %v5784 = vpop.f32.mrb[0].mxu0
        %v5785 = vadd.f32 0.0, %v5784
        %v5786 = vpop.f32.mrb[0].mxu0
        %v5787 = vpop.f32.mrb[0].mxu0
        %v5788 = vadd.f32 0.0, %v5787
        %v5789 = vpop.f32.mrb[0].mxu0
        %5790 = vmatprep.mubr.bf16.mxu0 0
        %5791 = vmatmul.mubr.bf16.gmra.mrb[0].mxu0 %v5650
        %v5792 = vpop.f32.mrb[0].mxu0
        %v5793 = vadd.f32 0.0, %v5792
        %v5794 = vpop.f32.mrb[0].mxu0
        %v5795 = vpop.f32.mrb[0].mxu0
        %v5796 = vadd.f32 0.0, %v5795
        %v5797 = vpop.f32.mrb[0].mxu0
        %5798 = vmatprep.mubr.bf16.mxu0 0
        %5799 = vmatmul.mubr.bf16.gmra.mrb[0].mxu0 %v5651
        %v5800 = vpop.f32.mrb[0].mxu0
        %v5801 = vadd.f32 0.0, %v5800
        %v5802 = vpop.f32.mrb[0].mxu0
        %v5803 = vpop.f32.mrb[0].mxu0
        %v5804 = vadd.f32 0.0, %v5803
        %v5805 = vpop.f32.mrb[0].mxu0
        %5806 = vmatprep.mubr.bf16.mxu0 0
        %5807 = vmatmul.mubr.bf16.gmra.mrb[0].mxu0 %v5652
        %v5808 = vpop.f32.mrb[0].mxu0
        %v5809 = vadd.f32 0.0, %v5808
        %v5810 = vpop.f32.mrb[0].mxu0
        %v5811 = vpop.f32.mrb[0].mxu0
        %v5812 = vadd.f32 0.0, %v5811
        %v5813 = vpop.f32.mrb[0].mxu0
        %5814 = vmatprep.mubr.bf16.mxu0 0
        %5815 = vmatmul.mubr.bf16.gmra.mrb[0].mxu0 %v5653
        %v5816 = vpop.f32.mrb[0].mxu0
        %v5817 = vadd.f32 0.0, %v5816
        %v5818 = vpop.f32.mrb[0].mxu0
        %v5819 = vpop.f32.mrb[0].mxu0
        %v5820 = vadd.f32 0.0, %v5819
        %v5821 = vpop.f32.mrb[0].mxu0
        %5822 = vmatprep.mubr.bf16.mxu0 0
        %5823 = vmatmul.mubr.bf16.gmra.mrb[0].mxu0 %v5654
        %v5824 = vpop.f32.mrb[0].mxu0
        %v5825 = vadd.f32 0.0, %v5824
        %v5826 = vpop.f32.mrb[0].mxu0
        %v5827 = vpop.f32.mrb[0].mxu0
        %v5828 = vadd.f32 0.0, %v5827
        %v5829 = vpop.f32.mrb[0].mxu0
        %5830 = vmatprep.mubr.bf16.mxu0 0
        %5831 = vmatmul.mubr.bf16.gmra.mrb[0].mxu0 %v5655
        %v5832 = vpop.f32.mrb[0].mxu0
        %v5833 = vadd.f32 0.0, %v5832
        %v5834 = vpop.f32.mrb[0].mxu0
        %v5835 = vpop.f32.mrb[0].mxu0
        %v5836 = vadd.f32 0.0, %v5835
        %v5837 = vpop.f32.mrb[0].mxu0
        %5838 = vmatprep.mubr.bf16.mxu0 0
        %5839 = vmatmul.mubr.bf16.gmra.mrb[0].mxu0 %v5656
        %v5840 = vpop.f32.mrb[0].mxu0
        %v5841 = vadd.f32 0.0, %v5840
        %v5842 = vpop.f32.mrb[0].mxu0
        %v5843 = vpop.f32.mrb[0].mxu0
        %v5844 = vadd.f32 0.0, %v5843
        %v5845 = vpop.f32.mrb[0].mxu0
        %5846 = vmatprep.mubr.bf16.mxu0 0
        %5847 = vmatmul.mubr.bf16.gmra.mrb[0].mxu0 %v5657
        %v5848 = vpop.f32.mrb[0].mxu0
        %v5849 = vadd.f32 0.0, %v5848
        %v5850 = vpop.f32.mrb[0].mxu0
        %v5851 = vpop.f32.mrb[0].mxu0
        %v5852 = vadd.f32 0.0, %v5851
        %v5853 = vpop.f32.mrb[0].mxu0
        %5854 = vmatprep.mubr.bf16.mxu0 0
        %5855 = vmatmul.mubr.bf16.gmra.mrb[0].mxu0 %v5658
        %v5856 = vpop.f32.mrb[0].mxu0
        %v5857 = vadd.f32 0.0, %v5856
        %v5858 = vpop.f32.mrb[0].mxu0
        %v5859 = vpop.f32.mrb[0].mxu0
        %v5860 = vadd.f32 0.0, %v5859
        %v5861 = vpop.f32.mrb[0].mxu0
        %5862 = vmatprep.mubr.bf16.mxu0 0
        %5863 = vmatmul.mubr.bf16.gmra.mrb[0].mxu0 %v5659
        %v5864 = vpop.f32.mrb[0].mxu0
        %v5865 = vadd.f32 0.0, %v5864
        %v5866 = vpop.f32.mrb[0].mxu0
        %v5867 = vpop.f32.mrb[0].mxu0
        %v5868 = vadd.f32 0.0, %v5867
        %v5869 = vpop.f32.mrb[0].mxu0
        %5870 = vmatprep.mubr.bf16.mxu0 0
        %5871 = vmatmul.mubr.bf16.gmra.mrb[0].mxu0 %v5660
        %v5872 = vpop.f32.mrb[0].mxu0
        %v5873 = vadd.f32 0.0, %v5872
        %v5874 = vpop.f32.mrb[0].mxu0
        %v5875 = vpop.f32.mrb[0].mxu0
        %v5876 = vadd.f32 0.0, %v5875
        %v5877 = vpop.f32.mrb[0].mxu0
        %5878 = vmatprep.mubr.bf16.mxu0 0
        %5879 = vmatmul.mubr.bf16.gmra.mrb[0].mxu0 %v5661
        %v5880 = vpop.f32.mrb[0].mxu0
        %v5881 = vadd.f32 0.0, %v5880
        %v5882 = vpop.f32.mrb[0].mxu0
        %v5883 = vpop.f32.mrb[0].mxu0
        %v5884 = vadd.f32 0.0, %v5883
        %v5885 = vpop.f32.mrb[0].mxu0
        %5886 = vdwg.mxu0
        %v5887 = vadd.f32 %v5357, %v5761
        %v5888 = vadd.f32 %v5358, %v5764
        %v5889 = vadd.f32 %v5359, %v5769
        %v5890 = vadd.f32 %v5360, %v5772
        %v5891 = vadd.f32 %v5361, %v5777
        %v5892 = vadd.f32 %v5362, %v5780
        %v5893 = vadd.f32 %v5363, %v5785
        %v5894 = vadd.f32 %v5364, %v5788
        %v5895 = vadd.f32 %v5365, %v5793
        %v5896 = vadd.f32 %v5366, %v5796
        %v5897 = vadd.f32 %v5367, %v5801
        %v5898 = vadd.f32 %v5368, %v5804
        %v5899 = vadd.f32 %v5369, %v5809
        %v5900 = vadd.f32 %v5370, %v5812
        %v5901 = vadd.f32 %v5371, %v5817
        %v5902 = vadd.f32 %v5372, %v5820
        %v5903 = vadd.f32 %v5373, %v5825
        %v5904 = vadd.f32 %v5374, %v5828
        %v5905 = vadd.f32 %v5375, %v5833
        %v5906 = vadd.f32 %v5376, %v5836
        %v5907 = vadd.f32 %v5377, %v5841
        %v5908 = vadd.f32 %v5378, %v5844
        %v5909 = vadd.f32 %v5379, %v5849
        %v5910 = vadd.f32 %v5380, %v5852
        %v5911 = vadd.f32 %v5381, %v5857
        %v5912 = vadd.f32 %v5382, %v5860
        %v5913 = vadd.f32 %v5383, %v5865
        %v5914 = vadd.f32 %v5384, %v5868
        %v5915 = vadd.f32 %v5385, %v5873
        %v5916 = vadd.f32 %v5386, %v5876
        %v5917 = vadd.f32 %v5387, %v5881
        %v5918 = vadd.f32 %v5388, %v5884
        %5919 = vst [vmem:[#allocation3] sm:$0xff] %v5887
        %5920 = vst [vmem:[#allocation3 + $0x8] sm:$0xff] %v5888
        %5921 = vst [vmem:[#allocation3 + $0x10] sm:$0xff] %v5889
        %5922 = vst [vmem:[#allocation3 + $0x18] sm:$0xff] %v5890
        %5923 = vst [vmem:[#allocation3 + $0x20] sm:$0xff] %v5891
        %5924 = vst [vmem:[#allocation3 + $0x28] sm:$0xff] %v5892
        %5925 = vst [vmem:[#allocation3 + $0x30] sm:$0xff] %v5893
        %5926 = vst [vmem:[#allocation3 + $0x38] sm:$0xff] %v5894
        %5927 = vst [vmem:[#allocation3 + $0x40] sm:$0xff] %v5895
        %5928 = vst [vmem:[#allocation3 + $0x48] sm:$0xff] %v5896
        %5929 = vst [vmem:[#allocation3 + $0x50] sm:$0xff] %v5897
        %5930 = vst [vmem:[#allocation3 + $0x58] sm:$0xff] %v5898
        %5931 = vst [vmem:[#allocation3 + $0x60] sm:$0xff] %v5899
        %5932 = vst [vmem:[#allocation3 + $0x68] sm:$0xff] %v5900
        %5933 = vst [vmem:[#allocation3 + $0x70] sm:$0xff] %v5901
        %5934 = vst [vmem:[#allocation3 + $0x78] sm:$0xff] %v5902
        %5935 = vst [vmem:[#allocation3 + $0x80] sm:$0xff] %v5903
        %5936 = vst [vmem:[#allocation3 + $0x88] sm:$0xff] %v5904
        %5937 = vst [vmem:[#allocation3 + $0x90] sm:$0xff] %v5905
        %5938 = vst [vmem:[#allocation3 + $0x98] sm:$0xff] %v5906
        %5939 = vst [vmem:[#allocation3 + $0xa0] sm:$0xff] %v5907
        %5940 = vst [vmem:[#allocation3 + $0xa8] sm:$0xff] %v5908
        %5941 = vst [vmem:[#allocation3 + $0xb0] sm:$0xff] %v5909
        %5942 = vst [vmem:[#allocation3 + $0xb8] sm:$0xff] %v5910
        %5943 = vst [vmem:[#allocation3 + $0xc0] sm:$0xff] %v5911
        %5944 = vst [vmem:[#allocation3 + $0xc8] sm:$0xff] %v5912
        %5945 = vst [vmem:[#allocation3 + $0xd0] sm:$0xff] %v5913
        %5946 = vst [vmem:[#allocation3 + $0xd8] sm:$0xff] %v5914
        %5947 = vst [vmem:[#allocation3 + $0xe0] sm:$0xff] %v5915
        %5948 = vst [vmem:[#allocation3 + $0xe8] sm:$0xff] %v5916
        %5949 = vst [vmem:[#allocation3 + $0xf0] sm:$0xff] %v5917
        %5950 = vst [vmem:[#allocation3 + $0xf8] sm:$0xff] %v5918
        %v5951 = vld [vmem:[#allocation3] sm:$0xff]
        %v5952 = vld [vmem:[#allocation3 + $0x8] sm:$0xff]
        %v5953 = vld [vmem:[#allocation3 + $0x10] sm:$0xff]
        %v5954 = vld [vmem:[#allocation3 + $0x18] sm:$0xff]
        %v5955 = vld [vmem:[#allocation3 + $0x20] sm:$0xff]
        %v5956 = vld [vmem:[#allocation3 + $0x28] sm:$0xff]
        %v5957 = vld [vmem:[#allocation3 + $0x30] sm:$0xff]
        %v5958 = vld [vmem:[#allocation3 + $0x38] sm:$0xff]
        %v5959 = vld [vmem:[#allocation3 + $0x40] sm:$0xff]
        %v5960 = vld [vmem:[#allocation3 + $0x48] sm:$0xff]
        %v5961 = vld [vmem:[#allocation3 + $0x50] sm:$0xff]
        %v5962 = vld [vmem:[#allocation3 + $0x58] sm:$0xff]
        %v5963 = vld [vmem:[#allocation3 + $0x60] sm:$0xff]
        %v5964 = vld [vmem:[#allocation3 + $0x68] sm:$0xff]
        %v5965 = vld [vmem:[#allocation3 + $0x70] sm:$0xff]
        %v5966 = vld [vmem:[#allocation3 + $0x78] sm:$0xff]
        %v5967 = vld [vmem:[#allocation3 + $0x80] sm:$0xff]
        %v5968 = vld [vmem:[#allocation3 + $0x88] sm:$0xff]
        %v5969 = vld [vmem:[#allocation3 + $0x90] sm:$0xff]
        %v5970 = vld [vmem:[#allocation3 + $0x98] sm:$0xff]
        %v5971 = vld [vmem:[#allocation3 + $0xa0] sm:$0xff]
        %v5972 = vld [vmem:[#allocation3 + $0xa8] sm:$0xff]
        %v5973 = vld [vmem:[#allocation3 + $0xb0] sm:$0xff]
        %v5974 = vld [vmem:[#allocation3 + $0xb8] sm:$0xff]
        %v5975 = vld [vmem:[#allocation3 + $0xc0] sm:$0xff]
        %v5976 = vld [vmem:[#allocation3 + $0xc8] sm:$0xff]
        %v5977 = vld [vmem:[#allocation3 + $0xd0] sm:$0xff]
        %v5978 = vld [vmem:[#allocation3 + $0xd8] sm:$0xff]
        %v5979 = vld [vmem:[#allocation3 + $0xe0] sm:$0xff]
        %v5980 = vld [vmem:[#allocation3 + $0xe8] sm:$0xff]
        %v5981 = vld [vmem:[#allocation3 + $0xf0] sm:$0xff]
        %v5982 = vld [vmem:[#allocation3 + $0xf8] sm:$0xff]
        %v5983 = vld [vmem:[%s4] sm:$0x1]
        %v5985 = vlaneseq
        %v5986 = vshrl.u32 %v5985, 7
        %v5987 = vsub.s32 0, %v5986
        %v5988 = vrot.slane %v5983, %v5987
        %v5990 = vadd.f32 %v5951, %v5988
        %v5991 = vadd.f32 %v5952, %v5988
        %v5992 = vadd.f32 %v5953, %v5988
        %v5993 = vadd.f32 %v5954, %v5988
        %v5994 = vadd.f32 %v5955, %v5988
        %v5995 = vadd.f32 %v5956, %v5988
        %v5996 = vadd.f32 %v5957, %v5988
        %v5997 = vadd.f32 %v5958, %v5988
        %v5998 = vadd.f32 %v5959, %v5988
        %v5999 = vadd.f32 %v5960, %v5988
        %v6000 = vadd.f32 %v5961, %v5988
        %v6001 = vadd.f32 %v5962, %v5988
        %v6002 = vadd.f32 %v5963, %v5988
        %v6003 = vadd.f32 %v5964, %v5988
        %v6004 = vadd.f32 %v5965, %v5988
        %v6005 = vadd.f32 %v5966, %v5988
        %v6006 = vadd.f32 %v5967, %v5988
        %v6007 = vadd.f32 %v5968, %v5988
        %v6008 = vadd.f32 %v5969, %v5988
        %v6009 = vadd.f32 %v5970, %v5988
        %v6010 = vadd.f32 %v5971, %v5988
        %v6011 = vadd.f32 %v5972, %v5988
        %v6012 = vadd.f32 %v5973, %v5988
        %v6013 = vadd.f32 %v5974, %v5988
        %v6014 = vadd.f32 %v5975, %v5988
        %v6015 = vadd.f32 %v5976, %v5988
        %v6016 = vadd.f32 %v5977, %v5988
        %v6017 = vadd.f32 %v5978, %v5988
        %v6018 = vadd.f32 %v5979, %v5988
        %v6019 = vadd.f32 %v5980, %v5988
        %v6020 = vadd.f32 %v5981, %v5988
        %v6021 = vadd.f32 %v5982, %v5988
        %v6022 = vmax.f32 %v5990, 0.0
        %v6023 = vmax.f32 %v5991, 0.0
        %v6024 = vmax.f32 %v5992, 0.0
        %v6025 = vmax.f32 %v5993, 0.0
        %v6026 = vmax.f32 %v5994, 0.0
        %v6027 = vmax.f32 %v5995, 0.0
        %v6028 = vmax.f32 %v5996, 0.0
        %v6029 = vmax.f32 %v5997, 0.0
        %v6030 = vmax.f32 %v5998, 0.0
        %v6031 = vmax.f32 %v5999, 0.0
        %v6032 = vmax.f32 %v6000, 0.0
        %v6033 = vmax.f32 %v6001, 0.0
        %v6034 = vmax.f32 %v6002, 0.0
        %v6035 = vmax.f32 %v6003, 0.0
        %v6036 = vmax.f32 %v6004, 0.0
        %v6037 = vmax.f32 %v6005, 0.0
        %v6038 = vmax.f32 %v6006, 0.0
        %v6039 = vmax.f32 %v6007, 0.0
        %v6040 = vmax.f32 %v6008, 0.0
        %v6041 = vmax.f32 %v6009, 0.0
        %v6042 = vmax.f32 %v6010, 0.0
        %v6043 = vmax.f32 %v6011, 0.0
        %v6044 = vmax.f32 %v6012, 0.0
        %v6045 = vmax.f32 %v6013, 0.0
        %v6046 = vmax.f32 %v6014, 0.0
        %v6047 = vmax.f32 %v6015, 0.0
        %v6048 = vmax.f32 %v6016, 0.0
        %v6049 = vmax.f32 %v6017, 0.0
        %v6050 = vmax.f32 %v6018, 0.0
        %v6051 = vmax.f32 %v6019, 0.0
        %v6052 = vmax.f32 %v6020, 0.0
        %v6053 = vmax.f32 %v6021, 0.0
        %v6054 = vpack.c.bf16 %v6023, %v6022
        %v6055 = vpack.c.bf16 %v6025, %v6024
        %v6056 = vpack.c.bf16 %v6027, %v6026
        %v6057 = vpack.c.bf16 %v6029, %v6028
        %v6058 = vpack.c.bf16 %v6031, %v6030
        %v6059 = vpack.c.bf16 %v6033, %v6032
        %v6060 = vpack.c.bf16 %v6035, %v6034
        %v6061 = vpack.c.bf16 %v6037, %v6036
        %v6062 = vpack.c.bf16 %v6039, %v6038
        %v6063 = vpack.c.bf16 %v6041, %v6040
        %v6064 = vpack.c.bf16 %v6043, %v6042
        %v6065 = vpack.c.bf16 %v6045, %v6044
        %v6066 = vpack.c.bf16 %v6047, %v6046
        %v6067 = vpack.c.bf16 %v6049, %v6048
        %v6068 = vpack.c.bf16 %v6051, %v6050
        %v6069 = vpack.c.bf16 %v6053, %v6052
        %v6070 = vld [vmem:[#allocation12] sm:$0xf]
        %v6071 = vld [vmem:[#allocation12 + $0x4] sm:$0xf]
        %v6072 = vld [vmem:[#allocation12 + $0x8] sm:$0xf]
        %v6073 = vld [vmem:[#allocation12 + $0xc] sm:$0xf]
        %v6074 = vld [vmem:[#allocation12 + $0x10] sm:$0xf]
        %v6075 = vld [vmem:[#allocation12 + $0x14] sm:$0xf]
        %v6076 = vld [vmem:[#allocation12 + $0x18] sm:$0xf]
        %v6077 = vld [vmem:[#allocation12 + $0x1c] sm:$0xf]
        %v6078 = vld [vmem:[#allocation12 + $0x20] sm:$0xf]
        %v6079 = vld [vmem:[#allocation12 + $0x24] sm:$0xf]
        %v6080 = vld [vmem:[#allocation12 + $0x28] sm:$0xf]
        %v6081 = vld [vmem:[#allocation12 + $0x2c] sm:$0xf]
        %v6082 = vld [vmem:[#allocation12 + $0x30] sm:$0xf]
        %v6083 = vld [vmem:[#allocation12 + $0x34] sm:$0xf]
        %v6084 = vld [vmem:[#allocation12 + $0x38] sm:$0xf]
        %v6085 = vld [vmem:[#allocation12 + $0x3c] sm:$0xf]
        %v6086 = vld [vmem:[%s6] sm:$0x1]
        %v6088 = vlaneseq
        %v6089 = vshrl.u32 %v6088, 7
        %v6090 = vsub.s32 0, %v6089
        %v6091 = vrot.slane %v6086, %v6090
        %v6109 = vunpack.c.l.b16 %v6070
        %v6110 = vunpack.c.l.b16 %v6071
        %v6111 = vunpack.c.l.b16 %v6072
        %v6112 = vunpack.c.l.b16 %v6073
        %v6113 = vunpack.c.l.b16 %v6074
        %v6114 = vunpack.c.l.b16 %v6075
        %v6115 = vunpack.c.l.b16 %v6076
        %v6116 = vunpack.c.l.b16 %v6077
        %v6117 = vunpack.c.l.b16 %v6078
        %v6118 = vunpack.c.l.b16 %v6079
        %v6119 = vunpack.c.l.b16 %v6080
        %v6120 = vunpack.c.l.b16 %v6081
        %v6121 = vunpack.c.l.b16 %v6082
        %v6122 = vunpack.c.l.b16 %v6083
        %v6123 = vunpack.c.l.b16 %v6084
        %v6124 = vunpack.c.l.b16 %v6085
        %v6125 = vpack.c.b16 %v6110, %v6109
        %v6126 = vpack.c.b16 %v6112, %v6111
        %v6127 = vpack.c.b16 %v6114, %v6113
        %v6128 = vpack.c.b16 %v6116, %v6115
        %v6129 = vpack.c.b16 %v6118, %v6117
        %v6130 = vpack.c.b16 %v6120, %v6119
        %v6131 = vpack.c.b16 %v6122, %v6121
        %v6132 = vpack.c.b16 %v6124, %v6123
        %6141 = vmatprep.subr.bf16.mxu0 0
        %6142 = vmatpush1.bf16.msra.mxu0 %v6125
        %6143 = vmatprep.subr.bf16.mxu0 0
        %6144 = vmatpush1.bf16.msra.mxu0 %v6126
        %6145 = vmatprep.subr.bf16.mxu0 0
        %6146 = vmatpush1.bf16.msra.mxu0 %v6127
        %6147 = vmatprep.subr.bf16.mxu0 0
        %6148 = vmatpush1.bf16.msra.mxu0 %v6128
        %6149 = vmatprep.subr.bf16.mxu0 0
        %6150 = vmatpush1.bf16.msra.mxu0 %v6129
        %6151 = vmatprep.subr.bf16.mxu0 0
        %6152 = vmatpush1.bf16.msra.mxu0 %v6130
        %6153 = vmatprep.subr.bf16.mxu0 0
        %6154 = vmatpush1.bf16.msra.mxu0 %v6131
        %6155 = vmatprep.subr.bf16.mxu0 0
        %6156 = vmatpush1.bf16.msra.mxu0 %v6132
        %6157 = vmatprep.subr.bf16.mxu0 0
        %6158 = vmatpush1.bf16.msra.mxu0 0
        %6159 = vmatprep.subr.bf16.mxu0 0
        %6160 = vmatpush1.bf16.msra.mxu0 0
        %6161 = vmatprep.subr.bf16.mxu0 0
        %6162 = vmatpush1.bf16.msra.mxu0 0
        %6163 = vmatprep.subr.bf16.mxu0 0
        %6164 = vmatpush1.bf16.msra.mxu0 0
        %6165 = vmatprep.subr.bf16.mxu0 0
        %6166 = vmatpush1.bf16.msra.mxu0 0
        %6167 = vmatprep.subr.bf16.mxu0 0
        %6168 = vmatpush1.bf16.msra.mxu0 0
        %6169 = vmatprep.subr.bf16.mxu0 0
        %6170 = vmatpush1.bf16.msra.mxu0 0
        %6171 = vmatprep.subr.bf16.mxu0 0
        %6172 = vmatpush1.bf16.msra.mxu0 0
        %6173 = vmatprep.mubr.bf16.mxu0 0
        %6174 = vmatmul.mubr.bf16.gmra.mrb[0].mxu0 %v6054
        %v6175 = vpop.f32.mrb[0].mxu0
        %v6176 = vadd.f32 %v6091, %v6175
        %v6177 = vpop.f32.mrb[0].mxu0
        %v6178 = vpop.f32.mrb[0].mxu0
        %v6179 = vadd.f32 %v6091, %v6178
        %v6180 = vpop.f32.mrb[0].mxu0
        %6181 = vmatprep.mubr.bf16.mxu0 0
        %6182 = vmatmul.mubr.bf16.gmra.mrb[0].mxu0 %v6055
        %v6183 = vpop.f32.mrb[0].mxu0
        %v6184 = vadd.f32 %v6091, %v6183
        %v6185 = vpop.f32.mrb[0].mxu0
        %v6186 = vpop.f32.mrb[0].mxu0
        %v6187 = vadd.f32 %v6091, %v6186
        %v6188 = vpop.f32.mrb[0].mxu0
        %6189 = vmatprep.mubr.bf16.mxu0 0
        %6190 = vmatmul.mubr.bf16.gmra.mrb[0].mxu0 %v6056
        %v6191 = vpop.f32.mrb[0].mxu0
        %v6192 = vadd.f32 %v6091, %v6191
        %v6193 = vpop.f32.mrb[0].mxu0
        %v6194 = vpop.f32.mrb[0].mxu0
        %v6195 = vadd.f32 %v6091, %v6194
        %v6196 = vpop.f32.mrb[0].mxu0
        %6197 = vmatprep.mubr.bf16.mxu0 0
        %6198 = vmatmul.mubr.bf16.gmra.mrb[0].mxu0 %v6057
        %v6199 = vpop.f32.mrb[0].mxu0
        %v6200 = vadd.f32 %v6091, %v6199
        %v6201 = vpop.f32.mrb[0].mxu0
        %v6202 = vpop.f32.mrb[0].mxu0
        %v6203 = vadd.f32 %v6091, %v6202
        %v6204 = vpop.f32.mrb[0].mxu0
        %6205 = vmatprep.mubr.bf16.mxu0 0
        %6206 = vmatmul.mubr.bf16.gmra.mrb[0].mxu0 %v6058
        %v6207 = vpop.f32.mrb[0].mxu0
        %v6208 = vadd.f32 %v6091, %v6207
        %v6209 = vpop.f32.mrb[0].mxu0
        %v6210 = vpop.f32.mrb[0].mxu0
        %v6211 = vadd.f32 %v6091, %v6210
        %v6212 = vpop.f32.mrb[0].mxu0
        %6213 = vmatprep.mubr.bf16.mxu0 0
        %6214 = vmatmul.mubr.bf16.gmra.mrb[0].mxu0 %v6059
        %v6215 = vpop.f32.mrb[0].mxu0
        %v6216 = vadd.f32 %v6091, %v6215
        %v6217 = vpop.f32.mrb[0].mxu0
        %v6218 = vpop.f32.mrb[0].mxu0
        %v6219 = vadd.f32 %v6091, %v6218
        %v6220 = vpop.f32.mrb[0].mxu0
        %6221 = vmatprep.mubr.bf16.mxu0 0
        %6222 = vmatmul.mubr.bf16.gmra.mrb[0].mxu0 %v6060
        %v6223 = vpop.f32.mrb[0].mxu0
        %v6224 = vadd.f32 %v6091, %v6223
        %v6225 = vpop.f32.mrb[0].mxu0
        %v6226 = vpop.f32.mrb[0].mxu0
        %v6227 = vadd.f32 %v6091, %v6226
        %v6228 = vpop.f32.mrb[0].mxu0
        %6229 = vmatprep.mubr.bf16.mxu0 0
        %6230 = vmatmul.mubr.bf16.gmra.mrb[0].mxu0 %v6061
        %v6231 = vpop.f32.mrb[0].mxu0
        %v6232 = vadd.f32 %v6091, %v6231
        %v6233 = vpop.f32.mrb[0].mxu0
        %v6234 = vpop.f32.mrb[0].mxu0
        %v6235 = vadd.f32 %v6091, %v6234
        %v6236 = vpop.f32.mrb[0].mxu0
        %6237 = vmatprep.mubr.bf16.mxu0 0
        %6238 = vmatmul.mubr.bf16.gmra.mrb[0].mxu0 %v6062
        %v6239 = vpop.f32.mrb[0].mxu0
        %v6240 = vadd.f32 %v6091, %v6239
        %v6241 = vpop.f32.mrb[0].mxu0
        %v6242 = vpop.f32.mrb[0].mxu0
        %v6243 = vadd.f32 %v6091, %v6242
        %v6244 = vpop.f32.mrb[0].mxu0
        %6245 = vmatprep.mubr.bf16.mxu0 0
        %6246 = vmatmul.mubr.bf16.gmra.mrb[0].mxu0 %v6063
        %v6247 = vpop.f32.mrb[0].mxu0
        %v6248 = vadd.f32 %v6091, %v6247
        %v6249 = vpop.f32.mrb[0].mxu0
        %v6250 = vpop.f32.mrb[0].mxu0
        %v6251 = vadd.f32 %v6091, %v6250
        %v6252 = vpop.f32.mrb[0].mxu0
        %6253 = vmatprep.mubr.bf16.mxu0 0
        %6254 = vmatmul.mubr.bf16.gmra.mrb[0].mxu0 %v6064
        %v6255 = vpop.f32.mrb[0].mxu0
        %v6256 = vadd.f32 %v6091, %v6255
        %v6257 = vpop.f32.mrb[0].mxu0
        %v6258 = vpop.f32.mrb[0].mxu0
        %v6259 = vadd.f32 %v6091, %v6258
        %v6260 = vpop.f32.mrb[0].mxu0
        %6261 = vmatprep.mubr.bf16.mxu0 0
        %6262 = vmatmul.mubr.bf16.gmra.mrb[0].mxu0 %v6065
        %v6263 = vpop.f32.mrb[0].mxu0
        %v6264 = vadd.f32 %v6091, %v6263
        %v6265 = vpop.f32.mrb[0].mxu0
        %v6266 = vpop.f32.mrb[0].mxu0
        %v6267 = vadd.f32 %v6091, %v6266
        %v6268 = vpop.f32.mrb[0].mxu0
        %6269 = vmatprep.mubr.bf16.mxu0 0
        %6270 = vmatmul.mubr.bf16.gmra.mrb[0].mxu0 %v6066
        %v6271 = vpop.f32.mrb[0].mxu0
        %v6272 = vadd.f32 %v6091, %v6271
        %v6273 = vpop.f32.mrb[0].mxu0
        %v6274 = vpop.f32.mrb[0].mxu0
        %v6275 = vadd.f32 %v6091, %v6274
        %v6276 = vpop.f32.mrb[0].mxu0
        %6277 = vmatprep.mubr.bf16.mxu0 0
        %6278 = vmatmul.mubr.bf16.gmra.mrb[0].mxu0 %v6067
        %v6279 = vpop.f32.mrb[0].mxu0
        %v6280 = vadd.f32 %v6091, %v6279
        %v6281 = vpop.f32.mrb[0].mxu0
        %v6282 = vpop.f32.mrb[0].mxu0
        %v6283 = vadd.f32 %v6091, %v6282
        %v6284 = vpop.f32.mrb[0].mxu0
        %6285 = vmatprep.mubr.bf16.mxu0 0
        %6286 = vmatmul.mubr.bf16.gmra.mrb[0].mxu0 %v6068
        %v6287 = vpop.f32.mrb[0].mxu0
        %v6288 = vadd.f32 %v6091, %v6287
        %v6289 = vpop.f32.mrb[0].mxu0
        %v6290 = vpop.f32.mrb[0].mxu0
        %v6291 = vadd.f32 %v6091, %v6290
        %v6292 = vpop.f32.mrb[0].mxu0
        %6293 = vmatprep.mubr.bf16.mxu0 0
        %6294 = vmatmul.mubr.bf16.gmra.mrb[0].mxu0 %v6069
        %v6295 = vpop.f32.mrb[0].mxu0
        %v6296 = vadd.f32 %v6091, %v6295
        %v6297 = vpop.f32.mrb[0].mxu0
        %v6298 = vpop.f32.mrb[0].mxu0
        %v6299 = vadd.f32 %v6091, %v6298
        %v6300 = vpop.f32.mrb[0].mxu0
        %6301 = vdwg.mxu0
        %v6302 = vadd.f32 %v6176, %v6179
        %v6303 = vadd.f32 %v6302, %v6184
        %v6304 = vadd.f32 %v6303, %v6187
        %v6305 = vadd.f32 %v6304, %v6192
        %v6306 = vadd.f32 %v6305, %v6195
        %v6307 = vadd.f32 %v6306, %v6200
        %v6308 = vadd.f32 %v6307, %v6203
        %v6309 = vadd.f32 %v6308, %v6208
        %v6310 = vadd.f32 %v6309, %v6211
        %v6311 = vadd.f32 %v6310, %v6216
        %v6312 = vadd.f32 %v6311, %v6219
        %v6313 = vadd.f32 %v6312, %v6224
        %v6314 = vadd.f32 %v6313, %v6227
        %v6315 = vadd.f32 %v6314, %v6232
        %v6316 = vadd.f32 %v6315, %v6235
        %v6317 = vadd.f32 %v6316, %v6240
        %v6318 = vadd.f32 %v6317, %v6243
        %v6319 = vadd.f32 %v6318, %v6248
        %v6320 = vadd.f32 %v6319, %v6251
        %v6321 = vadd.f32 %v6320, %v6256
        %v6322 = vadd.f32 %v6321, %v6259
        %v6323 = vadd.f32 %v6322, %v6264
        %v6324 = vadd.f32 %v6323, %v6267
        %v6325 = vadd.f32 %v6324, %v6272
        %v6326 = vadd.f32 %v6325, %v6275
        %v6327 = vadd.f32 %v6326, %v6280
        %v6328 = vadd.f32 %v6327, %v6283
        %v6329 = vadd.f32 %v6328, %v6288
        %v6330 = vadd.f32 %v6329, %v6291
        %v6331 = vadd.f32 %v6330, %v6296
        %v6332 = vadd.f32 %v6331, %v6299
        %v6333 = vrot.slane %v6332, 4
        %v6334 = vadd.f32 %v6332, %v6333
        %v6335 = vrot.slane %v6334, 2
        %v6336 = vadd.f32 %v6334, %v6335
        %v6337 = vrot.slane %v6336, 1
        %v6338 = vadd.f32 %v6336, %v6337
        %v6339 = vrcp.pop 256.0
        %v6340 = vmul.f32 %v6338, %v6339
        %v6341 = vld [vmem:[%s7] sm:$0xff]
        %v6342 = vmul.f32 %v6341, %v6340
        %6343 = vadd.xlane.f32.xlu0 %v6342
        %v6344 = vpop.xlane.xlu0 %6343
        %v6345 = vld [vmem:[%s8] sm:$0xff]
        %v6346 = vadd.f32 %v6344, %v6345
        %v6347 = vmax.f32 %v6346, 0.0
        %v6348 = vld [vmem:[%s9] sm:$0xff]
        %6350 = vset.pattern.permute.xlu0 0
        %6351 = vperm.xlu0 %6350, %v6347
        %v6352 = vpop.permute.xlu0 %6351
        %v6354 = vmul.f32 %v6348, %v6352
        %v6355 = vrot.slane %v6354, 4
        %v6356 = vadd.f32 %v6354, %v6355
        %v6357 = vrot.slane %v6356, 2
        %v6358 = vadd.f32 %v6356, %v6357
        %v6359 = vrot.slane %v6358, 1
        %v6360 = vadd.f32 %v6358, %v6359
        %v6361 = vld [vmem:[%s10] sm:$0x1]
        %v6362 = vadd.f32 %v6360, %v6361
        %v6363 = vsub.f32 0.0, %v6362
        %v6364 = vmul.f32 %v6363, 1.442695
        %v6365 = vpow.pop %v6364
        %v6366 = vadd.f32 %v6365, 1.0
        %v6367 = vrcp.pop %v6366
        %v6368 = vmul.f32 1.0, %v6367
        %v6369 = vld [vmem:[%s406] sm:$0xff]
        %v6370 = vld [vmem:[%s406 + $0x8] sm:$0xff]
        %v6371 = vld [vmem:[%s406 + $0x10] sm:$0xff]
        %v6372 = vld [vmem:[%s406 + $0x18] sm:$0xff]
        %v6373 = vld [vmem:[%s406 + $0x20] sm:$0xff]
        %v6374 = vld [vmem:[%s406 + $0x28] sm:$0xff]
        %v6375 = vld [vmem:[%s406 + $0x30] sm:$0xff]
        %v6376 = vld [vmem:[%s406 + $0x38] sm:$0xff]
        %v6377 = vld [vmem:[%s406 + $0x40] sm:$0xff]
        %v6378 = vld [vmem:[%s406 + $0x48] sm:$0xff]
        %v6379 = vld [vmem:[%s406 + $0x50] sm:$0xff]
        %v6380 = vld [vmem:[%s406 + $0x58] sm:$0xff]
        %v6381 = vld [vmem:[%s406 + $0x60] sm:$0xff]
        %v6382 = vld [vmem:[%s406 + $0x68] sm:$0xff]
        %v6383 = vld [vmem:[%s406 + $0x70] sm:$0xff]
        %v6384 = vld [vmem:[%s406 + $0x78] sm:$0xff]
        %v6385 = vld [vmem:[%s406 + $0x80] sm:$0xff]
        %v6386 = vld [vmem:[%s406 + $0x88] sm:$0xff]
        %v6387 = vld [vmem:[%s406 + $0x90] sm:$0xff]
        %v6388 = vld [vmem:[%s406 + $0x98] sm:$0xff]
        %v6389 = vld [vmem:[%s406 + $0xa0] sm:$0xff]
        %v6390 = vld [vmem:[%s406 + $0xa8] sm:$0xff]
        %v6391 = vld [vmem:[%s406 + $0xb0] sm:$0xff]
        %v6392 = vld [vmem:[%s406 + $0xb8] sm:$0xff]
        %v6393 = vld [vmem:[%s406 + $0xc0] sm:$0xff]
        %v6394 = vld [vmem:[%s406 + $0xc8] sm:$0xff]
        %v6395 = vld [vmem:[%s406 + $0xd0] sm:$0xff]
        %v6396 = vld [vmem:[%s406 + $0xd8] sm:$0xff]
        %v6397 = vld [vmem:[%s406 + $0xe0] sm:$0xff]
        %v6398 = vld [vmem:[%s406 + $0xe8] sm:$0xff]
        %v6399 = vld [vmem:[%s406 + $0xf0] sm:$0xff]
        %v6400 = vld [vmem:[%s406 + $0xf8] sm:$0xff]
        %v6401 = vlaneseq
        %v6402 = vshrl.u32 %v6401, 7
        %v6403 = vsub.s32 0, %v6402
        %v6404 = vrot.slane %v6368, %v6403
        %v6405 = vmul.f32 %v6176, %v6404
        %v6406 = vmul.f32 %v6179, %v6404
        %v6407 = vmul.f32 %v6184, %v6404
        %v6408 = vmul.f32 %v6187, %v6404
        %v6409 = vmul.f32 %v6192, %v6404
        %v6410 = vmul.f32 %v6195, %v6404
        %v6411 = vmul.f32 %v6200, %v6404
        %v6412 = vmul.f32 %v6203, %v6404
        %v6413 = vmul.f32 %v6208, %v6404
        %v6414 = vmul.f32 %v6211, %v6404
        %v6415 = vmul.f32 %v6216, %v6404
        %v6416 = vmul.f32 %v6219, %v6404
        %v6417 = vmul.f32 %v6224, %v6404
        %v6418 = vmul.f32 %v6227, %v6404
        %v6419 = vmul.f32 %v6232, %v6404
        %v6420 = vmul.f32 %v6235, %v6404
        %v6421 = vmul.f32 %v6240, %v6404
        %v6422 = vmul.f32 %v6243, %v6404
        %v6423 = vmul.f32 %v6248, %v6404
        %v6424 = vmul.f32 %v6251, %v6404
        %v6425 = vmul.f32 %v6256, %v6404
        %v6426 = vmul.f32 %v6259, %v6404
        %v6427 = vmul.f32 %v6264, %v6404
        %v6428 = vmul.f32 %v6267, %v6404
        %v6429 = vmul.f32 %v6272, %v6404
        %v6430 = vmul.f32 %v6275, %v6404
        %v6431 = vmul.f32 %v6280, %v6404
        %v6432 = vmul.f32 %v6283, %v6404
        %v6433 = vmul.f32 %v6288, %v6404
        %v6434 = vmul.f32 %v6291, %v6404
        %v6435 = vmul.f32 %v6296, %v6404
        %v6436 = vmul.f32 %v6299, %v6404
        %v6437 = vadd.f32 %v6405, %v6369
        %v6438 = vadd.f32 %v6406, %v6370
        %v6439 = vadd.f32 %v6407, %v6371
        %v6440 = vadd.f32 %v6408, %v6372
        %v6441 = vadd.f32 %v6409, %v6373
        %v6442 = vadd.f32 %v6410, %v6374
        %v6443 = vadd.f32 %v6411, %v6375
        %v6444 = vadd.f32 %v6412, %v6376
        %v6445 = vadd.f32 %v6413, %v6377
        %v6446 = vadd.f32 %v6414, %v6378
        %v6447 = vadd.f32 %v6415, %v6379
        %v6448 = vadd.f32 %v6416, %v6380
        %v6449 = vadd.f32 %v6417, %v6381
        %v6450 = vadd.f32 %v6418, %v6382
        %v6451 = vadd.f32 %v6419, %v6383
        %v6452 = vadd.f32 %v6420, %v6384
        %v6453 = vadd.f32 %v6421, %v6385
        %v6454 = vadd.f32 %v6422, %v6386
        %v6455 = vadd.f32 %v6423, %v6387
        %v6456 = vadd.f32 %v6424, %v6388
        %v6457 = vadd.f32 %v6425, %v6389
        %v6458 = vadd.f32 %v6426, %v6390
        %v6459 = vadd.f32 %v6427, %v6391
        %v6460 = vadd.f32 %v6428, %v6392
        %v6461 = vadd.f32 %v6429, %v6393
        %v6462 = vadd.f32 %v6430, %v6394
        %v6463 = vadd.f32 %v6431, %v6395
        %v6464 = vadd.f32 %v6432, %v6396
        %v6465 = vadd.f32 %v6433, %v6397
        %v6466 = vadd.f32 %v6434, %v6398
        %v6467 = vadd.f32 %v6435, %v6399
        %v6468 = vadd.f32 %v6436, %v6400
        %v6469 = vmax.f32 %v6437, 0.0
        %v6470 = vmax.f32 %v6438, 0.0
        %v6471 = vmax.f32 %v6439, 0.0
        %v6472 = vmax.f32 %v6440, 0.0
        %v6473 = vmax.f32 %v6441, 0.0
        %v6474 = vmax.f32 %v6442, 0.0
        %v6475 = vmax.f32 %v6443, 0.0
        %v6476 = vmax.f32 %v6444, 0.0
        %v6477 = vmax.f32 %v6445, 0.0
        %v6478 = vmax.f32 %v6446, 0.0
        %v6479 = vmax.f32 %v6447, 0.0
        %v6480 = vmax.f32 %v6448, 0.0
        %v6481 = vmax.f32 %v6449, 0.0
        %v6482 = vmax.f32 %v6450, 0.0
        %v6483 = vmax.f32 %v6451, 0.0
        %v6484 = vmax.f32 %v6452, 0.0
        %v6485 = vmax.f32 %v6453, 0.0
        %v6486 = vmax.f32 %v6454, 0.0
        %v6487 = vmax.f32 %v6455, 0.0
        %v6488 = vmax.f32 %v6456, 0.0
        %v6489 = vmax.f32 %v6457, 0.0
        %v6490 = vmax.f32 %v6458, 0.0
        %v6491 = vmax.f32 %v6459, 0.0
        %v6492 = vmax.f32 %v6460, 0.0
        %v6493 = vmax.f32 %v6461, 0.0
        %v6494 = vmax.f32 %v6462, 0.0
        %v6495 = vmax.f32 %v6463, 0.0
        %v6496 = vmax.f32 %v6464, 0.0
        %v6497 = vmax.f32 %v6465, 0.0
        %v6498 = vmax.f32 %v6466, 0.0
        %v6499 = vmax.f32 %v6467, 0.0
        %v6500 = vmax.f32 %v6468, 0.0
        %v6501 = vpack.c.bf16 %v6470, %v6469
        %v6502 = vpack.c.bf16 %v6472, %v6471
        %v6503 = vpack.c.bf16 %v6474, %v6473
        %v6504 = vpack.c.bf16 %v6476, %v6475
        %v6505 = vpack.c.bf16 %v6478, %v6477
        %v6506 = vpack.c.bf16 %v6480, %v6479
        %v6507 = vpack.c.bf16 %v6482, %v6481
        %v6508 = vpack.c.bf16 %v6484, %v6483
        %v6509 = vpack.c.bf16 %v6486, %v6485
        %v6510 = vpack.c.bf16 %v6488, %v6487
        %v6511 = vpack.c.bf16 %v6490, %v6489
        %v6512 = vpack.c.bf16 %v6492, %v6491
        %v6513 = vpack.c.bf16 %v6494, %v6493
        %v6514 = vpack.c.bf16 %v6496, %v6495
        %v6515 = vpack.c.bf16 %v6498, %v6497
        %v6516 = vpack.c.bf16 %v6500, %v6499
        %v6533 = vunpack.c.l.b16 %v6501
        %v6534 = vunpack.c.h.b16 %v6501
        %v6535 = vunpack.c.l.b16 %v6502
        %v6536 = vunpack.c.h.b16 %v6502
        %v6537 = vunpack.c.l.b16 %v6503
        %v6538 = vunpack.c.h.b16 %v6503
        %v6539 = vunpack.c.l.b16 %v6504
        %v6540 = vunpack.c.h.b16 %v6504
        %v6541 = vunpack.c.l.b16 %v6505
        %v6542 = vunpack.c.h.b16 %v6505
        %v6543 = vunpack.c.l.b16 %v6506
        %v6544 = vunpack.c.h.b16 %v6506
        %v6545 = vunpack.c.l.b16 %v6507
        %v6546 = vunpack.c.h.b16 %v6507
        %v6547 = vunpack.c.l.b16 %v6508
        %v6548 = vunpack.c.h.b16 %v6508
        %v6549 = vunpack.c.l.b16 %v6509
        %v6550 = vunpack.c.h.b16 %v6509
        %v6551 = vunpack.c.l.b16 %v6510
        %v6552 = vunpack.c.h.b16 %v6510
        %v6553 = vunpack.c.l.b16 %v6511
        %v6554 = vunpack.c.h.b16 %v6511
        %v6555 = vunpack.c.l.b16 %v6512
        %v6556 = vunpack.c.h.b16 %v6512
        %v6557 = vunpack.c.l.b16 %v6513
        %v6558 = vunpack.c.h.b16 %v6513
        %v6559 = vunpack.c.l.b16 %v6514
        %v6560 = vunpack.c.h.b16 %v6514
        %v6561 = vunpack.c.l.b16 %v6515
        %v6562 = vunpack.c.h.b16 %v6515
        %v6563 = vunpack.c.l.b16 %v6516
        %v6564 = vunpack.c.h.b16 %v6516
        %v6565 = vpack.c.b16 %v6533, %v6533
        %v6566 = vpack.c.b16 %v6534, %v6534
        %v6567 = vpack.c.b16 %v6535, %v6535
        %v6568 = vpack.c.b16 %v6536, %v6536
        %v6569 = vpack.c.b16 %v6537, %v6537
        %v6570 = vpack.c.b16 %v6538, %v6538
        %v6571 = vpack.c.b16 %v6539, %v6539
        %v6572 = vpack.c.b16 %v6540, %v6540
        %v6573 = vpack.c.b16 %v6541, %v6541
        %v6574 = vpack.c.b16 %v6542, %v6542
        %v6575 = vpack.c.b16 %v6543, %v6543
        %v6576 = vpack.c.b16 %v6544, %v6544
        %v6577 = vpack.c.b16 %v6545, %v6545
        %v6578 = vpack.c.b16 %v6546, %v6546
        %v6579 = vpack.c.b16 %v6547, %v6547
        %v6580 = vpack.c.b16 %v6548, %v6548
        %v6581 = vpack.c.b16 %v6549, %v6549
        %v6582 = vpack.c.b16 %v6550, %v6550
        %v6583 = vpack.c.b16 %v6551, %v6551
        %v6584 = vpack.c.b16 %v6552, %v6552
        %v6585 = vpack.c.b16 %v6553, %v6553
        %v6586 = vpack.c.b16 %v6554, %v6554
        %v6587 = vpack.c.b16 %v6555, %v6555
        %v6588 = vpack.c.b16 %v6556, %v6556
        %v6589 = vpack.c.b16 %v6557, %v6557
        %v6590 = vpack.c.b16 %v6558, %v6558
        %v6591 = vpack.c.b16 %v6559, %v6559
        %v6592 = vpack.c.b16 %v6560, %v6560
        %v6593 = vpack.c.b16 %v6561, %v6561
        %v6594 = vpack.c.b16 %v6562, %v6562
        %v6595 = vpack.c.b16 %v6563, %v6563
        %v6596 = vpack.c.b16 %v6564, %v6564
        %6629 = vst [vmem:[%s460] sm:$0xf] %v6565
        %6630 = vst [vmem:[%s460 + $0x4] sm:$0xf] %v6566
        %6631 = vst [vmem:[%s460 + $0x8] sm:$0xf] %v6567
        %6632 = vst [vmem:[%s460 + $0xc] sm:$0xf] %v6568
        %6633 = vst [vmem:[%s460 + $0x10] sm:$0xf] %v6569
        %6634 = vst [vmem:[%s460 + $0x14] sm:$0xf] %v6570
        %6635 = vst [vmem:[%s460 + $0x18] sm:$0xf] %v6571
        %6636 = vst [vmem:[%s460 + $0x1c] sm:$0xf] %v6572
        %6637 = vst [vmem:[%s460 + $0x20] sm:$0xf] %v6573
        %6638 = vst [vmem:[%s460 + $0x24] sm:$0xf] %v6574
        %6639 = vst [vmem:[%s460 + $0x28] sm:$0xf] %v6575
        %6640 = vst [vmem:[%s460 + $0x2c] sm:$0xf] %v6576
        %6641 = vst [vmem:[%s460 + $0x30] sm:$0xf] %v6577
        %6642 = vst [vmem:[%s460 + $0x34] sm:$0xf] %v6578
        %6643 = vst [vmem:[%s460 + $0x38] sm:$0xf] %v6579
        %6644 = vst [vmem:[%s460 + $0x3c] sm:$0xf] %v6580
        %6645 = vst [vmem:[%s460 + $0x40] sm:$0xf] %v6581
        %6646 = vst [vmem:[%s460 + $0x44] sm:$0xf] %v6582
        %6647 = vst [vmem:[%s460 + $0x48] sm:$0xf] %v6583
        %6648 = vst [vmem:[%s460 + $0x4c] sm:$0xf] %v6584
        %6649 = vst [vmem:[%s460 + $0x50] sm:$0xf] %v6585
        %6650 = vst [vmem:[%s460 + $0x54] sm:$0xf] %v6586
        %6651 = vst [vmem:[%s460 + $0x58] sm:$0xf] %v6587
        %6652 = vst [vmem:[%s460 + $0x5c] sm:$0xf] %v6588
        %6653 = vst [vmem:[%s460 + $0x60] sm:$0xf] %v6589
        %6654 = vst [vmem:[%s460 + $0x64] sm:$0xf] %v6590
        %6655 = vst [vmem:[%s460 + $0x68] sm:$0xf] %v6591
        %6656 = vst [vmem:[%s460 + $0x6c] sm:$0xf] %v6592
        %6657 = vst [vmem:[%s460 + $0x70] sm:$0xf] %v6593
        %6658 = vst [vmem:[%s460 + $0x74] sm:$0xf] %v6594
        %6659 = vst [vmem:[%s460 + $0x78] sm:$0xf] %v6595
        %6660 = vst [vmem:[%s460 + $0x7c] sm:$0xf] %v6596
        %s6661 = sand.u32 %s274, 1
        %s6662 = scalar_lea.sflag [#allocation6], %s6661
        %s6663 = sand.u32 %s274, 1
        %s6664 = smul.addr %s6663, 128
        %s6665 = scalar_lea.vmem [#allocation13], %s6664
        // Predicated region
        $region85: #{tpu_custom_call.1} parent=63 // pred_check
          %p6666 = pneg %p284
        $region86: #{tpu_custom_call.1} parent=63 // pred_check_branch
          %6668 = sbr.rel (%p6666) target = $region88
        $region87: #{tpu_custom_call.1} parent=63 // pred_region
          %s6670 = ssub.s32 2048, 2048
          %6671 = vsyncadd %s6662, %s6670
          %s6672 = smul.addr %s30, 32
          %s6673 = smul.addr %s6672, 64
          %s6674 = scalar_lea.hbm %s11, %s6673
          %s6675 = sshll.u32 %s6665, 4
          %s6676 = int_to_ptr.vmem [resolvable:$true] %s6675
          %6681 = dma.vmem_to_hbm [thread:$0]  %s6676, 2048, %s6674, %s6662, 64, 64, 4
        $region88: #{tpu_custom_call.1} parent=63 // pred_fallthru
          _
      $region64: #{tpu_custom_call.1} parent=5 // pred_fallthru
        _
      %p6682 = scmp.le.s32.totalorder 2, %s25
      // Predicated region
      $region89: #{tpu_custom_call.1} parent=5 // pred_check
        %p6683 = pneg %p6682
      $region90: #{tpu_custom_call.1} parent=5 // pred_check_branch
        %6685 = sbr.rel (%p6683) target = $region92
      $region91: #{tpu_custom_call.1} parent=5 // pred_region
        %s6686 = ssub.s32 %s25, 2
        // Predicated region
        $region93: #{tpu_custom_call.1} parent=91 // pred_check
          %p6687 = pneg %p290
        $region94: #{tpu_custom_call.1} parent=91 // pred_check_branch
          %6689 = sbr.rel (%p6687) target = $region96
        $region95: #{tpu_custom_call.1} parent=91 // pred_region
          %s6690 = sand.u32 %s275, 1
          %s6691 = scalar_lea.sflag [#allocation6], %s6690
          %s6692 = sand.u32 %s275, 1
          %s6693 = smul.addr %s6692, 128
          %s6694 = scalar_lea.vmem [#allocation13], %s6693
          %6695 = dma.done %s6691, 2048
        $region96: #{tpu_custom_call.1} parent=91 // pred_fallthru
          _
      $region92: #{tpu_custom_call.1} parent=5 // pred_fallthru
        _
    $region6: #{tpu_custom_call.1} parent=1 // loop_footer
      %s29 = sadd.s32 1, %s25
    $region7: #{tpu_custom_call.1} parent=1 // loop_footer_branch
      %24 = sbr.rel target = $region3
    $region8: #{tpu_custom_call.1} parent=1 // loop_exit
      _
    %6696 = vsyncpa [#allocation5], 1
    %s6697 = scalar_lea.sflag [#allocation5], 1
    %6698 = vsyncpa %s6697, 1
    %6699 = vsyncpa [#allocation8], 1
    %6700 = vsyncpa [#allocation11], 1
    %6701 = vsyncpa [#allocation6], 1
    %s6702 = scalar_lea.sflag [#allocation6], 1
    %6703 = vsyncpa %s6702, 1

</llo_original>
